<compile_context>
chip_gen: v6e
topology: v6e:2x2x1
jax: 0.10.0
libtpu: 0.0.40
codegen_flags: <defaults>
</compile_context>

<pallas_src>
import math

import jax
import jax.numpy as jnp
import numpy as np
from jax.experimental import pallas as pl
from jax.experimental.pallas import tpu as pltpu


# ----------------------------------------------------------------------------
# Glue: T5 relative-position bucketing (integer math, done once in plain JAX)
# ----------------------------------------------------------------------------
def _t5_rel_pos_bucket(rel_pos, num_buckets=32, max_distance=128):
    # bidirectional bucketing (encoder)
    num_buckets //= 2
    buckets = (rel_pos > 0).astype(jnp.int32) * num_buckets
    rel_pos = jnp.abs(rel_pos)
    max_exact = num_buckets // 2
    is_small = rel_pos < max_exact
    rp = jnp.maximum(rel_pos, 1).astype(jnp.float32)
    large = max_exact + (
        jnp.log(rp / max_exact)
        / math.log(max_distance / max_exact)
        * (num_buckets - max_exact)
    ).astype(jnp.int32)
    large = jnp.minimum(large, num_buckets - 1)
    return buckets + jnp.where(is_small, rel_pos, large)


# ----------------------------------------------------------------------------
# Pallas kernel: ONE encoder layer for a tile of TP passages per grid step.
#   grid = (passage_tiles, n_layers); hidden state is resident in out_ref (f32).
# ----------------------------------------------------------------------------
def _encoder_layer_kernel(x_ref, mask_ref, posb_ref,
                          ln1_ref, wqkv_ref, wo_ref,
                          ln2_ref, wi_ref, wof_ref, lnf_ref,
                          out_ref):
    layer = pl.program_id(1)
    n_layers = pl.num_programs(1)

    TP, _, L = mask_ref.shape          # (TP, 1, L)
    H = posb_ref.shape[0]              # (H, L, L)
    Hdh, D = wo_ref.shape[1], wo_ref.shape[2]
    dh = Hdh // H

    def rms_norm(v, w):                # T5 LayerNorm: no mean subtraction, no bias
        var = jnp.mean(v * v, axis=-1, keepdims=True)
        return v * jax.lax.rsqrt(var + 1e-6) * w

    # Initialize the resident f32 hidden state (output block) with the bf16 embeddings.
    @pl.when(layer == 0)
    def _():
        out_ref[...] = x_ref[...].astype(jnp.float32)

    x = out_ref[...]                                            # (TP*L, D) f32

    # ----- self attention block -----
    h = rms_norm(x, ln1_ref[0]).astype(jnp.bfloat16)            # (TP*L, D)
    # fused QKV projection: one full-width MXU matmul
    qkv = jnp.dot(h, wqkv_ref[0], preferred_element_type=jnp.float32)   # (TP*L, 3*Hdh)

    # Single relayout: (TP*L, 3*Hdh) -> (TP, 3H, L, dh); then leading-dim-only
    # reshapes/slices (free) give q/k/v batched over the (TP*H) dim.
    qkv = qkv.astype(jnp.bfloat16).reshape(TP, L, 3 * H, dh)
    qkv = jnp.transpose(qkv, (0, 2, 1, 3))                      # (TP, 3H, L, dh)
    qkv = qkv.reshape(TP, 3, H, L, dh)
    q = qkv[:, 0].reshape(TP * H, L, dh)
    k = qkv[:, 1].reshape(TP * H, L, dh)
    v = qkv[:, 2].reshape(TP * H, L, dh)

    # T5 does NOT scale scores by 1/sqrt(d_head); one batched QK^T over (TP*H).
    s = jax.lax.dot_general(q, k, (((2,), (2,)), ((0,), (0,))),
                            preferred_element_type=jnp.float32)          # (TP*H, L, L)
    s = s.reshape(TP, H, L, L)
    # pos-bias stays bf16 (implicit promotion); mask broadcasts over heads/queries.
    s = s + posb_ref[...] + mask_ref[...].reshape(TP, 1, 1, L)
    s = s - jnp.max(s, axis=-1, keepdims=True)
    e = jnp.exp(s)
    # NOTE: assumes every (real) passage has >= 1 unmasked token.
    p = e * pl.reciprocal(jnp.sum(e, axis=-1, keepdims=True), approx=True)
    p = p.astype(jnp.bfloat16).reshape(TP * H, L, L)
    # TODO(synk): for passage_length >= 512, block the key dim with an online softmax
    # (flash-style) instead of materializing the full (TP*H, L, L) score tensor.

    ctx = jax.lax.dot_general(p, v, (((2,), (1,)), ((0,), (0,))),
                              preferred_element_type=jnp.float32)        # (TP*H, L, dh)
    # Single relayout back to row-major (TP*L, Hdh) for the output projection.
    ctx = ctx.reshape(TP, H, L, dh)
    ctx = jnp.transpose(ctx, (0, 2, 1, 3)).reshape(TP * L, Hdh)
    attn_out = jnp.dot(ctx.astype(jnp.bfloat16), wo_ref[0],
                       preferred_element_type=jnp.float32)
    x = x + attn_out

    # ----- feed forward block (ReLU) -----
    h2 = rms_norm(x, ln2_ref[0]).astype(jnp.bfloat16)
    ff = jnp.dot(h2, wi_ref[0], preferred_element_type=jnp.float32)
    ff = jnp.maximum(ff, 0.0).astype(jnp.bfloat16)
    x = x + jnp.dot(ff, wof_ref[0], preferred_element_type=jnp.float32)

    # Per-layer update of the resident output block; final RMSNorm in place at the end.
    @pl.when(layer < n_layers - 1)
    def _():
        out_ref[...] = x

    @pl.when(layer == n_layers - 1)
    def _():
        out_ref[...] = rms_norm(x, lnf_ref[0])


# ----------------------------------------------------------------------------
# Tiling / VMEM helpers
# ----------------------------------------------------------------------------
def _vmem_capacity_bytes():
    try:
        info = pltpu.get_tpu_info()
        cap = getattr(info, "vmem_capacity_bytes", None)
        if cap:
            return int(cap)
    except Exception:
        pass
    return 64 * 1024 * 1024  # conservative default (v7x per-TensorCore)


def _choose_tiling(bp, seq_len, max_rows):
    """Pick TP (passages per grid step) and a padded passage count.

    R = TP*seq_len must be a multiple of 8 (sublane rule) unless a single tile
    covers the whole padded array.  Prefers large R (fills the MXU M dim and cuts
    repeated per-layer weight streaming) while penalizing padding waste.
    """
    best, best_score = None, -1.0
    tp_cap = max(1, max_rows // max(seq_len, 1))
    for tp in range(1, tp_cap + 1):
        r = tp * seq_len
        bp_pad = -(-bp // tp) * tp
        if r % 8 != 0 and bp_pad != tp:
            continue
        score = r * bp / bp_pad            # useful rows per tile
        if score > best_score:
            best, best_score = (tp, bp_pad), score
    if best is None:
        best = (bp, bp)                    # single tile covering the whole array
    return best


# ----------------------------------------------------------------------------
# EncoderWrapper.forward equivalent
# ----------------------------------------------------------------------------
def fid_encoder_forward(params, input_ids, attention_mask, n_passages):
    bsz, total_length = input_ids.shape
    L = total_length // n_passages            # passage_length
    BP = bsz * n_passages

    # FiD reshape: (bsz, total_length) -> (bsz * n_passages, passage_length)
    input_ids = input_ids.reshape(BP, L)
    attention_mask = attention_mask.reshape(BP, L)

    embed = params["embed"]
    D = embed.shape[1]
    n_layers, _, Hdh = params["wq"].shape
    H = params["rel_bias"].shape[1]
    F = params["wi"].shape[-1]

    # Glue (plain JAX): embedding lookup (bf16), additive mask, shared rel-pos bias.
    x = embed[input_ids].astype(jnp.bfloat16).reshape(BP * L, D)
    add_mask = ((1.0 - attention_mask.astype(jnp.float32)) * -1e9).reshape(BP, 1, L)

    pos = jnp.arange(L)
    rel = pos[None, :] - pos[:, None]                                   # key - query
    buckets = _t5_rel_pos_bucket(rel)                                   # (L, L)
    pos_bias = jnp.transpose(params["rel_bias"][buckets], (2, 0, 1)).astype(jnp.bfloat16)

    # bf16 MXU operands (accumulation stays f32 inside the kernel).
    wqkv = jnp.concatenate([params["wq"], params["wk"], params["wv"]],
                           axis=-1).astype(jnp.bfloat16)                # (nl, D, 3*Hdh)
    wo = params["wo"].astype(jnp.bfloat16)
    wi = params["wi"].astype(jnp.bfloat16)
    wof = params["wof"].astype(jnp.bfloat16)

    # Generation-aware tiling: smaller tiles / tighter VMEM cap on 64-MiB parts (v7x),
    # bigger tiles / ~100 MiB cap on 128-MiB parts (v5e / v6e).
    vmem_cap = _vmem_capacity_bytes()
    max_rows = 384 if vmem_cap <= 64 * 1024 * 1024 else 1024
    TP, BP_pad = _choose_tiling(BP, L, max_rows)
    n_tiles = BP_pad // TP
    R = TP * L                                                          # rows per tile

    if BP_pad > BP:
        # Pad with extra passages; their additive mask is 0 (attend-all) so no NaNs,
        # and their output rows are sliced off below.
        x = jnp.concatenate(
            [x, jnp.zeros(((BP_pad - BP) * L, D), x.dtype)], axis=0)
        add_mask = jnp.concatenate(
            [add_mask, jnp.zeros((BP_pad - BP, 1, L), add_mask.dtype)], axis=0)

    # Per-step VMEM footprint from the real terms (double-buffered ins/outs + in-kernel
    # intermediates), then clamped below the chip's physical capacity with headroom.
    bytes_in = (R * D * 2            # x (bf16)
                + TP * L * 4         # additive mask (f32)
                + H * L * L * 2      # rel-pos bias (bf16)
                + 3 * D * 4          # ln1 / ln2 / lnf
                + D * 3 * Hdh * 2    # wqkv
                + Hdh * D * 2        # wo
                + D * F * 2          # wi
                + F * D * 2)         # wof
    bytes_out = R * D * 4
    interm = (R * D * 4 * 3                       # hidden / residual f32 temporaries
              + R * 3 * Hdh * (4 + 2 + 2)         # qkv f32 + bf16 relayouts
              + TP * H * L * L * (4 + 4 + 2)      # scores + exp (f32) + P (bf16)
              + R * Hdh * (4 + 2)                 # ctx
              + R * F * (4 + 2))                  # FFN intermediate
    vmem_needed = 2 * (bytes_in + bytes_out) + interm
    hard_cap = min(vmem_cap - 16 * 1024 * 1024, 100 * 1024 * 1024)
    vmem_limit = int(min(max(int(1.5 * vmem_needed), 32 * 1024 * 1024), hard_cap))

    out = pl.pallas_call(
        _encoder_layer_kernel,
        out_shape=jax.ShapeDtypeStruct((BP_pad * L, D), jnp.float32),
        grid_spec=pltpu.PrefetchScalarGridSpec(
            num_scalar_prefetch=0,
            grid=(n_tiles, n_layers),        # layer axis last (carries hidden state)
            in_specs=[
                pl.BlockSpec((R, D), lambda i, l: (i, 0)),            # embeddings (bf16)
                pl.BlockSpec((TP, 1, L), lambda i, l: (i, 0, 0)),     # additive mask
                pl.BlockSpec((H, L, L), lambda i, l: (0, 0, 0)),      # rel-pos bias
                pl.BlockSpec((1, 1, D), lambda i, l: (l, 0, 0)),      # ln1[l]
                pl.BlockSpec((1, D, 3 * Hdh), lambda i, l: (l, 0, 0)),  # wqkv[l]
                pl.BlockSpec((1, Hdh, D), lambda i, l: (l, 0, 0)),    # wo[l]
                pl.BlockSpec((1, 1, D), lambda i, l: (l, 0, 0)),      # ln2[l]
                pl.BlockSpec((1, D, F), lambda i, l: (l, 0, 0)),      # wi[l]
                pl.BlockSpec((1, F, D), lambda i, l: (l, 0, 0)),      # wof[l]
                pl.BlockSpec((1, 1, D), lambda i, l: (0, 0, 0)),      # final layernorm
            ],
            out_specs=pl.BlockSpec((R, D), lambda i, l: (i, 0)),      # resident over l
        ),
        compiler_params=pltpu.CompilerParams(
            dimension_semantics=("parallel", "arbitrary"),
            vmem_limit_bytes=vmem_limit,
        ),
    )(x, add_mask, pos_bias,
      params["ln1"], wqkv, wo, params["ln2"], wi, wof, params["lnf"])

    out = out[:BP * L]                                                  # drop padding
    # FiD reshape back: (bsz, n_passages * passage_length, d_model)
    last_hidden_state = out.reshape(bsz, n_passages * L, D)
    # TODO(synk): BaseModelOutput.hidden_states / .attentions (None here) not materialized.
    return last_hidden_state


# ----------------------------------------------------------------------------
# Pure-JAX reference (same math, all f32) for a sanity check
# ----------------------------------------------------------------------------
def _reference(params, input_ids, attention_mask, n_passages):
    bsz, total_length = input_ids.shape
    L = total_length // n_passages
    BP = bsz * n_passages
    ids = input_ids.reshape(BP, L)
    am = attention_mask.reshape(BP, L).astype(jnp.float32)

    D = params["embed"].shape[1]
    n_layers, _, Hdh = params["wq"].shape
    H = params["rel_bias"].shape[1]
    dh = Hdh // H

    x = params["embed"][ids]
    add_mask = ((1.0 - am) * -1e9)[:, None, None, :]                    # (BP,1,1,L)
    pos = jnp.arange(L)
    rel = pos[None, :] - pos[:, None]
    pos_bias = jnp.transpose(params["rel_bias"][_t5_rel_pos_bucket(rel)], (2, 0, 1))

    def rms(v, w):
        return v * jax.lax.rsqrt(jnp.mean(v * v, -1, keepdims=True) + 1e-6) * w

    for l in range(n_layers):
        h = rms(x, params["ln1"][l])
        q = (h @ params["wq"][l]).reshape(BP, L, H, dh).transpose(0, 2, 1, 3)
        k = (h @ params["wk"][l]).reshape(BP, L, H, dh).transpose(0, 2, 1, 3)
        v = (h @ params["wv"][l]).reshape(BP, L, H, dh).transpose(0, 2, 1, 3)
        s = jnp.einsum("bhld,bhmd->bhlm", q, k) + pos_bias[None] + add_mask
        p = jax.nn.softmax(s, axis=-1)
        ctx = jnp.einsum("bhlm,bhmd->bhld", p, v).transpose(0, 2, 1, 3).reshape(BP, L, Hdh)
        x = x + ctx @ params["wo"][l]
        h2 = rms(x, params["ln2"][l])
        x = x + jnp.maximum(h2 @ params["wi"][l], 0.0) @ params["wof"][l]
    x = rms(x, params["lnf"][0])
    return x.reshape(bsz, n_passages * L, D)


# ----------------------------------------------------------------------------
# Deterministic synthetic parameters
# ----------------------------------------------------------------------------
def init_params(key, vocab, d_model, n_heads, d_head, d_ff, n_layers, num_buckets=32):
    ks = jax.random.split(key, 8)
    s = 0.02
    Hdh = n_heads * d_head
    return dict(
        embed=jax.random.normal(ks[0], (vocab, d_model), jnp.float32) * s,
        rel_bias=jax.random.normal(ks[1], (num_buckets, n_heads), jnp.float32) * s,
        ln1=jnp.ones((n_layers, 1, d_model), jnp.float32),
        wq=jax.random.normal(ks[2], (n_layers, d_model, Hdh), jnp.float32) * s,
        wk=jax.random.normal(ks[3], (n_layers, d_model, Hdh), jnp.float32) * s,
        wv=jax.random.normal(ks[4], (n_layers, d_model, Hdh), jnp.float32) * s,
        wo=jax.random.normal(ks[5], (n_layers, Hdh, d_model), jnp.float32) * s,
        ln2=jnp.ones((n_layers, 1, d_model), jnp.float32),
        wi=jax.random.normal(ks[6], (n_layers, d_model, d_ff), jnp.float32) * s,
        wof=jax.random.normal(ks[7], (n_layers, d_ff, d_model), jnp.float32) * s,
        lnf=jnp.ones((1, 1, d_model), jnp.float32),
    )


if __name__ == "__main__":
    # Small config consistent with the FiD forward pass.
    # NOTE: real T5 deployments should use lane/sublane-friendly dims
    # (D, Hdh, 3*Hdh, F multiples of 128; R = TP*L a multiple of 8).
    bsz, n_passages, passage_length = 2, 4, 16
    total_length = n_passages * passage_length
    vocab, d_model, n_heads, d_head, d_ff, n_layers = 128, 32, 4, 8, 64, 2

    key = jax.random.PRNGKey(0)
    k_ids, k_par = jax.random.split(key)

    input_ids = jax.random.randint(k_ids, (bsz, total_length), 0, vocab, dtype=jnp.int32)
    attention_mask = jnp.ones((bsz, total_length), jnp.int32)
    attention_mask = attention_mask.at[:, total_length - 3:].set(0)  # some padding

    params = init_params(k_par, vocab, d_model, n_heads, d_head, d_ff, n_layers)

    out = fid_encoder_forward(params, input_ids, attention_mask, n_passages)
    out = jax.block_until_ready(out)

    assert out.shape == (bsz, n_passages * passage_length, d_model), out.shape

    ref = jax.block_until_ready(_reference(params, input_ids, attention_mask, n_passages))
    np.testing.assert_allclose(np.asarray(out), np.asarray(ref), rtol=5e-2, atol=5e-2)

    print("KERNEL_OK")
</pallas_src>

<mosaic_0001>
module attributes {stable_mosaic.version = 11 : i64} {
  func.func @_encoder_layer_kernel(%arg0: i32, %arg1: i32, %arg2: memref<128x32xbf16, #tpu.memory_space<vmem>>, %arg3: memref<8x1x16xf32, #tpu.memory_space<vmem>>, %arg4: memref<4x16x16xbf16, #tpu.memory_space<vmem>>, %arg5: memref<1x1x32xf32, #tpu.memory_space<vmem>>, %arg6: memref<1x32x96xbf16, #tpu.memory_space<vmem>>, %arg7: memref<1x32x32xbf16, #tpu.memory_space<vmem>>, %arg8: memref<1x1x32xf32, #tpu.memory_space<vmem>>, %arg9: memref<1x32x64xbf16, #tpu.memory_space<vmem>>, %arg10: memref<1x64x32xbf16, #tpu.memory_space<vmem>>, %arg11: memref<1x1x32xf32, #tpu.memory_space<vmem>>, %arg12: memref<128x32xf32, #tpu.memory_space<vmem>>) attributes {dimension_semantics = [#tpu.dimension_semantics<parallel>, #tpu.dimension_semantics<arbitrary>], iteration_bounds = array<i64: 1, 2>, scalar_prefetch = 0 : i64, scratch_operands = 0 : i64, tpu.core_type = #tpu.core_type<tc>, window_params = [{transform_indices = @transform_0, window_bounds = array<i64: 128, 32>}, {transform_indices = @transform_1, window_bounds = array<i64: 8, 1, 16>}, {pipeline_mode = #tpu.pipeline_mode<synchronous>, transform_indices = @transform_2, window_bounds = array<i64: 4, 16, 16>}, {transform_indices = @transform_3, window_bounds = array<i64: 1, 1, 32>}, {transform_indices = @transform_4, window_bounds = array<i64: 1, 32, 96>}, {transform_indices = @transform_5, window_bounds = array<i64: 1, 32, 32>}, {transform_indices = @transform_6, window_bounds = array<i64: 1, 1, 32>}, {transform_indices = @transform_7, window_bounds = array<i64: 1, 32, 64>}, {transform_indices = @transform_8, window_bounds = array<i64: 1, 64, 32>}, {pipeline_mode = #tpu.pipeline_mode<synchronous>, transform_indices = @transform_9, window_bounds = array<i64: 1, 1, 32>}, {transform_indices = @transform_10, window_bounds = array<i64: 128, 32>}]} {
    %c0_i32 = arith.constant 0 : i32
    %0 = arith.cmpi eq, %arg1, %c0_i32 : i32
    %1 = arith.extui %0 : i1 to i32
    %c0_i32_0 = arith.constant 0 : i32
    %2 = arith.cmpi ne, %1, %c0_i32_0 : i32
    scf.if %2 {
      %c0_43 = arith.constant 0 : index
      %c0_44 = arith.constant 0 : index
      %98 = vector.load %arg2[%c0_43, %c0_44] : memref<128x32xbf16, #tpu.memory_space<vmem>>, vector<128x32xbf16>
      %99 = arith.extf %98 : vector<128x32xbf16> to vector<128x32xf32>
      %c0_45 = arith.constant 0 : index
      %c0_46 = arith.constant 0 : index
      %100 = vector.load %arg12[%c0_45, %c0_46] : memref<128x32xf32, #tpu.memory_space<vmem>>, vector<128x32xf32>
      tpu.vector_store %arg12[%c0_45, %c0_46], %99 {strides = array<i32>} : memref<128x32xf32, #tpu.memory_space<vmem>>, vector<128x32xf32>,
    } else {
    }
    %c0 = arith.constant 0 : index
    %c0_1 = arith.constant 0 : index
    %3 = vector.load %arg12[%c0, %c0_1] : memref<128x32xf32, #tpu.memory_space<vmem>>, vector<128x32xf32>
    %c0_2 = arith.constant 0 : index
    %c0_3 = arith.constant 0 : index
    %c0_4 = arith.constant 0 : index
    %4 = vector.load %arg5[%c0_2, %c0_3, %c0_4] : memref<1x1x32xf32, #tpu.memory_space<vmem>>, vector<1x1x32xf32>
    %5 = vector.shape_cast %4 : vector<1x1x32xf32> to vector<1x32xf32>
    %6 = arith.mulf %3, %3 : vector<128x32xf32>
    %cst = arith.constant dense<0.000000e+00> : vector<128xf32>
    %7 = vector.multi_reduction <add>, %6, %cst [1] : vector<128x32xf32> to vector<128xf32>
    %8 = vector.shape_cast %7 : vector<128xf32> to vector<128x1xf32>
    %cst_5 = arith.constant 3.200000e+01 : f32
    %9 = vector.broadcast %cst_5 : f32 to vector<128x1xf32>
    %10 = arith.divf %8, %9 : vector<128x1xf32>
    %cst_6 = arith.constant 9.99999997E-7 : f32
    %11 = vector.broadcast %cst_6 : f32 to vector<128x1xf32>
    %12 = arith.addf %10, %11 : vector<128x1xf32>
    %13 = math.rsqrt %12 : vector<128x1xf32>
    %14 = vector.broadcast %13 : vector<128x1xf32> to vector<128x32xf32>
    %15 = arith.mulf %3, %14 : vector<128x32xf32>
    %16 = vector.broadcast %5 : vector<1x32xf32> to vector<128x32xf32>
    %17 = arith.mulf %15, %16 : vector<128x32xf32>
    %18 = arith.truncf %17 : vector<128x32xf32> to vector<128x32xbf16>
    %c0_7 = arith.constant 0 : index
    %c0_8 = arith.constant 0 : index
    %c0_9 = arith.constant 0 : index
    %19 = vector.load %arg6[%c0_7, %c0_8, %c0_9] : memref<1x32x96xbf16, #tpu.memory_space<vmem>>, vector<1x32x96xbf16>
    %20 = vector.shape_cast %19 : vector<1x32x96xbf16> to vector<32x96xbf16>
    %cst_10 = arith.constant dense<0.000000e+00> : vector<128x96xf32>
    %21 = tpu.matmul %18, %20, %cst_10 {dimension_numbers = #tpu.dot_dimension_numbers<[1], [0], [0], [1], [0, 0, 1, 1], [], []>} : vector<128x32xbf16>, vector<32x96xbf16>, vector<128x96xf32> -> vector<128x96xf32>
    %22 = arith.truncf %21 : vector<128x96xf32> to vector<128x96xbf16>
    %23 = vector.shape_cast %22 : vector<128x96xbf16> to vector<8x16x12x8xbf16>
    %24 = tpu.transpose %23, [0, 2, 1, 3] : vector<8x16x12x8xbf16> -> vector<8x12x16x8xbf16>
    %25 = vector.shape_cast %24 : vector<8x12x16x8xbf16> to vector<8x3x4x16x8xbf16>
    %26 = vector.extract_strided_slice %25 {offsets = [0, 0, 0, 0, 0], sizes = [8, 1, 4, 16, 8], strides = [1, 1, 1, 1, 1]} : vector<8x3x4x16x8xbf16> to vector<8x1x4x16x8xbf16>
    %27 = vector.shape_cast %26 : vector<8x1x4x16x8xbf16> to vector<8x4x16x8xbf16>
    %28 = vector.shape_cast %27 : vector<8x4x16x8xbf16> to vector<32x16x8xbf16>
    %29 = vector.extract_strided_slice %25 {offsets = [0, 1, 0, 0, 0], sizes = [8, 1, 4, 16, 8], strides = [1, 1, 1, 1, 1]} : vector<8x3x4x16x8xbf16> to vector<8x1x4x16x8xbf16>
    %30 = vector.shape_cast %29 : vector<8x1x4x16x8xbf16> to vector<8x4x16x8xbf16>
    %31 = vector.shape_cast %30 : vector<8x4x16x8xbf16> to vector<32x16x8xbf16>
    %32 = vector.extract_strided_slice %25 {offsets = [0, 2, 0, 0, 0], sizes = [8, 1, 4, 16, 8], strides = [1, 1, 1, 1, 1]} : vector<8x3x4x16x8xbf16> to vector<8x1x4x16x8xbf16>
    %33 = vector.shape_cast %32 : vector<8x1x4x16x8xbf16> to vector<8x4x16x8xbf16>
    %34 = vector.shape_cast %33 : vector<8x4x16x8xbf16> to vector<32x16x8xbf16>
    %cst_11 = arith.constant dense<0.000000e+00> : vector<32x16x16xf32>
    %35 = tpu.matmul %28, %31, %cst_11 {dimension_numbers = #tpu.dot_dimension_numbers<[2], [2], [1], [1], [0, 0, 0, 1, 1, 1], [0], [0]>} : vector<32x16x8xbf16>, vector<32x16x8xbf16>, vector<32x16x16xf32> -> vector<32x16x16xf32>
    %36 = vector.shape_cast %35 : vector<32x16x16xf32> to vector<8x4x16x16xf32>
    %c0_12 = arith.constant 0 : index
    %c0_13 = arith.constant 0 : index
    %c0_14 = arith.constant 0 : index
    %37 = vector.load %arg4[%c0_12, %c0_13, %c0_14] : memref<4x16x16xbf16, #tpu.memory_space<vmem>>, vector<4x16x16xbf16>
    %38 = arith.extf %37 : vector<4x16x16xbf16> to vector<4x16x16xf32>
    %39 = vector.shape_cast %38 : vector<4x16x16xf32> to vector<1x4x16x16xf32>
    %40 = vector.broadcast %39 : vector<1x4x16x16xf32> to vector<8x4x16x16xf32>
    %41 = arith.addf %36, %40 : vector<8x4x16x16xf32>
    %c0_15 = arith.constant 0 : index
    %c0_16 = arith.constant 0 : index
    %c0_17 = arith.constant 0 : index
    %42 = vector.load %arg3[%c0_15, %c0_16, %c0_17] : memref<8x1x16xf32, #tpu.memory_space<vmem>>, vector<8x1x16xf32>
    %43 = vector.shape_cast %42 : vector<8x1x16xf32> to vector<8x1x1x16xf32>
    %44 = vector.broadcast %43 : vector<8x1x1x16xf32> to vector<8x4x16x16xf32>
    %45 = arith.addf %41, %44 : vector<8x4x16x16xf32>
    %cst_18 = arith.constant dense<0xFF800000> : vector<8x4x16xf32>
    %46 = vector.multi_reduction <maximumf>, %45, %cst_18 [3] : vector<8x4x16x16xf32> to vector<8x4x16xf32>
    %47 = vector.shape_cast %46 : vector<8x4x16xf32> to vector<8x4x16x1xf32>
    %48 = vector.broadcast %47 : vector<8x4x16x1xf32> to vector<8x4x16x16xf32>
    %49 = arith.subf %45, %48 : vector<8x4x16x16xf32>
    %50 = math.exp %49 : vector<8x4x16x16xf32>
    %cst_19 = arith.constant dense<0.000000e+00> : vector<8x4x16xf32>
    %51 = vector.multi_reduction <add>, %50, %cst_19 [3] : vector<8x4x16x16xf32> to vector<8x4x16xf32>
    %52 = vector.shape_cast %51 : vector<8x4x16xf32> to vector<8x4x16x1xf32>
    %53 = tpu.reciprocal %52 {approx = true} : vector<8x4x16x1xf32> -> vector<8x4x16x1xf32>
    %54 = vector.broadcast %53 : vector<8x4x16x1xf32> to vector<8x4x16x16xf32>
    %55 = arith.mulf %50, %54 : vector<8x4x16x16xf32>
    %56 = arith.truncf %55 : vector<8x4x16x16xf32> to vector<8x4x16x16xbf16>
    %57 = vector.shape_cast %56 : vector<8x4x16x16xbf16> to vector<32x16x16xbf16>
    %cst_20 = arith.constant dense<0.000000e+00> : vector<32x16x8xf32>
    %58 = tpu.matmul %57, %34, %cst_20 {dimension_numbers = #tpu.dot_dimension_numbers<[2], [1], [1], [2], [0, 0, 0, 1, 1, 2], [0], [0]>} : vector<32x16x16xbf16>, vector<32x16x8xbf16>, vector<32x16x8xf32> -> vector<32x16x8xf32>
    %59 = vector.shape_cast %58 : vector<32x16x8xf32> to vector<8x4x16x8xf32>
    %60 = tpu.transpose %59, [0, 2, 1, 3] : vector<8x4x16x8xf32> -> vector<8x16x4x8xf32>
    %61 = vector.shape_cast %60 : vector<8x16x4x8xf32> to vector<128x32xf32>
    %62 = arith.truncf %61 : vector<128x32xf32> to vector<128x32xbf16>
    %c0_21 = arith.constant 0 : index
    %c0_22 = arith.constant 0 : index
    %c0_23 = arith.constant 0 : index
    %63 = vector.load %arg7[%c0_21, %c0_22, %c0_23] : memref<1x32x32xbf16, #tpu.memory_space<vmem>>, vector<1x32x32xbf16>
    %64 = vector.shape_cast %63 : vector<1x32x32xbf16> to vector<32x32xbf16>
    %cst_24 = arith.constant dense<0.000000e+00> : vector<128x32xf32>
    %65 = tpu.matmul %62, %64, %cst_24 {dimension_numbers = #tpu.dot_dimension_numbers<[1], [0], [0], [1], [0, 0, 1, 1], [], []>} : vector<128x32xbf16>, vector<32x32xbf16>, vector<128x32xf32> -> vector<128x32xf32>
    %66 = arith.addf %3, %65 : vector<128x32xf32>
    %c0_25 = arith.constant 0 : index
    %c0_26 = arith.constant 0 : index
    %c0_27 = arith.constant 0 : index
    %67 = vector.load %arg8[%c0_25, %c0_26, %c0_27] : memref<1x1x32xf32, #tpu.memory_space<vmem>>, vector<1x1x32xf32>
    %68 = vector.shape_cast %67 : vector<1x1x32xf32> to vector<1x32xf32>
    %69 = arith.mulf %66, %66 : vector<128x32xf32>
    %cst_28 = arith.constant dense<0.000000e+00> : vector<128xf32>
    %70 = vector.multi_reduction <add>, %69, %cst_28 [1] : vector<128x32xf32> to vector<128xf32>
    %71 = vector.shape_cast %70 : vector<128xf32> to vector<128x1xf32>
    %cst_29 = arith.constant 3.200000e+01 : f32
    %72 = vector.broadcast %cst_29 : f32 to vector<128x1xf32>
    %73 = arith.divf %71, %72 : vector<128x1xf32>
    %cst_30 = arith.constant 9.99999997E-7 : f32
    %74 = vector.broadcast %cst_30 : f32 to vector<128x1xf32>
    %75 = arith.addf %73, %74 : vector<128x1xf32>
    %76 = math.rsqrt %75 : vector<128x1xf32>
    %77 = vector.broadcast %76 : vector<128x1xf32> to vector<128x32xf32>
    %78 = arith.mulf %66, %77 : vector<128x32xf32>
    %79 = vector.broadcast %68 : vector<1x32xf32> to vector<128x32xf32>
    %80 = arith.mulf %78, %79 : vector<128x32xf32>
    %81 = arith.truncf %80 : vector<128x32xf32> to vector<128x32xbf16>
    %c0_31 = arith.constant 0 : index
    %c0_32 = arith.constant 0 : index
    %c0_33 = arith.constant 0 : index
    %82 = vector.load %arg9[%c0_31, %c0_32, %c0_33] : memref<1x32x64xbf16, #tpu.memory_space<vmem>>, vector<1x32x64xbf16>
    %83 = vector.shape_cast %82 : vector<1x32x64xbf16> to vector<32x64xbf16>
    %cst_34 = arith.constant dense<0.000000e+00> : vector<128x64xf32>
    %84 = tpu.matmul %81, %83, %cst_34 {dimension_numbers = #tpu.dot_dimension_numbers<[1], [0], [0], [1], [0, 0, 1, 1], [], []>} : vector<128x32xbf16>, vector<32x64xbf16>, vector<128x64xf32> -> vector<128x64xf32>
    %cst_35 = arith.constant 0.000000e+00 : f32
    %85 = vector.broadcast %cst_35 : f32 to vector<128x64xf32>
    %86 = arith.maximumf %84, %85 : vector<128x64xf32>
    %87 = arith.truncf %86 : vector<128x64xf32> to vector<128x64xbf16>
    %c0_36 = arith.constant 0 : index
    %c0_37 = arith.constant 0 : index
    %c0_38 = arith.constant 0 : index
    %88 = vector.load %arg10[%c0_36, %c0_37, %c0_38] : memref<1x64x32xbf16, #tpu.memory_space<vmem>>, vector<1x64x32xbf16>
    %89 = vector.shape_cast %88 : vector<1x64x32xbf16> to vector<64x32xbf16>
    %cst_39 = arith.constant dense<0.000000e+00> : vector<128x32xf32>
    %90 = tpu.matmul %87, %89, %cst_39 {dimension_numbers = #tpu.dot_dimension_numbers<[1], [0], [0], [1], [0, 0, 1, 1], [], []>} : vector<128x64xbf16>, vector<64x32xbf16>, vector<128x32xf32> -> vector<128x32xf32>
    %91 = arith.addf %66, %90 : vector<128x32xf32>
    %c1_i32 = arith.constant 1 : i32
    %92 = arith.cmpi slt, %arg1, %c1_i32 : i32
    %93 = arith.extui %92 : i1 to i32
    %c0_i32_40 = arith.constant 0 : i32
    %94 = arith.cmpi ne, %93, %c0_i32_40 : i32
    scf.if %94 {
      %c0_43 = arith.constant 0 : index
      %c0_44 = arith.constant 0 : index
      %98 = vector.load %arg12[%c0_43, %c0_44] : memref<128x32xf32, #tpu.memory_space<vmem>>, vector<128x32xf32>
      tpu.vector_store %arg12[%c0_43, %c0_44], %91 {strides = array<i32>} : memref<128x32xf32, #tpu.memory_space<vmem>>, vector<128x32xf32>,
    } else {
    }
    %c1_i32_41 = arith.constant 1 : i32
    %95 = arith.cmpi eq, %arg1, %c1_i32_41 : i32
    %96 = arith.extui %95 : i1 to i32
    %c0_i32_42 = arith.constant 0 : i32
    %97 = arith.cmpi ne, %96, %c0_i32_42 : i32
    scf.if %97 {
      %c0_43 = arith.constant 0 : index
      %c0_44 = arith.constant 0 : index
      %c0_45 = arith.constant 0 : index
      %98 = vector.load %arg11[%c0_43, %c0_44, %c0_45] : memref<1x1x32xf32, #tpu.memory_space<vmem>>, vector<1x1x32xf32>
      %99 = vector.shape_cast %98 : vector<1x1x32xf32> to vector<1x32xf32>
      %100 = arith.mulf %91, %91 : vector<128x32xf32>
      %cst_46 = arith.constant dense<0.000000e+00> : vector<128xf32>
      %101 = vector.multi_reduction <add>, %100, %cst_46 [1] : vector<128x32xf32> to vector<128xf32>
      %102 = vector.shape_cast %101 : vector<128xf32> to vector<128x1xf32>
      %cst_47 = arith.constant 3.200000e+01 : f32
      %103 = vector.broadcast %cst_47 : f32 to vector<128x1xf32>
      %104 = arith.divf %102, %103 : vector<128x1xf32>
      %cst_48 = arith.constant 9.99999997E-7 : f32
      %105 = vector.broadcast %cst_48 : f32 to vector<128x1xf32>
      %106 = arith.addf %104, %105 : vector<128x1xf32>
      %107 = math.rsqrt %106 : vector<128x1xf32>
      %108 = vector.broadcast %107 : vector<128x1xf32> to vector<128x32xf32>
      %109 = arith.mulf %91, %108 : vector<128x32xf32>
      %110 = vector.broadcast %99 : vector<1x32xf32> to vector<128x32xf32>
      %111 = arith.mulf %109, %110 : vector<128x32xf32>
      %c0_49 = arith.constant 0 : index
      %c0_50 = arith.constant 0 : index
      %112 = vector.load %arg12[%c0_49, %c0_50] : memref<128x32xf32, #tpu.memory_space<vmem>>, vector<128x32xf32>
      tpu.vector_store %arg12[%c0_49, %c0_50], %111 {strides = array<i32>} : memref<128x32xf32, #tpu.memory_space<vmem>>, vector<128x32xf32>,
    } else {
    }
    return
  }
  func.func @transform_0(%arg0: i32, %arg1: i32) -> (i32, i32) {
    %c0_i32 = arith.constant 0 : i32
    %c0_i32_0 = arith.constant 0 : i32
    return %arg0, %c0_i32 : i32, i32
  }
  func.func @transform_1(%arg0: i32, %arg1: i32) -> (i32, i32, i32) {
    %c0_i32 = arith.constant 0 : i32
    %c0_i32_0 = arith.constant 0 : i32
    %c0_i32_1 = arith.constant 0 : i32
    return %arg0, %c0_i32, %c0_i32_0 : i32, i32, i32
  }
  func.func @transform_2(%arg0: i32, %arg1: i32) -> (i32, i32, i32) {
    %c0_i32 = arith.constant 0 : i32
    %c0_i32_0 = arith.constant 0 : i32
    %c0_i32_1 = arith.constant 0 : i32
    %c0_i32_2 = arith.constant 0 : i32
    return %c0_i32, %c0_i32_0, %c0_i32_1 : i32, i32, i32
  }
  func.func @transform_3(%arg0: i32, %arg1: i32) -> (i32, i32, i32) {
    %c0_i32 = arith.constant 0 : i32
    %c0_i32_0 = arith.constant 0 : i32
    %c0_i32_1 = arith.constant 0 : i32
    return %arg1, %c0_i32, %c0_i32_0 : i32, i32, i32
  }
  func.func @transform_4(%arg0: i32, %arg1: i32) -> (i32, i32, i32) {
    %c0_i32 = arith.constant 0 : i32
    %c0_i32_0 = arith.constant 0 : i32
    %c0_i32_1 = arith.constant 0 : i32
    return %arg1, %c0_i32, %c0_i32_0 : i32, i32, i32
  }
  func.func @transform_5(%arg0: i32, %arg1: i32) -> (i32, i32, i32) {
    %c0_i32 = arith.constant 0 : i32
    %c0_i32_0 = arith.constant 0 : i32
    %c0_i32_1 = arith.constant 0 : i32
    return %arg1, %c0_i32, %c0_i32_0 : i32, i32, i32
  }
  func.func @transform_6(%arg0: i32, %arg1: i32) -> (i32, i32, i32) {
    %c0_i32 = arith.constant 0 : i32
    %c0_i32_0 = arith.constant 0 : i32
    %c0_i32_1 = arith.constant 0 : i32
    return %arg1, %c0_i32, %c0_i32_0 : i32, i32, i32
  }
  func.func @transform_7(%arg0: i32, %arg1: i32) -> (i32, i32, i32) {
    %c0_i32 = arith.constant 0 : i32
    %c0_i32_0 = arith.constant 0 : i32
    %c0_i32_1 = arith.constant 0 : i32
    return %arg1, %c0_i32, %c0_i32_0 : i32, i32, i32
  }
  func.func @transform_8(%arg0: i32, %arg1: i32) -> (i32, i32, i32) {
    %c0_i32 = arith.constant 0 : i32
    %c0_i32_0 = arith.constant 0 : i32
    %c0_i32_1 = arith.constant 0 : i32
    return %arg1, %c0_i32, %c0_i32_0 : i32, i32, i32
  }
  func.func @transform_9(%arg0: i32, %arg1: i32) -> (i32, i32, i32) {
    %c0_i32 = arith.constant 0 : i32
    %c0_i32_0 = arith.constant 0 : i32
    %c0_i32_1 = arith.constant 0 : i32
    %c0_i32_2 = arith.constant 0 : i32
    return %c0_i32, %c0_i32_0, %c0_i32_1 : i32, i32, i32
  }
  func.func @transform_10(%arg0: i32, %arg1: i32) -> (i32, i32) {
    %c0_i32 = arith.constant 0 : i32
    %c0_i32_0 = arith.constant 0 : i32
    return %arg0, %c0_i32 : i32, i32
  }
}

</mosaic_0001>

<llo_original>
// kernel: tpu_custom_call.1
$region0: #{tpu_custom_call.1}
  #allocation0 [shape = 'u32[]', space=smem, size = 0x4, offset = 0x4, fixed_abs, tag = 'smem constant byte address 0x4 - core index']
  #allocation1 [shape = 'u32[144,128]{1,0:T(1,128)}', space=vmem, size = 0x12000, scoped, tag = 'internal scratch']
  %s0 = inlined_call_operand.vmem [shape: bf16[128,32], index: 0, kind: input, shape index: {}]
  %s1 = inlined_call_operand.vmem [shape: f32[8,1,16], index: 1, kind: input, shape index: {}]
  %s2 = inlined_call_operand.vmem [shape: bf16[4,16,16], index: 2, kind: input, shape index: {}]
  %s3 = inlined_call_operand.vmem [shape: f32[2,1,32], index: 3, kind: input, shape index: {}]
  %s4 = inlined_call_operand.vmem [shape: bf16[2,32,96], index: 4, kind: input, shape index: {}]
  %s5 = inlined_call_operand.vmem [shape: bf16[2,32,32], index: 5, kind: input, shape index: {}]
  %s6 = inlined_call_operand.vmem [shape: f32[2,1,32], index: 6, kind: input, shape index: {}]
  %s7 = inlined_call_operand.vmem [shape: bf16[2,32,64], index: 7, kind: input, shape index: {}]
  %s8 = inlined_call_operand.vmem [shape: bf16[2,64,32], index: 8, kind: input, shape index: {}]
  %s9 = inlined_call_operand.vmem [shape: f32[1,1,32], index: 9, kind: input, shape index: {}]
  %s10 = inlined_call_operand.vmem [shape: f32[128,32], index: 10, kind: output, shape index: {}]
  %s11 = sld [smem:[#allocation0]]
  $region85: #{tpu_custom_call.1} parent=0
    _
  %s13 = ssub.s32 1, %s11
  %s14 = scalar_select 0, %s13, %s11
  loop: start=0, step=1, limit=4
  $region2: #{tpu_custom_call.1} parent=0 // loop_pre_header
    _
  $region3: #{tpu_custom_call.1} parent=0 // loop_header
    %s16 = sphi 0, %s20
    %p17 = scmp.ge.s32.totalorder %s16, 4
    %s23 = sphi 0, %s35
    %s24 = sphi 0, %s31
    %s25 = sphi 0, %s23
    %s26 = sphi 0, %s24
    %s27 = sphi 0, %s25
    %s28 = sphi 0, %s26
    %s38 = sphi 0, %s40
    %s41 = sphi 0, %s38
    %s42 = sphi 0, %s41
    %s58 = sphi 0, %s42
    %s64 = sphi 0, %s66
    %s67 = sphi 0, %s64
    %s68 = sphi 0, %s67
    %s84 = sphi 0, %s68
    %s88 = sphi 0, %s88
    %s90 = sphi 0, %s88
    %s91 = sphi 0, %s90
    %s105 = sphi 0, %s91
    %s111 = sphi 0, %s113
    %s114 = sphi 0, %s111
    %s115 = sphi 0, %s114
    %s131 = sphi 0, %s115
    %s137 = sphi 0, %s139
    %s140 = sphi 0, %s137
    %s141 = sphi 0, %s140
    %s157 = sphi 0, %s141
    %s163 = sphi 0, %s165
    %s166 = sphi 0, %s163
    %s167 = sphi 0, %s166
    %s183 = sphi 0, %s167
    %s189 = sphi 0, %s191
    %s192 = sphi 0, %s189
    %s193 = sphi 0, %s192
    %s209 = sphi 0, %s193
    %s215 = sphi 0, %s217
    %s218 = sphi 0, %s215
    %s219 = sphi 0, %s218
    %s235 = sphi 0, %s219
    %s241 = sphi 0, %s243
    %s244 = sphi 0, %s241
    %s245 = sphi 0, %s244
    %s261 = sphi 0, %s245
    %s265 = sphi 0, %s265
    %s267 = sphi 0, %s265
    %s268 = sphi 0, %s267
    %s282 = sphi 0, %s268
    %s288 = sphi 0, %s290
    %s291 = sphi 0, %s288
    %s292 = sphi 0, %s291
    %s308 = sphi 0, %s292
  $region4: #{tpu_custom_call.1} parent=0 // loop_header_branch
    %19 = sbr.rel (%p17) target = $region8
  $region5: #{tpu_custom_call.1} parent=0 // loop_body
    %s21 = ssub.s32 %s16, 1
    %s22 = ssub.s32 %s16, 2
    %s29 = sadd.s32 1, %s24
    %p30 = scmp.ge.s32.totalorder %s29, 2
    %s31 = scalar_select %p30, 0, %s29
    %s32 = sadd.s32 1, %s23
    %s33 = scalar_select %p30, %s32, %s23
    %p34 = scmp.ge.s32.totalorder %s33, 1
    %s35 = scalar_select %p34, 0, %s33
    %s36 = ssub.s32 %s23, %s35
    %p37 = scmp.eq.s32.totalorder %s36, 0
    %s39 = sadd.s32 %s38, 1
    %s40 = scalar_select %p37, %s38, %s39
    %p43 = pneg %p37
    %p44 = scmp.eq.s32.totalorder %s16, 1
    %p45 = por %p43, %p44
    %p46 = scmp.ne.s32.totalorder %s38, %s41
    %p47 = scmp.eq.s32.totalorder %s16, 0
    %p48 = por %p46, %p47
    %p49 = scmp.ne.s32.totalorder %s38, %s41
    %p50 = scmp.eq.s32.totalorder %s21, 1
    %p51 = por %p49, %p50
    %p52 = scmp.ne.s32.totalorder %s41, %s42
    %p53 = scmp.eq.s32.totalorder %s21, 0
    %p54 = por %p52, %p53
    %p55 = scmp.ne.s32.totalorder %s41, %s42
    %p56 = scmp.eq.s32.totalorder %s22, 1
    %p57 = por %p55, %p56
    %p59 = scmp.ne.s32.totalorder %s42, %s58
    %p60 = scmp.eq.s32.totalorder %s22, 0
    %p61 = por %p59, %p60
    %s62 = ssub.s32 %s23, %s35
    %p63 = scmp.eq.s32.totalorder %s62, 0
    %s65 = sadd.s32 %s64, 1
    %s66 = scalar_select %p63, %s64, %s65
    %p69 = pneg %p63
    %p70 = scmp.eq.s32.totalorder %s16, 1
    %p71 = por %p69, %p70
    %p72 = scmp.ne.s32.totalorder %s64, %s67
    %p73 = scmp.eq.s32.totalorder %s16, 0
    %p74 = por %p72, %p73
    %p75 = scmp.ne.s32.totalorder %s64, %s67
    %p76 = scmp.eq.s32.totalorder %s21, 1
    %p77 = por %p75, %p76
    %p78 = scmp.ne.s32.totalorder %s67, %s68
    %p79 = scmp.eq.s32.totalorder %s21, 0
    %p80 = por %p78, %p79
    %p81 = scmp.ne.s32.totalorder %s67, %s68
    %p82 = scmp.eq.s32.totalorder %s22, 1
    %p83 = por %p81, %p82
    %p85 = scmp.ne.s32.totalorder %s68, %s84
    %p86 = scmp.eq.s32.totalorder %s22, 0
    %p87 = por %p85, %p86
    %s89 = sadd.s32 %s88, 1
    %p92 = scmp.eq.s32.totalorder %s16, 1
    %p93 = scmp.ne.s32.totalorder %s88, %s90
    %p94 = scmp.eq.s32.totalorder %s16, 0
    %p95 = por %p93, %p94
    %p96 = scmp.ne.s32.totalorder %s88, %s90
    %p97 = scmp.eq.s32.totalorder %s21, 1
    %p98 = por %p96, %p97
    %p99 = scmp.ne.s32.totalorder %s90, %s91
    %p100 = scmp.eq.s32.totalorder %s21, 0
    %p101 = por %p99, %p100
    %p102 = scmp.ne.s32.totalorder %s90, %s91
    %p103 = scmp.eq.s32.totalorder %s22, 1
    %p104 = por %p102, %p103
    %p106 = scmp.ne.s32.totalorder %s91, %s105
    %p107 = scmp.eq.s32.totalorder %s22, 0
    %p108 = por %p106, %p107
    %s109 = ssub.s32 %s24, %s31
    %p110 = scmp.eq.s32.totalorder %s109, 0
    %s112 = sadd.s32 %s111, 1
    %s113 = scalar_select %p110, %s111, %s112
    %p116 = pneg %p110
    %p117 = scmp.eq.s32.totalorder %s16, 1
    %p118 = por %p116, %p117
    %p119 = scmp.ne.s32.totalorder %s111, %s114
    %p120 = scmp.eq.s32.totalorder %s16, 0
    %p121 = por %p119, %p120
    %p122 = scmp.ne.s32.totalorder %s111, %s114
    %p123 = scmp.eq.s32.totalorder %s21, 1
    %p124 = por %p122, %p123
    %p125 = scmp.ne.s32.totalorder %s114, %s115
    %p126 = scmp.eq.s32.totalorder %s21, 0
    %p127 = por %p125, %p126
    %p128 = scmp.ne.s32.totalorder %s114, %s115
    %p129 = scmp.eq.s32.totalorder %s22, 1
    %p130 = por %p128, %p129
    %p132 = scmp.ne.s32.totalorder %s115, %s131
    %p133 = scmp.eq.s32.totalorder %s22, 0
    %p134 = por %p132, %p133
    %s135 = ssub.s32 %s24, %s31
    %p136 = scmp.eq.s32.totalorder %s135, 0
    %s138 = sadd.s32 %s137, 1
    %s139 = scalar_select %p136, %s137, %s138
    %p142 = pneg %p136
    %p143 = scmp.eq.s32.totalorder %s16, 1
    %p144 = por %p142, %p143
    %p145 = scmp.ne.s32.totalorder %s137, %s140
    %p146 = scmp.eq.s32.totalorder %s16, 0
    %p147 = por %p145, %p146
    %p148 = scmp.ne.s32.totalorder %s137, %s140
    %p149 = scmp.eq.s32.totalorder %s21, 1
    %p150 = por %p148, %p149
    %p151 = scmp.ne.s32.totalorder %s140, %s141
    %p152 = scmp.eq.s32.totalorder %s21, 0
    %p153 = por %p151, %p152
    %p154 = scmp.ne.s32.totalorder %s140, %s141
    %p155 = scmp.eq.s32.totalorder %s22, 1
    %p156 = por %p154, %p155
    %p158 = scmp.ne.s32.totalorder %s141, %s157
    %p159 = scmp.eq.s32.totalorder %s22, 0
    %p160 = por %p158, %p159
    %s161 = ssub.s32 %s24, %s31
    %p162 = scmp.eq.s32.totalorder %s161, 0
    %s164 = sadd.s32 %s163, 1
    %s165 = scalar_select %p162, %s163, %s164
    %p168 = pneg %p162
    %p169 = scmp.eq.s32.totalorder %s16, 1
    %p170 = por %p168, %p169
    %p171 = scmp.ne.s32.totalorder %s163, %s166
    %p172 = scmp.eq.s32.totalorder %s16, 0
    %p173 = por %p171, %p172
    %p174 = scmp.ne.s32.totalorder %s163, %s166
    %p175 = scmp.eq.s32.totalorder %s21, 1
    %p176 = por %p174, %p175
    %p177 = scmp.ne.s32.totalorder %s166, %s167
    %p178 = scmp.eq.s32.totalorder %s21, 0
    %p179 = por %p177, %p178
    %p180 = scmp.ne.s32.totalorder %s166, %s167
    %p181 = scmp.eq.s32.totalorder %s22, 1
    %p182 = por %p180, %p181
    %p184 = scmp.ne.s32.totalorder %s167, %s183
    %p185 = scmp.eq.s32.totalorder %s22, 0
    %p186 = por %p184, %p185
    %s187 = ssub.s32 %s24, %s31
    %p188 = scmp.eq.s32.totalorder %s187, 0
    %s190 = sadd.s32 %s189, 1
    %s191 = scalar_select %p188, %s189, %s190
    %p194 = pneg %p188
    %p195 = scmp.eq.s32.totalorder %s16, 1
    %p196 = por %p194, %p195
    %p197 = scmp.ne.s32.totalorder %s189, %s192
    %p198 = scmp.eq.s32.totalorder %s16, 0
    %p199 = por %p197, %p198
    %p200 = scmp.ne.s32.totalorder %s189, %s192
    %p201 = scmp.eq.s32.totalorder %s21, 1
    %p202 = por %p200, %p201
    %p203 = scmp.ne.s32.totalorder %s192, %s193
    %p204 = scmp.eq.s32.totalorder %s21, 0
    %p205 = por %p203, %p204
    %p206 = scmp.ne.s32.totalorder %s192, %s193
    %p207 = scmp.eq.s32.totalorder %s22, 1
    %p208 = por %p206, %p207
    %p210 = scmp.ne.s32.totalorder %s193, %s209
    %p211 = scmp.eq.s32.totalorder %s22, 0
    %p212 = por %p210, %p211
    %s213 = ssub.s32 %s24, %s31
    %p214 = scmp.eq.s32.totalorder %s213, 0
    %s216 = sadd.s32 %s215, 1
    %s217 = scalar_select %p214, %s215, %s216
    %p220 = pneg %p214
    %p221 = scmp.eq.s32.totalorder %s16, 1
    %p222 = por %p220, %p221
    %p223 = scmp.ne.s32.totalorder %s215, %s218
    %p224 = scmp.eq.s32.totalorder %s16, 0
    %p225 = por %p223, %p224
    %p226 = scmp.ne.s32.totalorder %s215, %s218
    %p227 = scmp.eq.s32.totalorder %s21, 1
    %p228 = por %p226, %p227
    %p229 = scmp.ne.s32.totalorder %s218, %s219
    %p230 = scmp.eq.s32.totalorder %s21, 0
    %p231 = por %p229, %p230
    %p232 = scmp.ne.s32.totalorder %s218, %s219
    %p233 = scmp.eq.s32.totalorder %s22, 1
    %p234 = por %p232, %p233
    %p236 = scmp.ne.s32.totalorder %s219, %s235
    %p237 = scmp.eq.s32.totalorder %s22, 0
    %p238 = por %p236, %p237
    %s239 = ssub.s32 %s24, %s31
    %p240 = scmp.eq.s32.totalorder %s239, 0
    %s242 = sadd.s32 %s241, 1
    %s243 = scalar_select %p240, %s241, %s242
    %p246 = pneg %p240
    %p247 = scmp.eq.s32.totalorder %s16, 1
    %p248 = por %p246, %p247
    %p249 = scmp.ne.s32.totalorder %s241, %s244
    %p250 = scmp.eq.s32.totalorder %s16, 0
    %p251 = por %p249, %p250
    %p252 = scmp.ne.s32.totalorder %s241, %s244
    %p253 = scmp.eq.s32.totalorder %s21, 1
    %p254 = por %p252, %p253
    %p255 = scmp.ne.s32.totalorder %s244, %s245
    %p256 = scmp.eq.s32.totalorder %s21, 0
    %p257 = por %p255, %p256
    %p258 = scmp.ne.s32.totalorder %s244, %s245
    %p259 = scmp.eq.s32.totalorder %s22, 1
    %p260 = por %p258, %p259
    %p262 = scmp.ne.s32.totalorder %s245, %s261
    %p263 = scmp.eq.s32.totalorder %s22, 0
    %p264 = por %p262, %p263
    %s266 = sadd.s32 %s265, 1
    %p269 = scmp.eq.s32.totalorder %s16, 1
    %p270 = scmp.ne.s32.totalorder %s265, %s267
    %p271 = scmp.eq.s32.totalorder %s16, 0
    %p272 = por %p270, %p271
    %p273 = scmp.ne.s32.totalorder %s265, %s267
    %p274 = scmp.eq.s32.totalorder %s21, 1
    %p275 = por %p273, %p274
    %p276 = scmp.ne.s32.totalorder %s267, %s268
    %p277 = scmp.eq.s32.totalorder %s21, 0
    %p278 = por %p276, %p277
    %p279 = scmp.ne.s32.totalorder %s267, %s268
    %p280 = scmp.eq.s32.totalorder %s22, 1
    %p281 = por %p279, %p280
    %p283 = scmp.ne.s32.totalorder %s268, %s282
    %p284 = scmp.eq.s32.totalorder %s22, 0
    %p285 = por %p283, %p284
    %s286 = ssub.s32 %s23, %s35
    %p287 = scmp.eq.s32.totalorder %s286, 0
    %s289 = sadd.s32 %s288, 1
    %s290 = scalar_select %p287, %s288, %s289
    %p293 = pneg %p287
    %p294 = scmp.eq.s32.totalorder %s16, 1
    %p295 = por %p293, %p294
    %p296 = scmp.ne.s32.totalorder %s288, %s291
    %p297 = scmp.eq.s32.totalorder %s16, 0
    %p298 = por %p296, %p297
    %p299 = scmp.ne.s32.totalorder %s288, %s291
    %p300 = scmp.eq.s32.totalorder %s21, 1
    %p301 = por %p299, %p300
    %p302 = scmp.ne.s32.totalorder %s291, %s292
    %p303 = scmp.eq.s32.totalorder %s21, 0
    %p304 = por %p302, %p303
    %p305 = scmp.ne.s32.totalorder %s291, %s292
    %p306 = scmp.eq.s32.totalorder %s22, 1
    %p307 = por %p305, %p306
    %p309 = scmp.ne.s32.totalorder %s292, %s308
    %p310 = scmp.eq.s32.totalorder %s22, 0
    %p311 = por %p309, %p310
    %p312 = scmp.le.s32.totalorder 1, %s16
    %p313 = scmp.lt.s32.totalorder %s16, 3
    %p314 = pnand %p312, %p313
    %p315 = pneg %p314
    // Predicated region
    $region9: #{tpu_custom_call.1} parent=5 // pred_check
      _
    $region10: #{tpu_custom_call.1} parent=5 // pred_check_branch
      %317 = sbr.rel (%p314) target = $region12
    $region11: #{tpu_custom_call.1} parent=5 // pred_region
      %s318 = ssub.s32 %s16, 1
      // Predicated region
      $region13: #{tpu_custom_call.1} parent=11 // pred_check
        %p319 = pneg %p54
      $region14: #{tpu_custom_call.1} parent=11 // pred_check_branch
        %321 = sbr.rel (%p319) target = $region16
      $region15: #{tpu_custom_call.1} parent=11 // pred_region
        %s322 = smul.u32 16, %s25
        %p323 = scmp.lt.s32.totalorder %s322, 15
        %s324 = scalar_select %p323, %s322, 15
        %s325 = smul.addr %s324, 4
        %s326 = scalar_lea.vmem %s0, %s325
        %s327 = smul.u32 16, %s25
      $region16: #{tpu_custom_call.1} parent=11 // pred_fallthru
        _
      // Predicated region
      $region17: #{tpu_custom_call.1} parent=11 // pred_check
        %p328 = pneg %p80
      $region18: #{tpu_custom_call.1} parent=11 // pred_check_branch
        %330 = sbr.rel (%p328) target = $region20
      $region19: #{tpu_custom_call.1} parent=11 // pred_region
        %s331 = smul.u32 8, %s25
        %p332 = scmp.lt.s32.totalorder %s331, 7
        %s333 = scalar_select %p332, %s331, 7
        %s334 = scalar_lea.vmem %s1, %s333
        %s335 = smul.u32 8, %s25
      $region20: #{tpu_custom_call.1} parent=11 // pred_fallthru
        _
      // Predicated region
      $region21: #{tpu_custom_call.1} parent=11 // pred_check
        %p336 = pneg %p101
      $region22: #{tpu_custom_call.1} parent=11 // pred_check_branch
        %338 = sbr.rel (%p336) target = $region24
      $region23: #{tpu_custom_call.1} parent=11 // pred_region
        _
      $region24: #{tpu_custom_call.1} parent=11 // pred_fallthru
        _
      // Predicated region
      $region25: #{tpu_custom_call.1} parent=11 // pred_check
        %p339 = pneg %p278
      $region26: #{tpu_custom_call.1} parent=11 // pred_check_branch
        %341 = sbr.rel (%p339) target = $region28
      $region27: #{tpu_custom_call.1} parent=11 // pred_region
        _
      $region28: #{tpu_custom_call.1} parent=11 // pred_fallthru
        _
    $region12: #{tpu_custom_call.1} parent=5 // pred_fallthru
      _
    %p342 = scmp.lt.s32.totalorder %s16, 2
    // Predicated region
    $region29: #{tpu_custom_call.1} parent=5 // pred_check
      %p343 = pneg %p342
    $region30: #{tpu_custom_call.1} parent=5 // pred_check_branch
      %345 = sbr.rel (%p343) target = $region32
    $region31: #{tpu_custom_call.1} parent=5 // pred_region
      // Predicated region
      $region33: #{tpu_custom_call.1} parent=31 // pred_check
        %p346 = pneg %p121
      $region34: #{tpu_custom_call.1} parent=31 // pred_check_branch
        %348 = sbr.rel (%p346) target = $region36
      $region35: #{tpu_custom_call.1} parent=31 // pred_region
        %p349 = scmp.lt.s32.totalorder %s24, 1
        %s350 = scalar_select %p349, %s24, 1
        %s351 = scalar_lea.vmem %s3, %s350
      $region36: #{tpu_custom_call.1} parent=31 // pred_fallthru
        _
      // Predicated region
      $region37: #{tpu_custom_call.1} parent=31 // pred_check
        %p352 = pneg %p147
      $region38: #{tpu_custom_call.1} parent=31 // pred_check_branch
        %354 = sbr.rel (%p352) target = $region40
      $region39: #{tpu_custom_call.1} parent=31 // pred_region
        %p355 = scmp.lt.s32.totalorder %s24, 1
        %s356 = scalar_select %p355, %s24, 1
        %s357 = smul.addr %s356, 4
        %s358 = smul.addr %s357, 4
        %s359 = scalar_lea.vmem %s4, %s358
      $region40: #{tpu_custom_call.1} parent=31 // pred_fallthru
        _
      // Predicated region
      $region41: #{tpu_custom_call.1} parent=31 // pred_check
        %p360 = pneg %p173
      $region42: #{tpu_custom_call.1} parent=31 // pred_check_branch
        %362 = sbr.rel (%p360) target = $region44
      $region43: #{tpu_custom_call.1} parent=31 // pred_region
        %p363 = scmp.lt.s32.totalorder %s24, 1
        %s364 = scalar_select %p363, %s24, 1
        %s365 = smul.addr %s364, 4
        %s366 = smul.addr %s365, 4
        %s367 = scalar_lea.vmem %s5, %s366
      $region44: #{tpu_custom_call.1} parent=31 // pred_fallthru
        _
      // Predicated region
      $region45: #{tpu_custom_call.1} parent=31 // pred_check
        %p368 = pneg %p199
      $region46: #{tpu_custom_call.1} parent=31 // pred_check_branch
        %370 = sbr.rel (%p368) target = $region48
      $region47: #{tpu_custom_call.1} parent=31 // pred_region
        %p371 = scmp.lt.s32.totalorder %s24, 1
        %s372 = scalar_select %p371, %s24, 1
        %s373 = scalar_lea.vmem %s6, %s372
      $region48: #{tpu_custom_call.1} parent=31 // pred_fallthru
        _
      // Predicated region
      $region49: #{tpu_custom_call.1} parent=31 // pred_check
        %p374 = pneg %p225
      $region50: #{tpu_custom_call.1} parent=31 // pred_check_branch
        %376 = sbr.rel (%p374) target = $region52
      $region51: #{tpu_custom_call.1} parent=31 // pred_region
        %p377 = scmp.lt.s32.totalorder %s24, 1
        %s378 = scalar_select %p377, %s24, 1
        %s379 = smul.addr %s378, 4
        %s380 = smul.addr %s379, 4
        %s381 = scalar_lea.vmem %s7, %s380
      $region52: #{tpu_custom_call.1} parent=31 // pred_fallthru
        _
      // Predicated region
      $region53: #{tpu_custom_call.1} parent=31 // pred_check
        %p382 = pneg %p251
      $region54: #{tpu_custom_call.1} parent=31 // pred_check_branch
        %384 = sbr.rel (%p382) target = $region56
      $region55: #{tpu_custom_call.1} parent=31 // pred_region
        %p385 = scmp.lt.s32.totalorder %s24, 1
        %s386 = scalar_select %p385, %s24, 1
        %s387 = smul.addr %s386, 8
        %s388 = smul.addr %s387, 4
        %s389 = scalar_lea.vmem %s8, %s388
      $region56: #{tpu_custom_call.1} parent=31 // pred_fallthru
        _
    $region32: #{tpu_custom_call.1} parent=5 // pred_fallthru
      _
    %p390 = scmp.le.s32.totalorder 1, %s16
    %p391 = scmp.lt.s32.totalorder %s16, 3
    %p392 = pnand %p390, %p391
    %p393 = pneg %p392
    // Predicated region
    $region57: #{tpu_custom_call.1} parent=5 // pred_check
      _
    $region58: #{tpu_custom_call.1} parent=5 // pred_check_branch
      %395 = sbr.rel (%p392) target = $region60
    $region59: #{tpu_custom_call.1} parent=5 // pred_region
      %s396 = ssub.s32 %s16, 1
      %s397 = smul.u32 16, %s25
      %p398 = scmp.lt.s32.totalorder %s397, 15
      %s399 = scalar_select %p398, %s397, 15
      %s400 = smul.addr %s399, 4
      %s401 = scalar_lea.vmem %s0, %s400
      %p402 = pneg %p54
      %p403 = pneg %p51
      %s404 = smul.u32 8, %s25
      %p405 = scmp.lt.s32.totalorder %s404, 7
      %s406 = scalar_select %p405, %s404, 7
      %s407 = scalar_lea.vmem %s1, %s406
      %p408 = pneg %p80
      %p409 = pneg %p77
      %p410 = pneg %p101
      %p411 = pneg %p98
      %p412 = scmp.lt.s32.totalorder %s26, 1
      %s413 = scalar_select %p412, %s26, 1
      %s414 = scalar_lea.vmem %s3, %s413
      %p415 = pneg %p127
      %p416 = pneg %p124
      %p417 = scmp.lt.s32.totalorder %s26, 1
      %s418 = scalar_select %p417, %s26, 1
      %s419 = smul.addr %s418, 4
      %s420 = smul.addr %s419, 4
      %s421 = scalar_lea.vmem %s4, %s420
      %p422 = pneg %p153
      %p423 = pneg %p150
      %p424 = scmp.lt.s32.totalorder %s26, 1
      %s425 = scalar_select %p424, %s26, 1
      %s426 = smul.addr %s425, 4
      %s427 = smul.addr %s426, 4
      %s428 = scalar_lea.vmem %s5, %s427
      %p429 = pneg %p179
      %p430 = pneg %p176
      %p431 = scmp.lt.s32.totalorder %s26, 1
      %s432 = scalar_select %p431, %s26, 1
      %s433 = scalar_lea.vmem %s6, %s432
      %p434 = pneg %p205
      %p435 = pneg %p202
      %p436 = scmp.lt.s32.totalorder %s26, 1
      %s437 = scalar_select %p436, %s26, 1
      %s438 = smul.addr %s437, 4
      %s439 = smul.addr %s438, 4
      %s440 = scalar_lea.vmem %s7, %s439
      %p441 = pneg %p231
      %p442 = pneg %p228
      %p443 = scmp.lt.s32.totalorder %s26, 1
      %s444 = scalar_select %p443, %s26, 1
      %s445 = smul.addr %s444, 8
      %s446 = smul.addr %s445, 4
      %s447 = scalar_lea.vmem %s8, %s446
      %p448 = pneg %p257
      %p449 = pneg %p254
      %p450 = pneg %p278
      %p451 = pneg %p275
      %p452 = pneg %p304
      %p453 = pneg %p301
      %s454 = smul.u32 16, %s25
      %p455 = scmp.lt.s32.totalorder %s454, 15
      %s456 = scalar_select %p455, %s454, 15
      %s457 = smul.addr %s456, 8
      %s458 = scalar_lea.vmem %s10, %s457
      %s459 = smul.u32 16, %s25
      %p460 = scmp.lt.s32.totalorder %s459, 15
      %s461 = scalar_select %p460, %s459, 15
      %s462 = smul.addr %s461, 4
      %s463 = scalar_lea.vmem %s0, %s462
      %s464 = smul.u32 16, %s25
      %s465 = smul.u32 8, %s25
      %p466 = scmp.lt.s32.totalorder %s465, 7
      %s467 = scalar_select %p466, %s465, 7
      %s468 = scalar_lea.vmem %s1, %s467
      %s469 = smul.u32 8, %s25
      %p470 = scmp.lt.s32.totalorder %s26, 1
      %s471 = scalar_select %p470, %s26, 1
      %s472 = scalar_lea.vmem %s3, %s471
      %p473 = scmp.lt.s32.totalorder %s26, 1
      %s474 = scalar_select %p473, %s26, 1
      %s475 = smul.addr %s474, 4
      %s476 = smul.addr %s475, 4
      %s477 = scalar_lea.vmem %s4, %s476
      %p478 = scmp.lt.s32.totalorder %s26, 1
      %s479 = scalar_select %p478, %s26, 1
      %s480 = smul.addr %s479, 4
      %s481 = smul.addr %s480, 4
      %s482 = scalar_lea.vmem %s5, %s481
      %p483 = scmp.lt.s32.totalorder %s26, 1
      %s484 = scalar_select %p483, %s26, 1
      %s485 = scalar_lea.vmem %s6, %s484
      %p486 = scmp.lt.s32.totalorder %s26, 1
      %s487 = scalar_select %p486, %s26, 1
      %s488 = smul.addr %s487, 4
      %s489 = smul.addr %s488, 4
      %s490 = scalar_lea.vmem %s7, %s489
      %p491 = scmp.lt.s32.totalorder %s26, 1
      %s492 = scalar_select %p491, %s26, 1
      %s493 = smul.addr %s492, 8
      %s494 = smul.addr %s493, 4
      %s495 = scalar_lea.vmem %s8, %s494
      %s496 = smul.u32 16, %s25
      %p497 = scmp.lt.s32.totalorder %s496, 15
      %s498 = scalar_select %p497, %s496, 15
      %s499 = smul.addr %s498, 8
      %s500 = scalar_lea.vmem %s10, %s499
      %s501 = smul.u32 16, %s25
      %p503 = scmp.eq.s32.totalorder %s26, 0
      // Predicated region
      $region61: #{tpu_custom_call.1} parent=59 // pred_check
        %p504 = pneg %p503
      $region62: #{tpu_custom_call.1} parent=59 // pred_check_branch
        %506 = sbr.rel (%p504) target = $region64
      $region63: #{tpu_custom_call.1} parent=59 // pred_region
        %v507 = vld [vmem:[%s463] sm:$0xf]
        %v508 = vld [vmem:[%s463 + $0x4] sm:$0xf]
        %v509 = vld [vmem:[%s463 + $0x8] sm:$0xf]
        %v510 = vld [vmem:[%s463 + $0xc] sm:$0xf]
        %v511 = vld [vmem:[%s463 + $0x10] sm:$0xf]
        %v512 = vld [vmem:[%s463 + $0x14] sm:$0xf]
        %v513 = vld [vmem:[%s463 + $0x18] sm:$0xf]
        %v514 = vld [vmem:[%s463 + $0x1c] sm:$0xf]
        %v515 = vld [vmem:[%s463 + $0x20] sm:$0xf]
        %v516 = vld [vmem:[%s463 + $0x24] sm:$0xf]
        %v517 = vld [vmem:[%s463 + $0x28] sm:$0xf]
        %v518 = vld [vmem:[%s463 + $0x2c] sm:$0xf]
        %v519 = vld [vmem:[%s463 + $0x30] sm:$0xf]
        %v520 = vld [vmem:[%s463 + $0x34] sm:$0xf]
        %v521 = vld [vmem:[%s463 + $0x38] sm:$0xf]
        %v522 = vld [vmem:[%s463 + $0x3c] sm:$0xf]
        %v523 = vunpack.c.l.bf16 %v507
        %v524 = vunpack.c.l.bf16 %v508
        %v525 = vunpack.c.l.bf16 %v509
        %v526 = vunpack.c.l.bf16 %v510
        %v527 = vunpack.c.l.bf16 %v511
        %v528 = vunpack.c.l.bf16 %v512
        %v529 = vunpack.c.l.bf16 %v513
        %v530 = vunpack.c.l.bf16 %v514
        %v531 = vunpack.c.l.bf16 %v515
        %v532 = vunpack.c.l.bf16 %v516
        %v533 = vunpack.c.l.bf16 %v517
        %v534 = vunpack.c.l.bf16 %v518
        %v535 = vunpack.c.l.bf16 %v519
        %v536 = vunpack.c.l.bf16 %v520
        %v537 = vunpack.c.l.bf16 %v521
        %v538 = vunpack.c.l.bf16 %v522
        %vm539 = vcmask 261120
        %540 = vst.msk [vmem:[%s500] sm:$0xff] %vm539, %v523
        %541 = vst.msk [vmem:[%s500 + $0x8] sm:$0xff] %vm539, %v524
        %542 = vst.msk [vmem:[%s500 + $0x10] sm:$0xff] %vm539, %v525
        %543 = vst.msk [vmem:[%s500 + $0x18] sm:$0xff] %vm539, %v526
        %544 = vst.msk [vmem:[%s500 + $0x20] sm:$0xff] %vm539, %v527
        %545 = vst.msk [vmem:[%s500 + $0x28] sm:$0xff] %vm539, %v528
        %546 = vst.msk [vmem:[%s500 + $0x30] sm:$0xff] %vm539, %v529
        %547 = vst.msk [vmem:[%s500 + $0x38] sm:$0xff] %vm539, %v530
        %548 = vst.msk [vmem:[%s500 + $0x40] sm:$0xff] %vm539, %v531
        %549 = vst.msk [vmem:[%s500 + $0x48] sm:$0xff] %vm539, %v532
        %550 = vst.msk [vmem:[%s500 + $0x50] sm:$0xff] %vm539, %v533
        %551 = vst.msk [vmem:[%s500 + $0x58] sm:$0xff] %vm539, %v534
        %552 = vst.msk [vmem:[%s500 + $0x60] sm:$0xff] %vm539, %v535
        %553 = vst.msk [vmem:[%s500 + $0x68] sm:$0xff] %vm539, %v536
        %554 = vst.msk [vmem:[%s500 + $0x70] sm:$0xff] %vm539, %v537
        %555 = vst.msk [vmem:[%s500 + $0x78] sm:$0xff] %vm539, %v538
      $region64: #{tpu_custom_call.1} parent=59 // pred_fallthru
        _
      %v556 = vld [vmem:[%s500] sm:$0xff]
      %v557 = vld [vmem:[%s500 + $0x8] sm:$0xff]
      %v558 = vld [vmem:[%s500 + $0x10] sm:$0xff]
      %v559 = vld [vmem:[%s500 + $0x18] sm:$0xff]
      %v560 = vld [vmem:[%s500 + $0x20] sm:$0xff]
      %v561 = vld [vmem:[%s500 + $0x28] sm:$0xff]
      %v562 = vld [vmem:[%s500 + $0x30] sm:$0xff]
      %v563 = vld [vmem:[%s500 + $0x38] sm:$0xff]
      %v564 = vld [vmem:[%s500 + $0x40] sm:$0xff]
      %v565 = vld [vmem:[%s500 + $0x48] sm:$0xff]
      %v566 = vld [vmem:[%s500 + $0x50] sm:$0xff]
      %v567 = vld [vmem:[%s500 + $0x58] sm:$0xff]
      %v568 = vld [vmem:[%s500 + $0x60] sm:$0xff]
      %v569 = vld [vmem:[%s500 + $0x68] sm:$0xff]
      %v570 = vld [vmem:[%s500 + $0x70] sm:$0xff]
      %v571 = vld [vmem:[%s500 + $0x78] sm:$0xff]
      %v572 = vld [vmem:[%s472] sm:$0x1]
      %v573 = vmul.f32 %v556, %v556
      %v574 = vmul.f32 %v557, %v557
      %v575 = vmul.f32 %v558, %v558
      %v576 = vmul.f32 %v559, %v559
      %v577 = vmul.f32 %v560, %v560
      %v578 = vmul.f32 %v561, %v561
      %v579 = vmul.f32 %v562, %v562
      %v580 = vmul.f32 %v563, %v563
      %v581 = vmul.f32 %v564, %v564
      %v582 = vmul.f32 %v565, %v565
      %v583 = vmul.f32 %v566, %v566
      %v584 = vmul.f32 %v567, %v567
      %v585 = vmul.f32 %v568, %v568
      %v586 = vmul.f32 %v569, %v569
      %v587 = vmul.f32 %v570, %v570
      %v588 = vmul.f32 %v571, %v571
      %vm589 = vcmask 261120
      %v590 = vsel %vm589, %v573, 0.0
      %591 = vadd.xlane.f32.xlu0 %v590
      %v592 = vpop.xlane.xlu0 %591
      %v593 = vsel %vm589, %v574, 0.0
      %594 = vadd.xlane.f32.xlu0 %v593
      %v595 = vpop.xlane.xlu0 %594
      %v596 = vsel %vm589, %v575, 0.0
      %597 = vadd.xlane.f32.xlu0 %v596
      %v598 = vpop.xlane.xlu0 %597
      %v599 = vsel %vm589, %v576, 0.0
      %600 = vadd.xlane.f32.xlu0 %v599
      %v601 = vpop.xlane.xlu0 %600
      %v602 = vsel %vm589, %v577, 0.0
      %603 = vadd.xlane.f32.xlu0 %v602
      %v604 = vpop.xlane.xlu0 %603
      %v605 = vsel %vm589, %v578, 0.0
      %606 = vadd.xlane.f32.xlu0 %v605
      %v607 = vpop.xlane.xlu0 %606
      %v608 = vsel %vm589, %v579, 0.0
      %609 = vadd.xlane.f32.xlu0 %v608
      %v610 = vpop.xlane.xlu0 %609
      %v611 = vsel %vm589, %v580, 0.0
      %612 = vadd.xlane.f32.xlu0 %v611
      %v613 = vpop.xlane.xlu0 %612
      %v614 = vsel %vm589, %v581, 0.0
      %615 = vadd.xlane.f32.xlu0 %v614
      %v616 = vpop.xlane.xlu0 %615
      %v617 = vsel %vm589, %v582, 0.0
      %618 = vadd.xlane.f32.xlu0 %v617
      %v619 = vpop.xlane.xlu0 %618
      %v620 = vsel %vm589, %v583, 0.0
      %621 = vadd.xlane.f32.xlu0 %v620
      %v622 = vpop.xlane.xlu0 %621
      %v623 = vsel %vm589, %v584, 0.0
      %624 = vadd.xlane.f32.xlu0 %v623
      %v625 = vpop.xlane.xlu0 %624
      %v626 = vsel %vm589, %v585, 0.0
      %627 = vadd.xlane.f32.xlu0 %v626
      %v628 = vpop.xlane.xlu0 %627
      %v629 = vsel %vm589, %v586, 0.0
      %630 = vadd.xlane.f32.xlu0 %v629
      %v631 = vpop.xlane.xlu0 %630
      %v632 = vsel %vm589, %v587, 0.0
      %633 = vadd.xlane.f32.xlu0 %v632
      %v634 = vpop.xlane.xlu0 %633
      %v635 = vsel %vm589, %v588, 0.0
      %636 = vadd.xlane.f32.xlu0 %v635
      %v637 = vpop.xlane.xlu0 %636
      %v638 = vrcp.pop 32.0
      %v639 = vmul.f32 %v592, %v638
      %v640 = vmul.f32 %v595, %v638
      %v641 = vmul.f32 %v598, %v638
      %v642 = vmul.f32 %v601, %v638
      %v643 = vmul.f32 %v604, %v638
      %v644 = vmul.f32 %v607, %v638
      %v645 = vmul.f32 %v610, %v638
      %v646 = vmul.f32 %v613, %v638
      %v647 = vmul.f32 %v616, %v638
      %v648 = vmul.f32 %v619, %v638
      %v649 = vmul.f32 %v622, %v638
      %v650 = vmul.f32 %v625, %v638
      %v651 = vmul.f32 %v628, %v638
      %v652 = vmul.f32 %v631, %v638
      %v653 = vmul.f32 %v634, %v638
      %v654 = vmul.f32 %v637, %v638
      %v655 = vadd.f32 %v639, 1e-06
      %v656 = vadd.f32 %v640, 1e-06
      %v657 = vadd.f32 %v641, 1e-06
      %v658 = vadd.f32 %v642, 1e-06
      %v659 = vadd.f32 %v643, 1e-06
      %v660 = vadd.f32 %v644, 1e-06
      %v661 = vadd.f32 %v645, 1e-06
      %v662 = vadd.f32 %v646, 1e-06
      %v663 = vadd.f32 %v647, 1e-06
      %v664 = vadd.f32 %v648, 1e-06
      %v665 = vadd.f32 %v649, 1e-06
      %v666 = vadd.f32 %v650, 1e-06
      %v667 = vadd.f32 %v651, 1e-06
      %v668 = vadd.f32 %v652, 1e-06
      %v669 = vadd.f32 %v653, 1e-06
      %v670 = vadd.f32 %v654, 1e-06
      %v671 = vrsqrt.pop %v655
      %v672 = vrsqrt.pop %v656
      %v673 = vrsqrt.pop %v657
      %v674 = vrsqrt.pop %v658
      %v675 = vrsqrt.pop %v659
      %v676 = vrsqrt.pop %v660
      %v677 = vrsqrt.pop %v661
      %v678 = vrsqrt.pop %v662
      %v679 = vrsqrt.pop %v663
      %v680 = vrsqrt.pop %v664
      %v681 = vrsqrt.pop %v665
      %v682 = vrsqrt.pop %v666
      %v683 = vrsqrt.pop %v667
      %v684 = vrsqrt.pop %v668
      %v685 = vrsqrt.pop %v669
      %v686 = vrsqrt.pop %v670
      %v687 = vmul.f32 %v556, %v671
      %v688 = vmul.f32 %v557, %v672
      %v689 = vmul.f32 %v558, %v673
      %v690 = vmul.f32 %v559, %v674
      %v691 = vmul.f32 %v560, %v675
      %v692 = vmul.f32 %v561, %v676
      %v693 = vmul.f32 %v562, %v677
      %v694 = vmul.f32 %v563, %v678
      %v695 = vmul.f32 %v564, %v679
      %v696 = vmul.f32 %v565, %v680
      %v697 = vmul.f32 %v566, %v681
      %v698 = vmul.f32 %v567, %v682
      %v699 = vmul.f32 %v568, %v683
      %v700 = vmul.f32 %v569, %v684
      %v701 = vmul.f32 %v570, %v685
      %v702 = vmul.f32 %v571, %v686
      %v704 = vlaneseq
      %v705 = vshrl.u32 %v704, 7
      %v706 = vsub.s32 0, %v705
      %v707 = vrot.slane %v572, %v706
      %v709 = vmul.f32 %v687, %v707
      %v710 = vmul.f32 %v688, %v707
      %v711 = vmul.f32 %v689, %v707
      %v712 = vmul.f32 %v690, %v707
      %v713 = vmul.f32 %v691, %v707
      %v714 = vmul.f32 %v692, %v707
      %v715 = vmul.f32 %v693, %v707
      %v716 = vmul.f32 %v694, %v707
      %v717 = vmul.f32 %v695, %v707
      %v718 = vmul.f32 %v696, %v707
      %v719 = vmul.f32 %v697, %v707
      %v720 = vmul.f32 %v698, %v707
      %v721 = vmul.f32 %v699, %v707
      %v722 = vmul.f32 %v700, %v707
      %v723 = vmul.f32 %v701, %v707
      %v724 = vmul.f32 %v702, %v707
      %v725 = vpack.c.bf16 %v710, %v709
      %v726 = vpack.c.bf16 %v712, %v711
      %v727 = vpack.c.bf16 %v714, %v713
      %v728 = vpack.c.bf16 %v716, %v715
      %v729 = vpack.c.bf16 %v718, %v717
      %v730 = vpack.c.bf16 %v720, %v719
      %v731 = vpack.c.bf16 %v722, %v721
      %v732 = vpack.c.bf16 %v724, %v723
      %v733 = vld [vmem:[%s477] sm:$0xf]
      %v734 = vld [vmem:[%s477 + $0x4] sm:$0xf]
      %v735 = vld [vmem:[%s477 + $0x8] sm:$0xf]
      %v736 = vld [vmem:[%s477 + $0xc] sm:$0xf]
      %v741 = vunpack.c.l.b16 %v733
      %v742 = vunpack.c.l.b16 %v734
      %v743 = vunpack.c.l.b16 %v735
      %v744 = vunpack.c.l.b16 %v736
      %v745 = vpack.c.b16 %v742, %v741
      %v746 = vpack.c.b16 %v744, %v743
      %v750 = vsel %vm589, %v725, 0
      %v753 = vsel %vm589, %v726, 0
      %v756 = vsel %vm589, %v727, 0
      %v759 = vsel %vm589, %v728, 0
      %v762 = vsel %vm589, %v729, 0
      %v765 = vsel %vm589, %v730, 0
      %v768 = vsel %vm589, %v731, 0
      %v771 = vsel %vm589, %v732, 0
      %773 = vmatprep.subr.bf16.mxu0 0
      %774 = vmatpush1.bf16.msra.mxu0 0
      %775 = vmatprep.subr.bf16.mxu0 0
      %776 = vmatpush1.bf16.msra.mxu0 0
      %777 = vmatprep.subr.bf16.mxu0 0
      %778 = vmatpush1.bf16.msra.mxu0 0
      %779 = vmatprep.subr.bf16.mxu0 0
      %780 = vmatpush1.bf16.msra.mxu0 0
      %781 = vmatprep.subr.bf16.mxu0 0
      %782 = vmatpush1.bf16.msra.mxu0 0
      %783 = vmatprep.subr.bf16.mxu0 0
      %784 = vmatpush1.bf16.msra.mxu0 0
      %785 = vmatprep.subr.bf16.mxu0 0
      %786 = vmatpush1.bf16.msra.mxu0 %v746
      %787 = vmatprep.subr.bf16.mxu0 0
      %788 = vmatpush1.bf16.msra.mxu0 %v745
      %789 = vmatprep.subr.bf16.mxu0 0
      %790 = vmatpush2.bf16.msra.mxu0 0
      %791 = vmatprep.subr.bf16.mxu0 0
      %792 = vmatpush2.bf16.msra.mxu0 0
      %793 = vmatprep.subr.bf16.mxu0 0
      %794 = vmatpush2.bf16.msra.mxu0 0
      %795 = vmatprep.subr.bf16.mxu0 0
      %796 = vmatpush2.bf16.msra.mxu0 0
      %797 = vmatprep.subr.bf16.mxu0 0
      %798 = vmatpush2.bf16.msra.mxu0 0
      %799 = vmatprep.subr.bf16.mxu0 0
      %800 = vmatpush2.bf16.msra.mxu0 0
      %801 = vmatprep.subr.bf16.mxu0 0
      %802 = vmatpush2.bf16.msra.mxu0 0
      %803 = vmatprep.subr.bf16.mxu0 0
      %804 = vmatpush2.bf16.msra.mxu0 0
      %805 = vmatprep.mubr.bf16.mxu0 0
      %806 = vmatmul.mubr.bf16.gmra.mxu0 %v750
      %v807 = vpop.f32.mrf.mxu0
      %v808 = vadd.f32 0.0, %v807
      %v809 = vpop.f32.mrf.mxu0
      %v810 = vpop.f32.mrf.mxu0
      %v811 = vadd.f32 0.0, %v810
      %v812 = vpop.f32.mrf.mxu0
      %813 = vmatprep.mubr.bf16.mxu0 0
      %814 = vmatmul.mubr.bf16.gmra.mxu0 %v753
      %v815 = vpop.f32.mrf.mxu0
      %v816 = vadd.f32 0.0, %v815
      %v817 = vpop.f32.mrf.mxu0
      %v818 = vpop.f32.mrf.mxu0
      %v819 = vadd.f32 0.0, %v818
      %v820 = vpop.f32.mrf.mxu0
      %821 = vmatprep.mubr.bf16.mxu0 0
      %822 = vmatmul.mubr.bf16.gmra.mxu0 %v756
      %v823 = vpop.f32.mrf.mxu0
      %v824 = vadd.f32 0.0, %v823
      %v825 = vpop.f32.mrf.mxu0
      %v826 = vpop.f32.mrf.mxu0
      %v827 = vadd.f32 0.0, %v826
      %v828 = vpop.f32.mrf.mxu0
      %829 = vmatprep.mubr.bf16.mxu0 0
      %830 = vmatmul.mubr.bf16.gmra.mxu0 %v759
      %v831 = vpop.f32.mrf.mxu0
      %v832 = vadd.f32 0.0, %v831
      %v833 = vpop.f32.mrf.mxu0
      %v834 = vpop.f32.mrf.mxu0
      %v835 = vadd.f32 0.0, %v834
      %v836 = vpop.f32.mrf.mxu0
      %837 = vmatprep.mubr.bf16.mxu0 0
      %838 = vmatmul.mubr.bf16.gmra.mxu0 %v762
      %v839 = vpop.f32.mrf.mxu0
      %v840 = vadd.f32 0.0, %v839
      %v841 = vpop.f32.mrf.mxu0
      %v842 = vpop.f32.mrf.mxu0
      %v843 = vadd.f32 0.0, %v842
      %v844 = vpop.f32.mrf.mxu0
      %845 = vmatprep.mubr.bf16.mxu0 0
      %846 = vmatmul.mubr.bf16.gmra.mxu0 %v765
      %v847 = vpop.f32.mrf.mxu0
      %v848 = vadd.f32 0.0, %v847
      %v849 = vpop.f32.mrf.mxu0
      %v850 = vpop.f32.mrf.mxu0
      %v851 = vadd.f32 0.0, %v850
      %v852 = vpop.f32.mrf.mxu0
      %853 = vmatprep.mubr.bf16.mxu0 0
      %854 = vmatmul.mubr.bf16.gmra.mxu0 %v768
      %v855 = vpop.f32.mrf.mxu0
      %v856 = vadd.f32 0.0, %v855
      %v857 = vpop.f32.mrf.mxu0
      %v858 = vpop.f32.mrf.mxu0
      %v859 = vadd.f32 0.0, %v858
      %v860 = vpop.f32.mrf.mxu0
      %861 = vmatprep.mubr.bf16.mxu0 0
      %862 = vmatmul.mubr.bf16.gmra.mxu0 %v771
      %v863 = vpop.f32.mrf.mxu0
      %v864 = vadd.f32 0.0, %v863
      %v865 = vpop.f32.mrf.mxu0
      %v866 = vpop.f32.mrf.mxu0
      %v867 = vadd.f32 0.0, %v866
      %v868 = vpop.f32.mrf.mxu0
      %869 = vdwg.mxu0
      %v870 = vpack.c.bf16 %v811, %v808
      %v871 = vpack.c.bf16 %v819, %v816
      %v872 = vpack.c.bf16 %v827, %v824
      %v873 = vpack.c.bf16 %v835, %v832
      %v874 = vpack.c.bf16 %v843, %v840
      %v875 = vpack.c.bf16 %v851, %v848
      %v876 = vpack.c.bf16 %v859, %v856
      %v877 = vpack.c.bf16 %v867, %v864
      %886 = vrot.lane.b32.xlu0 %v870, 120
      %v887 = vpop.permute.xlu0 %886
      %888 = vrot.lane.b32.xlu0 %v871, 120
      %v889 = vpop.permute.xlu0 %888
      %890 = vrot.lane.b32.xlu0 %v872, 120
      %v891 = vpop.permute.xlu0 %890
      %892 = vrot.lane.b32.xlu0 %v873, 120
      %v893 = vpop.permute.xlu0 %892
      %894 = vrot.lane.b32.xlu0 %v874, 120
      %v895 = vpop.permute.xlu0 %894
      %896 = vrot.lane.b32.xlu0 %v875, 120
      %v897 = vpop.permute.xlu0 %896
      %898 = vrot.lane.b32.xlu0 %v876, 120
      %v899 = vpop.permute.xlu0 %898
      %900 = vrot.lane.b32.xlu0 %v877, 120
      %v901 = vpop.permute.xlu0 %900
      %902 = vrot.lane.b32.xlu0 %v870, 112
      %v903 = vpop.permute.xlu0 %902
      %904 = vrot.lane.b32.xlu0 %v871, 112
      %v905 = vpop.permute.xlu0 %904
      %906 = vrot.lane.b32.xlu0 %v872, 112
      %v907 = vpop.permute.xlu0 %906
      %908 = vrot.lane.b32.xlu0 %v873, 112
      %v909 = vpop.permute.xlu0 %908
      %910 = vrot.lane.b32.xlu0 %v874, 112
      %v911 = vpop.permute.xlu0 %910
      %912 = vrot.lane.b32.xlu0 %v875, 112
      %v913 = vpop.permute.xlu0 %912
      %914 = vrot.lane.b32.xlu0 %v876, 112
      %v915 = vpop.permute.xlu0 %914
      %916 = vrot.lane.b32.xlu0 %v877, 112
      %v917 = vpop.permute.xlu0 %916
      %918 = vrot.lane.b32.xlu0 %v870, 104
      %v919 = vpop.permute.xlu0 %918
      %920 = vrot.lane.b32.xlu0 %v871, 104
      %v921 = vpop.permute.xlu0 %920
      %922 = vrot.lane.b32.xlu0 %v872, 104
      %v923 = vpop.permute.xlu0 %922
      %924 = vrot.lane.b32.xlu0 %v873, 104
      %v925 = vpop.permute.xlu0 %924
      %926 = vrot.lane.b32.xlu0 %v874, 104
      %v927 = vpop.permute.xlu0 %926
      %928 = vrot.lane.b32.xlu0 %v875, 104
      %v929 = vpop.permute.xlu0 %928
      %930 = vrot.lane.b32.xlu0 %v876, 104
      %v931 = vpop.permute.xlu0 %930
      %932 = vrot.lane.b32.xlu0 %v877, 104
      %v933 = vpop.permute.xlu0 %932
      %934 = vrot.lane.b32.xlu0 %v870, 96
      %v935 = vpop.permute.xlu0 %934
      %936 = vrot.lane.b32.xlu0 %v871, 96
      %v937 = vpop.permute.xlu0 %936
      %938 = vrot.lane.b32.xlu0 %v872, 96
      %v939 = vpop.permute.xlu0 %938
      %940 = vrot.lane.b32.xlu0 %v873, 96
      %v941 = vpop.permute.xlu0 %940
      %942 = vrot.lane.b32.xlu0 %v874, 96
      %v943 = vpop.permute.xlu0 %942
      %944 = vrot.lane.b32.xlu0 %v875, 96
      %v945 = vpop.permute.xlu0 %944
      %946 = vrot.lane.b32.xlu0 %v876, 96
      %v947 = vpop.permute.xlu0 %946
      %948 = vrot.lane.b32.xlu0 %v877, 96
      %v949 = vpop.permute.xlu0 %948
      %950 = vrot.lane.b32.xlu0 %v870, 88
      %v951 = vpop.permute.xlu0 %950
      %952 = vrot.lane.b32.xlu0 %v871, 88
      %v953 = vpop.permute.xlu0 %952
      %954 = vrot.lane.b32.xlu0 %v872, 88
      %v955 = vpop.permute.xlu0 %954
      %956 = vrot.lane.b32.xlu0 %v873, 88
      %v957 = vpop.permute.xlu0 %956
      %958 = vrot.lane.b32.xlu0 %v874, 88
      %v959 = vpop.permute.xlu0 %958
      %960 = vrot.lane.b32.xlu0 %v875, 88
      %v961 = vpop.permute.xlu0 %960
      %962 = vrot.lane.b32.xlu0 %v876, 88
      %v963 = vpop.permute.xlu0 %962
      %964 = vrot.lane.b32.xlu0 %v877, 88
      %v965 = vpop.permute.xlu0 %964
      %966 = vrot.lane.b32.xlu0 %v870, 80
      %v967 = vpop.permute.xlu0 %966
      %968 = vrot.lane.b32.xlu0 %v871, 80
      %v969 = vpop.permute.xlu0 %968
      %970 = vrot.lane.b32.xlu0 %v872, 80
      %v971 = vpop.permute.xlu0 %970
      %972 = vrot.lane.b32.xlu0 %v873, 80
      %v973 = vpop.permute.xlu0 %972
      %974 = vrot.lane.b32.xlu0 %v874, 80
      %v975 = vpop.permute.xlu0 %974
      %976 = vrot.lane.b32.xlu0 %v875, 80
      %v977 = vpop.permute.xlu0 %976
      %978 = vrot.lane.b32.xlu0 %v876, 80
      %v979 = vpop.permute.xlu0 %978
      %980 = vrot.lane.b32.xlu0 %v877, 80
      %v981 = vpop.permute.xlu0 %980
      %982 = vrot.lane.b32.xlu0 %v870, 72
      %v983 = vpop.permute.xlu0 %982
      %984 = vrot.lane.b32.xlu0 %v871, 72
      %v985 = vpop.permute.xlu0 %984
      %986 = vrot.lane.b32.xlu0 %v872, 72
      %v987 = vpop.permute.xlu0 %986
      %988 = vrot.lane.b32.xlu0 %v873, 72
      %v989 = vpop.permute.xlu0 %988
      %990 = vrot.lane.b32.xlu0 %v874, 72
      %v991 = vpop.permute.xlu0 %990
      %992 = vrot.lane.b32.xlu0 %v875, 72
      %v993 = vpop.permute.xlu0 %992
      %994 = vrot.lane.b32.xlu0 %v876, 72
      %v995 = vpop.permute.xlu0 %994
      %996 = vrot.lane.b32.xlu0 %v877, 72
      %v997 = vpop.permute.xlu0 %996
      %998 = vrot.lane.b32.xlu0 %v870, 64
      %v999 = vpop.permute.xlu0 %998
      %1000 = vrot.lane.b32.xlu0 %v871, 64
      %v1001 = vpop.permute.xlu0 %1000
      %1002 = vrot.lane.b32.xlu0 %v872, 64
      %v1003 = vpop.permute.xlu0 %1002
      %1004 = vrot.lane.b32.xlu0 %v873, 64
      %v1005 = vpop.permute.xlu0 %1004
      %1006 = vrot.lane.b32.xlu0 %v874, 64
      %v1007 = vpop.permute.xlu0 %1006
      %1008 = vrot.lane.b32.xlu0 %v875, 64
      %v1009 = vpop.permute.xlu0 %1008
      %1010 = vrot.lane.b32.xlu0 %v876, 64
      %v1011 = vpop.permute.xlu0 %1010
      %1012 = vrot.lane.b32.xlu0 %v877, 64
      %v1013 = vpop.permute.xlu0 %1012
      %1014 = vrot.lane.b32.xlu0 %v870, 56
      %v1015 = vpop.permute.xlu0 %1014
      %1016 = vrot.lane.b32.xlu0 %v871, 56
      %v1017 = vpop.permute.xlu0 %1016
      %1018 = vrot.lane.b32.xlu0 %v872, 56
      %v1019 = vpop.permute.xlu0 %1018
      %1020 = vrot.lane.b32.xlu0 %v873, 56
      %v1021 = vpop.permute.xlu0 %1020
      %1022 = vrot.lane.b32.xlu0 %v874, 56
      %v1023 = vpop.permute.xlu0 %1022
      %1024 = vrot.lane.b32.xlu0 %v875, 56
      %v1025 = vpop.permute.xlu0 %1024
      %1026 = vrot.lane.b32.xlu0 %v876, 56
      %v1027 = vpop.permute.xlu0 %1026
      %1028 = vrot.lane.b32.xlu0 %v877, 56
      %v1029 = vpop.permute.xlu0 %1028
      %1030 = vrot.lane.b32.xlu0 %v870, 48
      %v1031 = vpop.permute.xlu0 %1030
      %1032 = vrot.lane.b32.xlu0 %v871, 48
      %v1033 = vpop.permute.xlu0 %1032
      %1034 = vrot.lane.b32.xlu0 %v872, 48
      %v1035 = vpop.permute.xlu0 %1034
      %1036 = vrot.lane.b32.xlu0 %v873, 48
      %v1037 = vpop.permute.xlu0 %1036
      %1038 = vrot.lane.b32.xlu0 %v874, 48
      %v1039 = vpop.permute.xlu0 %1038
      %1040 = vrot.lane.b32.xlu0 %v875, 48
      %v1041 = vpop.permute.xlu0 %1040
      %1042 = vrot.lane.b32.xlu0 %v876, 48
      %v1043 = vpop.permute.xlu0 %1042
      %1044 = vrot.lane.b32.xlu0 %v877, 48
      %v1045 = vpop.permute.xlu0 %1044
      %1046 = vrot.lane.b32.xlu0 %v870, 40
      %v1047 = vpop.permute.xlu0 %1046
      %1048 = vrot.lane.b32.xlu0 %v871, 40
      %v1049 = vpop.permute.xlu0 %1048
      %1050 = vrot.lane.b32.xlu0 %v872, 40
      %v1051 = vpop.permute.xlu0 %1050
      %1052 = vrot.lane.b32.xlu0 %v873, 40
      %v1053 = vpop.permute.xlu0 %1052
      %1054 = vrot.lane.b32.xlu0 %v874, 40
      %v1055 = vpop.permute.xlu0 %1054
      %1056 = vrot.lane.b32.xlu0 %v875, 40
      %v1057 = vpop.permute.xlu0 %1056
      %1058 = vrot.lane.b32.xlu0 %v876, 40
      %v1059 = vpop.permute.xlu0 %1058
      %1060 = vrot.lane.b32.xlu0 %v877, 40
      %v1061 = vpop.permute.xlu0 %1060
      %v1064 = vpack.i.b16 %v887, %v870
      %v1066 = vshrl.u32 %v870, 16
      %v1067 = vshrl.u32 %v887, 16
      %v1068 = vpack.i.b16 %v1067, %v1066
      %v1072 = vpack.i.b16 %v919, %v903
      %v1074 = vshrl.u32 %v903, 16
      %v1075 = vshrl.u32 %v919, 16
      %v1076 = vpack.i.b16 %v1075, %v1074
      %v1080 = vpack.i.b16 %v951, %v935
      %v1082 = vshrl.u32 %v935, 16
      %v1083 = vshrl.u32 %v951, 16
      %v1084 = vpack.i.b16 %v1083, %v1082
      %v1088 = vpack.i.b16 %v983, %v967
      %v1090 = vshrl.u32 %v967, 16
      %v1091 = vshrl.u32 %v983, 16
      %v1092 = vpack.i.b16 %v1091, %v1090
      %v1096 = vpack.i.b16 %v1015, %v999
      %v1098 = vshrl.u32 %v999, 16
      %v1099 = vshrl.u32 %v1015, 16
      %v1100 = vpack.i.b16 %v1099, %v1098
      %v1104 = vpack.i.b16 %v1047, %v1031
      %v1106 = vshrl.u32 %v1031, 16
      %v1107 = vshrl.u32 %v1047, 16
      %v1108 = vpack.i.b16 %v1107, %v1106
      %v1111 = vpack.i.b16 0, 0
      %v1113 = vshrl.u32 0, 16
      %v1114 = vpack.i.b16 %v1113, %v1113
      %v1118 = vpack.i.b16 %v889, %v871
      %v1120 = vshrl.u32 %v871, 16
      %v1121 = vshrl.u32 %v889, 16
      %v1122 = vpack.i.b16 %v1121, %v1120
      %v1126 = vpack.i.b16 %v921, %v905
      %v1128 = vshrl.u32 %v905, 16
      %v1129 = vshrl.u32 %v921, 16
      %v1130 = vpack.i.b16 %v1129, %v1128
      %v1134 = vpack.i.b16 %v953, %v937
      %v1136 = vshrl.u32 %v937, 16
      %v1137 = vshrl.u32 %v953, 16
      %v1138 = vpack.i.b16 %v1137, %v1136
      %v1142 = vpack.i.b16 %v985, %v969
      %v1144 = vshrl.u32 %v969, 16
      %v1145 = vshrl.u32 %v985, 16
      %v1146 = vpack.i.b16 %v1145, %v1144
      %v1150 = vpack.i.b16 %v1017, %v1001
      %v1152 = vshrl.u32 %v1001, 16
      %v1153 = vshrl.u32 %v1017, 16
      %v1154 = vpack.i.b16 %v1153, %v1152
      %v1158 = vpack.i.b16 %v1049, %v1033
      %v1160 = vshrl.u32 %v1033, 16
      %v1161 = vshrl.u32 %v1049, 16
      %v1162 = vpack.i.b16 %v1161, %v1160
      %v1166 = vpack.i.b16 %v891, %v872
      %v1168 = vshrl.u32 %v872, 16
      %v1169 = vshrl.u32 %v891, 16
      %v1170 = vpack.i.b16 %v1169, %v1168
      %v1174 = vpack.i.b16 %v923, %v907
      %v1176 = vshrl.u32 %v907, 16
      %v1177 = vshrl.u32 %v923, 16
      %v1178 = vpack.i.b16 %v1177, %v1176
      %v1182 = vpack.i.b16 %v955, %v939
      %v1184 = vshrl.u32 %v939, 16
      %v1185 = vshrl.u32 %v955, 16
      %v1186 = vpack.i.b16 %v1185, %v1184
      %v1190 = vpack.i.b16 %v987, %v971
      %v1192 = vshrl.u32 %v971, 16
      %v1193 = vshrl.u32 %v987, 16
      %v1194 = vpack.i.b16 %v1193, %v1192
      %v1198 = vpack.i.b16 %v1019, %v1003
      %v1200 = vshrl.u32 %v1003, 16
      %v1201 = vshrl.u32 %v1019, 16
      %v1202 = vpack.i.b16 %v1201, %v1200
      %v1206 = vpack.i.b16 %v1051, %v1035
      %v1208 = vshrl.u32 %v1035, 16
      %v1209 = vshrl.u32 %v1051, 16
      %v1210 = vpack.i.b16 %v1209, %v1208
      %v1214 = vpack.i.b16 %v893, %v873
      %v1216 = vshrl.u32 %v873, 16
      %v1217 = vshrl.u32 %v893, 16
      %v1218 = vpack.i.b16 %v1217, %v1216
      %v1222 = vpack.i.b16 %v925, %v909
      %v1224 = vshrl.u32 %v909, 16
      %v1225 = vshrl.u32 %v925, 16
      %v1226 = vpack.i.b16 %v1225, %v1224
      %v1230 = vpack.i.b16 %v957, %v941
      %v1232 = vshrl.u32 %v941, 16
      %v1233 = vshrl.u32 %v957, 16
      %v1234 = vpack.i.b16 %v1233, %v1232
      %v1238 = vpack.i.b16 %v989, %v973
      %v1240 = vshrl.u32 %v973, 16
      %v1241 = vshrl.u32 %v989, 16
      %v1242 = vpack.i.b16 %v1241, %v1240
      %v1246 = vpack.i.b16 %v1021, %v1005
      %v1248 = vshrl.u32 %v1005, 16
      %v1249 = vshrl.u32 %v1021, 16
      %v1250 = vpack.i.b16 %v1249, %v1248
      %v1254 = vpack.i.b16 %v1053, %v1037
      %v1256 = vshrl.u32 %v1037, 16
      %v1257 = vshrl.u32 %v1053, 16
      %v1258 = vpack.i.b16 %v1257, %v1256
      %v1262 = vpack.i.b16 %v895, %v874
      %v1264 = vshrl.u32 %v874, 16
      %v1265 = vshrl.u32 %v895, 16
      %v1266 = vpack.i.b16 %v1265, %v1264
      %v1270 = vpack.i.b16 %v927, %v911
      %v1272 = vshrl.u32 %v911, 16
      %v1273 = vshrl.u32 %v927, 16
      %v1274 = vpack.i.b16 %v1273, %v1272
      %v1278 = vpack.i.b16 %v959, %v943
      %v1280 = vshrl.u32 %v943, 16
      %v1281 = vshrl.u32 %v959, 16
      %v1282 = vpack.i.b16 %v1281, %v1280
      %v1286 = vpack.i.b16 %v991, %v975
      %v1288 = vshrl.u32 %v975, 16
      %v1289 = vshrl.u32 %v991, 16
      %v1290 = vpack.i.b16 %v1289, %v1288
      %v1294 = vpack.i.b16 %v1023, %v1007
      %v1296 = vshrl.u32 %v1007, 16
      %v1297 = vshrl.u32 %v1023, 16
      %v1298 = vpack.i.b16 %v1297, %v1296
      %v1302 = vpack.i.b16 %v1055, %v1039
      %v1304 = vshrl.u32 %v1039, 16
      %v1305 = vshrl.u32 %v1055, 16
      %v1306 = vpack.i.b16 %v1305, %v1304
      %v1310 = vpack.i.b16 %v897, %v875
      %v1312 = vshrl.u32 %v875, 16
      %v1313 = vshrl.u32 %v897, 16
      %v1314 = vpack.i.b16 %v1313, %v1312
      %v1318 = vpack.i.b16 %v929, %v913
      %v1320 = vshrl.u32 %v913, 16
      %v1321 = vshrl.u32 %v929, 16
      %v1322 = vpack.i.b16 %v1321, %v1320
      %v1326 = vpack.i.b16 %v961, %v945
      %v1328 = vshrl.u32 %v945, 16
      %v1329 = vshrl.u32 %v961, 16
      %v1330 = vpack.i.b16 %v1329, %v1328
      %v1334 = vpack.i.b16 %v993, %v977
      %v1336 = vshrl.u32 %v977, 16
      %v1337 = vshrl.u32 %v993, 16
      %v1338 = vpack.i.b16 %v1337, %v1336
      %v1342 = vpack.i.b16 %v1025, %v1009
      %v1344 = vshrl.u32 %v1009, 16
      %v1345 = vshrl.u32 %v1025, 16
      %v1346 = vpack.i.b16 %v1345, %v1344
      %v1350 = vpack.i.b16 %v1057, %v1041
      %v1352 = vshrl.u32 %v1041, 16
      %v1353 = vshrl.u32 %v1057, 16
      %v1354 = vpack.i.b16 %v1353, %v1352
      %v1358 = vpack.i.b16 %v899, %v876
      %v1360 = vshrl.u32 %v876, 16
      %v1361 = vshrl.u32 %v899, 16
      %v1362 = vpack.i.b16 %v1361, %v1360
      %v1366 = vpack.i.b16 %v931, %v915
      %v1368 = vshrl.u32 %v915, 16
      %v1369 = vshrl.u32 %v931, 16
      %v1370 = vpack.i.b16 %v1369, %v1368
      %v1374 = vpack.i.b16 %v963, %v947
      %v1376 = vshrl.u32 %v947, 16
      %v1377 = vshrl.u32 %v963, 16
      %v1378 = vpack.i.b16 %v1377, %v1376
      %v1382 = vpack.i.b16 %v995, %v979
      %v1384 = vshrl.u32 %v979, 16
      %v1385 = vshrl.u32 %v995, 16
      %v1386 = vpack.i.b16 %v1385, %v1384
      %v1390 = vpack.i.b16 %v1027, %v1011
      %v1392 = vshrl.u32 %v1011, 16
      %v1393 = vshrl.u32 %v1027, 16
      %v1394 = vpack.i.b16 %v1393, %v1392
      %v1398 = vpack.i.b16 %v1059, %v1043
      %v1400 = vshrl.u32 %v1043, 16
      %v1401 = vshrl.u32 %v1059, 16
      %v1402 = vpack.i.b16 %v1401, %v1400
      %v1406 = vpack.i.b16 %v901, %v877
      %v1408 = vshrl.u32 %v877, 16
      %v1409 = vshrl.u32 %v901, 16
      %v1410 = vpack.i.b16 %v1409, %v1408
      %v1414 = vpack.i.b16 %v933, %v917
      %v1416 = vshrl.u32 %v917, 16
      %v1417 = vshrl.u32 %v933, 16
      %v1418 = vpack.i.b16 %v1417, %v1416
      %v1422 = vpack.i.b16 %v965, %v949
      %v1424 = vshrl.u32 %v949, 16
      %v1425 = vshrl.u32 %v965, 16
      %v1426 = vpack.i.b16 %v1425, %v1424
      %v1430 = vpack.i.b16 %v997, %v981
      %v1432 = vshrl.u32 %v981, 16
      %v1433 = vshrl.u32 %v997, 16
      %v1434 = vpack.i.b16 %v1433, %v1432
      %v1438 = vpack.i.b16 %v1029, %v1013
      %v1440 = vshrl.u32 %v1013, 16
      %v1441 = vshrl.u32 %v1029, 16
      %v1442 = vpack.i.b16 %v1441, %v1440
      %v1446 = vpack.i.b16 %v1061, %v1045
      %v1448 = vshrl.u32 %v1045, 16
      %v1449 = vshrl.u32 %v1061, 16
      %v1450 = vpack.i.b16 %v1449, %v1448
      %v1452 = vcombine.low %v1064, %v1080
      %v1453 = vcombine.high %v1064, %v1080
      %v1455 = vunpack.c.l.s4 1983009808
      %v1456 = vunpack.c.0.s8 %v1455
      %v1457 = vlaneseq
      %v1458 = vshrl.u32 %v1457, 7
      %v1459 = vsub.s32 %v1456, %v1458
      %v1460 = vrot.slane %v1452, %v1459
      %v1462 = vunpack.c.l.s4 1983009808
      %v1463 = vunpack.c.0.s8 %v1462
      %v1464 = vlaneseq
      %v1465 = vshrl.u32 %v1464, 7
      %v1466 = vsub.s32 %v1463, %v1465
      %v1467 = vrot.slane %v1453, %v1466
      %v1468 = vcombine.low %v1072, %v1088
      %v1469 = vcombine.high %v1072, %v1088
      %v1471 = vunpack.c.l.s4 1983009808
      %v1472 = vunpack.c.0.s8 %v1471
      %v1473 = vlaneseq
      %v1474 = vshrl.u32 %v1473, 7
      %v1475 = vsub.s32 %v1472, %v1474
      %v1476 = vrot.slane %v1468, %v1475
      %v1478 = vunpack.c.l.s4 1983009808
      %v1479 = vunpack.c.0.s8 %v1478
      %v1480 = vlaneseq
      %v1481 = vshrl.u32 %v1480, 7
      %v1482 = vsub.s32 %v1479, %v1481
      %v1483 = vrot.slane %v1469, %v1482
      %v1484 = vcombine.high %v1096, %v1111
      %v1486 = vunpack.c.l.s4 1983009808
      %v1487 = vunpack.c.0.s8 %v1486
      %v1488 = vlaneseq
      %v1489 = vshrl.u32 %v1488, 7
      %v1490 = vsub.s32 %v1487, %v1489
      %v1491 = vrot.slane %v1096, %v1490
      %v1493 = vunpack.c.l.s4 1983009808
      %v1494 = vunpack.c.0.s8 %v1493
      %v1495 = vlaneseq
      %v1496 = vshrl.u32 %v1495, 7
      %v1497 = vsub.s32 %v1494, %v1496
      %v1498 = vrot.slane %v1484, %v1497
      %v1499 = vcombine.high %v1104, %v1111
      %v1501 = vunpack.c.l.s4 1983009808
      %v1502 = vunpack.c.0.s8 %v1501
      %v1503 = vlaneseq
      %v1504 = vshrl.u32 %v1503, 7
      %v1505 = vsub.s32 %v1502, %v1504
      %v1506 = vrot.slane %v1104, %v1505
      %v1508 = vunpack.c.l.s4 1983009808
      %v1509 = vunpack.c.0.s8 %v1508
      %v1510 = vlaneseq
      %v1511 = vshrl.u32 %v1510, 7
      %v1512 = vsub.s32 %v1509, %v1511
      %v1513 = vrot.slane %v1499, %v1512
      %v1514 = vcombine.low %v1460, %v1476
      %v1515 = vcombine.high %v1460, %v1476
      %v1517 = vunpack.c.l.s4 1934713408
      %v1518 = vunpack.c.0.s8 %v1517
      %v1519 = vlaneseq
      %v1520 = vshrl.u32 %v1519, 7
      %v1521 = vsub.s32 %v1518, %v1520
      %v1522 = vrot.slane %v1514, %v1521
      %v1524 = vunpack.c.l.s4 1934713408
      %v1525 = vunpack.c.0.s8 %v1524
      %v1526 = vlaneseq
      %v1527 = vshrl.u32 %v1526, 7
      %v1528 = vsub.s32 %v1525, %v1527
      %v1529 = vrot.slane %v1515, %v1528
      %v1530 = vcombine.low %v1467, %v1483
      %v1531 = vcombine.high %v1467, %v1483
      %v1533 = vunpack.c.l.s4 1934713408
      %v1534 = vunpack.c.0.s8 %v1533
      %v1535 = vlaneseq
      %v1536 = vshrl.u32 %v1535, 7
      %v1537 = vsub.s32 %v1534, %v1536
      %v1538 = vrot.slane %v1530, %v1537
      %v1540 = vunpack.c.l.s4 1934713408
      %v1541 = vunpack.c.0.s8 %v1540
      %v1542 = vlaneseq
      %v1543 = vshrl.u32 %v1542, 7
      %v1544 = vsub.s32 %v1541, %v1543
      %v1545 = vrot.slane %v1531, %v1544
      %v1546 = vcombine.low %v1491, %v1506
      %v1547 = vcombine.high %v1491, %v1506
      %v1549 = vunpack.c.l.s4 1934713408
      %v1550 = vunpack.c.0.s8 %v1549
      %v1551 = vlaneseq
      %v1552 = vshrl.u32 %v1551, 7
      %v1553 = vsub.s32 %v1550, %v1552
      %v1554 = vrot.slane %v1546, %v1553
      %v1556 = vunpack.c.l.s4 1934713408
      %v1557 = vunpack.c.0.s8 %v1556
      %v1558 = vlaneseq
      %v1559 = vshrl.u32 %v1558, 7
      %v1560 = vsub.s32 %v1557, %v1559
      %v1561 = vrot.slane %v1547, %v1560
      %v1562 = vcombine.low %v1498, %v1513
      %v1563 = vcombine.high %v1498, %v1513
      %v1565 = vunpack.c.l.s4 1934713408
      %v1566 = vunpack.c.0.s8 %v1565
      %v1567 = vlaneseq
      %v1568 = vshrl.u32 %v1567, 7
      %v1569 = vsub.s32 %v1566, %v1568
      %v1570 = vrot.slane %v1562, %v1569
      %v1572 = vunpack.c.l.s4 1934713408
      %v1573 = vunpack.c.0.s8 %v1572
      %v1574 = vlaneseq
      %v1575 = vshrl.u32 %v1574, 7
      %v1576 = vsub.s32 %v1573, %v1575
      %v1577 = vrot.slane %v1563, %v1576
      %v1578 = vcombine.low %v1522, %v1554
      %v1579 = vcombine.high %v1522, %v1554
      %v1580 = vcombine.low %v1529, %v1561
      %v1581 = vcombine.high %v1529, %v1561
      %v1582 = vcombine.low %v1538, %v1570
      %v1583 = vcombine.high %v1538, %v1570
      %v1584 = vcombine.low %v1545, %v1577
      %v1585 = vcombine.high %v1545, %v1577
      %v1586 = vcombine.low %v1068, %v1084
      %v1587 = vcombine.high %v1068, %v1084
      %v1589 = vunpack.c.l.s4 1983009808
      %v1590 = vunpack.c.0.s8 %v1589
      %v1591 = vlaneseq
      %v1592 = vshrl.u32 %v1591, 7
      %v1593 = vsub.s32 %v1590, %v1592
      %v1594 = vrot.slane %v1586, %v1593
      %v1596 = vunpack.c.l.s4 1983009808
      %v1597 = vunpack.c.0.s8 %v1596
      %v1598 = vlaneseq
      %v1599 = vshrl.u32 %v1598, 7
      %v1600 = vsub.s32 %v1597, %v1599
      %v1601 = vrot.slane %v1587, %v1600
      %v1602 = vcombine.low %v1076, %v1092
      %v1603 = vcombine.high %v1076, %v1092
      %v1605 = vunpack.c.l.s4 1983009808
      %v1606 = vunpack.c.0.s8 %v1605
      %v1607 = vlaneseq
      %v1608 = vshrl.u32 %v1607, 7
      %v1609 = vsub.s32 %v1606, %v1608
      %v1610 = vrot.slane %v1602, %v1609
      %v1612 = vunpack.c.l.s4 1983009808
      %v1613 = vunpack.c.0.s8 %v1612
      %v1614 = vlaneseq
      %v1615 = vshrl.u32 %v1614, 7
      %v1616 = vsub.s32 %v1613, %v1615
      %v1617 = vrot.slane %v1603, %v1616
      %v1618 = vcombine.high %v1100, %v1114
      %v1620 = vunpack.c.l.s4 1983009808
      %v1621 = vunpack.c.0.s8 %v1620
      %v1622 = vlaneseq
      %v1623 = vshrl.u32 %v1622, 7
      %v1624 = vsub.s32 %v1621, %v1623
      %v1625 = vrot.slane %v1100, %v1624
      %v1627 = vunpack.c.l.s4 1983009808
      %v1628 = vunpack.c.0.s8 %v1627
      %v1629 = vlaneseq
      %v1630 = vshrl.u32 %v1629, 7
      %v1631 = vsub.s32 %v1628, %v1630
      %v1632 = vrot.slane %v1618, %v1631
      %v1633 = vcombine.high %v1108, %v1114
      %v1635 = vunpack.c.l.s4 1983009808
      %v1636 = vunpack.c.0.s8 %v1635
      %v1637 = vlaneseq
      %v1638 = vshrl.u32 %v1637, 7
      %v1639 = vsub.s32 %v1636, %v1638
      %v1640 = vrot.slane %v1108, %v1639
      %v1642 = vunpack.c.l.s4 1983009808
      %v1643 = vunpack.c.0.s8 %v1642
      %v1644 = vlaneseq
      %v1645 = vshrl.u32 %v1644, 7
      %v1646 = vsub.s32 %v1643, %v1645
      %v1647 = vrot.slane %v1633, %v1646
      %v1648 = vcombine.low %v1594, %v1610
      %v1649 = vcombine.high %v1594, %v1610
      %v1651 = vunpack.c.l.s4 1934713408
      %v1652 = vunpack.c.0.s8 %v1651
      %v1653 = vlaneseq
      %v1654 = vshrl.u32 %v1653, 7
      %v1655 = vsub.s32 %v1652, %v1654
      %v1656 = vrot.slane %v1648, %v1655
      %v1658 = vunpack.c.l.s4 1934713408
      %v1659 = vunpack.c.0.s8 %v1658
      %v1660 = vlaneseq
      %v1661 = vshrl.u32 %v1660, 7
      %v1662 = vsub.s32 %v1659, %v1661
      %v1663 = vrot.slane %v1649, %v1662
      %v1664 = vcombine.low %v1601, %v1617
      %v1665 = vcombine.high %v1601, %v1617
      %v1667 = vunpack.c.l.s4 1934713408
      %v1668 = vunpack.c.0.s8 %v1667
      %v1669 = vlaneseq
      %v1670 = vshrl.u32 %v1669, 7
      %v1671 = vsub.s32 %v1668, %v1670
      %v1672 = vrot.slane %v1664, %v1671
      %v1674 = vunpack.c.l.s4 1934713408
      %v1675 = vunpack.c.0.s8 %v1674
      %v1676 = vlaneseq
      %v1677 = vshrl.u32 %v1676, 7
      %v1678 = vsub.s32 %v1675, %v1677
      %v1679 = vrot.slane %v1665, %v1678
      %v1680 = vcombine.low %v1625, %v1640
      %v1681 = vcombine.high %v1625, %v1640
      %v1683 = vunpack.c.l.s4 1934713408
      %v1684 = vunpack.c.0.s8 %v1683
      %v1685 = vlaneseq
      %v1686 = vshrl.u32 %v1685, 7
      %v1687 = vsub.s32 %v1684, %v1686
      %v1688 = vrot.slane %v1680, %v1687
      %v1690 = vunpack.c.l.s4 1934713408
      %v1691 = vunpack.c.0.s8 %v1690
      %v1692 = vlaneseq
      %v1693 = vshrl.u32 %v1692, 7
      %v1694 = vsub.s32 %v1691, %v1693
      %v1695 = vrot.slane %v1681, %v1694
      %v1696 = vcombine.low %v1632, %v1647
      %v1697 = vcombine.high %v1632, %v1647
      %v1699 = vunpack.c.l.s4 1934713408
      %v1700 = vunpack.c.0.s8 %v1699
      %v1701 = vlaneseq
      %v1702 = vshrl.u32 %v1701, 7
      %v1703 = vsub.s32 %v1700, %v1702
      %v1704 = vrot.slane %v1696, %v1703
      %v1706 = vunpack.c.l.s4 1934713408
      %v1707 = vunpack.c.0.s8 %v1706
      %v1708 = vlaneseq
      %v1709 = vshrl.u32 %v1708, 7
      %v1710 = vsub.s32 %v1707, %v1709
      %v1711 = vrot.slane %v1697, %v1710
      %v1712 = vcombine.low %v1656, %v1688
      %v1713 = vcombine.high %v1656, %v1688
      %v1714 = vcombine.low %v1663, %v1695
      %v1715 = vcombine.high %v1663, %v1695
      %v1716 = vcombine.low %v1672, %v1704
      %v1717 = vcombine.high %v1672, %v1704
      %v1718 = vcombine.low %v1679, %v1711
      %v1719 = vcombine.high %v1679, %v1711
      %v1720 = vcombine.low %v1118, %v1134
      %v1721 = vcombine.high %v1118, %v1134
      %v1723 = vunpack.c.l.s4 1983009808
      %v1724 = vunpack.c.0.s8 %v1723
      %v1725 = vlaneseq
      %v1726 = vshrl.u32 %v1725, 7
      %v1727 = vsub.s32 %v1724, %v1726
      %v1728 = vrot.slane %v1720, %v1727
      %v1730 = vunpack.c.l.s4 1983009808
      %v1731 = vunpack.c.0.s8 %v1730
      %v1732 = vlaneseq
      %v1733 = vshrl.u32 %v1732, 7
      %v1734 = vsub.s32 %v1731, %v1733
      %v1735 = vrot.slane %v1721, %v1734
      %v1736 = vcombine.low %v1126, %v1142
      %v1737 = vcombine.high %v1126, %v1142
      %v1739 = vunpack.c.l.s4 1983009808
      %v1740 = vunpack.c.0.s8 %v1739
      %v1741 = vlaneseq
      %v1742 = vshrl.u32 %v1741, 7
      %v1743 = vsub.s32 %v1740, %v1742
      %v1744 = vrot.slane %v1736, %v1743
      %v1746 = vunpack.c.l.s4 1983009808
      %v1747 = vunpack.c.0.s8 %v1746
      %v1748 = vlaneseq
      %v1749 = vshrl.u32 %v1748, 7
      %v1750 = vsub.s32 %v1747, %v1749
      %v1751 = vrot.slane %v1737, %v1750
      %v1752 = vcombine.high %v1150, %v1111
      %v1754 = vunpack.c.l.s4 1983009808
      %v1755 = vunpack.c.0.s8 %v1754
      %v1756 = vlaneseq
      %v1757 = vshrl.u32 %v1756, 7
      %v1758 = vsub.s32 %v1755, %v1757
      %v1759 = vrot.slane %v1150, %v1758
      %v1761 = vunpack.c.l.s4 1983009808
      %v1762 = vunpack.c.0.s8 %v1761
      %v1763 = vlaneseq
      %v1764 = vshrl.u32 %v1763, 7
      %v1765 = vsub.s32 %v1762, %v1764
      %v1766 = vrot.slane %v1752, %v1765
      %v1767 = vcombine.high %v1158, %v1111
      %v1769 = vunpack.c.l.s4 1983009808
      %v1770 = vunpack.c.0.s8 %v1769
      %v1771 = vlaneseq
      %v1772 = vshrl.u32 %v1771, 7
      %v1773 = vsub.s32 %v1770, %v1772
      %v1774 = vrot.slane %v1158, %v1773
      %v1776 = vunpack.c.l.s4 1983009808
      %v1777 = vunpack.c.0.s8 %v1776
      %v1778 = vlaneseq
      %v1779 = vshrl.u32 %v1778, 7
      %v1780 = vsub.s32 %v1777, %v1779
      %v1781 = vrot.slane %v1767, %v1780
      %v1782 = vcombine.low %v1728, %v1744
      %v1783 = vcombine.high %v1728, %v1744
      %v1785 = vunpack.c.l.s4 1934713408
      %v1786 = vunpack.c.0.s8 %v1785
      %v1787 = vlaneseq
      %v1788 = vshrl.u32 %v1787, 7
      %v1789 = vsub.s32 %v1786, %v1788
      %v1790 = vrot.slane %v1782, %v1789
      %v1792 = vunpack.c.l.s4 1934713408
      %v1793 = vunpack.c.0.s8 %v1792
      %v1794 = vlaneseq
      %v1795 = vshrl.u32 %v1794, 7
      %v1796 = vsub.s32 %v1793, %v1795
      %v1797 = vrot.slane %v1783, %v1796
      %v1798 = vcombine.low %v1735, %v1751
      %v1799 = vcombine.high %v1735, %v1751
      %v1801 = vunpack.c.l.s4 1934713408
      %v1802 = vunpack.c.0.s8 %v1801
      %v1803 = vlaneseq
      %v1804 = vshrl.u32 %v1803, 7
      %v1805 = vsub.s32 %v1802, %v1804
      %v1806 = vrot.slane %v1798, %v1805
      %v1808 = vunpack.c.l.s4 1934713408
      %v1809 = vunpack.c.0.s8 %v1808
      %v1810 = vlaneseq
      %v1811 = vshrl.u32 %v1810, 7
      %v1812 = vsub.s32 %v1809, %v1811
      %v1813 = vrot.slane %v1799, %v1812
      %v1814 = vcombine.low %v1759, %v1774
      %v1815 = vcombine.high %v1759, %v1774
      %v1817 = vunpack.c.l.s4 1934713408
      %v1818 = vunpack.c.0.s8 %v1817
      %v1819 = vlaneseq
      %v1820 = vshrl.u32 %v1819, 7
      %v1821 = vsub.s32 %v1818, %v1820
      %v1822 = vrot.slane %v1814, %v1821
      %v1824 = vunpack.c.l.s4 1934713408
      %v1825 = vunpack.c.0.s8 %v1824
      %v1826 = vlaneseq
      %v1827 = vshrl.u32 %v1826, 7
      %v1828 = vsub.s32 %v1825, %v1827
      %v1829 = vrot.slane %v1815, %v1828
      %v1830 = vcombine.low %v1766, %v1781
      %v1831 = vcombine.high %v1766, %v1781
      %v1833 = vunpack.c.l.s4 1934713408
      %v1834 = vunpack.c.0.s8 %v1833
      %v1835 = vlaneseq
      %v1836 = vshrl.u32 %v1835, 7
      %v1837 = vsub.s32 %v1834, %v1836
      %v1838 = vrot.slane %v1830, %v1837
      %v1840 = vunpack.c.l.s4 1934713408
      %v1841 = vunpack.c.0.s8 %v1840
      %v1842 = vlaneseq
      %v1843 = vshrl.u32 %v1842, 7
      %v1844 = vsub.s32 %v1841, %v1843
      %v1845 = vrot.slane %v1831, %v1844
      %v1846 = vcombine.low %v1790, %v1822
      %v1847 = vcombine.high %v1790, %v1822
      %v1848 = vcombine.low %v1797, %v1829
      %v1849 = vcombine.high %v1797, %v1829
      %v1850 = vcombine.low %v1806, %v1838
      %v1851 = vcombine.high %v1806, %v1838
      %v1852 = vcombine.low %v1813, %v1845
      %v1853 = vcombine.high %v1813, %v1845
      %v1854 = vcombine.low %v1122, %v1138
      %v1855 = vcombine.high %v1122, %v1138
      %v1857 = vunpack.c.l.s4 1983009808
      %v1858 = vunpack.c.0.s8 %v1857
      %v1859 = vlaneseq
      %v1860 = vshrl.u32 %v1859, 7
      %v1861 = vsub.s32 %v1858, %v1860
      %v1862 = vrot.slane %v1854, %v1861
      %v1864 = vunpack.c.l.s4 1983009808
      %v1865 = vunpack.c.0.s8 %v1864
      %v1866 = vlaneseq
      %v1867 = vshrl.u32 %v1866, 7
      %v1868 = vsub.s32 %v1865, %v1867
      %v1869 = vrot.slane %v1855, %v1868
      %v1870 = vcombine.low %v1130, %v1146
      %v1871 = vcombine.high %v1130, %v1146
      %v1873 = vunpack.c.l.s4 1983009808
      %v1874 = vunpack.c.0.s8 %v1873
      %v1875 = vlaneseq
      %v1876 = vshrl.u32 %v1875, 7
      %v1877 = vsub.s32 %v1874, %v1876
      %v1878 = vrot.slane %v1870, %v1877
      %v1880 = vunpack.c.l.s4 1983009808
      %v1881 = vunpack.c.0.s8 %v1880
      %v1882 = vlaneseq
      %v1883 = vshrl.u32 %v1882, 7
      %v1884 = vsub.s32 %v1881, %v1883
      %v1885 = vrot.slane %v1871, %v1884
      %v1886 = vcombine.high %v1154, %v1114
      %v1888 = vunpack.c.l.s4 1983009808
      %v1889 = vunpack.c.0.s8 %v1888
      %v1890 = vlaneseq
      %v1891 = vshrl.u32 %v1890, 7
      %v1892 = vsub.s32 %v1889, %v1891
      %v1893 = vrot.slane %v1154, %v1892
      %v1895 = vunpack.c.l.s4 1983009808
      %v1896 = vunpack.c.0.s8 %v1895
      %v1897 = vlaneseq
      %v1898 = vshrl.u32 %v1897, 7
      %v1899 = vsub.s32 %v1896, %v1898
      %v1900 = vrot.slane %v1886, %v1899
      %v1901 = vcombine.high %v1162, %v1114
      %v1903 = vunpack.c.l.s4 1983009808
      %v1904 = vunpack.c.0.s8 %v1903
      %v1905 = vlaneseq
      %v1906 = vshrl.u32 %v1905, 7
      %v1907 = vsub.s32 %v1904, %v1906
      %v1908 = vrot.slane %v1162, %v1907
      %v1910 = vunpack.c.l.s4 1983009808
      %v1911 = vunpack.c.0.s8 %v1910
      %v1912 = vlaneseq
      %v1913 = vshrl.u32 %v1912, 7
      %v1914 = vsub.s32 %v1911, %v1913
      %v1915 = vrot.slane %v1901, %v1914
      %v1916 = vcombine.low %v1862, %v1878
      %v1917 = vcombine.high %v1862, %v1878
      %v1919 = vunpack.c.l.s4 1934713408
      %v1920 = vunpack.c.0.s8 %v1919
      %v1921 = vlaneseq
      %v1922 = vshrl.u32 %v1921, 7
      %v1923 = vsub.s32 %v1920, %v1922
      %v1924 = vrot.slane %v1916, %v1923
      %v1926 = vunpack.c.l.s4 1934713408
      %v1927 = vunpack.c.0.s8 %v1926
      %v1928 = vlaneseq
      %v1929 = vshrl.u32 %v1928, 7
      %v1930 = vsub.s32 %v1927, %v1929
      %v1931 = vrot.slane %v1917, %v1930
      %v1932 = vcombine.low %v1869, %v1885
      %v1933 = vcombine.high %v1869, %v1885
      %v1935 = vunpack.c.l.s4 1934713408
      %v1936 = vunpack.c.0.s8 %v1935
      %v1937 = vlaneseq
      %v1938 = vshrl.u32 %v1937, 7
      %v1939 = vsub.s32 %v1936, %v1938
      %v1940 = vrot.slane %v1932, %v1939
      %v1942 = vunpack.c.l.s4 1934713408
      %v1943 = vunpack.c.0.s8 %v1942
      %v1944 = vlaneseq
      %v1945 = vshrl.u32 %v1944, 7
      %v1946 = vsub.s32 %v1943, %v1945
      %v1947 = vrot.slane %v1933, %v1946
      %v1948 = vcombine.low %v1893, %v1908
      %v1949 = vcombine.high %v1893, %v1908
      %v1951 = vunpack.c.l.s4 1934713408
      %v1952 = vunpack.c.0.s8 %v1951
      %v1953 = vlaneseq
      %v1954 = vshrl.u32 %v1953, 7
      %v1955 = vsub.s32 %v1952, %v1954
      %v1956 = vrot.slane %v1948, %v1955
      %v1958 = vunpack.c.l.s4 1934713408
      %v1959 = vunpack.c.0.s8 %v1958
      %v1960 = vlaneseq
      %v1961 = vshrl.u32 %v1960, 7
      %v1962 = vsub.s32 %v1959, %v1961
      %v1963 = vrot.slane %v1949, %v1962
      %v1964 = vcombine.low %v1900, %v1915
      %v1965 = vcombine.high %v1900, %v1915
      %v1967 = vunpack.c.l.s4 1934713408
      %v1968 = vunpack.c.0.s8 %v1967
      %v1969 = vlaneseq
      %v1970 = vshrl.u32 %v1969, 7
      %v1971 = vsub.s32 %v1968, %v1970
      %v1972 = vrot.slane %v1964, %v1971
      %v1974 = vunpack.c.l.s4 1934713408
      %v1975 = vunpack.c.0.s8 %v1974
      %v1976 = vlaneseq
      %v1977 = vshrl.u32 %v1976, 7
      %v1978 = vsub.s32 %v1975, %v1977
      %v1979 = vrot.slane %v1965, %v1978
      %v1980 = vcombine.low %v1924, %v1956
      %v1981 = vcombine.high %v1924, %v1956
      %v1982 = vcombine.low %v1931, %v1963
      %v1983 = vcombine.high %v1931, %v1963
      %v1984 = vcombine.low %v1940, %v1972
      %v1985 = vcombine.high %v1940, %v1972
      %v1986 = vcombine.low %v1947, %v1979
      %v1987 = vcombine.high %v1947, %v1979
      %v1988 = vcombine.low %v1166, %v1182
      %v1989 = vcombine.high %v1166, %v1182
      %v1991 = vunpack.c.l.s4 1983009808
      %v1992 = vunpack.c.0.s8 %v1991
      %v1993 = vlaneseq
      %v1994 = vshrl.u32 %v1993, 7
      %v1995 = vsub.s32 %v1992, %v1994
      %v1996 = vrot.slane %v1988, %v1995
      %v1998 = vunpack.c.l.s4 1983009808
      %v1999 = vunpack.c.0.s8 %v1998
      %v2000 = vlaneseq
      %v2001 = vshrl.u32 %v2000, 7
      %v2002 = vsub.s32 %v1999, %v2001
      %v2003 = vrot.slane %v1989, %v2002
      %v2004 = vcombine.low %v1174, %v1190
      %v2005 = vcombine.high %v1174, %v1190
      %v2007 = vunpack.c.l.s4 1983009808
      %v2008 = vunpack.c.0.s8 %v2007
      %v2009 = vlaneseq
      %v2010 = vshrl.u32 %v2009, 7
      %v2011 = vsub.s32 %v2008, %v2010
      %v2012 = vrot.slane %v2004, %v2011
      %v2014 = vunpack.c.l.s4 1983009808
      %v2015 = vunpack.c.0.s8 %v2014
      %v2016 = vlaneseq
      %v2017 = vshrl.u32 %v2016, 7
      %v2018 = vsub.s32 %v2015, %v2017
      %v2019 = vrot.slane %v2005, %v2018
      %v2020 = vcombine.high %v1198, %v1111
      %v2022 = vunpack.c.l.s4 1983009808
      %v2023 = vunpack.c.0.s8 %v2022
      %v2024 = vlaneseq
      %v2025 = vshrl.u32 %v2024, 7
      %v2026 = vsub.s32 %v2023, %v2025
      %v2027 = vrot.slane %v1198, %v2026
      %v2029 = vunpack.c.l.s4 1983009808
      %v2030 = vunpack.c.0.s8 %v2029
      %v2031 = vlaneseq
      %v2032 = vshrl.u32 %v2031, 7
      %v2033 = vsub.s32 %v2030, %v2032
      %v2034 = vrot.slane %v2020, %v2033
      %v2035 = vcombine.high %v1206, %v1111
      %v2037 = vunpack.c.l.s4 1983009808
      %v2038 = vunpack.c.0.s8 %v2037
      %v2039 = vlaneseq
      %v2040 = vshrl.u32 %v2039, 7
      %v2041 = vsub.s32 %v2038, %v2040
      %v2042 = vrot.slane %v1206, %v2041
      %v2044 = vunpack.c.l.s4 1983009808
      %v2045 = vunpack.c.0.s8 %v2044
      %v2046 = vlaneseq
      %v2047 = vshrl.u32 %v2046, 7
      %v2048 = vsub.s32 %v2045, %v2047
      %v2049 = vrot.slane %v2035, %v2048
      %v2050 = vcombine.low %v1996, %v2012
      %v2051 = vcombine.high %v1996, %v2012
      %v2053 = vunpack.c.l.s4 1934713408
      %v2054 = vunpack.c.0.s8 %v2053
      %v2055 = vlaneseq
      %v2056 = vshrl.u32 %v2055, 7
      %v2057 = vsub.s32 %v2054, %v2056
      %v2058 = vrot.slane %v2050, %v2057
      %v2060 = vunpack.c.l.s4 1934713408
      %v2061 = vunpack.c.0.s8 %v2060
      %v2062 = vlaneseq
      %v2063 = vshrl.u32 %v2062, 7
      %v2064 = vsub.s32 %v2061, %v2063
      %v2065 = vrot.slane %v2051, %v2064
      %v2066 = vcombine.low %v2003, %v2019
      %v2067 = vcombine.high %v2003, %v2019
      %v2069 = vunpack.c.l.s4 1934713408
      %v2070 = vunpack.c.0.s8 %v2069
      %v2071 = vlaneseq
      %v2072 = vshrl.u32 %v2071, 7
      %v2073 = vsub.s32 %v2070, %v2072
      %v2074 = vrot.slane %v2066, %v2073
      %v2076 = vunpack.c.l.s4 1934713408
      %v2077 = vunpack.c.0.s8 %v2076
      %v2078 = vlaneseq
      %v2079 = vshrl.u32 %v2078, 7
      %v2080 = vsub.s32 %v2077, %v2079
      %v2081 = vrot.slane %v2067, %v2080
      %v2082 = vcombine.low %v2027, %v2042
      %v2083 = vcombine.high %v2027, %v2042
      %v2085 = vunpack.c.l.s4 1934713408
      %v2086 = vunpack.c.0.s8 %v2085
      %v2087 = vlaneseq
      %v2088 = vshrl.u32 %v2087, 7
      %v2089 = vsub.s32 %v2086, %v2088
      %v2090 = vrot.slane %v2082, %v2089
      %v2092 = vunpack.c.l.s4 1934713408
      %v2093 = vunpack.c.0.s8 %v2092
      %v2094 = vlaneseq
      %v2095 = vshrl.u32 %v2094, 7
      %v2096 = vsub.s32 %v2093, %v2095
      %v2097 = vrot.slane %v2083, %v2096
      %v2098 = vcombine.low %v2034, %v2049
      %v2099 = vcombine.high %v2034, %v2049
      %v2101 = vunpack.c.l.s4 1934713408
      %v2102 = vunpack.c.0.s8 %v2101
      %v2103 = vlaneseq
      %v2104 = vshrl.u32 %v2103, 7
      %v2105 = vsub.s32 %v2102, %v2104
      %v2106 = vrot.slane %v2098, %v2105
      %v2108 = vunpack.c.l.s4 1934713408
      %v2109 = vunpack.c.0.s8 %v2108
      %v2110 = vlaneseq
      %v2111 = vshrl.u32 %v2110, 7
      %v2112 = vsub.s32 %v2109, %v2111
      %v2113 = vrot.slane %v2099, %v2112
      %v2114 = vcombine.low %v2058, %v2090
      %v2115 = vcombine.high %v2058, %v2090
      %v2116 = vcombine.low %v2065, %v2097
      %v2117 = vcombine.high %v2065, %v2097
      %v2118 = vcombine.low %v2074, %v2106
      %v2119 = vcombine.high %v2074, %v2106
      %v2120 = vcombine.low %v2081, %v2113
      %v2121 = vcombine.high %v2081, %v2113
      %v2122 = vcombine.low %v1170, %v1186
      %v2123 = vcombine.high %v1170, %v1186
      %v2125 = vunpack.c.l.s4 1983009808
      %v2126 = vunpack.c.0.s8 %v2125
      %v2127 = vlaneseq
      %v2128 = vshrl.u32 %v2127, 7
      %v2129 = vsub.s32 %v2126, %v2128
      %v2130 = vrot.slane %v2122, %v2129
      %v2132 = vunpack.c.l.s4 1983009808
      %v2133 = vunpack.c.0.s8 %v2132
      %v2134 = vlaneseq
      %v2135 = vshrl.u32 %v2134, 7
      %v2136 = vsub.s32 %v2133, %v2135
      %v2137 = vrot.slane %v2123, %v2136
      %v2138 = vcombine.low %v1178, %v1194
      %v2139 = vcombine.high %v1178, %v1194
      %v2141 = vunpack.c.l.s4 1983009808
      %v2142 = vunpack.c.0.s8 %v2141
      %v2143 = vlaneseq
      %v2144 = vshrl.u32 %v2143, 7
      %v2145 = vsub.s32 %v2142, %v2144
      %v2146 = vrot.slane %v2138, %v2145
      %v2148 = vunpack.c.l.s4 1983009808
      %v2149 = vunpack.c.0.s8 %v2148
      %v2150 = vlaneseq
      %v2151 = vshrl.u32 %v2150, 7
      %v2152 = vsub.s32 %v2149, %v2151
      %v2153 = vrot.slane %v2139, %v2152
      %v2154 = vcombine.high %v1202, %v1114
      %v2156 = vunpack.c.l.s4 1983009808
      %v2157 = vunpack.c.0.s8 %v2156
      %v2158 = vlaneseq
      %v2159 = vshrl.u32 %v2158, 7
      %v2160 = vsub.s32 %v2157, %v2159
      %v2161 = vrot.slane %v1202, %v2160
      %v2163 = vunpack.c.l.s4 1983009808
      %v2164 = vunpack.c.0.s8 %v2163
      %v2165 = vlaneseq
      %v2166 = vshrl.u32 %v2165, 7
      %v2167 = vsub.s32 %v2164, %v2166
      %v2168 = vrot.slane %v2154, %v2167
      %v2169 = vcombine.high %v1210, %v1114
      %v2171 = vunpack.c.l.s4 1983009808
      %v2172 = vunpack.c.0.s8 %v2171
      %v2173 = vlaneseq
      %v2174 = vshrl.u32 %v2173, 7
      %v2175 = vsub.s32 %v2172, %v2174
      %v2176 = vrot.slane %v1210, %v2175
      %v2178 = vunpack.c.l.s4 1983009808
      %v2179 = vunpack.c.0.s8 %v2178
      %v2180 = vlaneseq
      %v2181 = vshrl.u32 %v2180, 7
      %v2182 = vsub.s32 %v2179, %v2181
      %v2183 = vrot.slane %v2169, %v2182
      %v2184 = vcombine.low %v2130, %v2146
      %v2185 = vcombine.high %v2130, %v2146
      %v2187 = vunpack.c.l.s4 1934713408
      %v2188 = vunpack.c.0.s8 %v2187
      %v2189 = vlaneseq
      %v2190 = vshrl.u32 %v2189, 7
      %v2191 = vsub.s32 %v2188, %v2190
      %v2192 = vrot.slane %v2184, %v2191
      %v2194 = vunpack.c.l.s4 1934713408
      %v2195 = vunpack.c.0.s8 %v2194
      %v2196 = vlaneseq
      %v2197 = vshrl.u32 %v2196, 7
      %v2198 = vsub.s32 %v2195, %v2197
      %v2199 = vrot.slane %v2185, %v2198
      %v2200 = vcombine.low %v2137, %v2153
      %v2201 = vcombine.high %v2137, %v2153
      %v2203 = vunpack.c.l.s4 1934713408
      %v2204 = vunpack.c.0.s8 %v2203
      %v2205 = vlaneseq
      %v2206 = vshrl.u32 %v2205, 7
      %v2207 = vsub.s32 %v2204, %v2206
      %v2208 = vrot.slane %v2200, %v2207
      %v2210 = vunpack.c.l.s4 1934713408
      %v2211 = vunpack.c.0.s8 %v2210
      %v2212 = vlaneseq
      %v2213 = vshrl.u32 %v2212, 7
      %v2214 = vsub.s32 %v2211, %v2213
      %v2215 = vrot.slane %v2201, %v2214
      %v2216 = vcombine.low %v2161, %v2176
      %v2217 = vcombine.high %v2161, %v2176
      %v2219 = vunpack.c.l.s4 1934713408
      %v2220 = vunpack.c.0.s8 %v2219
      %v2221 = vlaneseq
      %v2222 = vshrl.u32 %v2221, 7
      %v2223 = vsub.s32 %v2220, %v2222
      %v2224 = vrot.slane %v2216, %v2223
      %v2226 = vunpack.c.l.s4 1934713408
      %v2227 = vunpack.c.0.s8 %v2226
      %v2228 = vlaneseq
      %v2229 = vshrl.u32 %v2228, 7
      %v2230 = vsub.s32 %v2227, %v2229
      %v2231 = vrot.slane %v2217, %v2230
      %v2232 = vcombine.low %v2168, %v2183
      %v2233 = vcombine.high %v2168, %v2183
      %v2235 = vunpack.c.l.s4 1934713408
      %v2236 = vunpack.c.0.s8 %v2235
      %v2237 = vlaneseq
      %v2238 = vshrl.u32 %v2237, 7
      %v2239 = vsub.s32 %v2236, %v2238
      %v2240 = vrot.slane %v2232, %v2239
      %v2242 = vunpack.c.l.s4 1934713408
      %v2243 = vunpack.c.0.s8 %v2242
      %v2244 = vlaneseq
      %v2245 = vshrl.u32 %v2244, 7
      %v2246 = vsub.s32 %v2243, %v2245
      %v2247 = vrot.slane %v2233, %v2246
      %v2248 = vcombine.low %v2192, %v2224
      %v2249 = vcombine.high %v2192, %v2224
      %v2250 = vcombine.low %v2199, %v2231
      %v2251 = vcombine.high %v2199, %v2231
      %v2252 = vcombine.low %v2208, %v2240
      %v2253 = vcombine.high %v2208, %v2240
      %v2254 = vcombine.low %v2215, %v2247
      %v2255 = vcombine.high %v2215, %v2247
      %v2256 = vcombine.low %v1214, %v1230
      %v2257 = vcombine.high %v1214, %v1230
      %v2259 = vunpack.c.l.s4 1983009808
      %v2260 = vunpack.c.0.s8 %v2259
      %v2261 = vlaneseq
      %v2262 = vshrl.u32 %v2261, 7
      %v2263 = vsub.s32 %v2260, %v2262
      %v2264 = vrot.slane %v2256, %v2263
      %v2266 = vunpack.c.l.s4 1983009808
      %v2267 = vunpack.c.0.s8 %v2266
      %v2268 = vlaneseq
      %v2269 = vshrl.u32 %v2268, 7
      %v2270 = vsub.s32 %v2267, %v2269
      %v2271 = vrot.slane %v2257, %v2270
      %v2272 = vcombine.low %v1222, %v1238
      %v2273 = vcombine.high %v1222, %v1238
      %v2275 = vunpack.c.l.s4 1983009808
      %v2276 = vunpack.c.0.s8 %v2275
      %v2277 = vlaneseq
      %v2278 = vshrl.u32 %v2277, 7
      %v2279 = vsub.s32 %v2276, %v2278
      %v2280 = vrot.slane %v2272, %v2279
      %v2282 = vunpack.c.l.s4 1983009808
      %v2283 = vunpack.c.0.s8 %v2282
      %v2284 = vlaneseq
      %v2285 = vshrl.u32 %v2284, 7
      %v2286 = vsub.s32 %v2283, %v2285
      %v2287 = vrot.slane %v2273, %v2286
      %v2288 = vcombine.high %v1246, %v1111
      %v2290 = vunpack.c.l.s4 1983009808
      %v2291 = vunpack.c.0.s8 %v2290
      %v2292 = vlaneseq
      %v2293 = vshrl.u32 %v2292, 7
      %v2294 = vsub.s32 %v2291, %v2293
      %v2295 = vrot.slane %v1246, %v2294
      %v2297 = vunpack.c.l.s4 1983009808
      %v2298 = vunpack.c.0.s8 %v2297
      %v2299 = vlaneseq
      %v2300 = vshrl.u32 %v2299, 7
      %v2301 = vsub.s32 %v2298, %v2300
      %v2302 = vrot.slane %v2288, %v2301
      %v2303 = vcombine.high %v1254, %v1111
      %v2305 = vunpack.c.l.s4 1983009808
      %v2306 = vunpack.c.0.s8 %v2305
      %v2307 = vlaneseq
      %v2308 = vshrl.u32 %v2307, 7
      %v2309 = vsub.s32 %v2306, %v2308
      %v2310 = vrot.slane %v1254, %v2309
      %v2312 = vunpack.c.l.s4 1983009808
      %v2313 = vunpack.c.0.s8 %v2312
      %v2314 = vlaneseq
      %v2315 = vshrl.u32 %v2314, 7
      %v2316 = vsub.s32 %v2313, %v2315
      %v2317 = vrot.slane %v2303, %v2316
      %v2318 = vcombine.low %v2264, %v2280
      %v2319 = vcombine.high %v2264, %v2280
      %v2321 = vunpack.c.l.s4 1934713408
      %v2322 = vunpack.c.0.s8 %v2321
      %v2323 = vlaneseq
      %v2324 = vshrl.u32 %v2323, 7
      %v2325 = vsub.s32 %v2322, %v2324
      %v2326 = vrot.slane %v2318, %v2325
      %v2328 = vunpack.c.l.s4 1934713408
      %v2329 = vunpack.c.0.s8 %v2328
      %v2330 = vlaneseq
      %v2331 = vshrl.u32 %v2330, 7
      %v2332 = vsub.s32 %v2329, %v2331
      %v2333 = vrot.slane %v2319, %v2332
      %v2334 = vcombine.low %v2271, %v2287
      %v2335 = vcombine.high %v2271, %v2287
      %v2337 = vunpack.c.l.s4 1934713408
      %v2338 = vunpack.c.0.s8 %v2337
      %v2339 = vlaneseq
      %v2340 = vshrl.u32 %v2339, 7
      %v2341 = vsub.s32 %v2338, %v2340
      %v2342 = vrot.slane %v2334, %v2341
      %v2344 = vunpack.c.l.s4 1934713408
      %v2345 = vunpack.c.0.s8 %v2344
      %v2346 = vlaneseq
      %v2347 = vshrl.u32 %v2346, 7
      %v2348 = vsub.s32 %v2345, %v2347
      %v2349 = vrot.slane %v2335, %v2348
      %v2350 = vcombine.low %v2295, %v2310
      %v2351 = vcombine.high %v2295, %v2310
      %v2353 = vunpack.c.l.s4 1934713408
      %v2354 = vunpack.c.0.s8 %v2353
      %v2355 = vlaneseq
      %v2356 = vshrl.u32 %v2355, 7
      %v2357 = vsub.s32 %v2354, %v2356
      %v2358 = vrot.slane %v2350, %v2357
      %v2360 = vunpack.c.l.s4 1934713408
      %v2361 = vunpack.c.0.s8 %v2360
      %v2362 = vlaneseq
      %v2363 = vshrl.u32 %v2362, 7
      %v2364 = vsub.s32 %v2361, %v2363
      %v2365 = vrot.slane %v2351, %v2364
      %v2366 = vcombine.low %v2302, %v2317
      %v2367 = vcombine.high %v2302, %v2317
      %v2369 = vunpack.c.l.s4 1934713408
      %v2370 = vunpack.c.0.s8 %v2369
      %v2371 = vlaneseq
      %v2372 = vshrl.u32 %v2371, 7
      %v2373 = vsub.s32 %v2370, %v2372
      %v2374 = vrot.slane %v2366, %v2373
      %v2376 = vunpack.c.l.s4 1934713408
      %v2377 = vunpack.c.0.s8 %v2376
      %v2378 = vlaneseq
      %v2379 = vshrl.u32 %v2378, 7
      %v2380 = vsub.s32 %v2377, %v2379
      %v2381 = vrot.slane %v2367, %v2380
      %v2382 = vcombine.low %v2326, %v2358
      %v2383 = vcombine.high %v2326, %v2358
      %v2384 = vcombine.low %v2333, %v2365
      %v2385 = vcombine.high %v2333, %v2365
      %v2386 = vcombine.low %v2342, %v2374
      %v2387 = vcombine.high %v2342, %v2374
      %v2388 = vcombine.low %v2349, %v2381
      %v2389 = vcombine.high %v2349, %v2381
      %v2390 = vcombine.low %v1218, %v1234
      %v2391 = vcombine.high %v1218, %v1234
      %v2393 = vunpack.c.l.s4 1983009808
      %v2394 = vunpack.c.0.s8 %v2393
      %v2395 = vlaneseq
      %v2396 = vshrl.u32 %v2395, 7
      %v2397 = vsub.s32 %v2394, %v2396
      %v2398 = vrot.slane %v2390, %v2397
      %v2400 = vunpack.c.l.s4 1983009808
      %v2401 = vunpack.c.0.s8 %v2400
      %v2402 = vlaneseq
      %v2403 = vshrl.u32 %v2402, 7
      %v2404 = vsub.s32 %v2401, %v2403
      %v2405 = vrot.slane %v2391, %v2404
      %v2406 = vcombine.low %v1226, %v1242
      %v2407 = vcombine.high %v1226, %v1242
      %v2409 = vunpack.c.l.s4 1983009808
      %v2410 = vunpack.c.0.s8 %v2409
      %v2411 = vlaneseq
      %v2412 = vshrl.u32 %v2411, 7
      %v2413 = vsub.s32 %v2410, %v2412
      %v2414 = vrot.slane %v2406, %v2413
      %v2416 = vunpack.c.l.s4 1983009808
      %v2417 = vunpack.c.0.s8 %v2416
      %v2418 = vlaneseq
      %v2419 = vshrl.u32 %v2418, 7
      %v2420 = vsub.s32 %v2417, %v2419
      %v2421 = vrot.slane %v2407, %v2420
      %v2422 = vcombine.high %v1250, %v1114
      %v2424 = vunpack.c.l.s4 1983009808
      %v2425 = vunpack.c.0.s8 %v2424
      %v2426 = vlaneseq
      %v2427 = vshrl.u32 %v2426, 7
      %v2428 = vsub.s32 %v2425, %v2427
      %v2429 = vrot.slane %v1250, %v2428
      %v2431 = vunpack.c.l.s4 1983009808
      %v2432 = vunpack.c.0.s8 %v2431
      %v2433 = vlaneseq
      %v2434 = vshrl.u32 %v2433, 7
      %v2435 = vsub.s32 %v2432, %v2434
      %v2436 = vrot.slane %v2422, %v2435
      %v2437 = vcombine.high %v1258, %v1114
      %v2439 = vunpack.c.l.s4 1983009808
      %v2440 = vunpack.c.0.s8 %v2439
      %v2441 = vlaneseq
      %v2442 = vshrl.u32 %v2441, 7
      %v2443 = vsub.s32 %v2440, %v2442
      %v2444 = vrot.slane %v1258, %v2443
      %v2446 = vunpack.c.l.s4 1983009808
      %v2447 = vunpack.c.0.s8 %v2446
      %v2448 = vlaneseq
      %v2449 = vshrl.u32 %v2448, 7
      %v2450 = vsub.s32 %v2447, %v2449
      %v2451 = vrot.slane %v2437, %v2450
      %v2452 = vcombine.low %v2398, %v2414
      %v2453 = vcombine.high %v2398, %v2414
      %v2455 = vunpack.c.l.s4 1934713408
      %v2456 = vunpack.c.0.s8 %v2455
      %v2457 = vlaneseq
      %v2458 = vshrl.u32 %v2457, 7
      %v2459 = vsub.s32 %v2456, %v2458
      %v2460 = vrot.slane %v2452, %v2459
      %v2462 = vunpack.c.l.s4 1934713408
      %v2463 = vunpack.c.0.s8 %v2462
      %v2464 = vlaneseq
      %v2465 = vshrl.u32 %v2464, 7
      %v2466 = vsub.s32 %v2463, %v2465
      %v2467 = vrot.slane %v2453, %v2466
      %v2468 = vcombine.low %v2405, %v2421
      %v2469 = vcombine.high %v2405, %v2421
      %v2471 = vunpack.c.l.s4 1934713408
      %v2472 = vunpack.c.0.s8 %v2471
      %v2473 = vlaneseq
      %v2474 = vshrl.u32 %v2473, 7
      %v2475 = vsub.s32 %v2472, %v2474
      %v2476 = vrot.slane %v2468, %v2475
      %v2478 = vunpack.c.l.s4 1934713408
      %v2479 = vunpack.c.0.s8 %v2478
      %v2480 = vlaneseq
      %v2481 = vshrl.u32 %v2480, 7
      %v2482 = vsub.s32 %v2479, %v2481
      %v2483 = vrot.slane %v2469, %v2482
      %v2484 = vcombine.low %v2429, %v2444
      %v2485 = vcombine.high %v2429, %v2444
      %v2487 = vunpack.c.l.s4 1934713408
      %v2488 = vunpack.c.0.s8 %v2487
      %v2489 = vlaneseq
      %v2490 = vshrl.u32 %v2489, 7
      %v2491 = vsub.s32 %v2488, %v2490
      %v2492 = vrot.slane %v2484, %v2491
      %v2494 = vunpack.c.l.s4 1934713408
      %v2495 = vunpack.c.0.s8 %v2494
      %v2496 = vlaneseq
      %v2497 = vshrl.u32 %v2496, 7
      %v2498 = vsub.s32 %v2495, %v2497
      %v2499 = vrot.slane %v2485, %v2498
      %v2500 = vcombine.low %v2436, %v2451
      %v2501 = vcombine.high %v2436, %v2451
      %v2503 = vunpack.c.l.s4 1934713408
      %v2504 = vunpack.c.0.s8 %v2503
      %v2505 = vlaneseq
      %v2506 = vshrl.u32 %v2505, 7
      %v2507 = vsub.s32 %v2504, %v2506
      %v2508 = vrot.slane %v2500, %v2507
      %v2510 = vunpack.c.l.s4 1934713408
      %v2511 = vunpack.c.0.s8 %v2510
      %v2512 = vlaneseq
      %v2513 = vshrl.u32 %v2512, 7
      %v2514 = vsub.s32 %v2511, %v2513
      %v2515 = vrot.slane %v2501, %v2514
      %v2516 = vcombine.low %v2460, %v2492
      %v2517 = vcombine.high %v2460, %v2492
      %v2518 = vcombine.low %v2467, %v2499
      %v2519 = vcombine.high %v2467, %v2499
      %v2520 = vcombine.low %v2476, %v2508
      %v2521 = vcombine.high %v2476, %v2508
      %v2522 = vcombine.low %v2483, %v2515
      %v2523 = vcombine.high %v2483, %v2515
      %v2524 = vcombine.low %v1262, %v1278
      %v2525 = vcombine.high %v1262, %v1278
      %v2527 = vunpack.c.l.s4 1983009808
      %v2528 = vunpack.c.0.s8 %v2527
      %v2529 = vlaneseq
      %v2530 = vshrl.u32 %v2529, 7
      %v2531 = vsub.s32 %v2528, %v2530
      %v2532 = vrot.slane %v2524, %v2531
      %v2534 = vunpack.c.l.s4 1983009808
      %v2535 = vunpack.c.0.s8 %v2534
      %v2536 = vlaneseq
      %v2537 = vshrl.u32 %v2536, 7
      %v2538 = vsub.s32 %v2535, %v2537
      %v2539 = vrot.slane %v2525, %v2538
      %v2540 = vcombine.low %v1270, %v1286
      %v2541 = vcombine.high %v1270, %v1286
      %v2543 = vunpack.c.l.s4 1983009808
      %v2544 = vunpack.c.0.s8 %v2543
      %v2545 = vlaneseq
      %v2546 = vshrl.u32 %v2545, 7
      %v2547 = vsub.s32 %v2544, %v2546
      %v2548 = vrot.slane %v2540, %v2547
      %v2550 = vunpack.c.l.s4 1983009808
      %v2551 = vunpack.c.0.s8 %v2550
      %v2552 = vlaneseq
      %v2553 = vshrl.u32 %v2552, 7
      %v2554 = vsub.s32 %v2551, %v2553
      %v2555 = vrot.slane %v2541, %v2554
      %v2556 = vcombine.high %v1294, %v1111
      %v2558 = vunpack.c.l.s4 1983009808
      %v2559 = vunpack.c.0.s8 %v2558
      %v2560 = vlaneseq
      %v2561 = vshrl.u32 %v2560, 7
      %v2562 = vsub.s32 %v2559, %v2561
      %v2563 = vrot.slane %v1294, %v2562
      %v2565 = vunpack.c.l.s4 1983009808
      %v2566 = vunpack.c.0.s8 %v2565
      %v2567 = vlaneseq
      %v2568 = vshrl.u32 %v2567, 7
      %v2569 = vsub.s32 %v2566, %v2568
      %v2570 = vrot.slane %v2556, %v2569
      %v2571 = vcombine.high %v1302, %v1111
      %v2573 = vunpack.c.l.s4 1983009808
      %v2574 = vunpack.c.0.s8 %v2573
      %v2575 = vlaneseq
      %v2576 = vshrl.u32 %v2575, 7
      %v2577 = vsub.s32 %v2574, %v2576
      %v2578 = vrot.slane %v1302, %v2577
      %v2580 = vunpack.c.l.s4 1983009808
      %v2581 = vunpack.c.0.s8 %v2580
      %v2582 = vlaneseq
      %v2583 = vshrl.u32 %v2582, 7
      %v2584 = vsub.s32 %v2581, %v2583
      %v2585 = vrot.slane %v2571, %v2584
      %v2586 = vcombine.low %v2532, %v2548
      %v2587 = vcombine.high %v2532, %v2548
      %v2589 = vunpack.c.l.s4 1934713408
      %v2590 = vunpack.c.0.s8 %v2589
      %v2591 = vlaneseq
      %v2592 = vshrl.u32 %v2591, 7
      %v2593 = vsub.s32 %v2590, %v2592
      %v2594 = vrot.slane %v2586, %v2593
      %v2596 = vunpack.c.l.s4 1934713408
      %v2597 = vunpack.c.0.s8 %v2596
      %v2598 = vlaneseq
      %v2599 = vshrl.u32 %v2598, 7
      %v2600 = vsub.s32 %v2597, %v2599
      %v2601 = vrot.slane %v2587, %v2600
      %v2602 = vcombine.low %v2539, %v2555
      %v2603 = vcombine.high %v2539, %v2555
      %v2605 = vunpack.c.l.s4 1934713408
      %v2606 = vunpack.c.0.s8 %v2605
      %v2607 = vlaneseq
      %v2608 = vshrl.u32 %v2607, 7
      %v2609 = vsub.s32 %v2606, %v2608
      %v2610 = vrot.slane %v2602, %v2609
      %v2612 = vunpack.c.l.s4 1934713408
      %v2613 = vunpack.c.0.s8 %v2612
      %v2614 = vlaneseq
      %v2615 = vshrl.u32 %v2614, 7
      %v2616 = vsub.s32 %v2613, %v2615
      %v2617 = vrot.slane %v2603, %v2616
      %v2618 = vcombine.low %v2563, %v2578
      %v2619 = vcombine.high %v2563, %v2578
      %v2621 = vunpack.c.l.s4 1934713408
      %v2622 = vunpack.c.0.s8 %v2621
      %v2623 = vlaneseq
      %v2624 = vshrl.u32 %v2623, 7
      %v2625 = vsub.s32 %v2622, %v2624
      %v2626 = vrot.slane %v2618, %v2625
      %v2628 = vunpack.c.l.s4 1934713408
      %v2629 = vunpack.c.0.s8 %v2628
      %v2630 = vlaneseq
      %v2631 = vshrl.u32 %v2630, 7
      %v2632 = vsub.s32 %v2629, %v2631
      %v2633 = vrot.slane %v2619, %v2632
      %v2634 = vcombine.low %v2570, %v2585
      %v2635 = vcombine.high %v2570, %v2585
      %v2637 = vunpack.c.l.s4 1934713408
      %v2638 = vunpack.c.0.s8 %v2637
      %v2639 = vlaneseq
      %v2640 = vshrl.u32 %v2639, 7
      %v2641 = vsub.s32 %v2638, %v2640
      %v2642 = vrot.slane %v2634, %v2641
      %v2644 = vunpack.c.l.s4 1934713408
      %v2645 = vunpack.c.0.s8 %v2644
      %v2646 = vlaneseq
      %v2647 = vshrl.u32 %v2646, 7
      %v2648 = vsub.s32 %v2645, %v2647
      %v2649 = vrot.slane %v2635, %v2648
      %v2650 = vcombine.low %v2594, %v2626
      %v2651 = vcombine.high %v2594, %v2626
      %v2652 = vcombine.low %v2601, %v2633
      %v2653 = vcombine.high %v2601, %v2633
      %v2654 = vcombine.low %v2610, %v2642
      %v2655 = vcombine.high %v2610, %v2642
      %v2656 = vcombine.low %v2617, %v2649
      %v2657 = vcombine.high %v2617, %v2649
      %v2658 = vcombine.low %v1266, %v1282
      %v2659 = vcombine.high %v1266, %v1282
      %v2661 = vunpack.c.l.s4 1983009808
      %v2662 = vunpack.c.0.s8 %v2661
      %v2663 = vlaneseq
      %v2664 = vshrl.u32 %v2663, 7
      %v2665 = vsub.s32 %v2662, %v2664
      %v2666 = vrot.slane %v2658, %v2665
      %v2668 = vunpack.c.l.s4 1983009808
      %v2669 = vunpack.c.0.s8 %v2668
      %v2670 = vlaneseq
      %v2671 = vshrl.u32 %v2670, 7
      %v2672 = vsub.s32 %v2669, %v2671
      %v2673 = vrot.slane %v2659, %v2672
      %v2674 = vcombine.low %v1274, %v1290
      %v2675 = vcombine.high %v1274, %v1290
      %v2677 = vunpack.c.l.s4 1983009808
      %v2678 = vunpack.c.0.s8 %v2677
      %v2679 = vlaneseq
      %v2680 = vshrl.u32 %v2679, 7
      %v2681 = vsub.s32 %v2678, %v2680
      %v2682 = vrot.slane %v2674, %v2681
      %v2684 = vunpack.c.l.s4 1983009808
      %v2685 = vunpack.c.0.s8 %v2684
      %v2686 = vlaneseq
      %v2687 = vshrl.u32 %v2686, 7
      %v2688 = vsub.s32 %v2685, %v2687
      %v2689 = vrot.slane %v2675, %v2688
      %v2690 = vcombine.high %v1298, %v1114
      %v2692 = vunpack.c.l.s4 1983009808
      %v2693 = vunpack.c.0.s8 %v2692
      %v2694 = vlaneseq
      %v2695 = vshrl.u32 %v2694, 7
      %v2696 = vsub.s32 %v2693, %v2695
      %v2697 = vrot.slane %v1298, %v2696
      %v2699 = vunpack.c.l.s4 1983009808
      %v2700 = vunpack.c.0.s8 %v2699
      %v2701 = vlaneseq
      %v2702 = vshrl.u32 %v2701, 7
      %v2703 = vsub.s32 %v2700, %v2702
      %v2704 = vrot.slane %v2690, %v2703
      %v2705 = vcombine.high %v1306, %v1114
      %v2707 = vunpack.c.l.s4 1983009808
      %v2708 = vunpack.c.0.s8 %v2707
      %v2709 = vlaneseq
      %v2710 = vshrl.u32 %v2709, 7
      %v2711 = vsub.s32 %v2708, %v2710
      %v2712 = vrot.slane %v1306, %v2711
      %v2714 = vunpack.c.l.s4 1983009808
      %v2715 = vunpack.c.0.s8 %v2714
      %v2716 = vlaneseq
      %v2717 = vshrl.u32 %v2716, 7
      %v2718 = vsub.s32 %v2715, %v2717
      %v2719 = vrot.slane %v2705, %v2718
      %v2720 = vcombine.low %v2666, %v2682
      %v2721 = vcombine.high %v2666, %v2682
      %v2723 = vunpack.c.l.s4 1934713408
      %v2724 = vunpack.c.0.s8 %v2723
      %v2725 = vlaneseq
      %v2726 = vshrl.u32 %v2725, 7
      %v2727 = vsub.s32 %v2724, %v2726
      %v2728 = vrot.slane %v2720, %v2727
      %v2730 = vunpack.c.l.s4 1934713408
      %v2731 = vunpack.c.0.s8 %v2730
      %v2732 = vlaneseq
      %v2733 = vshrl.u32 %v2732, 7
      %v2734 = vsub.s32 %v2731, %v2733
      %v2735 = vrot.slane %v2721, %v2734
      %v2736 = vcombine.low %v2673, %v2689
      %v2737 = vcombine.high %v2673, %v2689
      %v2739 = vunpack.c.l.s4 1934713408
      %v2740 = vunpack.c.0.s8 %v2739
      %v2741 = vlaneseq
      %v2742 = vshrl.u32 %v2741, 7
      %v2743 = vsub.s32 %v2740, %v2742
      %v2744 = vrot.slane %v2736, %v2743
      %v2746 = vunpack.c.l.s4 1934713408
      %v2747 = vunpack.c.0.s8 %v2746
      %v2748 = vlaneseq
      %v2749 = vshrl.u32 %v2748, 7
      %v2750 = vsub.s32 %v2747, %v2749
      %v2751 = vrot.slane %v2737, %v2750
      %v2752 = vcombine.low %v2697, %v2712
      %v2753 = vcombine.high %v2697, %v2712
      %v2755 = vunpack.c.l.s4 1934713408
      %v2756 = vunpack.c.0.s8 %v2755
      %v2757 = vlaneseq
      %v2758 = vshrl.u32 %v2757, 7
      %v2759 = vsub.s32 %v2756, %v2758
      %v2760 = vrot.slane %v2752, %v2759
      %v2762 = vunpack.c.l.s4 1934713408
      %v2763 = vunpack.c.0.s8 %v2762
      %v2764 = vlaneseq
      %v2765 = vshrl.u32 %v2764, 7
      %v2766 = vsub.s32 %v2763, %v2765
      %v2767 = vrot.slane %v2753, %v2766
      %v2768 = vcombine.low %v2704, %v2719
      %v2769 = vcombine.high %v2704, %v2719
      %v2771 = vunpack.c.l.s4 1934713408
      %v2772 = vunpack.c.0.s8 %v2771
      %v2773 = vlaneseq
      %v2774 = vshrl.u32 %v2773, 7
      %v2775 = vsub.s32 %v2772, %v2774
      %v2776 = vrot.slane %v2768, %v2775
      %v2778 = vunpack.c.l.s4 1934713408
      %v2779 = vunpack.c.0.s8 %v2778
      %v2780 = vlaneseq
      %v2781 = vshrl.u32 %v2780, 7
      %v2782 = vsub.s32 %v2779, %v2781
      %v2783 = vrot.slane %v2769, %v2782
      %v2784 = vcombine.low %v2728, %v2760
      %v2785 = vcombine.high %v2728, %v2760
      %v2786 = vcombine.low %v2735, %v2767
      %v2787 = vcombine.high %v2735, %v2767
      %v2788 = vcombine.low %v2744, %v2776
      %v2789 = vcombine.high %v2744, %v2776
      %v2790 = vcombine.low %v2751, %v2783
      %v2791 = vcombine.high %v2751, %v2783
      %v2792 = vcombine.low %v1310, %v1326
      %v2793 = vcombine.high %v1310, %v1326
      %v2795 = vunpack.c.l.s4 1983009808
      %v2796 = vunpack.c.0.s8 %v2795
      %v2797 = vlaneseq
      %v2798 = vshrl.u32 %v2797, 7
      %v2799 = vsub.s32 %v2796, %v2798
      %v2800 = vrot.slane %v2792, %v2799
      %v2802 = vunpack.c.l.s4 1983009808
      %v2803 = vunpack.c.0.s8 %v2802
      %v2804 = vlaneseq
      %v2805 = vshrl.u32 %v2804, 7
      %v2806 = vsub.s32 %v2803, %v2805
      %v2807 = vrot.slane %v2793, %v2806
      %v2808 = vcombine.low %v1318, %v1334
      %v2809 = vcombine.high %v1318, %v1334
      %v2811 = vunpack.c.l.s4 1983009808
      %v2812 = vunpack.c.0.s8 %v2811
      %v2813 = vlaneseq
      %v2814 = vshrl.u32 %v2813, 7
      %v2815 = vsub.s32 %v2812, %v2814
      %v2816 = vrot.slane %v2808, %v2815
      %v2818 = vunpack.c.l.s4 1983009808
      %v2819 = vunpack.c.0.s8 %v2818
      %v2820 = vlaneseq
      %v2821 = vshrl.u32 %v2820, 7
      %v2822 = vsub.s32 %v2819, %v2821
      %v2823 = vrot.slane %v2809, %v2822
      %v2824 = vcombine.high %v1342, %v1111
      %v2826 = vunpack.c.l.s4 1983009808
      %v2827 = vunpack.c.0.s8 %v2826
      %v2828 = vlaneseq
      %v2829 = vshrl.u32 %v2828, 7
      %v2830 = vsub.s32 %v2827, %v2829
      %v2831 = vrot.slane %v1342, %v2830
      %v2833 = vunpack.c.l.s4 1983009808
      %v2834 = vunpack.c.0.s8 %v2833
      %v2835 = vlaneseq
      %v2836 = vshrl.u32 %v2835, 7
      %v2837 = vsub.s32 %v2834, %v2836
      %v2838 = vrot.slane %v2824, %v2837
      %v2839 = vcombine.high %v1350, %v1111
      %v2841 = vunpack.c.l.s4 1983009808
      %v2842 = vunpack.c.0.s8 %v2841
      %v2843 = vlaneseq
      %v2844 = vshrl.u32 %v2843, 7
      %v2845 = vsub.s32 %v2842, %v2844
      %v2846 = vrot.slane %v1350, %v2845
      %v2848 = vunpack.c.l.s4 1983009808
      %v2849 = vunpack.c.0.s8 %v2848
      %v2850 = vlaneseq
      %v2851 = vshrl.u32 %v2850, 7
      %v2852 = vsub.s32 %v2849, %v2851
      %v2853 = vrot.slane %v2839, %v2852
      %v2854 = vcombine.low %v2800, %v2816
      %v2855 = vcombine.high %v2800, %v2816
      %v2857 = vunpack.c.l.s4 1934713408
      %v2858 = vunpack.c.0.s8 %v2857
      %v2859 = vlaneseq
      %v2860 = vshrl.u32 %v2859, 7
      %v2861 = vsub.s32 %v2858, %v2860
      %v2862 = vrot.slane %v2854, %v2861
      %v2864 = vunpack.c.l.s4 1934713408
      %v2865 = vunpack.c.0.s8 %v2864
      %v2866 = vlaneseq
      %v2867 = vshrl.u32 %v2866, 7
      %v2868 = vsub.s32 %v2865, %v2867
      %v2869 = vrot.slane %v2855, %v2868
      %v2870 = vcombine.low %v2807, %v2823
      %v2871 = vcombine.high %v2807, %v2823
      %v2873 = vunpack.c.l.s4 1934713408
      %v2874 = vunpack.c.0.s8 %v2873
      %v2875 = vlaneseq
      %v2876 = vshrl.u32 %v2875, 7
      %v2877 = vsub.s32 %v2874, %v2876
      %v2878 = vrot.slane %v2870, %v2877
      %v2880 = vunpack.c.l.s4 1934713408
      %v2881 = vunpack.c.0.s8 %v2880
      %v2882 = vlaneseq
      %v2883 = vshrl.u32 %v2882, 7
      %v2884 = vsub.s32 %v2881, %v2883
      %v2885 = vrot.slane %v2871, %v2884
      %v2886 = vcombine.low %v2831, %v2846
      %v2887 = vcombine.high %v2831, %v2846
      %v2889 = vunpack.c.l.s4 1934713408
      %v2890 = vunpack.c.0.s8 %v2889
      %v2891 = vlaneseq
      %v2892 = vshrl.u32 %v2891, 7
      %v2893 = vsub.s32 %v2890, %v2892
      %v2894 = vrot.slane %v2886, %v2893
      %v2896 = vunpack.c.l.s4 1934713408
      %v2897 = vunpack.c.0.s8 %v2896
      %v2898 = vlaneseq
      %v2899 = vshrl.u32 %v2898, 7
      %v2900 = vsub.s32 %v2897, %v2899
      %v2901 = vrot.slane %v2887, %v2900
      %v2902 = vcombine.low %v2838, %v2853
      %v2903 = vcombine.high %v2838, %v2853
      %v2905 = vunpack.c.l.s4 1934713408
      %v2906 = vunpack.c.0.s8 %v2905
      %v2907 = vlaneseq
      %v2908 = vshrl.u32 %v2907, 7
      %v2909 = vsub.s32 %v2906, %v2908
      %v2910 = vrot.slane %v2902, %v2909
      %v2912 = vunpack.c.l.s4 1934713408
      %v2913 = vunpack.c.0.s8 %v2912
      %v2914 = vlaneseq
      %v2915 = vshrl.u32 %v2914, 7
      %v2916 = vsub.s32 %v2913, %v2915
      %v2917 = vrot.slane %v2903, %v2916
      %v2918 = vcombine.low %v2862, %v2894
      %v2919 = vcombine.high %v2862, %v2894
      %v2920 = vcombine.low %v2869, %v2901
      %v2921 = vcombine.high %v2869, %v2901
      %v2922 = vcombine.low %v2878, %v2910
      %v2923 = vcombine.high %v2878, %v2910
      %v2924 = vcombine.low %v2885, %v2917
      %v2925 = vcombine.high %v2885, %v2917
      %v2926 = vcombine.low %v1314, %v1330
      %v2927 = vcombine.high %v1314, %v1330
      %v2929 = vunpack.c.l.s4 1983009808
      %v2930 = vunpack.c.0.s8 %v2929
      %v2931 = vlaneseq
      %v2932 = vshrl.u32 %v2931, 7
      %v2933 = vsub.s32 %v2930, %v2932
      %v2934 = vrot.slane %v2926, %v2933
      %v2936 = vunpack.c.l.s4 1983009808
      %v2937 = vunpack.c.0.s8 %v2936
      %v2938 = vlaneseq
      %v2939 = vshrl.u32 %v2938, 7
      %v2940 = vsub.s32 %v2937, %v2939
      %v2941 = vrot.slane %v2927, %v2940
      %v2942 = vcombine.low %v1322, %v1338
      %v2943 = vcombine.high %v1322, %v1338
      %v2945 = vunpack.c.l.s4 1983009808
      %v2946 = vunpack.c.0.s8 %v2945
      %v2947 = vlaneseq
      %v2948 = vshrl.u32 %v2947, 7
      %v2949 = vsub.s32 %v2946, %v2948
      %v2950 = vrot.slane %v2942, %v2949
      %v2952 = vunpack.c.l.s4 1983009808
      %v2953 = vunpack.c.0.s8 %v2952
      %v2954 = vlaneseq
      %v2955 = vshrl.u32 %v2954, 7
      %v2956 = vsub.s32 %v2953, %v2955
      %v2957 = vrot.slane %v2943, %v2956
      %v2958 = vcombine.high %v1346, %v1114
      %v2960 = vunpack.c.l.s4 1983009808
      %v2961 = vunpack.c.0.s8 %v2960
      %v2962 = vlaneseq
      %v2963 = vshrl.u32 %v2962, 7
      %v2964 = vsub.s32 %v2961, %v2963
      %v2965 = vrot.slane %v1346, %v2964
      %v2967 = vunpack.c.l.s4 1983009808
      %v2968 = vunpack.c.0.s8 %v2967
      %v2969 = vlaneseq
      %v2970 = vshrl.u32 %v2969, 7
      %v2971 = vsub.s32 %v2968, %v2970
      %v2972 = vrot.slane %v2958, %v2971
      %v2973 = vcombine.high %v1354, %v1114
      %v2975 = vunpack.c.l.s4 1983009808
      %v2976 = vunpack.c.0.s8 %v2975
      %v2977 = vlaneseq
      %v2978 = vshrl.u32 %v2977, 7
      %v2979 = vsub.s32 %v2976, %v2978
      %v2980 = vrot.slane %v1354, %v2979
      %v2982 = vunpack.c.l.s4 1983009808
      %v2983 = vunpack.c.0.s8 %v2982
      %v2984 = vlaneseq
      %v2985 = vshrl.u32 %v2984, 7
      %v2986 = vsub.s32 %v2983, %v2985
      %v2987 = vrot.slane %v2973, %v2986
      %v2988 = vcombine.low %v2934, %v2950
      %v2989 = vcombine.high %v2934, %v2950
      %v2991 = vunpack.c.l.s4 1934713408
      %v2992 = vunpack.c.0.s8 %v2991
      %v2993 = vlaneseq
      %v2994 = vshrl.u32 %v2993, 7
      %v2995 = vsub.s32 %v2992, %v2994
      %v2996 = vrot.slane %v2988, %v2995
      %v2998 = vunpack.c.l.s4 1934713408
      %v2999 = vunpack.c.0.s8 %v2998
      %v3000 = vlaneseq
      %v3001 = vshrl.u32 %v3000, 7
      %v3002 = vsub.s32 %v2999, %v3001
      %v3003 = vrot.slane %v2989, %v3002
      %v3004 = vcombine.low %v2941, %v2957
      %v3005 = vcombine.high %v2941, %v2957
      %v3007 = vunpack.c.l.s4 1934713408
      %v3008 = vunpack.c.0.s8 %v3007
      %v3009 = vlaneseq
      %v3010 = vshrl.u32 %v3009, 7
      %v3011 = vsub.s32 %v3008, %v3010
      %v3012 = vrot.slane %v3004, %v3011
      %v3014 = vunpack.c.l.s4 1934713408
      %v3015 = vunpack.c.0.s8 %v3014
      %v3016 = vlaneseq
      %v3017 = vshrl.u32 %v3016, 7
      %v3018 = vsub.s32 %v3015, %v3017
      %v3019 = vrot.slane %v3005, %v3018
      %v3020 = vcombine.low %v2965, %v2980
      %v3021 = vcombine.high %v2965, %v2980
      %v3023 = vunpack.c.l.s4 1934713408
      %v3024 = vunpack.c.0.s8 %v3023
      %v3025 = vlaneseq
      %v3026 = vshrl.u32 %v3025, 7
      %v3027 = vsub.s32 %v3024, %v3026
      %v3028 = vrot.slane %v3020, %v3027
      %v3030 = vunpack.c.l.s4 1934713408
      %v3031 = vunpack.c.0.s8 %v3030
      %v3032 = vlaneseq
      %v3033 = vshrl.u32 %v3032, 7
      %v3034 = vsub.s32 %v3031, %v3033
      %v3035 = vrot.slane %v3021, %v3034
      %v3036 = vcombine.low %v2972, %v2987
      %v3037 = vcombine.high %v2972, %v2987
      %v3039 = vunpack.c.l.s4 1934713408
      %v3040 = vunpack.c.0.s8 %v3039
      %v3041 = vlaneseq
      %v3042 = vshrl.u32 %v3041, 7
      %v3043 = vsub.s32 %v3040, %v3042
      %v3044 = vrot.slane %v3036, %v3043
      %v3046 = vunpack.c.l.s4 1934713408
      %v3047 = vunpack.c.0.s8 %v3046
      %v3048 = vlaneseq
      %v3049 = vshrl.u32 %v3048, 7
      %v3050 = vsub.s32 %v3047, %v3049
      %v3051 = vrot.slane %v3037, %v3050
      %v3052 = vcombine.low %v2996, %v3028
      %v3053 = vcombine.high %v2996, %v3028
      %v3054 = vcombine.low %v3003, %v3035
      %v3055 = vcombine.high %v3003, %v3035
      %v3056 = vcombine.low %v3012, %v3044
      %v3057 = vcombine.high %v3012, %v3044
      %v3058 = vcombine.low %v3019, %v3051
      %v3059 = vcombine.high %v3019, %v3051
      %v3060 = vcombine.low %v1358, %v1374
      %v3061 = vcombine.high %v1358, %v1374
      %v3063 = vunpack.c.l.s4 1983009808
      %v3064 = vunpack.c.0.s8 %v3063
      %v3065 = vlaneseq
      %v3066 = vshrl.u32 %v3065, 7
      %v3067 = vsub.s32 %v3064, %v3066
      %v3068 = vrot.slane %v3060, %v3067
      %v3070 = vunpack.c.l.s4 1983009808
      %v3071 = vunpack.c.0.s8 %v3070
      %v3072 = vlaneseq
      %v3073 = vshrl.u32 %v3072, 7
      %v3074 = vsub.s32 %v3071, %v3073
      %v3075 = vrot.slane %v3061, %v3074
      %v3076 = vcombine.low %v1366, %v1382
      %v3077 = vcombine.high %v1366, %v1382
      %v3079 = vunpack.c.l.s4 1983009808
      %v3080 = vunpack.c.0.s8 %v3079
      %v3081 = vlaneseq
      %v3082 = vshrl.u32 %v3081, 7
      %v3083 = vsub.s32 %v3080, %v3082
      %v3084 = vrot.slane %v3076, %v3083
      %v3086 = vunpack.c.l.s4 1983009808
      %v3087 = vunpack.c.0.s8 %v3086
      %v3088 = vlaneseq
      %v3089 = vshrl.u32 %v3088, 7
      %v3090 = vsub.s32 %v3087, %v3089
      %v3091 = vrot.slane %v3077, %v3090
      %v3092 = vcombine.high %v1390, %v1111
      %v3094 = vunpack.c.l.s4 1983009808
      %v3095 = vunpack.c.0.s8 %v3094
      %v3096 = vlaneseq
      %v3097 = vshrl.u32 %v3096, 7
      %v3098 = vsub.s32 %v3095, %v3097
      %v3099 = vrot.slane %v1390, %v3098
      %v3101 = vunpack.c.l.s4 1983009808
      %v3102 = vunpack.c.0.s8 %v3101
      %v3103 = vlaneseq
      %v3104 = vshrl.u32 %v3103, 7
      %v3105 = vsub.s32 %v3102, %v3104
      %v3106 = vrot.slane %v3092, %v3105
      %v3107 = vcombine.high %v1398, %v1111
      %v3109 = vunpack.c.l.s4 1983009808
      %v3110 = vunpack.c.0.s8 %v3109
      %v3111 = vlaneseq
      %v3112 = vshrl.u32 %v3111, 7
      %v3113 = vsub.s32 %v3110, %v3112
      %v3114 = vrot.slane %v1398, %v3113
      %v3116 = vunpack.c.l.s4 1983009808
      %v3117 = vunpack.c.0.s8 %v3116
      %v3118 = vlaneseq
      %v3119 = vshrl.u32 %v3118, 7
      %v3120 = vsub.s32 %v3117, %v3119
      %v3121 = vrot.slane %v3107, %v3120
      %v3122 = vcombine.low %v3068, %v3084
      %v3123 = vcombine.high %v3068, %v3084
      %v3125 = vunpack.c.l.s4 1934713408
      %v3126 = vunpack.c.0.s8 %v3125
      %v3127 = vlaneseq
      %v3128 = vshrl.u32 %v3127, 7
      %v3129 = vsub.s32 %v3126, %v3128
      %v3130 = vrot.slane %v3122, %v3129
      %v3132 = vunpack.c.l.s4 1934713408
      %v3133 = vunpack.c.0.s8 %v3132
      %v3134 = vlaneseq
      %v3135 = vshrl.u32 %v3134, 7
      %v3136 = vsub.s32 %v3133, %v3135
      %v3137 = vrot.slane %v3123, %v3136
      %v3138 = vcombine.low %v3075, %v3091
      %v3139 = vcombine.high %v3075, %v3091
      %v3141 = vunpack.c.l.s4 1934713408
      %v3142 = vunpack.c.0.s8 %v3141
      %v3143 = vlaneseq
      %v3144 = vshrl.u32 %v3143, 7
      %v3145 = vsub.s32 %v3142, %v3144
      %v3146 = vrot.slane %v3138, %v3145
      %v3148 = vunpack.c.l.s4 1934713408
      %v3149 = vunpack.c.0.s8 %v3148
      %v3150 = vlaneseq
      %v3151 = vshrl.u32 %v3150, 7
      %v3152 = vsub.s32 %v3149, %v3151
      %v3153 = vrot.slane %v3139, %v3152
      %v3154 = vcombine.low %v3099, %v3114
      %v3155 = vcombine.high %v3099, %v3114
      %v3157 = vunpack.c.l.s4 1934713408
      %v3158 = vunpack.c.0.s8 %v3157
      %v3159 = vlaneseq
      %v3160 = vshrl.u32 %v3159, 7
      %v3161 = vsub.s32 %v3158, %v3160
      %v3162 = vrot.slane %v3154, %v3161
      %v3164 = vunpack.c.l.s4 1934713408
      %v3165 = vunpack.c.0.s8 %v3164
      %v3166 = vlaneseq
      %v3167 = vshrl.u32 %v3166, 7
      %v3168 = vsub.s32 %v3165, %v3167
      %v3169 = vrot.slane %v3155, %v3168
      %v3170 = vcombine.low %v3106, %v3121
      %v3171 = vcombine.high %v3106, %v3121
      %v3173 = vunpack.c.l.s4 1934713408
      %v3174 = vunpack.c.0.s8 %v3173
      %v3175 = vlaneseq
      %v3176 = vshrl.u32 %v3175, 7
      %v3177 = vsub.s32 %v3174, %v3176
      %v3178 = vrot.slane %v3170, %v3177
      %v3180 = vunpack.c.l.s4 1934713408
      %v3181 = vunpack.c.0.s8 %v3180
      %v3182 = vlaneseq
      %v3183 = vshrl.u32 %v3182, 7
      %v3184 = vsub.s32 %v3181, %v3183
      %v3185 = vrot.slane %v3171, %v3184
      %v3186 = vcombine.low %v3130, %v3162
      %v3187 = vcombine.high %v3130, %v3162
      %v3188 = vcombine.low %v3137, %v3169
      %v3189 = vcombine.high %v3137, %v3169
      %v3190 = vcombine.low %v3146, %v3178
      %v3191 = vcombine.high %v3146, %v3178
      %v3192 = vcombine.low %v3153, %v3185
      %v3193 = vcombine.high %v3153, %v3185
      %v3194 = vcombine.low %v1362, %v1378
      %v3195 = vcombine.high %v1362, %v1378
      %v3197 = vunpack.c.l.s4 1983009808
      %v3198 = vunpack.c.0.s8 %v3197
      %v3199 = vlaneseq
      %v3200 = vshrl.u32 %v3199, 7
      %v3201 = vsub.s32 %v3198, %v3200
      %v3202 = vrot.slane %v3194, %v3201
      %v3204 = vunpack.c.l.s4 1983009808
      %v3205 = vunpack.c.0.s8 %v3204
      %v3206 = vlaneseq
      %v3207 = vshrl.u32 %v3206, 7
      %v3208 = vsub.s32 %v3205, %v3207
      %v3209 = vrot.slane %v3195, %v3208
      %v3210 = vcombine.low %v1370, %v1386
      %v3211 = vcombine.high %v1370, %v1386
      %v3213 = vunpack.c.l.s4 1983009808
      %v3214 = vunpack.c.0.s8 %v3213
      %v3215 = vlaneseq
      %v3216 = vshrl.u32 %v3215, 7
      %v3217 = vsub.s32 %v3214, %v3216
      %v3218 = vrot.slane %v3210, %v3217
      %v3220 = vunpack.c.l.s4 1983009808
      %v3221 = vunpack.c.0.s8 %v3220
      %v3222 = vlaneseq
      %v3223 = vshrl.u32 %v3222, 7
      %v3224 = vsub.s32 %v3221, %v3223
      %v3225 = vrot.slane %v3211, %v3224
      %v3226 = vcombine.high %v1394, %v1114
      %v3228 = vunpack.c.l.s4 1983009808
      %v3229 = vunpack.c.0.s8 %v3228
      %v3230 = vlaneseq
      %v3231 = vshrl.u32 %v3230, 7
      %v3232 = vsub.s32 %v3229, %v3231
      %v3233 = vrot.slane %v1394, %v3232
      %v3235 = vunpack.c.l.s4 1983009808
      %v3236 = vunpack.c.0.s8 %v3235
      %v3237 = vlaneseq
      %v3238 = vshrl.u32 %v3237, 7
      %v3239 = vsub.s32 %v3236, %v3238
      %v3240 = vrot.slane %v3226, %v3239
      %v3241 = vcombine.high %v1402, %v1114
      %v3243 = vunpack.c.l.s4 1983009808
      %v3244 = vunpack.c.0.s8 %v3243
      %v3245 = vlaneseq
      %v3246 = vshrl.u32 %v3245, 7
      %v3247 = vsub.s32 %v3244, %v3246
      %v3248 = vrot.slane %v1402, %v3247
      %v3250 = vunpack.c.l.s4 1983009808
      %v3251 = vunpack.c.0.s8 %v3250
      %v3252 = vlaneseq
      %v3253 = vshrl.u32 %v3252, 7
      %v3254 = vsub.s32 %v3251, %v3253
      %v3255 = vrot.slane %v3241, %v3254
      %v3256 = vcombine.low %v3202, %v3218
      %v3257 = vcombine.high %v3202, %v3218
      %v3259 = vunpack.c.l.s4 1934713408
      %v3260 = vunpack.c.0.s8 %v3259
      %v3261 = vlaneseq
      %v3262 = vshrl.u32 %v3261, 7
      %v3263 = vsub.s32 %v3260, %v3262
      %v3264 = vrot.slane %v3256, %v3263
      %v3266 = vunpack.c.l.s4 1934713408
      %v3267 = vunpack.c.0.s8 %v3266
      %v3268 = vlaneseq
      %v3269 = vshrl.u32 %v3268, 7
      %v3270 = vsub.s32 %v3267, %v3269
      %v3271 = vrot.slane %v3257, %v3270
      %v3272 = vcombine.low %v3209, %v3225
      %v3273 = vcombine.high %v3209, %v3225
      %v3275 = vunpack.c.l.s4 1934713408
      %v3276 = vunpack.c.0.s8 %v3275
      %v3277 = vlaneseq
      %v3278 = vshrl.u32 %v3277, 7
      %v3279 = vsub.s32 %v3276, %v3278
      %v3280 = vrot.slane %v3272, %v3279
      %v3282 = vunpack.c.l.s4 1934713408
      %v3283 = vunpack.c.0.s8 %v3282
      %v3284 = vlaneseq
      %v3285 = vshrl.u32 %v3284, 7
      %v3286 = vsub.s32 %v3283, %v3285
      %v3287 = vrot.slane %v3273, %v3286
      %v3288 = vcombine.low %v3233, %v3248
      %v3289 = vcombine.high %v3233, %v3248
      %v3291 = vunpack.c.l.s4 1934713408
      %v3292 = vunpack.c.0.s8 %v3291
      %v3293 = vlaneseq
      %v3294 = vshrl.u32 %v3293, 7
      %v3295 = vsub.s32 %v3292, %v3294
      %v3296 = vrot.slane %v3288, %v3295
      %v3298 = vunpack.c.l.s4 1934713408
      %v3299 = vunpack.c.0.s8 %v3298
      %v3300 = vlaneseq
      %v3301 = vshrl.u32 %v3300, 7
      %v3302 = vsub.s32 %v3299, %v3301
      %v3303 = vrot.slane %v3289, %v3302
      %v3304 = vcombine.low %v3240, %v3255
      %v3305 = vcombine.high %v3240, %v3255
      %v3307 = vunpack.c.l.s4 1934713408
      %v3308 = vunpack.c.0.s8 %v3307
      %v3309 = vlaneseq
      %v3310 = vshrl.u32 %v3309, 7
      %v3311 = vsub.s32 %v3308, %v3310
      %v3312 = vrot.slane %v3304, %v3311
      %v3314 = vunpack.c.l.s4 1934713408
      %v3315 = vunpack.c.0.s8 %v3314
      %v3316 = vlaneseq
      %v3317 = vshrl.u32 %v3316, 7
      %v3318 = vsub.s32 %v3315, %v3317
      %v3319 = vrot.slane %v3305, %v3318
      %v3320 = vcombine.low %v3264, %v3296
      %v3321 = vcombine.high %v3264, %v3296
      %v3322 = vcombine.low %v3271, %v3303
      %v3323 = vcombine.high %v3271, %v3303
      %v3324 = vcombine.low %v3280, %v3312
      %v3325 = vcombine.high %v3280, %v3312
      %v3326 = vcombine.low %v3287, %v3319
      %v3327 = vcombine.high %v3287, %v3319
      %v3328 = vcombine.low %v1406, %v1422
      %v3329 = vcombine.high %v1406, %v1422
      %v3331 = vunpack.c.l.s4 1983009808
      %v3332 = vunpack.c.0.s8 %v3331
      %v3333 = vlaneseq
      %v3334 = vshrl.u32 %v3333, 7
      %v3335 = vsub.s32 %v3332, %v3334
      %v3336 = vrot.slane %v3328, %v3335
      %v3338 = vunpack.c.l.s4 1983009808
      %v3339 = vunpack.c.0.s8 %v3338
      %v3340 = vlaneseq
      %v3341 = vshrl.u32 %v3340, 7
      %v3342 = vsub.s32 %v3339, %v3341
      %v3343 = vrot.slane %v3329, %v3342
      %v3344 = vcombine.low %v1414, %v1430
      %v3345 = vcombine.high %v1414, %v1430
      %v3347 = vunpack.c.l.s4 1983009808
      %v3348 = vunpack.c.0.s8 %v3347
      %v3349 = vlaneseq
      %v3350 = vshrl.u32 %v3349, 7
      %v3351 = vsub.s32 %v3348, %v3350
      %v3352 = vrot.slane %v3344, %v3351
      %v3354 = vunpack.c.l.s4 1983009808
      %v3355 = vunpack.c.0.s8 %v3354
      %v3356 = vlaneseq
      %v3357 = vshrl.u32 %v3356, 7
      %v3358 = vsub.s32 %v3355, %v3357
      %v3359 = vrot.slane %v3345, %v3358
      %v3360 = vcombine.high %v1438, %v1111
      %v3362 = vunpack.c.l.s4 1983009808
      %v3363 = vunpack.c.0.s8 %v3362
      %v3364 = vlaneseq
      %v3365 = vshrl.u32 %v3364, 7
      %v3366 = vsub.s32 %v3363, %v3365
      %v3367 = vrot.slane %v1438, %v3366
      %v3369 = vunpack.c.l.s4 1983009808
      %v3370 = vunpack.c.0.s8 %v3369
      %v3371 = vlaneseq
      %v3372 = vshrl.u32 %v3371, 7
      %v3373 = vsub.s32 %v3370, %v3372
      %v3374 = vrot.slane %v3360, %v3373
      %v3375 = vcombine.high %v1446, %v1111
      %v3377 = vunpack.c.l.s4 1983009808
      %v3378 = vunpack.c.0.s8 %v3377
      %v3379 = vlaneseq
      %v3380 = vshrl.u32 %v3379, 7
      %v3381 = vsub.s32 %v3378, %v3380
      %v3382 = vrot.slane %v1446, %v3381
      %v3384 = vunpack.c.l.s4 1983009808
      %v3385 = vunpack.c.0.s8 %v3384
      %v3386 = vlaneseq
      %v3387 = vshrl.u32 %v3386, 7
      %v3388 = vsub.s32 %v3385, %v3387
      %v3389 = vrot.slane %v3375, %v3388
      %v3390 = vcombine.low %v3336, %v3352
      %v3391 = vcombine.high %v3336, %v3352
      %v3393 = vunpack.c.l.s4 1934713408
      %v3394 = vunpack.c.0.s8 %v3393
      %v3395 = vlaneseq
      %v3396 = vshrl.u32 %v3395, 7
      %v3397 = vsub.s32 %v3394, %v3396
      %v3398 = vrot.slane %v3390, %v3397
      %v3400 = vunpack.c.l.s4 1934713408
      %v3401 = vunpack.c.0.s8 %v3400
      %v3402 = vlaneseq
      %v3403 = vshrl.u32 %v3402, 7
      %v3404 = vsub.s32 %v3401, %v3403
      %v3405 = vrot.slane %v3391, %v3404
      %v3406 = vcombine.low %v3343, %v3359
      %v3407 = vcombine.high %v3343, %v3359
      %v3409 = vunpack.c.l.s4 1934713408
      %v3410 = vunpack.c.0.s8 %v3409
      %v3411 = vlaneseq
      %v3412 = vshrl.u32 %v3411, 7
      %v3413 = vsub.s32 %v3410, %v3412
      %v3414 = vrot.slane %v3406, %v3413
      %v3416 = vunpack.c.l.s4 1934713408
      %v3417 = vunpack.c.0.s8 %v3416
      %v3418 = vlaneseq
      %v3419 = vshrl.u32 %v3418, 7
      %v3420 = vsub.s32 %v3417, %v3419
      %v3421 = vrot.slane %v3407, %v3420
      %v3422 = vcombine.low %v3367, %v3382
      %v3423 = vcombine.high %v3367, %v3382
      %v3425 = vunpack.c.l.s4 1934713408
      %v3426 = vunpack.c.0.s8 %v3425
      %v3427 = vlaneseq
      %v3428 = vshrl.u32 %v3427, 7
      %v3429 = vsub.s32 %v3426, %v3428
      %v3430 = vrot.slane %v3422, %v3429
      %v3432 = vunpack.c.l.s4 1934713408
      %v3433 = vunpack.c.0.s8 %v3432
      %v3434 = vlaneseq
      %v3435 = vshrl.u32 %v3434, 7
      %v3436 = vsub.s32 %v3433, %v3435
      %v3437 = vrot.slane %v3423, %v3436
      %v3438 = vcombine.low %v3374, %v3389
      %v3439 = vcombine.high %v3374, %v3389
      %v3441 = vunpack.c.l.s4 1934713408
      %v3442 = vunpack.c.0.s8 %v3441
      %v3443 = vlaneseq
      %v3444 = vshrl.u32 %v3443, 7
      %v3445 = vsub.s32 %v3442, %v3444
      %v3446 = vrot.slane %v3438, %v3445
      %v3448 = vunpack.c.l.s4 1934713408
      %v3449 = vunpack.c.0.s8 %v3448
      %v3450 = vlaneseq
      %v3451 = vshrl.u32 %v3450, 7
      %v3452 = vsub.s32 %v3449, %v3451
      %v3453 = vrot.slane %v3439, %v3452
      %v3454 = vcombine.low %v3398, %v3430
      %v3455 = vcombine.high %v3398, %v3430
      %v3456 = vcombine.low %v3405, %v3437
      %v3457 = vcombine.high %v3405, %v3437
      %v3458 = vcombine.low %v3414, %v3446
      %v3459 = vcombine.high %v3414, %v3446
      %v3460 = vcombine.low %v3421, %v3453
      %v3461 = vcombine.high %v3421, %v3453
      %v3462 = vcombine.low %v1410, %v1426
      %v3463 = vcombine.high %v1410, %v1426
      %v3465 = vunpack.c.l.s4 1983009808
      %v3466 = vunpack.c.0.s8 %v3465
      %v3467 = vlaneseq
      %v3468 = vshrl.u32 %v3467, 7
      %v3469 = vsub.s32 %v3466, %v3468
      %v3470 = vrot.slane %v3462, %v3469
      %v3472 = vunpack.c.l.s4 1983009808
      %v3473 = vunpack.c.0.s8 %v3472
      %v3474 = vlaneseq
      %v3475 = vshrl.u32 %v3474, 7
      %v3476 = vsub.s32 %v3473, %v3475
      %v3477 = vrot.slane %v3463, %v3476
      %v3478 = vcombine.low %v1418, %v1434
      %v3479 = vcombine.high %v1418, %v1434
      %v3481 = vunpack.c.l.s4 1983009808
      %v3482 = vunpack.c.0.s8 %v3481
      %v3483 = vlaneseq
      %v3484 = vshrl.u32 %v3483, 7
      %v3485 = vsub.s32 %v3482, %v3484
      %v3486 = vrot.slane %v3478, %v3485
      %v3488 = vunpack.c.l.s4 1983009808
      %v3489 = vunpack.c.0.s8 %v3488
      %v3490 = vlaneseq
      %v3491 = vshrl.u32 %v3490, 7
      %v3492 = vsub.s32 %v3489, %v3491
      %v3493 = vrot.slane %v3479, %v3492
      %v3494 = vcombine.high %v1442, %v1114
      %v3496 = vunpack.c.l.s4 1983009808
      %v3497 = vunpack.c.0.s8 %v3496
      %v3498 = vlaneseq
      %v3499 = vshrl.u32 %v3498, 7
      %v3500 = vsub.s32 %v3497, %v3499
      %v3501 = vrot.slane %v1442, %v3500
      %v3503 = vunpack.c.l.s4 1983009808
      %v3504 = vunpack.c.0.s8 %v3503
      %v3505 = vlaneseq
      %v3506 = vshrl.u32 %v3505, 7
      %v3507 = vsub.s32 %v3504, %v3506
      %v3508 = vrot.slane %v3494, %v3507
      %v3509 = vcombine.high %v1450, %v1114
      %v3511 = vunpack.c.l.s4 1983009808
      %v3512 = vunpack.c.0.s8 %v3511
      %v3513 = vlaneseq
      %v3514 = vshrl.u32 %v3513, 7
      %v3515 = vsub.s32 %v3512, %v3514
      %v3516 = vrot.slane %v1450, %v3515
      %v3518 = vunpack.c.l.s4 1983009808
      %v3519 = vunpack.c.0.s8 %v3518
      %v3520 = vlaneseq
      %v3521 = vshrl.u32 %v3520, 7
      %v3522 = vsub.s32 %v3519, %v3521
      %v3523 = vrot.slane %v3509, %v3522
      %v3524 = vcombine.low %v3470, %v3486
      %v3525 = vcombine.high %v3470, %v3486
      %v3527 = vunpack.c.l.s4 1934713408
      %v3528 = vunpack.c.0.s8 %v3527
      %v3529 = vlaneseq
      %v3530 = vshrl.u32 %v3529, 7
      %v3531 = vsub.s32 %v3528, %v3530
      %v3532 = vrot.slane %v3524, %v3531
      %v3534 = vunpack.c.l.s4 1934713408
      %v3535 = vunpack.c.0.s8 %v3534
      %v3536 = vlaneseq
      %v3537 = vshrl.u32 %v3536, 7
      %v3538 = vsub.s32 %v3535, %v3537
      %v3539 = vrot.slane %v3525, %v3538
      %v3540 = vcombine.low %v3477, %v3493
      %v3541 = vcombine.high %v3477, %v3493
      %v3543 = vunpack.c.l.s4 1934713408
      %v3544 = vunpack.c.0.s8 %v3543
      %v3545 = vlaneseq
      %v3546 = vshrl.u32 %v3545, 7
      %v3547 = vsub.s32 %v3544, %v3546
      %v3548 = vrot.slane %v3540, %v3547
      %v3550 = vunpack.c.l.s4 1934713408
      %v3551 = vunpack.c.0.s8 %v3550
      %v3552 = vlaneseq
      %v3553 = vshrl.u32 %v3552, 7
      %v3554 = vsub.s32 %v3551, %v3553
      %v3555 = vrot.slane %v3541, %v3554
      %v3556 = vcombine.low %v3501, %v3516
      %v3557 = vcombine.high %v3501, %v3516
      %v3559 = vunpack.c.l.s4 1934713408
      %v3560 = vunpack.c.0.s8 %v3559
      %v3561 = vlaneseq
      %v3562 = vshrl.u32 %v3561, 7
      %v3563 = vsub.s32 %v3560, %v3562
      %v3564 = vrot.slane %v3556, %v3563
      %v3566 = vunpack.c.l.s4 1934713408
      %v3567 = vunpack.c.0.s8 %v3566
      %v3568 = vlaneseq
      %v3569 = vshrl.u32 %v3568, 7
      %v3570 = vsub.s32 %v3567, %v3569
      %v3571 = vrot.slane %v3557, %v3570
      %v3572 = vcombine.low %v3508, %v3523
      %v3573 = vcombine.high %v3508, %v3523
      %v3575 = vunpack.c.l.s4 1934713408
      %v3576 = vunpack.c.0.s8 %v3575
      %v3577 = vlaneseq
      %v3578 = vshrl.u32 %v3577, 7
      %v3579 = vsub.s32 %v3576, %v3578
      %v3580 = vrot.slane %v3572, %v3579
      %v3582 = vunpack.c.l.s4 1934713408
      %v3583 = vunpack.c.0.s8 %v3582
      %v3584 = vlaneseq
      %v3585 = vshrl.u32 %v3584, 7
      %v3586 = vsub.s32 %v3583, %v3585
      %v3587 = vrot.slane %v3573, %v3586
      %v3588 = vcombine.low %v3532, %v3564
      %v3589 = vcombine.high %v3532, %v3564
      %v3590 = vcombine.low %v3539, %v3571
      %v3591 = vcombine.high %v3539, %v3571
      %v3592 = vcombine.low %v3548, %v3580
      %v3593 = vcombine.high %v3548, %v3580
      %v3594 = vcombine.low %v3555, %v3587
      %v3595 = vcombine.high %v3555, %v3587
      %v3596 = vcombine.low %v1578, %v1580
      %v3597 = vcombine.high %v1578, %v1580
      %v3599 = vunpack.c.l.s4 1983009808
      %v3600 = vunpack.c.0.s8 %v3599
      %v3601 = vlaneseq
      %v3602 = vshrl.u32 %v3601, 7
      %v3603 = vsub.s32 %v3600, %v3602
      %v3604 = vrot.slane %v3596, %v3603
      %v3606 = vunpack.c.l.s4 1983009808
      %v3607 = vunpack.c.0.s8 %v3606
      %v3608 = vlaneseq
      %v3609 = vshrl.u32 %v3608, 7
      %v3610 = vsub.s32 %v3607, %v3609
      %v3611 = vrot.slane %v3597, %v3610
      %v3612 = vcombine.low %v1579, %v1581
      %v3613 = vcombine.high %v1579, %v1581
      %v3615 = vunpack.c.l.s4 1983009808
      %v3616 = vunpack.c.0.s8 %v3615
      %v3617 = vlaneseq
      %v3618 = vshrl.u32 %v3617, 7
      %v3619 = vsub.s32 %v3616, %v3618
      %v3620 = vrot.slane %v3612, %v3619
      %v3622 = vunpack.c.l.s4 1983009808
      %v3623 = vunpack.c.0.s8 %v3622
      %v3624 = vlaneseq
      %v3625 = vshrl.u32 %v3624, 7
      %v3626 = vsub.s32 %v3623, %v3625
      %v3627 = vrot.slane %v3613, %v3626
      %v3628 = vcombine.low %v1582, %v1584
      %v3629 = vcombine.high %v1582, %v1584
      %v3631 = vunpack.c.l.s4 1983009808
      %v3632 = vunpack.c.0.s8 %v3631
      %v3633 = vlaneseq
      %v3634 = vshrl.u32 %v3633, 7
      %v3635 = vsub.s32 %v3632, %v3634
      %v3636 = vrot.slane %v3628, %v3635
      %v3638 = vunpack.c.l.s4 1983009808
      %v3639 = vunpack.c.0.s8 %v3638
      %v3640 = vlaneseq
      %v3641 = vshrl.u32 %v3640, 7
      %v3642 = vsub.s32 %v3639, %v3641
      %v3643 = vrot.slane %v3629, %v3642
      %v3644 = vcombine.low %v1583, %v1585
      %v3645 = vcombine.high %v1583, %v1585
      %v3647 = vunpack.c.l.s4 1983009808
      %v3648 = vunpack.c.0.s8 %v3647
      %v3649 = vlaneseq
      %v3650 = vshrl.u32 %v3649, 7
      %v3651 = vsub.s32 %v3648, %v3650
      %v3652 = vrot.slane %v3644, %v3651
      %v3654 = vunpack.c.l.s4 1983009808
      %v3655 = vunpack.c.0.s8 %v3654
      %v3656 = vlaneseq
      %v3657 = vshrl.u32 %v3656, 7
      %v3658 = vsub.s32 %v3655, %v3657
      %v3659 = vrot.slane %v3645, %v3658
      %v3660 = vcombine.low %v3604, %v3620
      %v3661 = vcombine.high %v3604, %v3620
      %v3663 = vunpack.c.l.s4 1934713408
      %v3664 = vunpack.c.0.s8 %v3663
      %v3665 = vlaneseq
      %v3666 = vshrl.u32 %v3665, 7
      %v3667 = vsub.s32 %v3664, %v3666
      %v3668 = vrot.slane %v3660, %v3667
      %v3670 = vunpack.c.l.s4 1934713408
      %v3671 = vunpack.c.0.s8 %v3670
      %v3672 = vlaneseq
      %v3673 = vshrl.u32 %v3672, 7
      %v3674 = vsub.s32 %v3671, %v3673
      %v3675 = vrot.slane %v3661, %v3674
      %v3676 = vcombine.low %v3611, %v3627
      %v3678 = vunpack.c.l.s4 1934713408
      %v3679 = vunpack.c.0.s8 %v3678
      %v3680 = vlaneseq
      %v3681 = vshrl.u32 %v3680, 7
      %v3682 = vsub.s32 %v3679, %v3681
      %v3683 = vrot.slane %v3676, %v3682
      %v3684 = vcombine.low %v3636, %v3652
      %v3685 = vcombine.high %v3636, %v3652
      %v3687 = vunpack.c.l.s4 1934713408
      %v3688 = vunpack.c.0.s8 %v3687
      %v3689 = vlaneseq
      %v3690 = vshrl.u32 %v3689, 7
      %v3691 = vsub.s32 %v3688, %v3690
      %v3692 = vrot.slane %v3684, %v3691
      %v3694 = vunpack.c.l.s4 1934713408
      %v3695 = vunpack.c.0.s8 %v3694
      %v3696 = vlaneseq
      %v3697 = vshrl.u32 %v3696, 7
      %v3698 = vsub.s32 %v3695, %v3697
      %v3699 = vrot.slane %v3685, %v3698
      %v3700 = vcombine.low %v3643, %v3659
      %v3702 = vunpack.c.l.s4 1934713408
      %v3703 = vunpack.c.0.s8 %v3702
      %v3704 = vlaneseq
      %v3705 = vshrl.u32 %v3704, 7
      %v3706 = vsub.s32 %v3703, %v3705
      %v3707 = vrot.slane %v3700, %v3706
      %v3708 = vcombine.low %v3668, %v3692
      %v3709 = vcombine.high %v3668, %v3692
      %v3710 = vcombine.low %v3675, %v3699
      %v3711 = vcombine.high %v3675, %v3699
      %v3712 = vcombine.low %v3683, %v3707
      %v3713 = vcombine.high %v3683, %v3707
      %v3714 = vcombine.low %v1712, %v1714
      %v3715 = vcombine.high %v1712, %v1714
      %v3717 = vunpack.c.l.s4 1983009808
      %v3718 = vunpack.c.0.s8 %v3717
      %v3719 = vlaneseq
      %v3720 = vshrl.u32 %v3719, 7
      %v3721 = vsub.s32 %v3718, %v3720
      %v3722 = vrot.slane %v3714, %v3721
      %v3724 = vunpack.c.l.s4 1983009808
      %v3725 = vunpack.c.0.s8 %v3724
      %v3726 = vlaneseq
      %v3727 = vshrl.u32 %v3726, 7
      %v3728 = vsub.s32 %v3725, %v3727
      %v3729 = vrot.slane %v3715, %v3728
      %v3730 = vcombine.low %v1713, %v1715
      %v3731 = vcombine.high %v1713, %v1715
      %v3733 = vunpack.c.l.s4 1983009808
      %v3734 = vunpack.c.0.s8 %v3733
      %v3735 = vlaneseq
      %v3736 = vshrl.u32 %v3735, 7
      %v3737 = vsub.s32 %v3734, %v3736
      %v3738 = vrot.slane %v3730, %v3737
      %v3740 = vunpack.c.l.s4 1983009808
      %v3741 = vunpack.c.0.s8 %v3740
      %v3742 = vlaneseq
      %v3743 = vshrl.u32 %v3742, 7
      %v3744 = vsub.s32 %v3741, %v3743
      %v3745 = vrot.slane %v3731, %v3744
      %v3746 = vcombine.low %v1716, %v1718
      %v3747 = vcombine.high %v1716, %v1718
      %v3749 = vunpack.c.l.s4 1983009808
      %v3750 = vunpack.c.0.s8 %v3749
      %v3751 = vlaneseq
      %v3752 = vshrl.u32 %v3751, 7
      %v3753 = vsub.s32 %v3750, %v3752
      %v3754 = vrot.slane %v3746, %v3753
      %v3756 = vunpack.c.l.s4 1983009808
      %v3757 = vunpack.c.0.s8 %v3756
      %v3758 = vlaneseq
      %v3759 = vshrl.u32 %v3758, 7
      %v3760 = vsub.s32 %v3757, %v3759
      %v3761 = vrot.slane %v3747, %v3760
      %v3762 = vcombine.low %v1717, %v1719
      %v3763 = vcombine.high %v1717, %v1719
      %v3765 = vunpack.c.l.s4 1983009808
      %v3766 = vunpack.c.0.s8 %v3765
      %v3767 = vlaneseq
      %v3768 = vshrl.u32 %v3767, 7
      %v3769 = vsub.s32 %v3766, %v3768
      %v3770 = vrot.slane %v3762, %v3769
      %v3772 = vunpack.c.l.s4 1983009808
      %v3773 = vunpack.c.0.s8 %v3772
      %v3774 = vlaneseq
      %v3775 = vshrl.u32 %v3774, 7
      %v3776 = vsub.s32 %v3773, %v3775
      %v3777 = vrot.slane %v3763, %v3776
      %v3778 = vcombine.low %v3722, %v3738
      %v3779 = vcombine.high %v3722, %v3738
      %v3781 = vunpack.c.l.s4 1934713408
      %v3782 = vunpack.c.0.s8 %v3781
      %v3783 = vlaneseq
      %v3784 = vshrl.u32 %v3783, 7
      %v3785 = vsub.s32 %v3782, %v3784
      %v3786 = vrot.slane %v3778, %v3785
      %v3788 = vunpack.c.l.s4 1934713408
      %v3789 = vunpack.c.0.s8 %v3788
      %v3790 = vlaneseq
      %v3791 = vshrl.u32 %v3790, 7
      %v3792 = vsub.s32 %v3789, %v3791
      %v3793 = vrot.slane %v3779, %v3792
      %v3794 = vcombine.low %v3729, %v3745
      %v3796 = vunpack.c.l.s4 1934713408
      %v3797 = vunpack.c.0.s8 %v3796
      %v3798 = vlaneseq
      %v3799 = vshrl.u32 %v3798, 7
      %v3800 = vsub.s32 %v3797, %v3799
      %v3801 = vrot.slane %v3794, %v3800
      %v3802 = vcombine.low %v3754, %v3770
      %v3803 = vcombine.high %v3754, %v3770
      %v3805 = vunpack.c.l.s4 1934713408
      %v3806 = vunpack.c.0.s8 %v3805
      %v3807 = vlaneseq
      %v3808 = vshrl.u32 %v3807, 7
      %v3809 = vsub.s32 %v3806, %v3808
      %v3810 = vrot.slane %v3802, %v3809
      %v3812 = vunpack.c.l.s4 1934713408
      %v3813 = vunpack.c.0.s8 %v3812
      %v3814 = vlaneseq
      %v3815 = vshrl.u32 %v3814, 7
      %v3816 = vsub.s32 %v3813, %v3815
      %v3817 = vrot.slane %v3803, %v3816
      %v3818 = vcombine.low %v3761, %v3777
      %v3820 = vunpack.c.l.s4 1934713408
      %v3821 = vunpack.c.0.s8 %v3820
      %v3822 = vlaneseq
      %v3823 = vshrl.u32 %v3822, 7
      %v3824 = vsub.s32 %v3821, %v3823
      %v3825 = vrot.slane %v3818, %v3824
      %v3826 = vcombine.low %v3786, %v3810
      %v3827 = vcombine.high %v3786, %v3810
      %v3828 = vcombine.low %v3793, %v3817
      %v3829 = vcombine.high %v3793, %v3817
      %v3830 = vcombine.low %v3801, %v3825
      %v3831 = vcombine.high %v3801, %v3825
      %v3832 = vcombine.low %v1846, %v1848
      %v3833 = vcombine.high %v1846, %v1848
      %v3835 = vunpack.c.l.s4 1983009808
      %v3836 = vunpack.c.0.s8 %v3835
      %v3837 = vlaneseq
      %v3838 = vshrl.u32 %v3837, 7
      %v3839 = vsub.s32 %v3836, %v3838
      %v3840 = vrot.slane %v3832, %v3839
      %v3842 = vunpack.c.l.s4 1983009808
      %v3843 = vunpack.c.0.s8 %v3842
      %v3844 = vlaneseq
      %v3845 = vshrl.u32 %v3844, 7
      %v3846 = vsub.s32 %v3843, %v3845
      %v3847 = vrot.slane %v3833, %v3846
      %v3848 = vcombine.low %v1847, %v1849
      %v3849 = vcombine.high %v1847, %v1849
      %v3851 = vunpack.c.l.s4 1983009808
      %v3852 = vunpack.c.0.s8 %v3851
      %v3853 = vlaneseq
      %v3854 = vshrl.u32 %v3853, 7
      %v3855 = vsub.s32 %v3852, %v3854
      %v3856 = vrot.slane %v3848, %v3855
      %v3858 = vunpack.c.l.s4 1983009808
      %v3859 = vunpack.c.0.s8 %v3858
      %v3860 = vlaneseq
      %v3861 = vshrl.u32 %v3860, 7
      %v3862 = vsub.s32 %v3859, %v3861
      %v3863 = vrot.slane %v3849, %v3862
      %v3864 = vcombine.low %v1850, %v1852
      %v3865 = vcombine.high %v1850, %v1852
      %v3867 = vunpack.c.l.s4 1983009808
      %v3868 = vunpack.c.0.s8 %v3867
      %v3869 = vlaneseq
      %v3870 = vshrl.u32 %v3869, 7
      %v3871 = vsub.s32 %v3868, %v3870
      %v3872 = vrot.slane %v3864, %v3871
      %v3874 = vunpack.c.l.s4 1983009808
      %v3875 = vunpack.c.0.s8 %v3874
      %v3876 = vlaneseq
      %v3877 = vshrl.u32 %v3876, 7
      %v3878 = vsub.s32 %v3875, %v3877
      %v3879 = vrot.slane %v3865, %v3878
      %v3880 = vcombine.low %v1851, %v1853
      %v3881 = vcombine.high %v1851, %v1853
      %v3883 = vunpack.c.l.s4 1983009808
      %v3884 = vunpack.c.0.s8 %v3883
      %v3885 = vlaneseq
      %v3886 = vshrl.u32 %v3885, 7
      %v3887 = vsub.s32 %v3884, %v3886
      %v3888 = vrot.slane %v3880, %v3887
      %v3890 = vunpack.c.l.s4 1983009808
      %v3891 = vunpack.c.0.s8 %v3890
      %v3892 = vlaneseq
      %v3893 = vshrl.u32 %v3892, 7
      %v3894 = vsub.s32 %v3891, %v3893
      %v3895 = vrot.slane %v3881, %v3894
      %v3896 = vcombine.low %v3840, %v3856
      %v3897 = vcombine.high %v3840, %v3856
      %v3899 = vunpack.c.l.s4 1934713408
      %v3900 = vunpack.c.0.s8 %v3899
      %v3901 = vlaneseq
      %v3902 = vshrl.u32 %v3901, 7
      %v3903 = vsub.s32 %v3900, %v3902
      %v3904 = vrot.slane %v3896, %v3903
      %v3906 = vunpack.c.l.s4 1934713408
      %v3907 = vunpack.c.0.s8 %v3906
      %v3908 = vlaneseq
      %v3909 = vshrl.u32 %v3908, 7
      %v3910 = vsub.s32 %v3907, %v3909
      %v3911 = vrot.slane %v3897, %v3910
      %v3912 = vcombine.low %v3847, %v3863
      %v3914 = vunpack.c.l.s4 1934713408
      %v3915 = vunpack.c.0.s8 %v3914
      %v3916 = vlaneseq
      %v3917 = vshrl.u32 %v3916, 7
      %v3918 = vsub.s32 %v3915, %v3917
      %v3919 = vrot.slane %v3912, %v3918
      %v3920 = vcombine.low %v3872, %v3888
      %v3921 = vcombine.high %v3872, %v3888
      %v3923 = vunpack.c.l.s4 1934713408
      %v3924 = vunpack.c.0.s8 %v3923
      %v3925 = vlaneseq
      %v3926 = vshrl.u32 %v3925, 7
      %v3927 = vsub.s32 %v3924, %v3926
      %v3928 = vrot.slane %v3920, %v3927
      %v3930 = vunpack.c.l.s4 1934713408
      %v3931 = vunpack.c.0.s8 %v3930
      %v3932 = vlaneseq
      %v3933 = vshrl.u32 %v3932, 7
      %v3934 = vsub.s32 %v3931, %v3933
      %v3935 = vrot.slane %v3921, %v3934
      %v3936 = vcombine.low %v3879, %v3895
      %v3938 = vunpack.c.l.s4 1934713408
      %v3939 = vunpack.c.0.s8 %v3938
      %v3940 = vlaneseq
      %v3941 = vshrl.u32 %v3940, 7
      %v3942 = vsub.s32 %v3939, %v3941
      %v3943 = vrot.slane %v3936, %v3942
      %v3944 = vcombine.low %v3904, %v3928
      %v3945 = vcombine.high %v3904, %v3928
      %v3946 = vcombine.low %v3911, %v3935
      %v3947 = vcombine.high %v3911, %v3935
      %v3948 = vcombine.low %v3919, %v3943
      %v3949 = vcombine.high %v3919, %v3943
      %v3950 = vcombine.low %v1980, %v1982
      %v3951 = vcombine.high %v1980, %v1982
      %v3953 = vunpack.c.l.s4 1983009808
      %v3954 = vunpack.c.0.s8 %v3953
      %v3955 = vlaneseq
      %v3956 = vshrl.u32 %v3955, 7
      %v3957 = vsub.s32 %v3954, %v3956
      %v3958 = vrot.slane %v3950, %v3957
      %v3960 = vunpack.c.l.s4 1983009808
      %v3961 = vunpack.c.0.s8 %v3960
      %v3962 = vlaneseq
      %v3963 = vshrl.u32 %v3962, 7
      %v3964 = vsub.s32 %v3961, %v3963
      %v3965 = vrot.slane %v3951, %v3964
      %v3966 = vcombine.low %v1981, %v1983
      %v3967 = vcombine.high %v1981, %v1983
      %v3969 = vunpack.c.l.s4 1983009808
      %v3970 = vunpack.c.0.s8 %v3969
      %v3971 = vlaneseq
      %v3972 = vshrl.u32 %v3971, 7
      %v3973 = vsub.s32 %v3970, %v3972
      %v3974 = vrot.slane %v3966, %v3973
      %v3976 = vunpack.c.l.s4 1983009808
      %v3977 = vunpack.c.0.s8 %v3976
      %v3978 = vlaneseq
      %v3979 = vshrl.u32 %v3978, 7
      %v3980 = vsub.s32 %v3977, %v3979
      %v3981 = vrot.slane %v3967, %v3980
      %v3982 = vcombine.low %v1984, %v1986
      %v3983 = vcombine.high %v1984, %v1986
      %v3985 = vunpack.c.l.s4 1983009808
      %v3986 = vunpack.c.0.s8 %v3985
      %v3987 = vlaneseq
      %v3988 = vshrl.u32 %v3987, 7
      %v3989 = vsub.s32 %v3986, %v3988
      %v3990 = vrot.slane %v3982, %v3989
      %v3992 = vunpack.c.l.s4 1983009808
      %v3993 = vunpack.c.0.s8 %v3992
      %v3994 = vlaneseq
      %v3995 = vshrl.u32 %v3994, 7
      %v3996 = vsub.s32 %v3993, %v3995
      %v3997 = vrot.slane %v3983, %v3996
      %v3998 = vcombine.low %v1985, %v1987
      %v3999 = vcombine.high %v1985, %v1987
      %v4001 = vunpack.c.l.s4 1983009808
      %v4002 = vunpack.c.0.s8 %v4001
      %v4003 = vlaneseq
      %v4004 = vshrl.u32 %v4003, 7
      %v4005 = vsub.s32 %v4002, %v4004
      %v4006 = vrot.slane %v3998, %v4005
      %v4008 = vunpack.c.l.s4 1983009808
      %v4009 = vunpack.c.0.s8 %v4008
      %v4010 = vlaneseq
      %v4011 = vshrl.u32 %v4010, 7
      %v4012 = vsub.s32 %v4009, %v4011
      %v4013 = vrot.slane %v3999, %v4012
      %v4014 = vcombine.low %v3958, %v3974
      %v4015 = vcombine.high %v3958, %v3974
      %v4017 = vunpack.c.l.s4 1934713408
      %v4018 = vunpack.c.0.s8 %v4017
      %v4019 = vlaneseq
      %v4020 = vshrl.u32 %v4019, 7
      %v4021 = vsub.s32 %v4018, %v4020
      %v4022 = vrot.slane %v4014, %v4021
      %v4024 = vunpack.c.l.s4 1934713408
      %v4025 = vunpack.c.0.s8 %v4024
      %v4026 = vlaneseq
      %v4027 = vshrl.u32 %v4026, 7
      %v4028 = vsub.s32 %v4025, %v4027
      %v4029 = vrot.slane %v4015, %v4028
      %v4030 = vcombine.low %v3965, %v3981
      %v4032 = vunpack.c.l.s4 1934713408
      %v4033 = vunpack.c.0.s8 %v4032
      %v4034 = vlaneseq
      %v4035 = vshrl.u32 %v4034, 7
      %v4036 = vsub.s32 %v4033, %v4035
      %v4037 = vrot.slane %v4030, %v4036
      %v4038 = vcombine.low %v3990, %v4006
      %v4039 = vcombine.high %v3990, %v4006
      %v4041 = vunpack.c.l.s4 1934713408
      %v4042 = vunpack.c.0.s8 %v4041
      %v4043 = vlaneseq
      %v4044 = vshrl.u32 %v4043, 7
      %v4045 = vsub.s32 %v4042, %v4044
      %v4046 = vrot.slane %v4038, %v4045
      %v4048 = vunpack.c.l.s4 1934713408
      %v4049 = vunpack.c.0.s8 %v4048
      %v4050 = vlaneseq
      %v4051 = vshrl.u32 %v4050, 7
      %v4052 = vsub.s32 %v4049, %v4051
      %v4053 = vrot.slane %v4039, %v4052
      %v4054 = vcombine.low %v3997, %v4013
      %v4056 = vunpack.c.l.s4 1934713408
      %v4057 = vunpack.c.0.s8 %v4056
      %v4058 = vlaneseq
      %v4059 = vshrl.u32 %v4058, 7
      %v4060 = vsub.s32 %v4057, %v4059
      %v4061 = vrot.slane %v4054, %v4060
      %v4062 = vcombine.low %v4022, %v4046
      %v4063 = vcombine.high %v4022, %v4046
      %v4064 = vcombine.low %v4029, %v4053
      %v4065 = vcombine.high %v4029, %v4053
      %v4066 = vcombine.low %v4037, %v4061
      %v4067 = vcombine.high %v4037, %v4061
      %v4068 = vcombine.low %v2114, %v2116
      %v4069 = vcombine.high %v2114, %v2116
      %v4071 = vunpack.c.l.s4 1983009808
      %v4072 = vunpack.c.0.s8 %v4071
      %v4073 = vlaneseq
      %v4074 = vshrl.u32 %v4073, 7
      %v4075 = vsub.s32 %v4072, %v4074
      %v4076 = vrot.slane %v4068, %v4075
      %v4078 = vunpack.c.l.s4 1983009808
      %v4079 = vunpack.c.0.s8 %v4078
      %v4080 = vlaneseq
      %v4081 = vshrl.u32 %v4080, 7
      %v4082 = vsub.s32 %v4079, %v4081
      %v4083 = vrot.slane %v4069, %v4082
      %v4084 = vcombine.low %v2115, %v2117
      %v4085 = vcombine.high %v2115, %v2117
      %v4087 = vunpack.c.l.s4 1983009808
      %v4088 = vunpack.c.0.s8 %v4087
      %v4089 = vlaneseq
      %v4090 = vshrl.u32 %v4089, 7
      %v4091 = vsub.s32 %v4088, %v4090
      %v4092 = vrot.slane %v4084, %v4091
      %v4094 = vunpack.c.l.s4 1983009808
      %v4095 = vunpack.c.0.s8 %v4094
      %v4096 = vlaneseq
      %v4097 = vshrl.u32 %v4096, 7
      %v4098 = vsub.s32 %v4095, %v4097
      %v4099 = vrot.slane %v4085, %v4098
      %v4100 = vcombine.low %v2118, %v2120
      %v4101 = vcombine.high %v2118, %v2120
      %v4103 = vunpack.c.l.s4 1983009808
      %v4104 = vunpack.c.0.s8 %v4103
      %v4105 = vlaneseq
      %v4106 = vshrl.u32 %v4105, 7
      %v4107 = vsub.s32 %v4104, %v4106
      %v4108 = vrot.slane %v4100, %v4107
      %v4110 = vunpack.c.l.s4 1983009808
      %v4111 = vunpack.c.0.s8 %v4110
      %v4112 = vlaneseq
      %v4113 = vshrl.u32 %v4112, 7
      %v4114 = vsub.s32 %v4111, %v4113
      %v4115 = vrot.slane %v4101, %v4114
      %v4116 = vcombine.low %v2119, %v2121
      %v4117 = vcombine.high %v2119, %v2121
      %v4119 = vunpack.c.l.s4 1983009808
      %v4120 = vunpack.c.0.s8 %v4119
      %v4121 = vlaneseq
      %v4122 = vshrl.u32 %v4121, 7
      %v4123 = vsub.s32 %v4120, %v4122
      %v4124 = vrot.slane %v4116, %v4123
      %v4126 = vunpack.c.l.s4 1983009808
      %v4127 = vunpack.c.0.s8 %v4126
      %v4128 = vlaneseq
      %v4129 = vshrl.u32 %v4128, 7
      %v4130 = vsub.s32 %v4127, %v4129
      %v4131 = vrot.slane %v4117, %v4130
      %v4132 = vcombine.low %v4076, %v4092
      %v4133 = vcombine.high %v4076, %v4092
      %v4135 = vunpack.c.l.s4 1934713408
      %v4136 = vunpack.c.0.s8 %v4135
      %v4137 = vlaneseq
      %v4138 = vshrl.u32 %v4137, 7
      %v4139 = vsub.s32 %v4136, %v4138
      %v4140 = vrot.slane %v4132, %v4139
      %v4142 = vunpack.c.l.s4 1934713408
      %v4143 = vunpack.c.0.s8 %v4142
      %v4144 = vlaneseq
      %v4145 = vshrl.u32 %v4144, 7
      %v4146 = vsub.s32 %v4143, %v4145
      %v4147 = vrot.slane %v4133, %v4146
      %v4148 = vcombine.low %v4083, %v4099
      %v4150 = vunpack.c.l.s4 1934713408
      %v4151 = vunpack.c.0.s8 %v4150
      %v4152 = vlaneseq
      %v4153 = vshrl.u32 %v4152, 7
      %v4154 = vsub.s32 %v4151, %v4153
      %v4155 = vrot.slane %v4148, %v4154
      %v4156 = vcombine.low %v4108, %v4124
      %v4157 = vcombine.high %v4108, %v4124
      %v4159 = vunpack.c.l.s4 1934713408
      %v4160 = vunpack.c.0.s8 %v4159
      %v4161 = vlaneseq
      %v4162 = vshrl.u32 %v4161, 7
      %v4163 = vsub.s32 %v4160, %v4162
      %v4164 = vrot.slane %v4156, %v4163
      %v4166 = vunpack.c.l.s4 1934713408
      %v4167 = vunpack.c.0.s8 %v4166
      %v4168 = vlaneseq
      %v4169 = vshrl.u32 %v4168, 7
      %v4170 = vsub.s32 %v4167, %v4169
      %v4171 = vrot.slane %v4157, %v4170
      %v4172 = vcombine.low %v4115, %v4131
      %v4174 = vunpack.c.l.s4 1934713408
      %v4175 = vunpack.c.0.s8 %v4174
      %v4176 = vlaneseq
      %v4177 = vshrl.u32 %v4176, 7
      %v4178 = vsub.s32 %v4175, %v4177
      %v4179 = vrot.slane %v4172, %v4178
      %v4180 = vcombine.low %v4140, %v4164
      %v4181 = vcombine.high %v4140, %v4164
      %v4182 = vcombine.low %v4147, %v4171
      %v4183 = vcombine.high %v4147, %v4171
      %v4184 = vcombine.low %v4155, %v4179
      %v4185 = vcombine.high %v4155, %v4179
      %v4186 = vcombine.low %v2248, %v2250
      %v4187 = vcombine.high %v2248, %v2250
      %v4189 = vunpack.c.l.s4 1983009808
      %v4190 = vunpack.c.0.s8 %v4189
      %v4191 = vlaneseq
      %v4192 = vshrl.u32 %v4191, 7
      %v4193 = vsub.s32 %v4190, %v4192
      %v4194 = vrot.slane %v4186, %v4193
      %v4196 = vunpack.c.l.s4 1983009808
      %v4197 = vunpack.c.0.s8 %v4196
      %v4198 = vlaneseq
      %v4199 = vshrl.u32 %v4198, 7
      %v4200 = vsub.s32 %v4197, %v4199
      %v4201 = vrot.slane %v4187, %v4200
      %v4202 = vcombine.low %v2249, %v2251
      %v4203 = vcombine.high %v2249, %v2251
      %v4205 = vunpack.c.l.s4 1983009808
      %v4206 = vunpack.c.0.s8 %v4205
      %v4207 = vlaneseq
      %v4208 = vshrl.u32 %v4207, 7
      %v4209 = vsub.s32 %v4206, %v4208
      %v4210 = vrot.slane %v4202, %v4209
      %v4212 = vunpack.c.l.s4 1983009808
      %v4213 = vunpack.c.0.s8 %v4212
      %v4214 = vlaneseq
      %v4215 = vshrl.u32 %v4214, 7
      %v4216 = vsub.s32 %v4213, %v4215
      %v4217 = vrot.slane %v4203, %v4216
      %v4218 = vcombine.low %v2252, %v2254
      %v4219 = vcombine.high %v2252, %v2254
      %v4221 = vunpack.c.l.s4 1983009808
      %v4222 = vunpack.c.0.s8 %v4221
      %v4223 = vlaneseq
      %v4224 = vshrl.u32 %v4223, 7
      %v4225 = vsub.s32 %v4222, %v4224
      %v4226 = vrot.slane %v4218, %v4225
      %v4228 = vunpack.c.l.s4 1983009808
      %v4229 = vunpack.c.0.s8 %v4228
      %v4230 = vlaneseq
      %v4231 = vshrl.u32 %v4230, 7
      %v4232 = vsub.s32 %v4229, %v4231
      %v4233 = vrot.slane %v4219, %v4232
      %v4234 = vcombine.low %v2253, %v2255
      %v4235 = vcombine.high %v2253, %v2255
      %v4237 = vunpack.c.l.s4 1983009808
      %v4238 = vunpack.c.0.s8 %v4237
      %v4239 = vlaneseq
      %v4240 = vshrl.u32 %v4239, 7
      %v4241 = vsub.s32 %v4238, %v4240
      %v4242 = vrot.slane %v4234, %v4241
      %v4244 = vunpack.c.l.s4 1983009808
      %v4245 = vunpack.c.0.s8 %v4244
      %v4246 = vlaneseq
      %v4247 = vshrl.u32 %v4246, 7
      %v4248 = vsub.s32 %v4245, %v4247
      %v4249 = vrot.slane %v4235, %v4248
      %v4250 = vcombine.low %v4194, %v4210
      %v4251 = vcombine.high %v4194, %v4210
      %v4253 = vunpack.c.l.s4 1934713408
      %v4254 = vunpack.c.0.s8 %v4253
      %v4255 = vlaneseq
      %v4256 = vshrl.u32 %v4255, 7
      %v4257 = vsub.s32 %v4254, %v4256
      %v4258 = vrot.slane %v4250, %v4257
      %v4260 = vunpack.c.l.s4 1934713408
      %v4261 = vunpack.c.0.s8 %v4260
      %v4262 = vlaneseq
      %v4263 = vshrl.u32 %v4262, 7
      %v4264 = vsub.s32 %v4261, %v4263
      %v4265 = vrot.slane %v4251, %v4264
      %v4266 = vcombine.low %v4201, %v4217
      %v4268 = vunpack.c.l.s4 1934713408
      %v4269 = vunpack.c.0.s8 %v4268
      %v4270 = vlaneseq
      %v4271 = vshrl.u32 %v4270, 7
      %v4272 = vsub.s32 %v4269, %v4271
      %v4273 = vrot.slane %v4266, %v4272
      %v4274 = vcombine.low %v4226, %v4242
      %v4275 = vcombine.high %v4226, %v4242
      %v4277 = vunpack.c.l.s4 1934713408
      %v4278 = vunpack.c.0.s8 %v4277
      %v4279 = vlaneseq
      %v4280 = vshrl.u32 %v4279, 7
      %v4281 = vsub.s32 %v4278, %v4280
      %v4282 = vrot.slane %v4274, %v4281
      %v4284 = vunpack.c.l.s4 1934713408
      %v4285 = vunpack.c.0.s8 %v4284
      %v4286 = vlaneseq
      %v4287 = vshrl.u32 %v4286, 7
      %v4288 = vsub.s32 %v4285, %v4287
      %v4289 = vrot.slane %v4275, %v4288
      %v4290 = vcombine.low %v4233, %v4249
      %v4292 = vunpack.c.l.s4 1934713408
      %v4293 = vunpack.c.0.s8 %v4292
      %v4294 = vlaneseq
      %v4295 = vshrl.u32 %v4294, 7
      %v4296 = vsub.s32 %v4293, %v4295
      %v4297 = vrot.slane %v4290, %v4296
      %v4298 = vcombine.low %v4258, %v4282
      %v4299 = vcombine.high %v4258, %v4282
      %v4300 = vcombine.low %v4265, %v4289
      %v4301 = vcombine.high %v4265, %v4289
      %v4302 = vcombine.low %v4273, %v4297
      %v4303 = vcombine.high %v4273, %v4297
      %v4304 = vcombine.low %v2382, %v2384
      %v4305 = vcombine.high %v2382, %v2384
      %v4307 = vunpack.c.l.s4 1983009808
      %v4308 = vunpack.c.0.s8 %v4307
      %v4309 = vlaneseq
      %v4310 = vshrl.u32 %v4309, 7
      %v4311 = vsub.s32 %v4308, %v4310
      %v4312 = vrot.slane %v4304, %v4311
      %v4314 = vunpack.c.l.s4 1983009808
      %v4315 = vunpack.c.0.s8 %v4314
      %v4316 = vlaneseq
      %v4317 = vshrl.u32 %v4316, 7
      %v4318 = vsub.s32 %v4315, %v4317
      %v4319 = vrot.slane %v4305, %v4318
      %v4320 = vcombine.low %v2383, %v2385
      %v4321 = vcombine.high %v2383, %v2385
      %v4323 = vunpack.c.l.s4 1983009808
      %v4324 = vunpack.c.0.s8 %v4323
      %v4325 = vlaneseq
      %v4326 = vshrl.u32 %v4325, 7
      %v4327 = vsub.s32 %v4324, %v4326
      %v4328 = vrot.slane %v4320, %v4327
      %v4330 = vunpack.c.l.s4 1983009808
      %v4331 = vunpack.c.0.s8 %v4330
      %v4332 = vlaneseq
      %v4333 = vshrl.u32 %v4332, 7
      %v4334 = vsub.s32 %v4331, %v4333
      %v4335 = vrot.slane %v4321, %v4334
      %v4336 = vcombine.low %v2386, %v2388
      %v4337 = vcombine.high %v2386, %v2388
      %v4339 = vunpack.c.l.s4 1983009808
      %v4340 = vunpack.c.0.s8 %v4339
      %v4341 = vlaneseq
      %v4342 = vshrl.u32 %v4341, 7
      %v4343 = vsub.s32 %v4340, %v4342
      %v4344 = vrot.slane %v4336, %v4343
      %v4346 = vunpack.c.l.s4 1983009808
      %v4347 = vunpack.c.0.s8 %v4346
      %v4348 = vlaneseq
      %v4349 = vshrl.u32 %v4348, 7
      %v4350 = vsub.s32 %v4347, %v4349
      %v4351 = vrot.slane %v4337, %v4350
      %v4352 = vcombine.low %v2387, %v2389
      %v4353 = vcombine.high %v2387, %v2389
      %v4355 = vunpack.c.l.s4 1983009808
      %v4356 = vunpack.c.0.s8 %v4355
      %v4357 = vlaneseq
      %v4358 = vshrl.u32 %v4357, 7
      %v4359 = vsub.s32 %v4356, %v4358
      %v4360 = vrot.slane %v4352, %v4359
      %v4362 = vunpack.c.l.s4 1983009808
      %v4363 = vunpack.c.0.s8 %v4362
      %v4364 = vlaneseq
      %v4365 = vshrl.u32 %v4364, 7
      %v4366 = vsub.s32 %v4363, %v4365
      %v4367 = vrot.slane %v4353, %v4366
      %v4368 = vcombine.low %v4312, %v4328
      %v4369 = vcombine.high %v4312, %v4328
      %v4371 = vunpack.c.l.s4 1934713408
      %v4372 = vunpack.c.0.s8 %v4371
      %v4373 = vlaneseq
      %v4374 = vshrl.u32 %v4373, 7
      %v4375 = vsub.s32 %v4372, %v4374
      %v4376 = vrot.slane %v4368, %v4375
      %v4378 = vunpack.c.l.s4 1934713408
      %v4379 = vunpack.c.0.s8 %v4378
      %v4380 = vlaneseq
      %v4381 = vshrl.u32 %v4380, 7
      %v4382 = vsub.s32 %v4379, %v4381
      %v4383 = vrot.slane %v4369, %v4382
      %v4384 = vcombine.low %v4319, %v4335
      %v4386 = vunpack.c.l.s4 1934713408
      %v4387 = vunpack.c.0.s8 %v4386
      %v4388 = vlaneseq
      %v4389 = vshrl.u32 %v4388, 7
      %v4390 = vsub.s32 %v4387, %v4389
      %v4391 = vrot.slane %v4384, %v4390
      %v4392 = vcombine.low %v4344, %v4360
      %v4393 = vcombine.high %v4344, %v4360
      %v4395 = vunpack.c.l.s4 1934713408
      %v4396 = vunpack.c.0.s8 %v4395
      %v4397 = vlaneseq
      %v4398 = vshrl.u32 %v4397, 7
      %v4399 = vsub.s32 %v4396, %v4398
      %v4400 = vrot.slane %v4392, %v4399
      %v4402 = vunpack.c.l.s4 1934713408
      %v4403 = vunpack.c.0.s8 %v4402
      %v4404 = vlaneseq
      %v4405 = vshrl.u32 %v4404, 7
      %v4406 = vsub.s32 %v4403, %v4405
      %v4407 = vrot.slane %v4393, %v4406
      %v4408 = vcombine.low %v4351, %v4367
      %v4410 = vunpack.c.l.s4 1934713408
      %v4411 = vunpack.c.0.s8 %v4410
      %v4412 = vlaneseq
      %v4413 = vshrl.u32 %v4412, 7
      %v4414 = vsub.s32 %v4411, %v4413
      %v4415 = vrot.slane %v4408, %v4414
      %v4416 = vcombine.low %v4376, %v4400
      %v4417 = vcombine.high %v4376, %v4400
      %v4418 = vcombine.low %v4383, %v4407
      %v4419 = vcombine.high %v4383, %v4407
      %v4420 = vcombine.low %v4391, %v4415
      %v4421 = vcombine.high %v4391, %v4415
      %v4422 = vcombine.low %v2516, %v2518
      %v4423 = vcombine.high %v2516, %v2518
      %v4425 = vunpack.c.l.s4 1983009808
      %v4426 = vunpack.c.0.s8 %v4425
      %v4427 = vlaneseq
      %v4428 = vshrl.u32 %v4427, 7
      %v4429 = vsub.s32 %v4426, %v4428
      %v4430 = vrot.slane %v4422, %v4429
      %v4432 = vunpack.c.l.s4 1983009808
      %v4433 = vunpack.c.0.s8 %v4432
      %v4434 = vlaneseq
      %v4435 = vshrl.u32 %v4434, 7
      %v4436 = vsub.s32 %v4433, %v4435
      %v4437 = vrot.slane %v4423, %v4436
      %v4438 = vcombine.low %v2517, %v2519
      %v4439 = vcombine.high %v2517, %v2519
      %v4441 = vunpack.c.l.s4 1983009808
      %v4442 = vunpack.c.0.s8 %v4441
      %v4443 = vlaneseq
      %v4444 = vshrl.u32 %v4443, 7
      %v4445 = vsub.s32 %v4442, %v4444
      %v4446 = vrot.slane %v4438, %v4445
      %v4448 = vunpack.c.l.s4 1983009808
      %v4449 = vunpack.c.0.s8 %v4448
      %v4450 = vlaneseq
      %v4451 = vshrl.u32 %v4450, 7
      %v4452 = vsub.s32 %v4449, %v4451
      %v4453 = vrot.slane %v4439, %v4452
      %v4454 = vcombine.low %v2520, %v2522
      %v4455 = vcombine.high %v2520, %v2522
      %v4457 = vunpack.c.l.s4 1983009808
      %v4458 = vunpack.c.0.s8 %v4457
      %v4459 = vlaneseq
      %v4460 = vshrl.u32 %v4459, 7
      %v4461 = vsub.s32 %v4458, %v4460
      %v4462 = vrot.slane %v4454, %v4461
      %v4464 = vunpack.c.l.s4 1983009808
      %v4465 = vunpack.c.0.s8 %v4464
      %v4466 = vlaneseq
      %v4467 = vshrl.u32 %v4466, 7
      %v4468 = vsub.s32 %v4465, %v4467
      %v4469 = vrot.slane %v4455, %v4468
      %v4470 = vcombine.low %v2521, %v2523
      %v4471 = vcombine.high %v2521, %v2523
      %v4473 = vunpack.c.l.s4 1983009808
      %v4474 = vunpack.c.0.s8 %v4473
      %v4475 = vlaneseq
      %v4476 = vshrl.u32 %v4475, 7
      %v4477 = vsub.s32 %v4474, %v4476
      %v4478 = vrot.slane %v4470, %v4477
      %v4480 = vunpack.c.l.s4 1983009808
      %v4481 = vunpack.c.0.s8 %v4480
      %v4482 = vlaneseq
      %v4483 = vshrl.u32 %v4482, 7
      %v4484 = vsub.s32 %v4481, %v4483
      %v4485 = vrot.slane %v4471, %v4484
      %v4486 = vcombine.low %v4430, %v4446
      %v4487 = vcombine.high %v4430, %v4446
      %v4489 = vunpack.c.l.s4 1934713408
      %v4490 = vunpack.c.0.s8 %v4489
      %v4491 = vlaneseq
      %v4492 = vshrl.u32 %v4491, 7
      %v4493 = vsub.s32 %v4490, %v4492
      %v4494 = vrot.slane %v4486, %v4493
      %v4496 = vunpack.c.l.s4 1934713408
      %v4497 = vunpack.c.0.s8 %v4496
      %v4498 = vlaneseq
      %v4499 = vshrl.u32 %v4498, 7
      %v4500 = vsub.s32 %v4497, %v4499
      %v4501 = vrot.slane %v4487, %v4500
      %v4502 = vcombine.low %v4437, %v4453
      %v4504 = vunpack.c.l.s4 1934713408
      %v4505 = vunpack.c.0.s8 %v4504
      %v4506 = vlaneseq
      %v4507 = vshrl.u32 %v4506, 7
      %v4508 = vsub.s32 %v4505, %v4507
      %v4509 = vrot.slane %v4502, %v4508
      %v4510 = vcombine.low %v4462, %v4478
      %v4511 = vcombine.high %v4462, %v4478
      %v4513 = vunpack.c.l.s4 1934713408
      %v4514 = vunpack.c.0.s8 %v4513
      %v4515 = vlaneseq
      %v4516 = vshrl.u32 %v4515, 7
      %v4517 = vsub.s32 %v4514, %v4516
      %v4518 = vrot.slane %v4510, %v4517
      %v4520 = vunpack.c.l.s4 1934713408
      %v4521 = vunpack.c.0.s8 %v4520
      %v4522 = vlaneseq
      %v4523 = vshrl.u32 %v4522, 7
      %v4524 = vsub.s32 %v4521, %v4523
      %v4525 = vrot.slane %v4511, %v4524
      %v4526 = vcombine.low %v4469, %v4485
      %v4528 = vunpack.c.l.s4 1934713408
      %v4529 = vunpack.c.0.s8 %v4528
      %v4530 = vlaneseq
      %v4531 = vshrl.u32 %v4530, 7
      %v4532 = vsub.s32 %v4529, %v4531
      %v4533 = vrot.slane %v4526, %v4532
      %v4534 = vcombine.low %v4494, %v4518
      %v4535 = vcombine.high %v4494, %v4518
      %v4536 = vcombine.low %v4501, %v4525
      %v4537 = vcombine.high %v4501, %v4525
      %v4538 = vcombine.low %v4509, %v4533
      %v4539 = vcombine.high %v4509, %v4533
      %v4540 = vcombine.low %v2650, %v2652
      %v4541 = vcombine.high %v2650, %v2652
      %v4543 = vunpack.c.l.s4 1983009808
      %v4544 = vunpack.c.0.s8 %v4543
      %v4545 = vlaneseq
      %v4546 = vshrl.u32 %v4545, 7
      %v4547 = vsub.s32 %v4544, %v4546
      %v4548 = vrot.slane %v4540, %v4547
      %v4550 = vunpack.c.l.s4 1983009808
      %v4551 = vunpack.c.0.s8 %v4550
      %v4552 = vlaneseq
      %v4553 = vshrl.u32 %v4552, 7
      %v4554 = vsub.s32 %v4551, %v4553
      %v4555 = vrot.slane %v4541, %v4554
      %v4556 = vcombine.low %v2651, %v2653
      %v4557 = vcombine.high %v2651, %v2653
      %v4559 = vunpack.c.l.s4 1983009808
      %v4560 = vunpack.c.0.s8 %v4559
      %v4561 = vlaneseq
      %v4562 = vshrl.u32 %v4561, 7
      %v4563 = vsub.s32 %v4560, %v4562
      %v4564 = vrot.slane %v4556, %v4563
      %v4566 = vunpack.c.l.s4 1983009808
      %v4567 = vunpack.c.0.s8 %v4566
      %v4568 = vlaneseq
      %v4569 = vshrl.u32 %v4568, 7
      %v4570 = vsub.s32 %v4567, %v4569
      %v4571 = vrot.slane %v4557, %v4570
      %v4572 = vcombine.low %v2654, %v2656
      %v4573 = vcombine.high %v2654, %v2656
      %v4575 = vunpack.c.l.s4 1983009808
      %v4576 = vunpack.c.0.s8 %v4575
      %v4577 = vlaneseq
      %v4578 = vshrl.u32 %v4577, 7
      %v4579 = vsub.s32 %v4576, %v4578
      %v4580 = vrot.slane %v4572, %v4579
      %v4582 = vunpack.c.l.s4 1983009808
      %v4583 = vunpack.c.0.s8 %v4582
      %v4584 = vlaneseq
      %v4585 = vshrl.u32 %v4584, 7
      %v4586 = vsub.s32 %v4583, %v4585
      %v4587 = vrot.slane %v4573, %v4586
      %v4588 = vcombine.low %v2655, %v2657
      %v4589 = vcombine.high %v2655, %v2657
      %v4591 = vunpack.c.l.s4 1983009808
      %v4592 = vunpack.c.0.s8 %v4591
      %v4593 = vlaneseq
      %v4594 = vshrl.u32 %v4593, 7
      %v4595 = vsub.s32 %v4592, %v4594
      %v4596 = vrot.slane %v4588, %v4595
      %v4598 = vunpack.c.l.s4 1983009808
      %v4599 = vunpack.c.0.s8 %v4598
      %v4600 = vlaneseq
      %v4601 = vshrl.u32 %v4600, 7
      %v4602 = vsub.s32 %v4599, %v4601
      %v4603 = vrot.slane %v4589, %v4602
      %v4604 = vcombine.low %v4548, %v4564
      %v4605 = vcombine.high %v4548, %v4564
      %v4607 = vunpack.c.l.s4 1934713408
      %v4608 = vunpack.c.0.s8 %v4607
      %v4609 = vlaneseq
      %v4610 = vshrl.u32 %v4609, 7
      %v4611 = vsub.s32 %v4608, %v4610
      %v4612 = vrot.slane %v4604, %v4611
      %v4614 = vunpack.c.l.s4 1934713408
      %v4615 = vunpack.c.0.s8 %v4614
      %v4616 = vlaneseq
      %v4617 = vshrl.u32 %v4616, 7
      %v4618 = vsub.s32 %v4615, %v4617
      %v4619 = vrot.slane %v4605, %v4618
      %v4620 = vcombine.low %v4555, %v4571
      %v4622 = vunpack.c.l.s4 1934713408
      %v4623 = vunpack.c.0.s8 %v4622
      %v4624 = vlaneseq
      %v4625 = vshrl.u32 %v4624, 7
      %v4626 = vsub.s32 %v4623, %v4625
      %v4627 = vrot.slane %v4620, %v4626
      %v4628 = vcombine.low %v4580, %v4596
      %v4629 = vcombine.high %v4580, %v4596
      %v4631 = vunpack.c.l.s4 1934713408
      %v4632 = vunpack.c.0.s8 %v4631
      %v4633 = vlaneseq
      %v4634 = vshrl.u32 %v4633, 7
      %v4635 = vsub.s32 %v4632, %v4634
      %v4636 = vrot.slane %v4628, %v4635
      %v4638 = vunpack.c.l.s4 1934713408
      %v4639 = vunpack.c.0.s8 %v4638
      %v4640 = vlaneseq
      %v4641 = vshrl.u32 %v4640, 7
      %v4642 = vsub.s32 %v4639, %v4641
      %v4643 = vrot.slane %v4629, %v4642
      %v4644 = vcombine.low %v4587, %v4603
      %v4646 = vunpack.c.l.s4 1934713408
      %v4647 = vunpack.c.0.s8 %v4646
      %v4648 = vlaneseq
      %v4649 = vshrl.u32 %v4648, 7
      %v4650 = vsub.s32 %v4647, %v4649
      %v4651 = vrot.slane %v4644, %v4650
      %v4652 = vcombine.low %v4612, %v4636
      %v4653 = vcombine.high %v4612, %v4636
      %v4654 = vcombine.low %v4619, %v4643
      %v4655 = vcombine.high %v4619, %v4643
      %v4656 = vcombine.low %v4627, %v4651
      %v4657 = vcombine.high %v4627, %v4651
      %v4658 = vcombine.low %v2784, %v2786
      %v4659 = vcombine.high %v2784, %v2786
      %v4661 = vunpack.c.l.s4 1983009808
      %v4662 = vunpack.c.0.s8 %v4661
      %v4663 = vlaneseq
      %v4664 = vshrl.u32 %v4663, 7
      %v4665 = vsub.s32 %v4662, %v4664
      %v4666 = vrot.slane %v4658, %v4665
      %v4668 = vunpack.c.l.s4 1983009808
      %v4669 = vunpack.c.0.s8 %v4668
      %v4670 = vlaneseq
      %v4671 = vshrl.u32 %v4670, 7
      %v4672 = vsub.s32 %v4669, %v4671
      %v4673 = vrot.slane %v4659, %v4672
      %v4674 = vcombine.low %v2785, %v2787
      %v4675 = vcombine.high %v2785, %v2787
      %v4677 = vunpack.c.l.s4 1983009808
      %v4678 = vunpack.c.0.s8 %v4677
      %v4679 = vlaneseq
      %v4680 = vshrl.u32 %v4679, 7
      %v4681 = vsub.s32 %v4678, %v4680
      %v4682 = vrot.slane %v4674, %v4681
      %v4684 = vunpack.c.l.s4 1983009808
      %v4685 = vunpack.c.0.s8 %v4684
      %v4686 = vlaneseq
      %v4687 = vshrl.u32 %v4686, 7
      %v4688 = vsub.s32 %v4685, %v4687
      %v4689 = vrot.slane %v4675, %v4688
      %v4690 = vcombine.low %v2788, %v2790
      %v4691 = vcombine.high %v2788, %v2790
      %v4693 = vunpack.c.l.s4 1983009808
      %v4694 = vunpack.c.0.s8 %v4693
      %v4695 = vlaneseq
      %v4696 = vshrl.u32 %v4695, 7
      %v4697 = vsub.s32 %v4694, %v4696
      %v4698 = vrot.slane %v4690, %v4697
      %v4700 = vunpack.c.l.s4 1983009808
      %v4701 = vunpack.c.0.s8 %v4700
      %v4702 = vlaneseq
      %v4703 = vshrl.u32 %v4702, 7
      %v4704 = vsub.s32 %v4701, %v4703
      %v4705 = vrot.slane %v4691, %v4704
      %v4706 = vcombine.low %v2789, %v2791
      %v4707 = vcombine.high %v2789, %v2791
      %v4709 = vunpack.c.l.s4 1983009808
      %v4710 = vunpack.c.0.s8 %v4709
      %v4711 = vlaneseq
      %v4712 = vshrl.u32 %v4711, 7
      %v4713 = vsub.s32 %v4710, %v4712
      %v4714 = vrot.slane %v4706, %v4713
      %v4716 = vunpack.c.l.s4 1983009808
      %v4717 = vunpack.c.0.s8 %v4716
      %v4718 = vlaneseq
      %v4719 = vshrl.u32 %v4718, 7
      %v4720 = vsub.s32 %v4717, %v4719
      %v4721 = vrot.slane %v4707, %v4720
      %v4722 = vcombine.low %v4666, %v4682
      %v4723 = vcombine.high %v4666, %v4682
      %v4725 = vunpack.c.l.s4 1934713408
      %v4726 = vunpack.c.0.s8 %v4725
      %v4727 = vlaneseq
      %v4728 = vshrl.u32 %v4727, 7
      %v4729 = vsub.s32 %v4726, %v4728
      %v4730 = vrot.slane %v4722, %v4729
      %v4732 = vunpack.c.l.s4 1934713408
      %v4733 = vunpack.c.0.s8 %v4732
      %v4734 = vlaneseq
      %v4735 = vshrl.u32 %v4734, 7
      %v4736 = vsub.s32 %v4733, %v4735
      %v4737 = vrot.slane %v4723, %v4736
      %v4738 = vcombine.low %v4673, %v4689
      %v4740 = vunpack.c.l.s4 1934713408
      %v4741 = vunpack.c.0.s8 %v4740
      %v4742 = vlaneseq
      %v4743 = vshrl.u32 %v4742, 7
      %v4744 = vsub.s32 %v4741, %v4743
      %v4745 = vrot.slane %v4738, %v4744
      %v4746 = vcombine.low %v4698, %v4714
      %v4747 = vcombine.high %v4698, %v4714
      %v4749 = vunpack.c.l.s4 1934713408
      %v4750 = vunpack.c.0.s8 %v4749
      %v4751 = vlaneseq
      %v4752 = vshrl.u32 %v4751, 7
      %v4753 = vsub.s32 %v4750, %v4752
      %v4754 = vrot.slane %v4746, %v4753
      %v4756 = vunpack.c.l.s4 1934713408
      %v4757 = vunpack.c.0.s8 %v4756
      %v4758 = vlaneseq
      %v4759 = vshrl.u32 %v4758, 7
      %v4760 = vsub.s32 %v4757, %v4759
      %v4761 = vrot.slane %v4747, %v4760
      %v4762 = vcombine.low %v4705, %v4721
      %v4764 = vunpack.c.l.s4 1934713408
      %v4765 = vunpack.c.0.s8 %v4764
      %v4766 = vlaneseq
      %v4767 = vshrl.u32 %v4766, 7
      %v4768 = vsub.s32 %v4765, %v4767
      %v4769 = vrot.slane %v4762, %v4768
      %v4770 = vcombine.low %v4730, %v4754
      %v4771 = vcombine.high %v4730, %v4754
      %v4772 = vcombine.low %v4737, %v4761
      %v4773 = vcombine.high %v4737, %v4761
      %v4774 = vcombine.low %v4745, %v4769
      %v4775 = vcombine.high %v4745, %v4769
      %v4776 = vcombine.low %v2918, %v2920
      %v4777 = vcombine.high %v2918, %v2920
      %v4779 = vunpack.c.l.s4 1983009808
      %v4780 = vunpack.c.0.s8 %v4779
      %v4781 = vlaneseq
      %v4782 = vshrl.u32 %v4781, 7
      %v4783 = vsub.s32 %v4780, %v4782
      %v4784 = vrot.slane %v4776, %v4783
      %v4786 = vunpack.c.l.s4 1983009808
      %v4787 = vunpack.c.0.s8 %v4786
      %v4788 = vlaneseq
      %v4789 = vshrl.u32 %v4788, 7
      %v4790 = vsub.s32 %v4787, %v4789
      %v4791 = vrot.slane %v4777, %v4790
      %v4792 = vcombine.low %v2919, %v2921
      %v4793 = vcombine.high %v2919, %v2921
      %v4795 = vunpack.c.l.s4 1983009808
      %v4796 = vunpack.c.0.s8 %v4795
      %v4797 = vlaneseq
      %v4798 = vshrl.u32 %v4797, 7
      %v4799 = vsub.s32 %v4796, %v4798
      %v4800 = vrot.slane %v4792, %v4799
      %v4802 = vunpack.c.l.s4 1983009808
      %v4803 = vunpack.c.0.s8 %v4802
      %v4804 = vlaneseq
      %v4805 = vshrl.u32 %v4804, 7
      %v4806 = vsub.s32 %v4803, %v4805
      %v4807 = vrot.slane %v4793, %v4806
      %v4808 = vcombine.low %v2922, %v2924
      %v4809 = vcombine.high %v2922, %v2924
      %v4811 = vunpack.c.l.s4 1983009808
      %v4812 = vunpack.c.0.s8 %v4811
      %v4813 = vlaneseq
      %v4814 = vshrl.u32 %v4813, 7
      %v4815 = vsub.s32 %v4812, %v4814
      %v4816 = vrot.slane %v4808, %v4815
      %v4818 = vunpack.c.l.s4 1983009808
      %v4819 = vunpack.c.0.s8 %v4818
      %v4820 = vlaneseq
      %v4821 = vshrl.u32 %v4820, 7
      %v4822 = vsub.s32 %v4819, %v4821
      %v4823 = vrot.slane %v4809, %v4822
      %v4824 = vcombine.low %v2923, %v2925
      %v4825 = vcombine.high %v2923, %v2925
      %v4827 = vunpack.c.l.s4 1983009808
      %v4828 = vunpack.c.0.s8 %v4827
      %v4829 = vlaneseq
      %v4830 = vshrl.u32 %v4829, 7
      %v4831 = vsub.s32 %v4828, %v4830
      %v4832 = vrot.slane %v4824, %v4831
      %v4834 = vunpack.c.l.s4 1983009808
      %v4835 = vunpack.c.0.s8 %v4834
      %v4836 = vlaneseq
      %v4837 = vshrl.u32 %v4836, 7
      %v4838 = vsub.s32 %v4835, %v4837
      %v4839 = vrot.slane %v4825, %v4838
      %v4840 = vcombine.low %v4784, %v4800
      %v4841 = vcombine.high %v4784, %v4800
      %v4843 = vunpack.c.l.s4 1934713408
      %v4844 = vunpack.c.0.s8 %v4843
      %v4845 = vlaneseq
      %v4846 = vshrl.u32 %v4845, 7
      %v4847 = vsub.s32 %v4844, %v4846
      %v4848 = vrot.slane %v4840, %v4847
      %v4850 = vunpack.c.l.s4 1934713408
      %v4851 = vunpack.c.0.s8 %v4850
      %v4852 = vlaneseq
      %v4853 = vshrl.u32 %v4852, 7
      %v4854 = vsub.s32 %v4851, %v4853
      %v4855 = vrot.slane %v4841, %v4854
      %v4856 = vcombine.low %v4791, %v4807
      %v4858 = vunpack.c.l.s4 1934713408
      %v4859 = vunpack.c.0.s8 %v4858
      %v4860 = vlaneseq
      %v4861 = vshrl.u32 %v4860, 7
      %v4862 = vsub.s32 %v4859, %v4861
      %v4863 = vrot.slane %v4856, %v4862
      %v4864 = vcombine.low %v4816, %v4832
      %v4865 = vcombine.high %v4816, %v4832
      %v4867 = vunpack.c.l.s4 1934713408
      %v4868 = vunpack.c.0.s8 %v4867
      %v4869 = vlaneseq
      %v4870 = vshrl.u32 %v4869, 7
      %v4871 = vsub.s32 %v4868, %v4870
      %v4872 = vrot.slane %v4864, %v4871
      %v4874 = vunpack.c.l.s4 1934713408
      %v4875 = vunpack.c.0.s8 %v4874
      %v4876 = vlaneseq
      %v4877 = vshrl.u32 %v4876, 7
      %v4878 = vsub.s32 %v4875, %v4877
      %v4879 = vrot.slane %v4865, %v4878
      %v4880 = vcombine.low %v4823, %v4839
      %v4882 = vunpack.c.l.s4 1934713408
      %v4883 = vunpack.c.0.s8 %v4882
      %v4884 = vlaneseq
      %v4885 = vshrl.u32 %v4884, 7
      %v4886 = vsub.s32 %v4883, %v4885
      %v4887 = vrot.slane %v4880, %v4886
      %v4888 = vcombine.low %v4848, %v4872
      %v4889 = vcombine.high %v4848, %v4872
      %v4890 = vcombine.low %v4855, %v4879
      %v4891 = vcombine.high %v4855, %v4879
      %v4892 = vcombine.low %v4863, %v4887
      %v4893 = vcombine.high %v4863, %v4887
      %v4894 = vcombine.low %v3052, %v3054
      %v4895 = vcombine.high %v3052, %v3054
      %v4897 = vunpack.c.l.s4 1983009808
      %v4898 = vunpack.c.0.s8 %v4897
      %v4899 = vlaneseq
      %v4900 = vshrl.u32 %v4899, 7
      %v4901 = vsub.s32 %v4898, %v4900
      %v4902 = vrot.slane %v4894, %v4901
      %v4904 = vunpack.c.l.s4 1983009808
      %v4905 = vunpack.c.0.s8 %v4904
      %v4906 = vlaneseq
      %v4907 = vshrl.u32 %v4906, 7
      %v4908 = vsub.s32 %v4905, %v4907
      %v4909 = vrot.slane %v4895, %v4908
      %v4910 = vcombine.low %v3053, %v3055
      %v4911 = vcombine.high %v3053, %v3055
      %v4913 = vunpack.c.l.s4 1983009808
      %v4914 = vunpack.c.0.s8 %v4913
      %v4915 = vlaneseq
      %v4916 = vshrl.u32 %v4915, 7
      %v4917 = vsub.s32 %v4914, %v4916
      %v4918 = vrot.slane %v4910, %v4917
      %v4920 = vunpack.c.l.s4 1983009808
      %v4921 = vunpack.c.0.s8 %v4920
      %v4922 = vlaneseq
      %v4923 = vshrl.u32 %v4922, 7
      %v4924 = vsub.s32 %v4921, %v4923
      %v4925 = vrot.slane %v4911, %v4924
      %v4926 = vcombine.low %v3056, %v3058
      %v4927 = vcombine.high %v3056, %v3058
      %v4929 = vunpack.c.l.s4 1983009808
      %v4930 = vunpack.c.0.s8 %v4929
      %v4931 = vlaneseq
      %v4932 = vshrl.u32 %v4931, 7
      %v4933 = vsub.s32 %v4930, %v4932
      %v4934 = vrot.slane %v4926, %v4933
      %v4936 = vunpack.c.l.s4 1983009808
      %v4937 = vunpack.c.0.s8 %v4936
      %v4938 = vlaneseq
      %v4939 = vshrl.u32 %v4938, 7
      %v4940 = vsub.s32 %v4937, %v4939
      %v4941 = vrot.slane %v4927, %v4940
      %v4942 = vcombine.low %v3057, %v3059
      %v4943 = vcombine.high %v3057, %v3059
      %v4945 = vunpack.c.l.s4 1983009808
      %v4946 = vunpack.c.0.s8 %v4945
      %v4947 = vlaneseq
      %v4948 = vshrl.u32 %v4947, 7
      %v4949 = vsub.s32 %v4946, %v4948
      %v4950 = vrot.slane %v4942, %v4949
      %v4952 = vunpack.c.l.s4 1983009808
      %v4953 = vunpack.c.0.s8 %v4952
      %v4954 = vlaneseq
      %v4955 = vshrl.u32 %v4954, 7
      %v4956 = vsub.s32 %v4953, %v4955
      %v4957 = vrot.slane %v4943, %v4956
      %v4958 = vcombine.low %v4902, %v4918
      %v4959 = vcombine.high %v4902, %v4918
      %v4961 = vunpack.c.l.s4 1934713408
      %v4962 = vunpack.c.0.s8 %v4961
      %v4963 = vlaneseq
      %v4964 = vshrl.u32 %v4963, 7
      %v4965 = vsub.s32 %v4962, %v4964
      %v4966 = vrot.slane %v4958, %v4965
      %v4968 = vunpack.c.l.s4 1934713408
      %v4969 = vunpack.c.0.s8 %v4968
      %v4970 = vlaneseq
      %v4971 = vshrl.u32 %v4970, 7
      %v4972 = vsub.s32 %v4969, %v4971
      %v4973 = vrot.slane %v4959, %v4972
      %v4974 = vcombine.low %v4909, %v4925
      %v4976 = vunpack.c.l.s4 1934713408
      %v4977 = vunpack.c.0.s8 %v4976
      %v4978 = vlaneseq
      %v4979 = vshrl.u32 %v4978, 7
      %v4980 = vsub.s32 %v4977, %v4979
      %v4981 = vrot.slane %v4974, %v4980
      %v4982 = vcombine.low %v4934, %v4950
      %v4983 = vcombine.high %v4934, %v4950
      %v4985 = vunpack.c.l.s4 1934713408
      %v4986 = vunpack.c.0.s8 %v4985
      %v4987 = vlaneseq
      %v4988 = vshrl.u32 %v4987, 7
      %v4989 = vsub.s32 %v4986, %v4988
      %v4990 = vrot.slane %v4982, %v4989
      %v4992 = vunpack.c.l.s4 1934713408
      %v4993 = vunpack.c.0.s8 %v4992
      %v4994 = vlaneseq
      %v4995 = vshrl.u32 %v4994, 7
      %v4996 = vsub.s32 %v4993, %v4995
      %v4997 = vrot.slane %v4983, %v4996
      %v4998 = vcombine.low %v4941, %v4957
      %v5000 = vunpack.c.l.s4 1934713408
      %v5001 = vunpack.c.0.s8 %v5000
      %v5002 = vlaneseq
      %v5003 = vshrl.u32 %v5002, 7
      %v5004 = vsub.s32 %v5001, %v5003
      %v5005 = vrot.slane %v4998, %v5004
      %v5006 = vcombine.low %v4966, %v4990
      %v5007 = vcombine.high %v4966, %v4990
      %v5008 = vcombine.low %v4973, %v4997
      %v5009 = vcombine.high %v4973, %v4997
      %v5010 = vcombine.low %v4981, %v5005
      %v5011 = vcombine.high %v4981, %v5005
      %v5012 = vcombine.low %v3186, %v3188
      %v5013 = vcombine.high %v3186, %v3188
      %v5015 = vunpack.c.l.s4 1983009808
      %v5016 = vunpack.c.0.s8 %v5015
      %v5017 = vlaneseq
      %v5018 = vshrl.u32 %v5017, 7
      %v5019 = vsub.s32 %v5016, %v5018
      %v5020 = vrot.slane %v5012, %v5019
      %v5022 = vunpack.c.l.s4 1983009808
      %v5023 = vunpack.c.0.s8 %v5022
      %v5024 = vlaneseq
      %v5025 = vshrl.u32 %v5024, 7
      %v5026 = vsub.s32 %v5023, %v5025
      %v5027 = vrot.slane %v5013, %v5026
      %v5028 = vcombine.low %v3187, %v3189
      %v5029 = vcombine.high %v3187, %v3189
      %v5031 = vunpack.c.l.s4 1983009808
      %v5032 = vunpack.c.0.s8 %v5031
      %v5033 = vlaneseq
      %v5034 = vshrl.u32 %v5033, 7
      %v5035 = vsub.s32 %v5032, %v5034
      %v5036 = vrot.slane %v5028, %v5035
      %v5038 = vunpack.c.l.s4 1983009808
      %v5039 = vunpack.c.0.s8 %v5038
      %v5040 = vlaneseq
      %v5041 = vshrl.u32 %v5040, 7
      %v5042 = vsub.s32 %v5039, %v5041
      %v5043 = vrot.slane %v5029, %v5042
      %v5044 = vcombine.low %v3190, %v3192
      %v5045 = vcombine.high %v3190, %v3192
      %v5047 = vunpack.c.l.s4 1983009808
      %v5048 = vunpack.c.0.s8 %v5047
      %v5049 = vlaneseq
      %v5050 = vshrl.u32 %v5049, 7
      %v5051 = vsub.s32 %v5048, %v5050
      %v5052 = vrot.slane %v5044, %v5051
      %v5054 = vunpack.c.l.s4 1983009808
      %v5055 = vunpack.c.0.s8 %v5054
      %v5056 = vlaneseq
      %v5057 = vshrl.u32 %v5056, 7
      %v5058 = vsub.s32 %v5055, %v5057
      %v5059 = vrot.slane %v5045, %v5058
      %v5060 = vcombine.low %v3191, %v3193
      %v5061 = vcombine.high %v3191, %v3193
      %v5063 = vunpack.c.l.s4 1983009808
      %v5064 = vunpack.c.0.s8 %v5063
      %v5065 = vlaneseq
      %v5066 = vshrl.u32 %v5065, 7
      %v5067 = vsub.s32 %v5064, %v5066
      %v5068 = vrot.slane %v5060, %v5067
      %v5070 = vunpack.c.l.s4 1983009808
      %v5071 = vunpack.c.0.s8 %v5070
      %v5072 = vlaneseq
      %v5073 = vshrl.u32 %v5072, 7
      %v5074 = vsub.s32 %v5071, %v5073
      %v5075 = vrot.slane %v5061, %v5074
      %v5076 = vcombine.low %v5020, %v5036
      %v5077 = vcombine.high %v5020, %v5036
      %v5079 = vunpack.c.l.s4 1934713408
      %v5080 = vunpack.c.0.s8 %v5079
      %v5081 = vlaneseq
      %v5082 = vshrl.u32 %v5081, 7
      %v5083 = vsub.s32 %v5080, %v5082
      %v5084 = vrot.slane %v5076, %v5083
      %v5086 = vunpack.c.l.s4 1934713408
      %v5087 = vunpack.c.0.s8 %v5086
      %v5088 = vlaneseq
      %v5089 = vshrl.u32 %v5088, 7
      %v5090 = vsub.s32 %v5087, %v5089
      %v5091 = vrot.slane %v5077, %v5090
      %v5092 = vcombine.low %v5027, %v5043
      %v5094 = vunpack.c.l.s4 1934713408
      %v5095 = vunpack.c.0.s8 %v5094
      %v5096 = vlaneseq
      %v5097 = vshrl.u32 %v5096, 7
      %v5098 = vsub.s32 %v5095, %v5097
      %v5099 = vrot.slane %v5092, %v5098
      %v5100 = vcombine.low %v5052, %v5068
      %v5101 = vcombine.high %v5052, %v5068
      %v5103 = vunpack.c.l.s4 1934713408
      %v5104 = vunpack.c.0.s8 %v5103
      %v5105 = vlaneseq
      %v5106 = vshrl.u32 %v5105, 7
      %v5107 = vsub.s32 %v5104, %v5106
      %v5108 = vrot.slane %v5100, %v5107
      %v5110 = vunpack.c.l.s4 1934713408
      %v5111 = vunpack.c.0.s8 %v5110
      %v5112 = vlaneseq
      %v5113 = vshrl.u32 %v5112, 7
      %v5114 = vsub.s32 %v5111, %v5113
      %v5115 = vrot.slane %v5101, %v5114
      %v5116 = vcombine.low %v5059, %v5075
      %v5118 = vunpack.c.l.s4 1934713408
      %v5119 = vunpack.c.0.s8 %v5118
      %v5120 = vlaneseq
      %v5121 = vshrl.u32 %v5120, 7
      %v5122 = vsub.s32 %v5119, %v5121
      %v5123 = vrot.slane %v5116, %v5122
      %v5124 = vcombine.low %v5084, %v5108
      %v5125 = vcombine.high %v5084, %v5108
      %v5126 = vcombine.low %v5091, %v5115
      %v5127 = vcombine.high %v5091, %v5115
      %v5128 = vcombine.low %v5099, %v5123
      %v5129 = vcombine.high %v5099, %v5123
      %v5130 = vcombine.low %v3320, %v3322
      %v5131 = vcombine.high %v3320, %v3322
      %v5133 = vunpack.c.l.s4 1983009808
      %v5134 = vunpack.c.0.s8 %v5133
      %v5135 = vlaneseq
      %v5136 = vshrl.u32 %v5135, 7
      %v5137 = vsub.s32 %v5134, %v5136
      %v5138 = vrot.slane %v5130, %v5137
      %v5140 = vunpack.c.l.s4 1983009808
      %v5141 = vunpack.c.0.s8 %v5140
      %v5142 = vlaneseq
      %v5143 = vshrl.u32 %v5142, 7
      %v5144 = vsub.s32 %v5141, %v5143
      %v5145 = vrot.slane %v5131, %v5144
      %v5146 = vcombine.low %v3321, %v3323
      %v5147 = vcombine.high %v3321, %v3323
      %v5149 = vunpack.c.l.s4 1983009808
      %v5150 = vunpack.c.0.s8 %v5149
      %v5151 = vlaneseq
      %v5152 = vshrl.u32 %v5151, 7
      %v5153 = vsub.s32 %v5150, %v5152
      %v5154 = vrot.slane %v5146, %v5153
      %v5156 = vunpack.c.l.s4 1983009808
      %v5157 = vunpack.c.0.s8 %v5156
      %v5158 = vlaneseq
      %v5159 = vshrl.u32 %v5158, 7
      %v5160 = vsub.s32 %v5157, %v5159
      %v5161 = vrot.slane %v5147, %v5160
      %v5162 = vcombine.low %v3324, %v3326
      %v5163 = vcombine.high %v3324, %v3326
      %v5165 = vunpack.c.l.s4 1983009808
      %v5166 = vunpack.c.0.s8 %v5165
      %v5167 = vlaneseq
      %v5168 = vshrl.u32 %v5167, 7
      %v5169 = vsub.s32 %v5166, %v5168
      %v5170 = vrot.slane %v5162, %v5169
      %v5172 = vunpack.c.l.s4 1983009808
      %v5173 = vunpack.c.0.s8 %v5172
      %v5174 = vlaneseq
      %v5175 = vshrl.u32 %v5174, 7
      %v5176 = vsub.s32 %v5173, %v5175
      %v5177 = vrot.slane %v5163, %v5176
      %v5178 = vcombine.low %v3325, %v3327
      %v5179 = vcombine.high %v3325, %v3327
      %v5181 = vunpack.c.l.s4 1983009808
      %v5182 = vunpack.c.0.s8 %v5181
      %v5183 = vlaneseq
      %v5184 = vshrl.u32 %v5183, 7
      %v5185 = vsub.s32 %v5182, %v5184
      %v5186 = vrot.slane %v5178, %v5185
      %v5188 = vunpack.c.l.s4 1983009808
      %v5189 = vunpack.c.0.s8 %v5188
      %v5190 = vlaneseq
      %v5191 = vshrl.u32 %v5190, 7
      %v5192 = vsub.s32 %v5189, %v5191
      %v5193 = vrot.slane %v5179, %v5192
      %v5194 = vcombine.low %v5138, %v5154
      %v5195 = vcombine.high %v5138, %v5154
      %v5197 = vunpack.c.l.s4 1934713408
      %v5198 = vunpack.c.0.s8 %v5197
      %v5199 = vlaneseq
      %v5200 = vshrl.u32 %v5199, 7
      %v5201 = vsub.s32 %v5198, %v5200
      %v5202 = vrot.slane %v5194, %v5201
      %v5204 = vunpack.c.l.s4 1934713408
      %v5205 = vunpack.c.0.s8 %v5204
      %v5206 = vlaneseq
      %v5207 = vshrl.u32 %v5206, 7
      %v5208 = vsub.s32 %v5205, %v5207
      %v5209 = vrot.slane %v5195, %v5208
      %v5210 = vcombine.low %v5145, %v5161
      %v5212 = vunpack.c.l.s4 1934713408
      %v5213 = vunpack.c.0.s8 %v5212
      %v5214 = vlaneseq
      %v5215 = vshrl.u32 %v5214, 7
      %v5216 = vsub.s32 %v5213, %v5215
      %v5217 = vrot.slane %v5210, %v5216
      %v5218 = vcombine.low %v5170, %v5186
      %v5219 = vcombine.high %v5170, %v5186
      %v5221 = vunpack.c.l.s4 1934713408
      %v5222 = vunpack.c.0.s8 %v5221
      %v5223 = vlaneseq
      %v5224 = vshrl.u32 %v5223, 7
      %v5225 = vsub.s32 %v5222, %v5224
      %v5226 = vrot.slane %v5218, %v5225
      %v5228 = vunpack.c.l.s4 1934713408
      %v5229 = vunpack.c.0.s8 %v5228
      %v5230 = vlaneseq
      %v5231 = vshrl.u32 %v5230, 7
      %v5232 = vsub.s32 %v5229, %v5231
      %v5233 = vrot.slane %v5219, %v5232
      %v5234 = vcombine.low %v5177, %v5193
      %v5236 = vunpack.c.l.s4 1934713408
      %v5237 = vunpack.c.0.s8 %v5236
      %v5238 = vlaneseq
      %v5239 = vshrl.u32 %v5238, 7
      %v5240 = vsub.s32 %v5237, %v5239
      %v5241 = vrot.slane %v5234, %v5240
      %v5242 = vcombine.low %v5202, %v5226
      %v5243 = vcombine.high %v5202, %v5226
      %v5244 = vcombine.low %v5209, %v5233
      %v5245 = vcombine.high %v5209, %v5233
      %v5246 = vcombine.low %v5217, %v5241
      %v5247 = vcombine.high %v5217, %v5241
      %v5248 = vcombine.low %v3454, %v3456
      %v5249 = vcombine.high %v3454, %v3456
      %v5251 = vunpack.c.l.s4 1983009808
      %v5252 = vunpack.c.0.s8 %v5251
      %v5253 = vlaneseq
      %v5254 = vshrl.u32 %v5253, 7
      %v5255 = vsub.s32 %v5252, %v5254
      %v5256 = vrot.slane %v5248, %v5255
      %v5258 = vunpack.c.l.s4 1983009808
      %v5259 = vunpack.c.0.s8 %v5258
      %v5260 = vlaneseq
      %v5261 = vshrl.u32 %v5260, 7
      %v5262 = vsub.s32 %v5259, %v5261
      %v5263 = vrot.slane %v5249, %v5262
      %v5264 = vcombine.low %v3455, %v3457
      %v5265 = vcombine.high %v3455, %v3457
      %v5267 = vunpack.c.l.s4 1983009808
      %v5268 = vunpack.c.0.s8 %v5267
      %v5269 = vlaneseq
      %v5270 = vshrl.u32 %v5269, 7
      %v5271 = vsub.s32 %v5268, %v5270
      %v5272 = vrot.slane %v5264, %v5271
      %v5274 = vunpack.c.l.s4 1983009808
      %v5275 = vunpack.c.0.s8 %v5274
      %v5276 = vlaneseq
      %v5277 = vshrl.u32 %v5276, 7
      %v5278 = vsub.s32 %v5275, %v5277
      %v5279 = vrot.slane %v5265, %v5278
      %v5280 = vcombine.low %v3458, %v3460
      %v5281 = vcombine.high %v3458, %v3460
      %v5283 = vunpack.c.l.s4 1983009808
      %v5284 = vunpack.c.0.s8 %v5283
      %v5285 = vlaneseq
      %v5286 = vshrl.u32 %v5285, 7
      %v5287 = vsub.s32 %v5284, %v5286
      %v5288 = vrot.slane %v5280, %v5287
      %v5290 = vunpack.c.l.s4 1983009808
      %v5291 = vunpack.c.0.s8 %v5290
      %v5292 = vlaneseq
      %v5293 = vshrl.u32 %v5292, 7
      %v5294 = vsub.s32 %v5291, %v5293
      %v5295 = vrot.slane %v5281, %v5294
      %v5296 = vcombine.low %v3459, %v3461
      %v5297 = vcombine.high %v3459, %v3461
      %v5299 = vunpack.c.l.s4 1983009808
      %v5300 = vunpack.c.0.s8 %v5299
      %v5301 = vlaneseq
      %v5302 = vshrl.u32 %v5301, 7
      %v5303 = vsub.s32 %v5300, %v5302
      %v5304 = vrot.slane %v5296, %v5303
      %v5306 = vunpack.c.l.s4 1983009808
      %v5307 = vunpack.c.0.s8 %v5306
      %v5308 = vlaneseq
      %v5309 = vshrl.u32 %v5308, 7
      %v5310 = vsub.s32 %v5307, %v5309
      %v5311 = vrot.slane %v5297, %v5310
      %v5312 = vcombine.low %v5256, %v5272
      %v5313 = vcombine.high %v5256, %v5272
      %v5315 = vunpack.c.l.s4 1934713408
      %v5316 = vunpack.c.0.s8 %v5315
      %v5317 = vlaneseq
      %v5318 = vshrl.u32 %v5317, 7
      %v5319 = vsub.s32 %v5316, %v5318
      %v5320 = vrot.slane %v5312, %v5319
      %v5322 = vunpack.c.l.s4 1934713408
      %v5323 = vunpack.c.0.s8 %v5322
      %v5324 = vlaneseq
      %v5325 = vshrl.u32 %v5324, 7
      %v5326 = vsub.s32 %v5323, %v5325
      %v5327 = vrot.slane %v5313, %v5326
      %v5328 = vcombine.low %v5263, %v5279
      %v5330 = vunpack.c.l.s4 1934713408
      %v5331 = vunpack.c.0.s8 %v5330
      %v5332 = vlaneseq
      %v5333 = vshrl.u32 %v5332, 7
      %v5334 = vsub.s32 %v5331, %v5333
      %v5335 = vrot.slane %v5328, %v5334
      %v5336 = vcombine.low %v5288, %v5304
      %v5337 = vcombine.high %v5288, %v5304
      %v5339 = vunpack.c.l.s4 1934713408
      %v5340 = vunpack.c.0.s8 %v5339
      %v5341 = vlaneseq
      %v5342 = vshrl.u32 %v5341, 7
      %v5343 = vsub.s32 %v5340, %v5342
      %v5344 = vrot.slane %v5336, %v5343
      %v5346 = vunpack.c.l.s4 1934713408
      %v5347 = vunpack.c.0.s8 %v5346
      %v5348 = vlaneseq
      %v5349 = vshrl.u32 %v5348, 7
      %v5350 = vsub.s32 %v5347, %v5349
      %v5351 = vrot.slane %v5337, %v5350
      %v5352 = vcombine.low %v5295, %v5311
      %v5354 = vunpack.c.l.s4 1934713408
      %v5355 = vunpack.c.0.s8 %v5354
      %v5356 = vlaneseq
      %v5357 = vshrl.u32 %v5356, 7
      %v5358 = vsub.s32 %v5355, %v5357
      %v5359 = vrot.slane %v5352, %v5358
      %v5360 = vcombine.low %v5320, %v5344
      %v5361 = vcombine.high %v5320, %v5344
      %v5362 = vcombine.low %v5327, %v5351
      %v5363 = vcombine.high %v5327, %v5351
      %v5364 = vcombine.low %v5335, %v5359
      %v5365 = vcombine.high %v5335, %v5359
      %v5366 = vcombine.low %v3588, %v3590
      %v5367 = vcombine.high %v3588, %v3590
      %v5369 = vunpack.c.l.s4 1983009808
      %v5370 = vunpack.c.0.s8 %v5369
      %v5371 = vlaneseq
      %v5372 = vshrl.u32 %v5371, 7
      %v5373 = vsub.s32 %v5370, %v5372
      %v5374 = vrot.slane %v5366, %v5373
      %v5376 = vunpack.c.l.s4 1983009808
      %v5377 = vunpack.c.0.s8 %v5376
      %v5378 = vlaneseq
      %v5379 = vshrl.u32 %v5378, 7
      %v5380 = vsub.s32 %v5377, %v5379
      %v5381 = vrot.slane %v5367, %v5380
      %v5382 = vcombine.low %v3589, %v3591
      %v5383 = vcombine.high %v3589, %v3591
      %v5385 = vunpack.c.l.s4 1983009808
      %v5386 = vunpack.c.0.s8 %v5385
      %v5387 = vlaneseq
      %v5388 = vshrl.u32 %v5387, 7
      %v5389 = vsub.s32 %v5386, %v5388
      %v5390 = vrot.slane %v5382, %v5389
      %v5392 = vunpack.c.l.s4 1983009808
      %v5393 = vunpack.c.0.s8 %v5392
      %v5394 = vlaneseq
      %v5395 = vshrl.u32 %v5394, 7
      %v5396 = vsub.s32 %v5393, %v5395
      %v5397 = vrot.slane %v5383, %v5396
      %v5398 = vcombine.low %v3592, %v3594
      %v5399 = vcombine.high %v3592, %v3594
      %v5401 = vunpack.c.l.s4 1983009808
      %v5402 = vunpack.c.0.s8 %v5401
      %v5403 = vlaneseq
      %v5404 = vshrl.u32 %v5403, 7
      %v5405 = vsub.s32 %v5402, %v5404
      %v5406 = vrot.slane %v5398, %v5405
      %v5408 = vunpack.c.l.s4 1983009808
      %v5409 = vunpack.c.0.s8 %v5408
      %v5410 = vlaneseq
      %v5411 = vshrl.u32 %v5410, 7
      %v5412 = vsub.s32 %v5409, %v5411
      %v5413 = vrot.slane %v5399, %v5412
      %v5414 = vcombine.low %v3593, %v3595
      %v5415 = vcombine.high %v3593, %v3595
      %v5417 = vunpack.c.l.s4 1983009808
      %v5418 = vunpack.c.0.s8 %v5417
      %v5419 = vlaneseq
      %v5420 = vshrl.u32 %v5419, 7
      %v5421 = vsub.s32 %v5418, %v5420
      %v5422 = vrot.slane %v5414, %v5421
      %v5424 = vunpack.c.l.s4 1983009808
      %v5425 = vunpack.c.0.s8 %v5424
      %v5426 = vlaneseq
      %v5427 = vshrl.u32 %v5426, 7
      %v5428 = vsub.s32 %v5425, %v5427
      %v5429 = vrot.slane %v5415, %v5428
      %v5430 = vcombine.low %v5374, %v5390
      %v5431 = vcombine.high %v5374, %v5390
      %v5433 = vunpack.c.l.s4 1934713408
      %v5434 = vunpack.c.0.s8 %v5433
      %v5435 = vlaneseq
      %v5436 = vshrl.u32 %v5435, 7
      %v5437 = vsub.s32 %v5434, %v5436
      %v5438 = vrot.slane %v5430, %v5437
      %v5440 = vunpack.c.l.s4 1934713408
      %v5441 = vunpack.c.0.s8 %v5440
      %v5442 = vlaneseq
      %v5443 = vshrl.u32 %v5442, 7
      %v5444 = vsub.s32 %v5441, %v5443
      %v5445 = vrot.slane %v5431, %v5444
      %v5446 = vcombine.low %v5381, %v5397
      %v5448 = vunpack.c.l.s4 1934713408
      %v5449 = vunpack.c.0.s8 %v5448
      %v5450 = vlaneseq
      %v5451 = vshrl.u32 %v5450, 7
      %v5452 = vsub.s32 %v5449, %v5451
      %v5453 = vrot.slane %v5446, %v5452
      %v5454 = vcombine.low %v5406, %v5422
      %v5455 = vcombine.high %v5406, %v5422
      %v5457 = vunpack.c.l.s4 1934713408
      %v5458 = vunpack.c.0.s8 %v5457
      %v5459 = vlaneseq
      %v5460 = vshrl.u32 %v5459, 7
      %v5461 = vsub.s32 %v5458, %v5460
      %v5462 = vrot.slane %v5454, %v5461
      %v5464 = vunpack.c.l.s4 1934713408
      %v5465 = vunpack.c.0.s8 %v5464
      %v5466 = vlaneseq
      %v5467 = vshrl.u32 %v5466, 7
      %v5468 = vsub.s32 %v5465, %v5467
      %v5469 = vrot.slane %v5455, %v5468
      %v5470 = vcombine.low %v5413, %v5429
      %v5472 = vunpack.c.l.s4 1934713408
      %v5473 = vunpack.c.0.s8 %v5472
      %v5474 = vlaneseq
      %v5475 = vshrl.u32 %v5474, 7
      %v5476 = vsub.s32 %v5473, %v5475
      %v5477 = vrot.slane %v5470, %v5476
      %v5478 = vcombine.low %v5438, %v5462
      %v5479 = vcombine.high %v5438, %v5462
      %v5480 = vcombine.low %v5445, %v5469
      %v5481 = vcombine.high %v5445, %v5469
      %v5482 = vcombine.low %v5453, %v5477
      %v5483 = vcombine.high %v5453, %v5477
      %v5486 = vpack.i.b16 %v3826, %v3708
      %v5487 = vshrl.u32 %v3708, 16
      %v5488 = vshrl.u32 %v3826, 16
      %v5489 = vpack.i.b16 %v5488, %v5487
      %v5492 = vpack.i.b16 %v3827, %v3709
      %v5493 = vshrl.u32 %v3709, 16
      %v5494 = vshrl.u32 %v3827, 16
      %v5495 = vpack.i.b16 %v5494, %v5493
      %v5498 = vpack.i.b16 %v3828, %v3710
      %v5499 = vshrl.u32 %v3710, 16
      %v5500 = vshrl.u32 %v3828, 16
      %v5501 = vpack.i.b16 %v5500, %v5499
      %v5504 = vpack.i.b16 %v3829, %v3711
      %v5505 = vshrl.u32 %v3711, 16
      %v5506 = vshrl.u32 %v3829, 16
      %v5507 = vpack.i.b16 %v5506, %v5505
      %v5510 = vpack.i.b16 %v3830, %v3712
      %v5512 = vshrl.u32 %v3712, 16
      %v5513 = vshrl.u32 %v3830, 16
      %v5514 = vpack.i.b16 %v5513, %v5512
      %v5518 = vpack.i.b16 %v3831, %v3713
      %v5520 = vshrl.u32 %v3713, 16
      %v5521 = vshrl.u32 %v3831, 16
      %v5522 = vpack.i.b16 %v5521, %v5520
      %v5526 = vpack.i.b16 %v4062, %v3944
      %v5527 = vshrl.u32 %v3944, 16
      %v5528 = vshrl.u32 %v4062, 16
      %v5529 = vpack.i.b16 %v5528, %v5527
      %v5532 = vpack.i.b16 %v4063, %v3945
      %v5533 = vshrl.u32 %v3945, 16
      %v5534 = vshrl.u32 %v4063, 16
      %v5535 = vpack.i.b16 %v5534, %v5533
      %v5538 = vpack.i.b16 %v4064, %v3946
      %v5539 = vshrl.u32 %v3946, 16
      %v5540 = vshrl.u32 %v4064, 16
      %v5541 = vpack.i.b16 %v5540, %v5539
      %v5544 = vpack.i.b16 %v4065, %v3947
      %v5545 = vshrl.u32 %v3947, 16
      %v5546 = vshrl.u32 %v4065, 16
      %v5547 = vpack.i.b16 %v5546, %v5545
      %v5550 = vpack.i.b16 %v4066, %v3948
      %v5552 = vshrl.u32 %v3948, 16
      %v5553 = vshrl.u32 %v4066, 16
      %v5554 = vpack.i.b16 %v5553, %v5552
      %v5558 = vpack.i.b16 %v4067, %v3949
      %v5560 = vshrl.u32 %v3949, 16
      %v5561 = vshrl.u32 %v4067, 16
      %v5562 = vpack.i.b16 %v5561, %v5560
      %v5566 = vpack.i.b16 %v4298, %v4180
      %v5567 = vshrl.u32 %v4180, 16
      %v5568 = vshrl.u32 %v4298, 16
      %v5569 = vpack.i.b16 %v5568, %v5567
      %v5572 = vpack.i.b16 %v4299, %v4181
      %v5573 = vshrl.u32 %v4181, 16
      %v5574 = vshrl.u32 %v4299, 16
      %v5575 = vpack.i.b16 %v5574, %v5573
      %v5578 = vpack.i.b16 %v4300, %v4182
      %v5579 = vshrl.u32 %v4182, 16
      %v5580 = vshrl.u32 %v4300, 16
      %v5581 = vpack.i.b16 %v5580, %v5579
      %v5584 = vpack.i.b16 %v4301, %v4183
      %v5585 = vshrl.u32 %v4183, 16
      %v5586 = vshrl.u32 %v4301, 16
      %v5587 = vpack.i.b16 %v5586, %v5585
      %v5590 = vpack.i.b16 %v4302, %v4184
      %v5592 = vshrl.u32 %v4184, 16
      %v5593 = vshrl.u32 %v4302, 16
      %v5594 = vpack.i.b16 %v5593, %v5592
      %v5598 = vpack.i.b16 %v4303, %v4185
      %v5600 = vshrl.u32 %v4185, 16
      %v5601 = vshrl.u32 %v4303, 16
      %v5602 = vpack.i.b16 %v5601, %v5600
      %v5606 = vpack.i.b16 %v4534, %v4416
      %v5607 = vshrl.u32 %v4416, 16
      %v5608 = vshrl.u32 %v4534, 16
      %v5609 = vpack.i.b16 %v5608, %v5607
      %v5612 = vpack.i.b16 %v4535, %v4417
      %v5613 = vshrl.u32 %v4417, 16
      %v5614 = vshrl.u32 %v4535, 16
      %v5615 = vpack.i.b16 %v5614, %v5613
      %v5618 = vpack.i.b16 %v4536, %v4418
      %v5619 = vshrl.u32 %v4418, 16
      %v5620 = vshrl.u32 %v4536, 16
      %v5621 = vpack.i.b16 %v5620, %v5619
      %v5624 = vpack.i.b16 %v4537, %v4419
      %v5625 = vshrl.u32 %v4419, 16
      %v5626 = vshrl.u32 %v4537, 16
      %v5627 = vpack.i.b16 %v5626, %v5625
      %v5630 = vpack.i.b16 %v4538, %v4420
      %v5632 = vshrl.u32 %v4420, 16
      %v5633 = vshrl.u32 %v4538, 16
      %v5634 = vpack.i.b16 %v5633, %v5632
      %v5638 = vpack.i.b16 %v4539, %v4421
      %v5640 = vshrl.u32 %v4421, 16
      %v5641 = vshrl.u32 %v4539, 16
      %v5642 = vpack.i.b16 %v5641, %v5640
      %v5646 = vpack.i.b16 %v4770, %v4652
      %v5647 = vshrl.u32 %v4652, 16
      %v5648 = vshrl.u32 %v4770, 16
      %v5649 = vpack.i.b16 %v5648, %v5647
      %v5652 = vpack.i.b16 %v4771, %v4653
      %v5653 = vshrl.u32 %v4653, 16
      %v5654 = vshrl.u32 %v4771, 16
      %v5655 = vpack.i.b16 %v5654, %v5653
      %v5658 = vpack.i.b16 %v4772, %v4654
      %v5659 = vshrl.u32 %v4654, 16
      %v5660 = vshrl.u32 %v4772, 16
      %v5661 = vpack.i.b16 %v5660, %v5659
      %v5664 = vpack.i.b16 %v4773, %v4655
      %v5665 = vshrl.u32 %v4655, 16
      %v5666 = vshrl.u32 %v4773, 16
      %v5667 = vpack.i.b16 %v5666, %v5665
      %v5670 = vpack.i.b16 %v4774, %v4656
      %v5672 = vshrl.u32 %v4656, 16
      %v5673 = vshrl.u32 %v4774, 16
      %v5674 = vpack.i.b16 %v5673, %v5672
      %v5678 = vpack.i.b16 %v4775, %v4657
      %v5680 = vshrl.u32 %v4657, 16
      %v5681 = vshrl.u32 %v4775, 16
      %v5682 = vpack.i.b16 %v5681, %v5680
      %v5686 = vpack.i.b16 %v5006, %v4888
      %v5687 = vshrl.u32 %v4888, 16
      %v5688 = vshrl.u32 %v5006, 16
      %v5689 = vpack.i.b16 %v5688, %v5687
      %v5692 = vpack.i.b16 %v5007, %v4889
      %v5693 = vshrl.u32 %v4889, 16
      %v5694 = vshrl.u32 %v5007, 16
      %v5695 = vpack.i.b16 %v5694, %v5693
      %v5698 = vpack.i.b16 %v5008, %v4890
      %v5699 = vshrl.u32 %v4890, 16
      %v5700 = vshrl.u32 %v5008, 16
      %v5701 = vpack.i.b16 %v5700, %v5699
      %v5704 = vpack.i.b16 %v5009, %v4891
      %v5705 = vshrl.u32 %v4891, 16
      %v5706 = vshrl.u32 %v5009, 16
      %v5707 = vpack.i.b16 %v5706, %v5705
      %v5710 = vpack.i.b16 %v5010, %v4892
      %v5712 = vshrl.u32 %v4892, 16
      %v5713 = vshrl.u32 %v5010, 16
      %v5714 = vpack.i.b16 %v5713, %v5712
      %v5718 = vpack.i.b16 %v5011, %v4893
      %v5720 = vshrl.u32 %v4893, 16
      %v5721 = vshrl.u32 %v5011, 16
      %v5722 = vpack.i.b16 %v5721, %v5720
      %v5726 = vpack.i.b16 %v5242, %v5124
      %v5727 = vshrl.u32 %v5124, 16
      %v5728 = vshrl.u32 %v5242, 16
      %v5729 = vpack.i.b16 %v5728, %v5727
      %v5732 = vpack.i.b16 %v5243, %v5125
      %v5733 = vshrl.u32 %v5125, 16
      %v5734 = vshrl.u32 %v5243, 16
      %v5735 = vpack.i.b16 %v5734, %v5733
      %v5738 = vpack.i.b16 %v5244, %v5126
      %v5739 = vshrl.u32 %v5126, 16
      %v5740 = vshrl.u32 %v5244, 16
      %v5741 = vpack.i.b16 %v5740, %v5739
      %v5744 = vpack.i.b16 %v5245, %v5127
      %v5745 = vshrl.u32 %v5127, 16
      %v5746 = vshrl.u32 %v5245, 16
      %v5747 = vpack.i.b16 %v5746, %v5745
      %v5750 = vpack.i.b16 %v5246, %v5128
      %v5752 = vshrl.u32 %v5128, 16
      %v5753 = vshrl.u32 %v5246, 16
      %v5754 = vpack.i.b16 %v5753, %v5752
      %v5758 = vpack.i.b16 %v5247, %v5129
      %v5760 = vshrl.u32 %v5129, 16
      %v5761 = vshrl.u32 %v5247, 16
      %v5762 = vpack.i.b16 %v5761, %v5760
      %v5766 = vpack.i.b16 %v5478, %v5360
      %v5767 = vshrl.u32 %v5360, 16
      %v5768 = vshrl.u32 %v5478, 16
      %v5769 = vpack.i.b16 %v5768, %v5767
      %v5772 = vpack.i.b16 %v5479, %v5361
      %v5773 = vshrl.u32 %v5361, 16
      %v5774 = vshrl.u32 %v5479, 16
      %v5775 = vpack.i.b16 %v5774, %v5773
      %v5778 = vpack.i.b16 %v5480, %v5362
      %v5779 = vshrl.u32 %v5362, 16
      %v5780 = vshrl.u32 %v5480, 16
      %v5781 = vpack.i.b16 %v5780, %v5779
      %v5784 = vpack.i.b16 %v5481, %v5363
      %v5785 = vshrl.u32 %v5363, 16
      %v5786 = vshrl.u32 %v5481, 16
      %v5787 = vpack.i.b16 %v5786, %v5785
      %v5790 = vpack.i.b16 %v5482, %v5364
      %v5792 = vshrl.u32 %v5364, 16
      %v5793 = vshrl.u32 %v5482, 16
      %v5794 = vpack.i.b16 %v5793, %v5792
      %v5798 = vpack.i.b16 %v5483, %v5365
      %v5800 = vshrl.u32 %v5365, 16
      %v5801 = vshrl.u32 %v5483, 16
      %v5802 = vpack.i.b16 %v5801, %v5800
      %vm5804 = vcmask 64512
      %v5806 = vsel %vm5804, %v5486, 0
      %v5809 = vsel %vm5804, %v5498, 0
      %5811 = vmatprep.subr.bf16.mxu0 0
      %5812 = vmatpush1.bf16.xpose.msra.mxu0 0
      %5813 = vmatprep.subr.bf16.mxu0 0
      %5814 = vmatpush1.bf16.xpose.msra.mxu0 0
      %5815 = vmatprep.subr.bf16.mxu0 0
      %5816 = vmatpush1.bf16.xpose.msra.mxu0 0
      %5817 = vmatprep.subr.bf16.mxu0 0
      %5818 = vmatpush1.bf16.xpose.msra.mxu0 0
      %5819 = vmatprep.subr.bf16.mxu0 0
      %5820 = vmatpush1.bf16.xpose.msra.mxu0 0
      %5821 = vmatprep.subr.bf16.mxu0 0
      %5822 = vmatpush1.bf16.xpose.msra.mxu0 0
      %5823 = vmatprep.subr.bf16.mxu0 0
      %5824 = vmatpush1.bf16.xpose.msra.mxu0 0
      %5825 = vmatprep.subr.bf16.mxu0 0
      %5826 = vmatpush1.bf16.xpose.msra.mxu0 %v5809
      %5827 = vmatprep.subr.bf16.mxu0 0
      %5828 = vmatpush2.bf16.xpose.msra.mxu0 0
      %5829 = vmatprep.subr.bf16.mxu0 0
      %5830 = vmatpush2.bf16.xpose.msra.mxu0 0
      %5831 = vmatprep.subr.bf16.mxu0 0
      %5832 = vmatpush2.bf16.xpose.msra.mxu0 0
      %5833 = vmatprep.subr.bf16.mxu0 0
      %5834 = vmatpush2.bf16.xpose.msra.mxu0 0
      %5835 = vmatprep.subr.bf16.mxu0 0
      %5836 = vmatpush2.bf16.xpose.msra.mxu0 0
      %5837 = vmatprep.subr.bf16.mxu0 0
      %5838 = vmatpush2.bf16.xpose.msra.mxu0 0
      %5839 = vmatprep.subr.bf16.mxu0 0
      %5840 = vmatpush2.bf16.xpose.msra.mxu0 0
      %5841 = vmatprep.subr.bf16.mxu0 0
      %5842 = vmatpush2.bf16.xpose.msra.mxu0 0
      %5843 = vmatprep.mubr.bf16.mxu0 0
      %5844 = vmatmul.mubr.bf16.gmra.mxu0 %v5806
      %v5845 = vpop.f32.mrf.mxu0
      %v5846 = vadd.f32 0.0, %v5845
      %v5847 = vpop.f32.mrf.mxu0
      %v5848 = vpop.f32.mrf.mxu0
      %v5849 = vadd.f32 0.0, %v5848
      %v5850 = vpop.f32.mrf.mxu0
      %5851 = vdwg.mxu0
      %v5853 = vsel %vm5804, %v5489, 0
      %v5856 = vsel %vm5804, %v5501, 0
      %5858 = vmatprep.subr.bf16.mxu0 0
      %5859 = vmatpush1.bf16.xpose.msra.mxu0 0
      %5860 = vmatprep.subr.bf16.mxu0 0
      %5861 = vmatpush1.bf16.xpose.msra.mxu0 0
      %5862 = vmatprep.subr.bf16.mxu0 0
      %5863 = vmatpush1.bf16.xpose.msra.mxu0 0
      %5864 = vmatprep.subr.bf16.mxu0 0
      %5865 = vmatpush1.bf16.xpose.msra.mxu0 0
      %5866 = vmatprep.subr.bf16.mxu0 0
      %5867 = vmatpush1.bf16.xpose.msra.mxu0 0
      %5868 = vmatprep.subr.bf16.mxu0 0
      %5869 = vmatpush1.bf16.xpose.msra.mxu0 0
      %5870 = vmatprep.subr.bf16.mxu0 0
      %5871 = vmatpush1.bf16.xpose.msra.mxu0 0
      %5872 = vmatprep.subr.bf16.mxu0 0
      %5873 = vmatpush1.bf16.xpose.msra.mxu0 %v5856
      %5874 = vmatprep.subr.bf16.mxu0 0
      %5875 = vmatpush2.bf16.xpose.msra.mxu0 0
      %5876 = vmatprep.subr.bf16.mxu0 0
      %5877 = vmatpush2.bf16.xpose.msra.mxu0 0
      %5878 = vmatprep.subr.bf16.mxu0 0
      %5879 = vmatpush2.bf16.xpose.msra.mxu0 0
      %5880 = vmatprep.subr.bf16.mxu0 0
      %5881 = vmatpush2.bf16.xpose.msra.mxu0 0
      %5882 = vmatprep.subr.bf16.mxu0 0
      %5883 = vmatpush2.bf16.xpose.msra.mxu0 0
      %5884 = vmatprep.subr.bf16.mxu0 0
      %5885 = vmatpush2.bf16.xpose.msra.mxu0 0
      %5886 = vmatprep.subr.bf16.mxu0 0
      %5887 = vmatpush2.bf16.xpose.msra.mxu0 0
      %5888 = vmatprep.subr.bf16.mxu0 0
      %5889 = vmatpush2.bf16.xpose.msra.mxu0 0
      %5890 = vmatprep.mubr.bf16.mxu0 0
      %5891 = vmatmul.mubr.bf16.gmra.mxu0 %v5853
      %v5892 = vpop.f32.mrf.mxu0
      %v5893 = vadd.f32 0.0, %v5892
      %v5894 = vpop.f32.mrf.mxu0
      %v5895 = vpop.f32.mrf.mxu0
      %v5896 = vadd.f32 0.0, %v5895
      %v5897 = vpop.f32.mrf.mxu0
      %5898 = vdwg.mxu0
      %v5900 = vsel %vm5804, %v5492, 0
      %v5903 = vsel %vm5804, %v5504, 0
      %5905 = vmatprep.subr.bf16.mxu0 0
      %5906 = vmatpush1.bf16.xpose.msra.mxu0 0
      %5907 = vmatprep.subr.bf16.mxu0 0
      %5908 = vmatpush1.bf16.xpose.msra.mxu0 0
      %5909 = vmatprep.subr.bf16.mxu0 0
      %5910 = vmatpush1.bf16.xpose.msra.mxu0 0
      %5911 = vmatprep.subr.bf16.mxu0 0
      %5912 = vmatpush1.bf16.xpose.msra.mxu0 0
      %5913 = vmatprep.subr.bf16.mxu0 0
      %5914 = vmatpush1.bf16.xpose.msra.mxu0 0
      %5915 = vmatprep.subr.bf16.mxu0 0
      %5916 = vmatpush1.bf16.xpose.msra.mxu0 0
      %5917 = vmatprep.subr.bf16.mxu0 0
      %5918 = vmatpush1.bf16.xpose.msra.mxu0 0
      %5919 = vmatprep.subr.bf16.mxu0 0
      %5920 = vmatpush1.bf16.xpose.msra.mxu0 %v5903
      %5921 = vmatprep.subr.bf16.mxu0 0
      %5922 = vmatpush2.bf16.xpose.msra.mxu0 0
      %5923 = vmatprep.subr.bf16.mxu0 0
      %5924 = vmatpush2.bf16.xpose.msra.mxu0 0
      %5925 = vmatprep.subr.bf16.mxu0 0
      %5926 = vmatpush2.bf16.xpose.msra.mxu0 0
      %5927 = vmatprep.subr.bf16.mxu0 0
      %5928 = vmatpush2.bf16.xpose.msra.mxu0 0
      %5929 = vmatprep.subr.bf16.mxu0 0
      %5930 = vmatpush2.bf16.xpose.msra.mxu0 0
      %5931 = vmatprep.subr.bf16.mxu0 0
      %5932 = vmatpush2.bf16.xpose.msra.mxu0 0
      %5933 = vmatprep.subr.bf16.mxu0 0
      %5934 = vmatpush2.bf16.xpose.msra.mxu0 0
      %5935 = vmatprep.subr.bf16.mxu0 0
      %5936 = vmatpush2.bf16.xpose.msra.mxu0 0
      %5937 = vmatprep.mubr.bf16.mxu0 0
      %5938 = vmatmul.mubr.bf16.gmra.mxu0 %v5900
      %v5939 = vpop.f32.mrf.mxu0
      %v5940 = vadd.f32 0.0, %v5939
      %v5941 = vpop.f32.mrf.mxu0
      %v5942 = vpop.f32.mrf.mxu0
      %v5943 = vadd.f32 0.0, %v5942
      %v5944 = vpop.f32.mrf.mxu0
      %5945 = vdwg.mxu0
      %v5947 = vsel %vm5804, %v5495, 0
      %v5950 = vsel %vm5804, %v5507, 0
      %5952 = vmatprep.subr.bf16.mxu0 0
      %5953 = vmatpush1.bf16.xpose.msra.mxu0 0
      %5954 = vmatprep.subr.bf16.mxu0 0
      %5955 = vmatpush1.bf16.xpose.msra.mxu0 0
      %5956 = vmatprep.subr.bf16.mxu0 0
      %5957 = vmatpush1.bf16.xpose.msra.mxu0 0
      %5958 = vmatprep.subr.bf16.mxu0 0
      %5959 = vmatpush1.bf16.xpose.msra.mxu0 0
      %5960 = vmatprep.subr.bf16.mxu0 0
      %5961 = vmatpush1.bf16.xpose.msra.mxu0 0
      %5962 = vmatprep.subr.bf16.mxu0 0
      %5963 = vmatpush1.bf16.xpose.msra.mxu0 0
      %5964 = vmatprep.subr.bf16.mxu0 0
      %5965 = vmatpush1.bf16.xpose.msra.mxu0 0
      %5966 = vmatprep.subr.bf16.mxu0 0
      %5967 = vmatpush1.bf16.xpose.msra.mxu0 %v5950
      %5968 = vmatprep.subr.bf16.mxu0 0
      %5969 = vmatpush2.bf16.xpose.msra.mxu0 0
      %5970 = vmatprep.subr.bf16.mxu0 0
      %5971 = vmatpush2.bf16.xpose.msra.mxu0 0
      %5972 = vmatprep.subr.bf16.mxu0 0
      %5973 = vmatpush2.bf16.xpose.msra.mxu0 0
      %5974 = vmatprep.subr.bf16.mxu0 0
      %5975 = vmatpush2.bf16.xpose.msra.mxu0 0
      %5976 = vmatprep.subr.bf16.mxu0 0
      %5977 = vmatpush2.bf16.xpose.msra.mxu0 0
      %5978 = vmatprep.subr.bf16.mxu0 0
      %5979 = vmatpush2.bf16.xpose.msra.mxu0 0
      %5980 = vmatprep.subr.bf16.mxu0 0
      %5981 = vmatpush2.bf16.xpose.msra.mxu0 0
      %5982 = vmatprep.subr.bf16.mxu0 0
      %5983 = vmatpush2.bf16.xpose.msra.mxu0 0
      %5984 = vmatprep.mubr.bf16.mxu0 0
      %5985 = vmatmul.mubr.bf16.gmra.mxu0 %v5947
      %v5986 = vpop.f32.mrf.mxu0
      %v5987 = vadd.f32 0.0, %v5986
      %v5988 = vpop.f32.mrf.mxu0
      %v5989 = vpop.f32.mrf.mxu0
      %v5990 = vadd.f32 0.0, %v5989
      %v5991 = vpop.f32.mrf.mxu0
      %5992 = vdwg.mxu0
      %v5994 = vsel %vm5804, %v5526, 0
      %v5997 = vsel %vm5804, %v5538, 0
      %5999 = vmatprep.subr.bf16.mxu0 0
      %6000 = vmatpush1.bf16.xpose.msra.mxu0 0
      %6001 = vmatprep.subr.bf16.mxu0 0
      %6002 = vmatpush1.bf16.xpose.msra.mxu0 0
      %6003 = vmatprep.subr.bf16.mxu0 0
      %6004 = vmatpush1.bf16.xpose.msra.mxu0 0
      %6005 = vmatprep.subr.bf16.mxu0 0
      %6006 = vmatpush1.bf16.xpose.msra.mxu0 0
      %6007 = vmatprep.subr.bf16.mxu0 0
      %6008 = vmatpush1.bf16.xpose.msra.mxu0 0
      %6009 = vmatprep.subr.bf16.mxu0 0
      %6010 = vmatpush1.bf16.xpose.msra.mxu0 0
      %6011 = vmatprep.subr.bf16.mxu0 0
      %6012 = vmatpush1.bf16.xpose.msra.mxu0 0
      %6013 = vmatprep.subr.bf16.mxu0 0
      %6014 = vmatpush1.bf16.xpose.msra.mxu0 %v5997
      %6015 = vmatprep.subr.bf16.mxu0 0
      %6016 = vmatpush2.bf16.xpose.msra.mxu0 0
      %6017 = vmatprep.subr.bf16.mxu0 0
      %6018 = vmatpush2.bf16.xpose.msra.mxu0 0
      %6019 = vmatprep.subr.bf16.mxu0 0
      %6020 = vmatpush2.bf16.xpose.msra.mxu0 0
      %6021 = vmatprep.subr.bf16.mxu0 0
      %6022 = vmatpush2.bf16.xpose.msra.mxu0 0
      %6023 = vmatprep.subr.bf16.mxu0 0
      %6024 = vmatpush2.bf16.xpose.msra.mxu0 0
      %6025 = vmatprep.subr.bf16.mxu0 0
      %6026 = vmatpush2.bf16.xpose.msra.mxu0 0
      %6027 = vmatprep.subr.bf16.mxu0 0
      %6028 = vmatpush2.bf16.xpose.msra.mxu0 0
      %6029 = vmatprep.subr.bf16.mxu0 0
      %6030 = vmatpush2.bf16.xpose.msra.mxu0 0
      %6031 = vmatprep.mubr.bf16.mxu0 0
      %6032 = vmatmul.mubr.bf16.gmra.mxu0 %v5994
      %v6033 = vpop.f32.mrf.mxu0
      %v6034 = vadd.f32 0.0, %v6033
      %v6035 = vpop.f32.mrf.mxu0
      %v6036 = vpop.f32.mrf.mxu0
      %v6037 = vadd.f32 0.0, %v6036
      %v6038 = vpop.f32.mrf.mxu0
      %6039 = vdwg.mxu0
      %v6041 = vsel %vm5804, %v5529, 0
      %v6044 = vsel %vm5804, %v5541, 0
      %6046 = vmatprep.subr.bf16.mxu0 0
      %6047 = vmatpush1.bf16.xpose.msra.mxu0 0
      %6048 = vmatprep.subr.bf16.mxu0 0
      %6049 = vmatpush1.bf16.xpose.msra.mxu0 0
      %6050 = vmatprep.subr.bf16.mxu0 0
      %6051 = vmatpush1.bf16.xpose.msra.mxu0 0
      %6052 = vmatprep.subr.bf16.mxu0 0
      %6053 = vmatpush1.bf16.xpose.msra.mxu0 0
      %6054 = vmatprep.subr.bf16.mxu0 0
      %6055 = vmatpush1.bf16.xpose.msra.mxu0 0
      %6056 = vmatprep.subr.bf16.mxu0 0
      %6057 = vmatpush1.bf16.xpose.msra.mxu0 0
      %6058 = vmatprep.subr.bf16.mxu0 0
      %6059 = vmatpush1.bf16.xpose.msra.mxu0 0
      %6060 = vmatprep.subr.bf16.mxu0 0
      %6061 = vmatpush1.bf16.xpose.msra.mxu0 %v6044
      %6062 = vmatprep.subr.bf16.mxu0 0
      %6063 = vmatpush2.bf16.xpose.msra.mxu0 0
      %6064 = vmatprep.subr.bf16.mxu0 0
      %6065 = vmatpush2.bf16.xpose.msra.mxu0 0
      %6066 = vmatprep.subr.bf16.mxu0 0
      %6067 = vmatpush2.bf16.xpose.msra.mxu0 0
      %6068 = vmatprep.subr.bf16.mxu0 0
      %6069 = vmatpush2.bf16.xpose.msra.mxu0 0
      %6070 = vmatprep.subr.bf16.mxu0 0
      %6071 = vmatpush2.bf16.xpose.msra.mxu0 0
      %6072 = vmatprep.subr.bf16.mxu0 0
      %6073 = vmatpush2.bf16.xpose.msra.mxu0 0
      %6074 = vmatprep.subr.bf16.mxu0 0
      %6075 = vmatpush2.bf16.xpose.msra.mxu0 0
      %6076 = vmatprep.subr.bf16.mxu0 0
      %6077 = vmatpush2.bf16.xpose.msra.mxu0 0
      %6078 = vmatprep.mubr.bf16.mxu0 0
      %6079 = vmatmul.mubr.bf16.gmra.mxu0 %v6041
      %v6080 = vpop.f32.mrf.mxu0
      %v6081 = vadd.f32 0.0, %v6080
      %v6082 = vpop.f32.mrf.mxu0
      %v6083 = vpop.f32.mrf.mxu0
      %v6084 = vadd.f32 0.0, %v6083
      %v6085 = vpop.f32.mrf.mxu0
      %6086 = vdwg.mxu0
      %v6088 = vsel %vm5804, %v5532, 0
      %v6091 = vsel %vm5804, %v5544, 0
      %6093 = vmatprep.subr.bf16.mxu0 0
      %6094 = vmatpush1.bf16.xpose.msra.mxu0 0
      %6095 = vmatprep.subr.bf16.mxu0 0
      %6096 = vmatpush1.bf16.xpose.msra.mxu0 0
      %6097 = vmatprep.subr.bf16.mxu0 0
      %6098 = vmatpush1.bf16.xpose.msra.mxu0 0
      %6099 = vmatprep.subr.bf16.mxu0 0
      %6100 = vmatpush1.bf16.xpose.msra.mxu0 0
      %6101 = vmatprep.subr.bf16.mxu0 0
      %6102 = vmatpush1.bf16.xpose.msra.mxu0 0
      %6103 = vmatprep.subr.bf16.mxu0 0
      %6104 = vmatpush1.bf16.xpose.msra.mxu0 0
      %6105 = vmatprep.subr.bf16.mxu0 0
      %6106 = vmatpush1.bf16.xpose.msra.mxu0 0
      %6107 = vmatprep.subr.bf16.mxu0 0
      %6108 = vmatpush1.bf16.xpose.msra.mxu0 %v6091
      %6109 = vmatprep.subr.bf16.mxu0 0
      %6110 = vmatpush2.bf16.xpose.msra.mxu0 0
      %6111 = vmatprep.subr.bf16.mxu0 0
      %6112 = vmatpush2.bf16.xpose.msra.mxu0 0
      %6113 = vmatprep.subr.bf16.mxu0 0
      %6114 = vmatpush2.bf16.xpose.msra.mxu0 0
      %6115 = vmatprep.subr.bf16.mxu0 0
      %6116 = vmatpush2.bf16.xpose.msra.mxu0 0
      %6117 = vmatprep.subr.bf16.mxu0 0
      %6118 = vmatpush2.bf16.xpose.msra.mxu0 0
      %6119 = vmatprep.subr.bf16.mxu0 0
      %6120 = vmatpush2.bf16.xpose.msra.mxu0 0
      %6121 = vmatprep.subr.bf16.mxu0 0
      %6122 = vmatpush2.bf16.xpose.msra.mxu0 0
      %6123 = vmatprep.subr.bf16.mxu0 0
      %6124 = vmatpush2.bf16.xpose.msra.mxu0 0
      %6125 = vmatprep.mubr.bf16.mxu0 0
      %6126 = vmatmul.mubr.bf16.gmra.mxu0 %v6088
      %v6127 = vpop.f32.mrf.mxu0
      %v6128 = vadd.f32 0.0, %v6127
      %v6129 = vpop.f32.mrf.mxu0
      %v6130 = vpop.f32.mrf.mxu0
      %v6131 = vadd.f32 0.0, %v6130
      %v6132 = vpop.f32.mrf.mxu0
      %6133 = vdwg.mxu0
      %v6135 = vsel %vm5804, %v5535, 0
      %v6138 = vsel %vm5804, %v5547, 0
      %6140 = vmatprep.subr.bf16.mxu0 0
      %6141 = vmatpush1.bf16.xpose.msra.mxu0 0
      %6142 = vmatprep.subr.bf16.mxu0 0
      %6143 = vmatpush1.bf16.xpose.msra.mxu0 0
      %6144 = vmatprep.subr.bf16.mxu0 0
      %6145 = vmatpush1.bf16.xpose.msra.mxu0 0
      %6146 = vmatprep.subr.bf16.mxu0 0
      %6147 = vmatpush1.bf16.xpose.msra.mxu0 0
      %6148 = vmatprep.subr.bf16.mxu0 0
      %6149 = vmatpush1.bf16.xpose.msra.mxu0 0
      %6150 = vmatprep.subr.bf16.mxu0 0
      %6151 = vmatpush1.bf16.xpose.msra.mxu0 0
      %6152 = vmatprep.subr.bf16.mxu0 0
      %6153 = vmatpush1.bf16.xpose.msra.mxu0 0
      %6154 = vmatprep.subr.bf16.mxu0 0
      %6155 = vmatpush1.bf16.xpose.msra.mxu0 %v6138
      %6156 = vmatprep.subr.bf16.mxu0 0
      %6157 = vmatpush2.bf16.xpose.msra.mxu0 0
      %6158 = vmatprep.subr.bf16.mxu0 0
      %6159 = vmatpush2.bf16.xpose.msra.mxu0 0
      %6160 = vmatprep.subr.bf16.mxu0 0
      %6161 = vmatpush2.bf16.xpose.msra.mxu0 0
      %6162 = vmatprep.subr.bf16.mxu0 0
      %6163 = vmatpush2.bf16.xpose.msra.mxu0 0
      %6164 = vmatprep.subr.bf16.mxu0 0
      %6165 = vmatpush2.bf16.xpose.msra.mxu0 0
      %6166 = vmatprep.subr.bf16.mxu0 0
      %6167 = vmatpush2.bf16.xpose.msra.mxu0 0
      %6168 = vmatprep.subr.bf16.mxu0 0
      %6169 = vmatpush2.bf16.xpose.msra.mxu0 0
      %6170 = vmatprep.subr.bf16.mxu0 0
      %6171 = vmatpush2.bf16.xpose.msra.mxu0 0
      %6172 = vmatprep.mubr.bf16.mxu0 0
      %6173 = vmatmul.mubr.bf16.gmra.mxu0 %v6135
      %v6174 = vpop.f32.mrf.mxu0
      %v6175 = vadd.f32 0.0, %v6174
      %v6176 = vpop.f32.mrf.mxu0
      %v6177 = vpop.f32.mrf.mxu0
      %v6178 = vadd.f32 0.0, %v6177
      %v6179 = vpop.f32.mrf.mxu0
      %6180 = vdwg.mxu0
      %v6182 = vsel %vm5804, %v5566, 0
      %v6185 = vsel %vm5804, %v5578, 0
      %6187 = vmatprep.subr.bf16.mxu0 0
      %6188 = vmatpush1.bf16.xpose.msra.mxu0 0
      %6189 = vmatprep.subr.bf16.mxu0 0
      %6190 = vmatpush1.bf16.xpose.msra.mxu0 0
      %6191 = vmatprep.subr.bf16.mxu0 0
      %6192 = vmatpush1.bf16.xpose.msra.mxu0 0
      %6193 = vmatprep.subr.bf16.mxu0 0
      %6194 = vmatpush1.bf16.xpose.msra.mxu0 0
      %6195 = vmatprep.subr.bf16.mxu0 0
      %6196 = vmatpush1.bf16.xpose.msra.mxu0 0
      %6197 = vmatprep.subr.bf16.mxu0 0
      %6198 = vmatpush1.bf16.xpose.msra.mxu0 0
      %6199 = vmatprep.subr.bf16.mxu0 0
      %6200 = vmatpush1.bf16.xpose.msra.mxu0 0
      %6201 = vmatprep.subr.bf16.mxu0 0
      %6202 = vmatpush1.bf16.xpose.msra.mxu0 %v6185
      %6203 = vmatprep.subr.bf16.mxu0 0
      %6204 = vmatpush2.bf16.xpose.msra.mxu0 0
      %6205 = vmatprep.subr.bf16.mxu0 0
      %6206 = vmatpush2.bf16.xpose.msra.mxu0 0
      %6207 = vmatprep.subr.bf16.mxu0 0
      %6208 = vmatpush2.bf16.xpose.msra.mxu0 0
      %6209 = vmatprep.subr.bf16.mxu0 0
      %6210 = vmatpush2.bf16.xpose.msra.mxu0 0
      %6211 = vmatprep.subr.bf16.mxu0 0
      %6212 = vmatpush2.bf16.xpose.msra.mxu0 0
      %6213 = vmatprep.subr.bf16.mxu0 0
      %6214 = vmatpush2.bf16.xpose.msra.mxu0 0
      %6215 = vmatprep.subr.bf16.mxu0 0
      %6216 = vmatpush2.bf16.xpose.msra.mxu0 0
      %6217 = vmatprep.subr.bf16.mxu0 0
      %6218 = vmatpush2.bf16.xpose.msra.mxu0 0
      %6219 = vmatprep.mubr.bf16.mxu0 0
      %6220 = vmatmul.mubr.bf16.gmra.mxu0 %v6182
      %v6221 = vpop.f32.mrf.mxu0
      %v6222 = vadd.f32 0.0, %v6221
      %v6223 = vpop.f32.mrf.mxu0
      %v6224 = vpop.f32.mrf.mxu0
      %v6225 = vadd.f32 0.0, %v6224
      %v6226 = vpop.f32.mrf.mxu0
      %6227 = vdwg.mxu0
      %v6229 = vsel %vm5804, %v5569, 0
      %v6232 = vsel %vm5804, %v5581, 0
      %6234 = vmatprep.subr.bf16.mxu0 0
      %6235 = vmatpush1.bf16.xpose.msra.mxu0 0
      %6236 = vmatprep.subr.bf16.mxu0 0
      %6237 = vmatpush1.bf16.xpose.msra.mxu0 0
      %6238 = vmatprep.subr.bf16.mxu0 0
      %6239 = vmatpush1.bf16.xpose.msra.mxu0 0
      %6240 = vmatprep.subr.bf16.mxu0 0
      %6241 = vmatpush1.bf16.xpose.msra.mxu0 0
      %6242 = vmatprep.subr.bf16.mxu0 0
      %6243 = vmatpush1.bf16.xpose.msra.mxu0 0
      %6244 = vmatprep.subr.bf16.mxu0 0
      %6245 = vmatpush1.bf16.xpose.msra.mxu0 0
      %6246 = vmatprep.subr.bf16.mxu0 0
      %6247 = vmatpush1.bf16.xpose.msra.mxu0 0
      %6248 = vmatprep.subr.bf16.mxu0 0
      %6249 = vmatpush1.bf16.xpose.msra.mxu0 %v6232
      %6250 = vmatprep.subr.bf16.mxu0 0
      %6251 = vmatpush2.bf16.xpose.msra.mxu0 0
      %6252 = vmatprep.subr.bf16.mxu0 0
      %6253 = vmatpush2.bf16.xpose.msra.mxu0 0
      %6254 = vmatprep.subr.bf16.mxu0 0
      %6255 = vmatpush2.bf16.xpose.msra.mxu0 0
      %6256 = vmatprep.subr.bf16.mxu0 0
      %6257 = vmatpush2.bf16.xpose.msra.mxu0 0
      %6258 = vmatprep.subr.bf16.mxu0 0
      %6259 = vmatpush2.bf16.xpose.msra.mxu0 0
      %6260 = vmatprep.subr.bf16.mxu0 0
      %6261 = vmatpush2.bf16.xpose.msra.mxu0 0
      %6262 = vmatprep.subr.bf16.mxu0 0
      %6263 = vmatpush2.bf16.xpose.msra.mxu0 0
      %6264 = vmatprep.subr.bf16.mxu0 0
      %6265 = vmatpush2.bf16.xpose.msra.mxu0 0
      %6266 = vmatprep.mubr.bf16.mxu0 0
      %6267 = vmatmul.mubr.bf16.gmra.mxu0 %v6229
      %v6268 = vpop.f32.mrf.mxu0
      %v6269 = vadd.f32 0.0, %v6268
      %v6270 = vpop.f32.mrf.mxu0
      %v6271 = vpop.f32.mrf.mxu0
      %v6272 = vadd.f32 0.0, %v6271
      %v6273 = vpop.f32.mrf.mxu0
      %6274 = vdwg.mxu0
      %v6276 = vsel %vm5804, %v5572, 0
      %v6279 = vsel %vm5804, %v5584, 0
      %6281 = vmatprep.subr.bf16.mxu0 0
      %6282 = vmatpush1.bf16.xpose.msra.mxu0 0
      %6283 = vmatprep.subr.bf16.mxu0 0
      %6284 = vmatpush1.bf16.xpose.msra.mxu0 0
      %6285 = vmatprep.subr.bf16.mxu0 0
      %6286 = vmatpush1.bf16.xpose.msra.mxu0 0
      %6287 = vmatprep.subr.bf16.mxu0 0
      %6288 = vmatpush1.bf16.xpose.msra.mxu0 0
      %6289 = vmatprep.subr.bf16.mxu0 0
      %6290 = vmatpush1.bf16.xpose.msra.mxu0 0
      %6291 = vmatprep.subr.bf16.mxu0 0
      %6292 = vmatpush1.bf16.xpose.msra.mxu0 0
      %6293 = vmatprep.subr.bf16.mxu0 0
      %6294 = vmatpush1.bf16.xpose.msra.mxu0 0
      %6295 = vmatprep.subr.bf16.mxu0 0
      %6296 = vmatpush1.bf16.xpose.msra.mxu0 %v6279
      %6297 = vmatprep.subr.bf16.mxu0 0
      %6298 = vmatpush2.bf16.xpose.msra.mxu0 0
      %6299 = vmatprep.subr.bf16.mxu0 0
      %6300 = vmatpush2.bf16.xpose.msra.mxu0 0
      %6301 = vmatprep.subr.bf16.mxu0 0
      %6302 = vmatpush2.bf16.xpose.msra.mxu0 0
      %6303 = vmatprep.subr.bf16.mxu0 0
      %6304 = vmatpush2.bf16.xpose.msra.mxu0 0
      %6305 = vmatprep.subr.bf16.mxu0 0
      %6306 = vmatpush2.bf16.xpose.msra.mxu0 0
      %6307 = vmatprep.subr.bf16.mxu0 0
      %6308 = vmatpush2.bf16.xpose.msra.mxu0 0
      %6309 = vmatprep.subr.bf16.mxu0 0
      %6310 = vmatpush2.bf16.xpose.msra.mxu0 0
      %6311 = vmatprep.subr.bf16.mxu0 0
      %6312 = vmatpush2.bf16.xpose.msra.mxu0 0
      %6313 = vmatprep.mubr.bf16.mxu0 0
      %6314 = vmatmul.mubr.bf16.gmra.mxu0 %v6276
      %v6315 = vpop.f32.mrf.mxu0
      %v6316 = vadd.f32 0.0, %v6315
      %v6317 = vpop.f32.mrf.mxu0
      %v6318 = vpop.f32.mrf.mxu0
      %v6319 = vadd.f32 0.0, %v6318
      %v6320 = vpop.f32.mrf.mxu0
      %6321 = vdwg.mxu0
      %v6323 = vsel %vm5804, %v5575, 0
      %v6326 = vsel %vm5804, %v5587, 0
      %6328 = vmatprep.subr.bf16.mxu0 0
      %6329 = vmatpush1.bf16.xpose.msra.mxu0 0
      %6330 = vmatprep.subr.bf16.mxu0 0
      %6331 = vmatpush1.bf16.xpose.msra.mxu0 0
      %6332 = vmatprep.subr.bf16.mxu0 0
      %6333 = vmatpush1.bf16.xpose.msra.mxu0 0
      %6334 = vmatprep.subr.bf16.mxu0 0
      %6335 = vmatpush1.bf16.xpose.msra.mxu0 0
      %6336 = vmatprep.subr.bf16.mxu0 0
      %6337 = vmatpush1.bf16.xpose.msra.mxu0 0
      %6338 = vmatprep.subr.bf16.mxu0 0
      %6339 = vmatpush1.bf16.xpose.msra.mxu0 0
      %6340 = vmatprep.subr.bf16.mxu0 0
      %6341 = vmatpush1.bf16.xpose.msra.mxu0 0
      %6342 = vmatprep.subr.bf16.mxu0 0
      %6343 = vmatpush1.bf16.xpose.msra.mxu0 %v6326
      %6344 = vmatprep.subr.bf16.mxu0 0
      %6345 = vmatpush2.bf16.xpose.msra.mxu0 0
      %6346 = vmatprep.subr.bf16.mxu0 0
      %6347 = vmatpush2.bf16.xpose.msra.mxu0 0
      %6348 = vmatprep.subr.bf16.mxu0 0
      %6349 = vmatpush2.bf16.xpose.msra.mxu0 0
      %6350 = vmatprep.subr.bf16.mxu0 0
      %6351 = vmatpush2.bf16.xpose.msra.mxu0 0
      %6352 = vmatprep.subr.bf16.mxu0 0
      %6353 = vmatpush2.bf16.xpose.msra.mxu0 0
      %6354 = vmatprep.subr.bf16.mxu0 0
      %6355 = vmatpush2.bf16.xpose.msra.mxu0 0
      %6356 = vmatprep.subr.bf16.mxu0 0
      %6357 = vmatpush2.bf16.xpose.msra.mxu0 0
      %6358 = vmatprep.subr.bf16.mxu0 0
      %6359 = vmatpush2.bf16.xpose.msra.mxu0 0
      %6360 = vmatprep.mubr.bf16.mxu0 0
      %6361 = vmatmul.mubr.bf16.gmra.mxu0 %v6323
      %v6362 = vpop.f32.mrf.mxu0
      %v6363 = vadd.f32 0.0, %v6362
      %v6364 = vpop.f32.mrf.mxu0
      %v6365 = vpop.f32.mrf.mxu0
      %v6366 = vadd.f32 0.0, %v6365
      %v6367 = vpop.f32.mrf.mxu0
      %6368 = vdwg.mxu0
      %v6370 = vsel %vm5804, %v5606, 0
      %v6373 = vsel %vm5804, %v5618, 0
      %6375 = vmatprep.subr.bf16.mxu0 0
      %6376 = vmatpush1.bf16.xpose.msra.mxu0 0
      %6377 = vmatprep.subr.bf16.mxu0 0
      %6378 = vmatpush1.bf16.xpose.msra.mxu0 0
      %6379 = vmatprep.subr.bf16.mxu0 0
      %6380 = vmatpush1.bf16.xpose.msra.mxu0 0
      %6381 = vmatprep.subr.bf16.mxu0 0
      %6382 = vmatpush1.bf16.xpose.msra.mxu0 0
      %6383 = vmatprep.subr.bf16.mxu0 0
      %6384 = vmatpush1.bf16.xpose.msra.mxu0 0
      %6385 = vmatprep.subr.bf16.mxu0 0
      %6386 = vmatpush1.bf16.xpose.msra.mxu0 0
      %6387 = vmatprep.subr.bf16.mxu0 0
      %6388 = vmatpush1.bf16.xpose.msra.mxu0 0
      %6389 = vmatprep.subr.bf16.mxu0 0
      %6390 = vmatpush1.bf16.xpose.msra.mxu0 %v6373
      %6391 = vmatprep.subr.bf16.mxu0 0
      %6392 = vmatpush2.bf16.xpose.msra.mxu0 0
      %6393 = vmatprep.subr.bf16.mxu0 0
      %6394 = vmatpush2.bf16.xpose.msra.mxu0 0
      %6395 = vmatprep.subr.bf16.mxu0 0
      %6396 = vmatpush2.bf16.xpose.msra.mxu0 0
      %6397 = vmatprep.subr.bf16.mxu0 0
      %6398 = vmatpush2.bf16.xpose.msra.mxu0 0
      %6399 = vmatprep.subr.bf16.mxu0 0
      %6400 = vmatpush2.bf16.xpose.msra.mxu0 0
      %6401 = vmatprep.subr.bf16.mxu0 0
      %6402 = vmatpush2.bf16.xpose.msra.mxu0 0
      %6403 = vmatprep.subr.bf16.mxu0 0
      %6404 = vmatpush2.bf16.xpose.msra.mxu0 0
      %6405 = vmatprep.subr.bf16.mxu0 0
      %6406 = vmatpush2.bf16.xpose.msra.mxu0 0
      %6407 = vmatprep.mubr.bf16.mxu0 0
      %6408 = vmatmul.mubr.bf16.gmra.mxu0 %v6370
      %v6409 = vpop.f32.mrf.mxu0
      %v6410 = vadd.f32 0.0, %v6409
      %v6411 = vpop.f32.mrf.mxu0
      %v6412 = vpop.f32.mrf.mxu0
      %v6413 = vadd.f32 0.0, %v6412
      %v6414 = vpop.f32.mrf.mxu0
      %6415 = vdwg.mxu0
      %v6417 = vsel %vm5804, %v5609, 0
      %v6420 = vsel %vm5804, %v5621, 0
      %6422 = vmatprep.subr.bf16.mxu0 0
      %6423 = vmatpush1.bf16.xpose.msra.mxu0 0
      %6424 = vmatprep.subr.bf16.mxu0 0
      %6425 = vmatpush1.bf16.xpose.msra.mxu0 0
      %6426 = vmatprep.subr.bf16.mxu0 0
      %6427 = vmatpush1.bf16.xpose.msra.mxu0 0
      %6428 = vmatprep.subr.bf16.mxu0 0
      %6429 = vmatpush1.bf16.xpose.msra.mxu0 0
      %6430 = vmatprep.subr.bf16.mxu0 0
      %6431 = vmatpush1.bf16.xpose.msra.mxu0 0
      %6432 = vmatprep.subr.bf16.mxu0 0
      %6433 = vmatpush1.bf16.xpose.msra.mxu0 0
      %6434 = vmatprep.subr.bf16.mxu0 0
      %6435 = vmatpush1.bf16.xpose.msra.mxu0 0
      %6436 = vmatprep.subr.bf16.mxu0 0
      %6437 = vmatpush1.bf16.xpose.msra.mxu0 %v6420
      %6438 = vmatprep.subr.bf16.mxu0 0
      %6439 = vmatpush2.bf16.xpose.msra.mxu0 0
      %6440 = vmatprep.subr.bf16.mxu0 0
      %6441 = vmatpush2.bf16.xpose.msra.mxu0 0
      %6442 = vmatprep.subr.bf16.mxu0 0
      %6443 = vmatpush2.bf16.xpose.msra.mxu0 0
      %6444 = vmatprep.subr.bf16.mxu0 0
      %6445 = vmatpush2.bf16.xpose.msra.mxu0 0
      %6446 = vmatprep.subr.bf16.mxu0 0
      %6447 = vmatpush2.bf16.xpose.msra.mxu0 0
      %6448 = vmatprep.subr.bf16.mxu0 0
      %6449 = vmatpush2.bf16.xpose.msra.mxu0 0
      %6450 = vmatprep.subr.bf16.mxu0 0
      %6451 = vmatpush2.bf16.xpose.msra.mxu0 0
      %6452 = vmatprep.subr.bf16.mxu0 0
      %6453 = vmatpush2.bf16.xpose.msra.mxu0 0
      %6454 = vmatprep.mubr.bf16.mxu0 0
      %6455 = vmatmul.mubr.bf16.gmra.mxu0 %v6417
      %v6456 = vpop.f32.mrf.mxu0
      %v6457 = vadd.f32 0.0, %v6456
      %v6458 = vpop.f32.mrf.mxu0
      %v6459 = vpop.f32.mrf.mxu0
      %v6460 = vadd.f32 0.0, %v6459
      %v6461 = vpop.f32.mrf.mxu0
      %6462 = vdwg.mxu0
      %v6464 = vsel %vm5804, %v5612, 0
      %v6467 = vsel %vm5804, %v5624, 0
      %6469 = vmatprep.subr.bf16.mxu0 0
      %6470 = vmatpush1.bf16.xpose.msra.mxu0 0
      %6471 = vmatprep.subr.bf16.mxu0 0
      %6472 = vmatpush1.bf16.xpose.msra.mxu0 0
      %6473 = vmatprep.subr.bf16.mxu0 0
      %6474 = vmatpush1.bf16.xpose.msra.mxu0 0
      %6475 = vmatprep.subr.bf16.mxu0 0
      %6476 = vmatpush1.bf16.xpose.msra.mxu0 0
      %6477 = vmatprep.subr.bf16.mxu0 0
      %6478 = vmatpush1.bf16.xpose.msra.mxu0 0
      %6479 = vmatprep.subr.bf16.mxu0 0
      %6480 = vmatpush1.bf16.xpose.msra.mxu0 0
      %6481 = vmatprep.subr.bf16.mxu0 0
      %6482 = vmatpush1.bf16.xpose.msra.mxu0 0
      %6483 = vmatprep.subr.bf16.mxu0 0
      %6484 = vmatpush1.bf16.xpose.msra.mxu0 %v6467
      %6485 = vmatprep.subr.bf16.mxu0 0
      %6486 = vmatpush2.bf16.xpose.msra.mxu0 0
      %6487 = vmatprep.subr.bf16.mxu0 0
      %6488 = vmatpush2.bf16.xpose.msra.mxu0 0
      %6489 = vmatprep.subr.bf16.mxu0 0
      %6490 = vmatpush2.bf16.xpose.msra.mxu0 0
      %6491 = vmatprep.subr.bf16.mxu0 0
      %6492 = vmatpush2.bf16.xpose.msra.mxu0 0
      %6493 = vmatprep.subr.bf16.mxu0 0
      %6494 = vmatpush2.bf16.xpose.msra.mxu0 0
      %6495 = vmatprep.subr.bf16.mxu0 0
      %6496 = vmatpush2.bf16.xpose.msra.mxu0 0
      %6497 = vmatprep.subr.bf16.mxu0 0
      %6498 = vmatpush2.bf16.xpose.msra.mxu0 0
      %6499 = vmatprep.subr.bf16.mxu0 0
      %6500 = vmatpush2.bf16.xpose.msra.mxu0 0
      %6501 = vmatprep.mubr.bf16.mxu0 0
      %6502 = vmatmul.mubr.bf16.gmra.mxu0 %v6464
      %v6503 = vpop.f32.mrf.mxu0
      %v6504 = vadd.f32 0.0, %v6503
      %v6505 = vpop.f32.mrf.mxu0
      %v6506 = vpop.f32.mrf.mxu0
      %v6507 = vadd.f32 0.0, %v6506
      %v6508 = vpop.f32.mrf.mxu0
      %6509 = vdwg.mxu0
      %v6511 = vsel %vm5804, %v5615, 0
      %v6514 = vsel %vm5804, %v5627, 0
      %6516 = vmatprep.subr.bf16.mxu0 0
      %6517 = vmatpush1.bf16.xpose.msra.mxu0 0
      %6518 = vmatprep.subr.bf16.mxu0 0
      %6519 = vmatpush1.bf16.xpose.msra.mxu0 0
      %6520 = vmatprep.subr.bf16.mxu0 0
      %6521 = vmatpush1.bf16.xpose.msra.mxu0 0
      %6522 = vmatprep.subr.bf16.mxu0 0
      %6523 = vmatpush1.bf16.xpose.msra.mxu0 0
      %6524 = vmatprep.subr.bf16.mxu0 0
      %6525 = vmatpush1.bf16.xpose.msra.mxu0 0
      %6526 = vmatprep.subr.bf16.mxu0 0
      %6527 = vmatpush1.bf16.xpose.msra.mxu0 0
      %6528 = vmatprep.subr.bf16.mxu0 0
      %6529 = vmatpush1.bf16.xpose.msra.mxu0 0
      %6530 = vmatprep.subr.bf16.mxu0 0
      %6531 = vmatpush1.bf16.xpose.msra.mxu0 %v6514
      %6532 = vmatprep.subr.bf16.mxu0 0
      %6533 = vmatpush2.bf16.xpose.msra.mxu0 0
      %6534 = vmatprep.subr.bf16.mxu0 0
      %6535 = vmatpush2.bf16.xpose.msra.mxu0 0
      %6536 = vmatprep.subr.bf16.mxu0 0
      %6537 = vmatpush2.bf16.xpose.msra.mxu0 0
      %6538 = vmatprep.subr.bf16.mxu0 0
      %6539 = vmatpush2.bf16.xpose.msra.mxu0 0
      %6540 = vmatprep.subr.bf16.mxu0 0
      %6541 = vmatpush2.bf16.xpose.msra.mxu0 0
      %6542 = vmatprep.subr.bf16.mxu0 0
      %6543 = vmatpush2.bf16.xpose.msra.mxu0 0
      %6544 = vmatprep.subr.bf16.mxu0 0
      %6545 = vmatpush2.bf16.xpose.msra.mxu0 0
      %6546 = vmatprep.subr.bf16.mxu0 0
      %6547 = vmatpush2.bf16.xpose.msra.mxu0 0
      %6548 = vmatprep.mubr.bf16.mxu0 0
      %6549 = vmatmul.mubr.bf16.gmra.mxu0 %v6511
      %v6550 = vpop.f32.mrf.mxu0
      %v6551 = vadd.f32 0.0, %v6550
      %v6552 = vpop.f32.mrf.mxu0
      %v6553 = vpop.f32.mrf.mxu0
      %v6554 = vadd.f32 0.0, %v6553
      %v6555 = vpop.f32.mrf.mxu0
      %6556 = vdwg.mxu0
      %v6558 = vsel %vm5804, %v5646, 0
      %v6561 = vsel %vm5804, %v5658, 0
      %6563 = vmatprep.subr.bf16.mxu0 0
      %6564 = vmatpush1.bf16.xpose.msra.mxu0 0
      %6565 = vmatprep.subr.bf16.mxu0 0
      %6566 = vmatpush1.bf16.xpose.msra.mxu0 0
      %6567 = vmatprep.subr.bf16.mxu0 0
      %6568 = vmatpush1.bf16.xpose.msra.mxu0 0
      %6569 = vmatprep.subr.bf16.mxu0 0
      %6570 = vmatpush1.bf16.xpose.msra.mxu0 0
      %6571 = vmatprep.subr.bf16.mxu0 0
      %6572 = vmatpush1.bf16.xpose.msra.mxu0 0
      %6573 = vmatprep.subr.bf16.mxu0 0
      %6574 = vmatpush1.bf16.xpose.msra.mxu0 0
      %6575 = vmatprep.subr.bf16.mxu0 0
      %6576 = vmatpush1.bf16.xpose.msra.mxu0 0
      %6577 = vmatprep.subr.bf16.mxu0 0
      %6578 = vmatpush1.bf16.xpose.msra.mxu0 %v6561
      %6579 = vmatprep.subr.bf16.mxu0 0
      %6580 = vmatpush2.bf16.xpose.msra.mxu0 0
      %6581 = vmatprep.subr.bf16.mxu0 0
      %6582 = vmatpush2.bf16.xpose.msra.mxu0 0
      %6583 = vmatprep.subr.bf16.mxu0 0
      %6584 = vmatpush2.bf16.xpose.msra.mxu0 0
      %6585 = vmatprep.subr.bf16.mxu0 0
      %6586 = vmatpush2.bf16.xpose.msra.mxu0 0
      %6587 = vmatprep.subr.bf16.mxu0 0
      %6588 = vmatpush2.bf16.xpose.msra.mxu0 0
      %6589 = vmatprep.subr.bf16.mxu0 0
      %6590 = vmatpush2.bf16.xpose.msra.mxu0 0
      %6591 = vmatprep.subr.bf16.mxu0 0
      %6592 = vmatpush2.bf16.xpose.msra.mxu0 0
      %6593 = vmatprep.subr.bf16.mxu0 0
      %6594 = vmatpush2.bf16.xpose.msra.mxu0 0
      %6595 = vmatprep.mubr.bf16.mxu0 0
      %6596 = vmatmul.mubr.bf16.gmra.mxu0 %v6558
      %v6597 = vpop.f32.mrf.mxu0
      %v6598 = vadd.f32 0.0, %v6597
      %v6599 = vpop.f32.mrf.mxu0
      %v6600 = vpop.f32.mrf.mxu0
      %v6601 = vadd.f32 0.0, %v6600
      %v6602 = vpop.f32.mrf.mxu0
      %6603 = vdwg.mxu0
      %v6605 = vsel %vm5804, %v5649, 0
      %v6608 = vsel %vm5804, %v5661, 0
      %6610 = vmatprep.subr.bf16.mxu0 0
      %6611 = vmatpush1.bf16.xpose.msra.mxu0 0
      %6612 = vmatprep.subr.bf16.mxu0 0
      %6613 = vmatpush1.bf16.xpose.msra.mxu0 0
      %6614 = vmatprep.subr.bf16.mxu0 0
      %6615 = vmatpush1.bf16.xpose.msra.mxu0 0
      %6616 = vmatprep.subr.bf16.mxu0 0
      %6617 = vmatpush1.bf16.xpose.msra.mxu0 0
      %6618 = vmatprep.subr.bf16.mxu0 0
      %6619 = vmatpush1.bf16.xpose.msra.mxu0 0
      %6620 = vmatprep.subr.bf16.mxu0 0
      %6621 = vmatpush1.bf16.xpose.msra.mxu0 0
      %6622 = vmatprep.subr.bf16.mxu0 0
      %6623 = vmatpush1.bf16.xpose.msra.mxu0 0
      %6624 = vmatprep.subr.bf16.mxu0 0
      %6625 = vmatpush1.bf16.xpose.msra.mxu0 %v6608
      %6626 = vmatprep.subr.bf16.mxu0 0
      %6627 = vmatpush2.bf16.xpose.msra.mxu0 0
      %6628 = vmatprep.subr.bf16.mxu0 0
      %6629 = vmatpush2.bf16.xpose.msra.mxu0 0
      %6630 = vmatprep.subr.bf16.mxu0 0
      %6631 = vmatpush2.bf16.xpose.msra.mxu0 0
      %6632 = vmatprep.subr.bf16.mxu0 0
      %6633 = vmatpush2.bf16.xpose.msra.mxu0 0
      %6634 = vmatprep.subr.bf16.mxu0 0
      %6635 = vmatpush2.bf16.xpose.msra.mxu0 0
      %6636 = vmatprep.subr.bf16.mxu0 0
      %6637 = vmatpush2.bf16.xpose.msra.mxu0 0
      %6638 = vmatprep.subr.bf16.mxu0 0
      %6639 = vmatpush2.bf16.xpose.msra.mxu0 0
      %6640 = vmatprep.subr.bf16.mxu0 0
      %6641 = vmatpush2.bf16.xpose.msra.mxu0 0
      %6642 = vmatprep.mubr.bf16.mxu0 0
      %6643 = vmatmul.mubr.bf16.gmra.mxu0 %v6605
      %v6644 = vpop.f32.mrf.mxu0
      %v6645 = vadd.f32 0.0, %v6644
      %v6646 = vpop.f32.mrf.mxu0
      %v6647 = vpop.f32.mrf.mxu0
      %v6648 = vadd.f32 0.0, %v6647
      %v6649 = vpop.f32.mrf.mxu0
      %6650 = vdwg.mxu0
      %v6652 = vsel %vm5804, %v5652, 0
      %v6655 = vsel %vm5804, %v5664, 0
      %6657 = vmatprep.subr.bf16.mxu0 0
      %6658 = vmatpush1.bf16.xpose.msra.mxu0 0
      %6659 = vmatprep.subr.bf16.mxu0 0
      %6660 = vmatpush1.bf16.xpose.msra.mxu0 0
      %6661 = vmatprep.subr.bf16.mxu0 0
      %6662 = vmatpush1.bf16.xpose.msra.mxu0 0
      %6663 = vmatprep.subr.bf16.mxu0 0
      %6664 = vmatpush1.bf16.xpose.msra.mxu0 0
      %6665 = vmatprep.subr.bf16.mxu0 0
      %6666 = vmatpush1.bf16.xpose.msra.mxu0 0
      %6667 = vmatprep.subr.bf16.mxu0 0
      %6668 = vmatpush1.bf16.xpose.msra.mxu0 0
      %6669 = vmatprep.subr.bf16.mxu0 0
      %6670 = vmatpush1.bf16.xpose.msra.mxu0 0
      %6671 = vmatprep.subr.bf16.mxu0 0
      %6672 = vmatpush1.bf16.xpose.msra.mxu0 %v6655
      %6673 = vmatprep.subr.bf16.mxu0 0
      %6674 = vmatpush2.bf16.xpose.msra.mxu0 0
      %6675 = vmatprep.subr.bf16.mxu0 0
      %6676 = vmatpush2.bf16.xpose.msra.mxu0 0
      %6677 = vmatprep.subr.bf16.mxu0 0
      %6678 = vmatpush2.bf16.xpose.msra.mxu0 0
      %6679 = vmatprep.subr.bf16.mxu0 0
      %6680 = vmatpush2.bf16.xpose.msra.mxu0 0
      %6681 = vmatprep.subr.bf16.mxu0 0
      %6682 = vmatpush2.bf16.xpose.msra.mxu0 0
      %6683 = vmatprep.subr.bf16.mxu0 0
      %6684 = vmatpush2.bf16.xpose.msra.mxu0 0
      %6685 = vmatprep.subr.bf16.mxu0 0
      %6686 = vmatpush2.bf16.xpose.msra.mxu0 0
      %6687 = vmatprep.subr.bf16.mxu0 0
      %6688 = vmatpush2.bf16.xpose.msra.mxu0 0
      %6689 = vmatprep.mubr.bf16.mxu0 0
      %6690 = vmatmul.mubr.bf16.gmra.mxu0 %v6652
      %v6691 = vpop.f32.mrf.mxu0
      %v6692 = vadd.f32 0.0, %v6691
      %v6693 = vpop.f32.mrf.mxu0
      %v6694 = vpop.f32.mrf.mxu0
      %v6695 = vadd.f32 0.0, %v6694
      %v6696 = vpop.f32.mrf.mxu0
      %6697 = vdwg.mxu0
      %v6699 = vsel %vm5804, %v5655, 0
      %v6702 = vsel %vm5804, %v5667, 0
      %6704 = vmatprep.subr.bf16.mxu0 0
      %6705 = vmatpush1.bf16.xpose.msra.mxu0 0
      %6706 = vmatprep.subr.bf16.mxu0 0
      %6707 = vmatpush1.bf16.xpose.msra.mxu0 0
      %6708 = vmatprep.subr.bf16.mxu0 0
      %6709 = vmatpush1.bf16.xpose.msra.mxu0 0
      %6710 = vmatprep.subr.bf16.mxu0 0
      %6711 = vmatpush1.bf16.xpose.msra.mxu0 0
      %6712 = vmatprep.subr.bf16.mxu0 0
      %6713 = vmatpush1.bf16.xpose.msra.mxu0 0
      %6714 = vmatprep.subr.bf16.mxu0 0
      %6715 = vmatpush1.bf16.xpose.msra.mxu0 0
      %6716 = vmatprep.subr.bf16.mxu0 0
      %6717 = vmatpush1.bf16.xpose.msra.mxu0 0
      %6718 = vmatprep.subr.bf16.mxu0 0
      %6719 = vmatpush1.bf16.xpose.msra.mxu0 %v6702
      %6720 = vmatprep.subr.bf16.mxu0 0
      %6721 = vmatpush2.bf16.xpose.msra.mxu0 0
      %6722 = vmatprep.subr.bf16.mxu0 0
      %6723 = vmatpush2.bf16.xpose.msra.mxu0 0
      %6724 = vmatprep.subr.bf16.mxu0 0
      %6725 = vmatpush2.bf16.xpose.msra.mxu0 0
      %6726 = vmatprep.subr.bf16.mxu0 0
      %6727 = vmatpush2.bf16.xpose.msra.mxu0 0
      %6728 = vmatprep.subr.bf16.mxu0 0
      %6729 = vmatpush2.bf16.xpose.msra.mxu0 0
      %6730 = vmatprep.subr.bf16.mxu0 0
      %6731 = vmatpush2.bf16.xpose.msra.mxu0 0
      %6732 = vmatprep.subr.bf16.mxu0 0
      %6733 = vmatpush2.bf16.xpose.msra.mxu0 0
      %6734 = vmatprep.subr.bf16.mxu0 0
      %6735 = vmatpush2.bf16.xpose.msra.mxu0 0
      %6736 = vmatprep.mubr.bf16.mxu0 0
      %6737 = vmatmul.mubr.bf16.gmra.mxu0 %v6699
      %v6738 = vpop.f32.mrf.mxu0
      %v6739 = vadd.f32 0.0, %v6738
      %v6740 = vpop.f32.mrf.mxu0
      %v6741 = vpop.f32.mrf.mxu0
      %v6742 = vadd.f32 0.0, %v6741
      %v6743 = vpop.f32.mrf.mxu0
      %6744 = vdwg.mxu0
      %v6746 = vsel %vm5804, %v5686, 0
      %v6749 = vsel %vm5804, %v5698, 0
      %6751 = vmatprep.subr.bf16.mxu0 0
      %6752 = vmatpush1.bf16.xpose.msra.mxu0 0
      %6753 = vmatprep.subr.bf16.mxu0 0
      %6754 = vmatpush1.bf16.xpose.msra.mxu0 0
      %6755 = vmatprep.subr.bf16.mxu0 0
      %6756 = vmatpush1.bf16.xpose.msra.mxu0 0
      %6757 = vmatprep.subr.bf16.mxu0 0
      %6758 = vmatpush1.bf16.xpose.msra.mxu0 0
      %6759 = vmatprep.subr.bf16.mxu0 0
      %6760 = vmatpush1.bf16.xpose.msra.mxu0 0
      %6761 = vmatprep.subr.bf16.mxu0 0
      %6762 = vmatpush1.bf16.xpose.msra.mxu0 0
      %6763 = vmatprep.subr.bf16.mxu0 0
      %6764 = vmatpush1.bf16.xpose.msra.mxu0 0
      %6765 = vmatprep.subr.bf16.mxu0 0
      %6766 = vmatpush1.bf16.xpose.msra.mxu0 %v6749
      %6767 = vmatprep.subr.bf16.mxu0 0
      %6768 = vmatpush2.bf16.xpose.msra.mxu0 0
      %6769 = vmatprep.subr.bf16.mxu0 0
      %6770 = vmatpush2.bf16.xpose.msra.mxu0 0
      %6771 = vmatprep.subr.bf16.mxu0 0
      %6772 = vmatpush2.bf16.xpose.msra.mxu0 0
      %6773 = vmatprep.subr.bf16.mxu0 0
      %6774 = vmatpush2.bf16.xpose.msra.mxu0 0
      %6775 = vmatprep.subr.bf16.mxu0 0
      %6776 = vmatpush2.bf16.xpose.msra.mxu0 0
      %6777 = vmatprep.subr.bf16.mxu0 0
      %6778 = vmatpush2.bf16.xpose.msra.mxu0 0
      %6779 = vmatprep.subr.bf16.mxu0 0
      %6780 = vmatpush2.bf16.xpose.msra.mxu0 0
      %6781 = vmatprep.subr.bf16.mxu0 0
      %6782 = vmatpush2.bf16.xpose.msra.mxu0 0
      %6783 = vmatprep.mubr.bf16.mxu0 0
      %6784 = vmatmul.mubr.bf16.gmra.mxu0 %v6746
      %v6785 = vpop.f32.mrf.mxu0
      %v6786 = vadd.f32 0.0, %v6785
      %v6787 = vpop.f32.mrf.mxu0
      %v6788 = vpop.f32.mrf.mxu0
      %v6789 = vadd.f32 0.0, %v6788
      %v6790 = vpop.f32.mrf.mxu0
      %6791 = vdwg.mxu0
      %v6793 = vsel %vm5804, %v5689, 0
      %v6796 = vsel %vm5804, %v5701, 0
      %6798 = vmatprep.subr.bf16.mxu0 0
      %6799 = vmatpush1.bf16.xpose.msra.mxu0 0
      %6800 = vmatprep.subr.bf16.mxu0 0
      %6801 = vmatpush1.bf16.xpose.msra.mxu0 0
      %6802 = vmatprep.subr.bf16.mxu0 0
      %6803 = vmatpush1.bf16.xpose.msra.mxu0 0
      %6804 = vmatprep.subr.bf16.mxu0 0
      %6805 = vmatpush1.bf16.xpose.msra.mxu0 0
      %6806 = vmatprep.subr.bf16.mxu0 0
      %6807 = vmatpush1.bf16.xpose.msra.mxu0 0
      %6808 = vmatprep.subr.bf16.mxu0 0
      %6809 = vmatpush1.bf16.xpose.msra.mxu0 0
      %6810 = vmatprep.subr.bf16.mxu0 0
      %6811 = vmatpush1.bf16.xpose.msra.mxu0 0
      %6812 = vmatprep.subr.bf16.mxu0 0
      %6813 = vmatpush1.bf16.xpose.msra.mxu0 %v6796
      %6814 = vmatprep.subr.bf16.mxu0 0
      %6815 = vmatpush2.bf16.xpose.msra.mxu0 0
      %6816 = vmatprep.subr.bf16.mxu0 0
      %6817 = vmatpush2.bf16.xpose.msra.mxu0 0
      %6818 = vmatprep.subr.bf16.mxu0 0
      %6819 = vmatpush2.bf16.xpose.msra.mxu0 0
      %6820 = vmatprep.subr.bf16.mxu0 0
      %6821 = vmatpush2.bf16.xpose.msra.mxu0 0
      %6822 = vmatprep.subr.bf16.mxu0 0
      %6823 = vmatpush2.bf16.xpose.msra.mxu0 0
      %6824 = vmatprep.subr.bf16.mxu0 0
      %6825 = vmatpush2.bf16.xpose.msra.mxu0 0
      %6826 = vmatprep.subr.bf16.mxu0 0
      %6827 = vmatpush2.bf16.xpose.msra.mxu0 0
      %6828 = vmatprep.subr.bf16.mxu0 0
      %6829 = vmatpush2.bf16.xpose.msra.mxu0 0
      %6830 = vmatprep.mubr.bf16.mxu0 0
      %6831 = vmatmul.mubr.bf16.gmra.mxu0 %v6793
      %v6832 = vpop.f32.mrf.mxu0
      %v6833 = vadd.f32 0.0, %v6832
      %v6834 = vpop.f32.mrf.mxu0
      %v6835 = vpop.f32.mrf.mxu0
      %v6836 = vadd.f32 0.0, %v6835
      %v6837 = vpop.f32.mrf.mxu0
      %6838 = vdwg.mxu0
      %v6840 = vsel %vm5804, %v5692, 0
      %v6843 = vsel %vm5804, %v5704, 0
      %6845 = vmatprep.subr.bf16.mxu0 0
      %6846 = vmatpush1.bf16.xpose.msra.mxu0 0
      %6847 = vmatprep.subr.bf16.mxu0 0
      %6848 = vmatpush1.bf16.xpose.msra.mxu0 0
      %6849 = vmatprep.subr.bf16.mxu0 0
      %6850 = vmatpush1.bf16.xpose.msra.mxu0 0
      %6851 = vmatprep.subr.bf16.mxu0 0
      %6852 = vmatpush1.bf16.xpose.msra.mxu0 0
      %6853 = vmatprep.subr.bf16.mxu0 0
      %6854 = vmatpush1.bf16.xpose.msra.mxu0 0
      %6855 = vmatprep.subr.bf16.mxu0 0
      %6856 = vmatpush1.bf16.xpose.msra.mxu0 0
      %6857 = vmatprep.subr.bf16.mxu0 0
      %6858 = vmatpush1.bf16.xpose.msra.mxu0 0
      %6859 = vmatprep.subr.bf16.mxu0 0
      %6860 = vmatpush1.bf16.xpose.msra.mxu0 %v6843
      %6861 = vmatprep.subr.bf16.mxu0 0
      %6862 = vmatpush2.bf16.xpose.msra.mxu0 0
      %6863 = vmatprep.subr.bf16.mxu0 0
      %6864 = vmatpush2.bf16.xpose.msra.mxu0 0
      %6865 = vmatprep.subr.bf16.mxu0 0
      %6866 = vmatpush2.bf16.xpose.msra.mxu0 0
      %6867 = vmatprep.subr.bf16.mxu0 0
      %6868 = vmatpush2.bf16.xpose.msra.mxu0 0
      %6869 = vmatprep.subr.bf16.mxu0 0
      %6870 = vmatpush2.bf16.xpose.msra.mxu0 0
      %6871 = vmatprep.subr.bf16.mxu0 0
      %6872 = vmatpush2.bf16.xpose.msra.mxu0 0
      %6873 = vmatprep.subr.bf16.mxu0 0
      %6874 = vmatpush2.bf16.xpose.msra.mxu0 0
      %6875 = vmatprep.subr.bf16.mxu0 0
      %6876 = vmatpush2.bf16.xpose.msra.mxu0 0
      %6877 = vmatprep.mubr.bf16.mxu0 0
      %6878 = vmatmul.mubr.bf16.gmra.mxu0 %v6840
      %v6879 = vpop.f32.mrf.mxu0
      %v6880 = vadd.f32 0.0, %v6879
      %v6881 = vpop.f32.mrf.mxu0
      %v6882 = vpop.f32.mrf.mxu0
      %v6883 = vadd.f32 0.0, %v6882
      %v6884 = vpop.f32.mrf.mxu0
      %6885 = vdwg.mxu0
      %v6887 = vsel %vm5804, %v5695, 0
      %v6890 = vsel %vm5804, %v5707, 0
      %6892 = vmatprep.subr.bf16.mxu0 0
      %6893 = vmatpush1.bf16.xpose.msra.mxu0 0
      %6894 = vmatprep.subr.bf16.mxu0 0
      %6895 = vmatpush1.bf16.xpose.msra.mxu0 0
      %6896 = vmatprep.subr.bf16.mxu0 0
      %6897 = vmatpush1.bf16.xpose.msra.mxu0 0
      %6898 = vmatprep.subr.bf16.mxu0 0
      %6899 = vmatpush1.bf16.xpose.msra.mxu0 0
      %6900 = vmatprep.subr.bf16.mxu0 0
      %6901 = vmatpush1.bf16.xpose.msra.mxu0 0
      %6902 = vmatprep.subr.bf16.mxu0 0
      %6903 = vmatpush1.bf16.xpose.msra.mxu0 0
      %6904 = vmatprep.subr.bf16.mxu0 0
      %6905 = vmatpush1.bf16.xpose.msra.mxu0 0
      %6906 = vmatprep.subr.bf16.mxu0 0
      %6907 = vmatpush1.bf16.xpose.msra.mxu0 %v6890
      %6908 = vmatprep.subr.bf16.mxu0 0
      %6909 = vmatpush2.bf16.xpose.msra.mxu0 0
      %6910 = vmatprep.subr.bf16.mxu0 0
      %6911 = vmatpush2.bf16.xpose.msra.mxu0 0
      %6912 = vmatprep.subr.bf16.mxu0 0
      %6913 = vmatpush2.bf16.xpose.msra.mxu0 0
      %6914 = vmatprep.subr.bf16.mxu0 0
      %6915 = vmatpush2.bf16.xpose.msra.mxu0 0
      %6916 = vmatprep.subr.bf16.mxu0 0
      %6917 = vmatpush2.bf16.xpose.msra.mxu0 0
      %6918 = vmatprep.subr.bf16.mxu0 0
      %6919 = vmatpush2.bf16.xpose.msra.mxu0 0
      %6920 = vmatprep.subr.bf16.mxu0 0
      %6921 = vmatpush2.bf16.xpose.msra.mxu0 0
      %6922 = vmatprep.subr.bf16.mxu0 0
      %6923 = vmatpush2.bf16.xpose.msra.mxu0 0
      %6924 = vmatprep.mubr.bf16.mxu0 0
      %6925 = vmatmul.mubr.bf16.gmra.mxu0 %v6887
      %v6926 = vpop.f32.mrf.mxu0
      %v6927 = vadd.f32 0.0, %v6926
      %v6928 = vpop.f32.mrf.mxu0
      %v6929 = vpop.f32.mrf.mxu0
      %v6930 = vadd.f32 0.0, %v6929
      %v6931 = vpop.f32.mrf.mxu0
      %6932 = vdwg.mxu0
      %v6934 = vsel %vm5804, %v5726, 0
      %v6937 = vsel %vm5804, %v5738, 0
      %6939 = vmatprep.subr.bf16.mxu0 0
      %6940 = vmatpush1.bf16.xpose.msra.mxu0 0
      %6941 = vmatprep.subr.bf16.mxu0 0
      %6942 = vmatpush1.bf16.xpose.msra.mxu0 0
      %6943 = vmatprep.subr.bf16.mxu0 0
      %6944 = vmatpush1.bf16.xpose.msra.mxu0 0
      %6945 = vmatprep.subr.bf16.mxu0 0
      %6946 = vmatpush1.bf16.xpose.msra.mxu0 0
      %6947 = vmatprep.subr.bf16.mxu0 0
      %6948 = vmatpush1.bf16.xpose.msra.mxu0 0
      %6949 = vmatprep.subr.bf16.mxu0 0
      %6950 = vmatpush1.bf16.xpose.msra.mxu0 0
      %6951 = vmatprep.subr.bf16.mxu0 0
      %6952 = vmatpush1.bf16.xpose.msra.mxu0 0
      %6953 = vmatprep.subr.bf16.mxu0 0
      %6954 = vmatpush1.bf16.xpose.msra.mxu0 %v6937
      %6955 = vmatprep.subr.bf16.mxu0 0
      %6956 = vmatpush2.bf16.xpose.msra.mxu0 0
      %6957 = vmatprep.subr.bf16.mxu0 0
      %6958 = vmatpush2.bf16.xpose.msra.mxu0 0
      %6959 = vmatprep.subr.bf16.mxu0 0
      %6960 = vmatpush2.bf16.xpose.msra.mxu0 0
      %6961 = vmatprep.subr.bf16.mxu0 0
      %6962 = vmatpush2.bf16.xpose.msra.mxu0 0
      %6963 = vmatprep.subr.bf16.mxu0 0
      %6964 = vmatpush2.bf16.xpose.msra.mxu0 0
      %6965 = vmatprep.subr.bf16.mxu0 0
      %6966 = vmatpush2.bf16.xpose.msra.mxu0 0
      %6967 = vmatprep.subr.bf16.mxu0 0
      %6968 = vmatpush2.bf16.xpose.msra.mxu0 0
      %6969 = vmatprep.subr.bf16.mxu0 0
      %6970 = vmatpush2.bf16.xpose.msra.mxu0 0
      %6971 = vmatprep.mubr.bf16.mxu0 0
      %6972 = vmatmul.mubr.bf16.gmra.mxu0 %v6934
      %v6973 = vpop.f32.mrf.mxu0
      %v6974 = vadd.f32 0.0, %v6973
      %v6975 = vpop.f32.mrf.mxu0
      %v6976 = vpop.f32.mrf.mxu0
      %v6977 = vadd.f32 0.0, %v6976
      %v6978 = vpop.f32.mrf.mxu0
      %6979 = vdwg.mxu0
      %v6981 = vsel %vm5804, %v5729, 0
      %v6984 = vsel %vm5804, %v5741, 0
      %6986 = vmatprep.subr.bf16.mxu0 0
      %6987 = vmatpush1.bf16.xpose.msra.mxu0 0
      %6988 = vmatprep.subr.bf16.mxu0 0
      %6989 = vmatpush1.bf16.xpose.msra.mxu0 0
      %6990 = vmatprep.subr.bf16.mxu0 0
      %6991 = vmatpush1.bf16.xpose.msra.mxu0 0
      %6992 = vmatprep.subr.bf16.mxu0 0
      %6993 = vmatpush1.bf16.xpose.msra.mxu0 0
      %6994 = vmatprep.subr.bf16.mxu0 0
      %6995 = vmatpush1.bf16.xpose.msra.mxu0 0
      %6996 = vmatprep.subr.bf16.mxu0 0
      %6997 = vmatpush1.bf16.xpose.msra.mxu0 0
      %6998 = vmatprep.subr.bf16.mxu0 0
      %6999 = vmatpush1.bf16.xpose.msra.mxu0 0
      %7000 = vmatprep.subr.bf16.mxu0 0
      %7001 = vmatpush1.bf16.xpose.msra.mxu0 %v6984
      %7002 = vmatprep.subr.bf16.mxu0 0
      %7003 = vmatpush2.bf16.xpose.msra.mxu0 0
      %7004 = vmatprep.subr.bf16.mxu0 0
      %7005 = vmatpush2.bf16.xpose.msra.mxu0 0
      %7006 = vmatprep.subr.bf16.mxu0 0
      %7007 = vmatpush2.bf16.xpose.msra.mxu0 0
      %7008 = vmatprep.subr.bf16.mxu0 0
      %7009 = vmatpush2.bf16.xpose.msra.mxu0 0
      %7010 = vmatprep.subr.bf16.mxu0 0
      %7011 = vmatpush2.bf16.xpose.msra.mxu0 0
      %7012 = vmatprep.subr.bf16.mxu0 0
      %7013 = vmatpush2.bf16.xpose.msra.mxu0 0
      %7014 = vmatprep.subr.bf16.mxu0 0
      %7015 = vmatpush2.bf16.xpose.msra.mxu0 0
      %7016 = vmatprep.subr.bf16.mxu0 0
      %7017 = vmatpush2.bf16.xpose.msra.mxu0 0
      %7018 = vmatprep.mubr.bf16.mxu0 0
      %7019 = vmatmul.mubr.bf16.gmra.mxu0 %v6981
      %v7020 = vpop.f32.mrf.mxu0
      %v7021 = vadd.f32 0.0, %v7020
      %v7022 = vpop.f32.mrf.mxu0
      %v7023 = vpop.f32.mrf.mxu0
      %v7024 = vadd.f32 0.0, %v7023
      %v7025 = vpop.f32.mrf.mxu0
      %7026 = vdwg.mxu0
      %v7028 = vsel %vm5804, %v5732, 0
      %v7031 = vsel %vm5804, %v5744, 0
      %7033 = vmatprep.subr.bf16.mxu0 0
      %7034 = vmatpush1.bf16.xpose.msra.mxu0 0
      %7035 = vmatprep.subr.bf16.mxu0 0
      %7036 = vmatpush1.bf16.xpose.msra.mxu0 0
      %7037 = vmatprep.subr.bf16.mxu0 0
      %7038 = vmatpush1.bf16.xpose.msra.mxu0 0
      %7039 = vmatprep.subr.bf16.mxu0 0
      %7040 = vmatpush1.bf16.xpose.msra.mxu0 0
      %7041 = vmatprep.subr.bf16.mxu0 0
      %7042 = vmatpush1.bf16.xpose.msra.mxu0 0
      %7043 = vmatprep.subr.bf16.mxu0 0
      %7044 = vmatpush1.bf16.xpose.msra.mxu0 0
      %7045 = vmatprep.subr.bf16.mxu0 0
      %7046 = vmatpush1.bf16.xpose.msra.mxu0 0
      %7047 = vmatprep.subr.bf16.mxu0 0
      %7048 = vmatpush1.bf16.xpose.msra.mxu0 %v7031
      %7049 = vmatprep.subr.bf16.mxu0 0
      %7050 = vmatpush2.bf16.xpose.msra.mxu0 0
      %7051 = vmatprep.subr.bf16.mxu0 0
      %7052 = vmatpush2.bf16.xpose.msra.mxu0 0
      %7053 = vmatprep.subr.bf16.mxu0 0
      %7054 = vmatpush2.bf16.xpose.msra.mxu0 0
      %7055 = vmatprep.subr.bf16.mxu0 0
      %7056 = vmatpush2.bf16.xpose.msra.mxu0 0
      %7057 = vmatprep.subr.bf16.mxu0 0
      %7058 = vmatpush2.bf16.xpose.msra.mxu0 0
      %7059 = vmatprep.subr.bf16.mxu0 0
      %7060 = vmatpush2.bf16.xpose.msra.mxu0 0
      %7061 = vmatprep.subr.bf16.mxu0 0
      %7062 = vmatpush2.bf16.xpose.msra.mxu0 0
      %7063 = vmatprep.subr.bf16.mxu0 0
      %7064 = vmatpush2.bf16.xpose.msra.mxu0 0
      %7065 = vmatprep.mubr.bf16.mxu0 0
      %7066 = vmatmul.mubr.bf16.gmra.mxu0 %v7028
      %v7067 = vpop.f32.mrf.mxu0
      %v7068 = vadd.f32 0.0, %v7067
      %v7069 = vpop.f32.mrf.mxu0
      %v7070 = vpop.f32.mrf.mxu0
      %v7071 = vadd.f32 0.0, %v7070
      %v7072 = vpop.f32.mrf.mxu0
      %7073 = vdwg.mxu0
      %v7075 = vsel %vm5804, %v5735, 0
      %v7078 = vsel %vm5804, %v5747, 0
      %7080 = vmatprep.subr.bf16.mxu0 0
      %7081 = vmatpush1.bf16.xpose.msra.mxu0 0
      %7082 = vmatprep.subr.bf16.mxu0 0
      %7083 = vmatpush1.bf16.xpose.msra.mxu0 0
      %7084 = vmatprep.subr.bf16.mxu0 0
      %7085 = vmatpush1.bf16.xpose.msra.mxu0 0
      %7086 = vmatprep.subr.bf16.mxu0 0
      %7087 = vmatpush1.bf16.xpose.msra.mxu0 0
      %7088 = vmatprep.subr.bf16.mxu0 0
      %7089 = vmatpush1.bf16.xpose.msra.mxu0 0
      %7090 = vmatprep.subr.bf16.mxu0 0
      %7091 = vmatpush1.bf16.xpose.msra.mxu0 0
      %7092 = vmatprep.subr.bf16.mxu0 0
      %7093 = vmatpush1.bf16.xpose.msra.mxu0 0
      %7094 = vmatprep.subr.bf16.mxu0 0
      %7095 = vmatpush1.bf16.xpose.msra.mxu0 %v7078
      %7096 = vmatprep.subr.bf16.mxu0 0
      %7097 = vmatpush2.bf16.xpose.msra.mxu0 0
      %7098 = vmatprep.subr.bf16.mxu0 0
      %7099 = vmatpush2.bf16.xpose.msra.mxu0 0
      %7100 = vmatprep.subr.bf16.mxu0 0
      %7101 = vmatpush2.bf16.xpose.msra.mxu0 0
      %7102 = vmatprep.subr.bf16.mxu0 0
      %7103 = vmatpush2.bf16.xpose.msra.mxu0 0
      %7104 = vmatprep.subr.bf16.mxu0 0
      %7105 = vmatpush2.bf16.xpose.msra.mxu0 0
      %7106 = vmatprep.subr.bf16.mxu0 0
      %7107 = vmatpush2.bf16.xpose.msra.mxu0 0
      %7108 = vmatprep.subr.bf16.mxu0 0
      %7109 = vmatpush2.bf16.xpose.msra.mxu0 0
      %7110 = vmatprep.subr.bf16.mxu0 0
      %7111 = vmatpush2.bf16.xpose.msra.mxu0 0
      %7112 = vmatprep.mubr.bf16.mxu0 0
      %7113 = vmatmul.mubr.bf16.gmra.mxu0 %v7075
      %v7114 = vpop.f32.mrf.mxu0
      %v7115 = vadd.f32 0.0, %v7114
      %v7116 = vpop.f32.mrf.mxu0
      %v7117 = vpop.f32.mrf.mxu0
      %v7118 = vadd.f32 0.0, %v7117
      %v7119 = vpop.f32.mrf.mxu0
      %7120 = vdwg.mxu0
      %v7122 = vsel %vm5804, %v5766, 0
      %v7125 = vsel %vm5804, %v5778, 0
      %7127 = vmatprep.subr.bf16.mxu0 0
      %7128 = vmatpush1.bf16.xpose.msra.mxu0 0
      %7129 = vmatprep.subr.bf16.mxu0 0
      %7130 = vmatpush1.bf16.xpose.msra.mxu0 0
      %7131 = vmatprep.subr.bf16.mxu0 0
      %7132 = vmatpush1.bf16.xpose.msra.mxu0 0
      %7133 = vmatprep.subr.bf16.mxu0 0
      %7134 = vmatpush1.bf16.xpose.msra.mxu0 0
      %7135 = vmatprep.subr.bf16.mxu0 0
      %7136 = vmatpush1.bf16.xpose.msra.mxu0 0
      %7137 = vmatprep.subr.bf16.mxu0 0
      %7138 = vmatpush1.bf16.xpose.msra.mxu0 0
      %7139 = vmatprep.subr.bf16.mxu0 0
      %7140 = vmatpush1.bf16.xpose.msra.mxu0 0
      %7141 = vmatprep.subr.bf16.mxu0 0
      %7142 = vmatpush1.bf16.xpose.msra.mxu0 %v7125
      %7143 = vmatprep.subr.bf16.mxu0 0
      %7144 = vmatpush2.bf16.xpose.msra.mxu0 0
      %7145 = vmatprep.subr.bf16.mxu0 0
      %7146 = vmatpush2.bf16.xpose.msra.mxu0 0
      %7147 = vmatprep.subr.bf16.mxu0 0
      %7148 = vmatpush2.bf16.xpose.msra.mxu0 0
      %7149 = vmatprep.subr.bf16.mxu0 0
      %7150 = vmatpush2.bf16.xpose.msra.mxu0 0
      %7151 = vmatprep.subr.bf16.mxu0 0
      %7152 = vmatpush2.bf16.xpose.msra.mxu0 0
      %7153 = vmatprep.subr.bf16.mxu0 0
      %7154 = vmatpush2.bf16.xpose.msra.mxu0 0
      %7155 = vmatprep.subr.bf16.mxu0 0
      %7156 = vmatpush2.bf16.xpose.msra.mxu0 0
      %7157 = vmatprep.subr.bf16.mxu0 0
      %7158 = vmatpush2.bf16.xpose.msra.mxu0 0
      %7159 = vmatprep.mubr.bf16.mxu0 0
      %7160 = vmatmul.mubr.bf16.gmra.mxu0 %v7122
      %v7161 = vpop.f32.mrf.mxu0
      %v7162 = vadd.f32 0.0, %v7161
      %v7163 = vpop.f32.mrf.mxu0
      %v7164 = vpop.f32.mrf.mxu0
      %v7165 = vadd.f32 0.0, %v7164
      %v7166 = vpop.f32.mrf.mxu0
      %7167 = vdwg.mxu0
      %v7169 = vsel %vm5804, %v5769, 0
      %v7172 = vsel %vm5804, %v5781, 0
      %7174 = vmatprep.subr.bf16.mxu0 0
      %7175 = vmatpush1.bf16.xpose.msra.mxu0 0
      %7176 = vmatprep.subr.bf16.mxu0 0
      %7177 = vmatpush1.bf16.xpose.msra.mxu0 0
      %7178 = vmatprep.subr.bf16.mxu0 0
      %7179 = vmatpush1.bf16.xpose.msra.mxu0 0
      %7180 = vmatprep.subr.bf16.mxu0 0
      %7181 = vmatpush1.bf16.xpose.msra.mxu0 0
      %7182 = vmatprep.subr.bf16.mxu0 0
      %7183 = vmatpush1.bf16.xpose.msra.mxu0 0
      %7184 = vmatprep.subr.bf16.mxu0 0
      %7185 = vmatpush1.bf16.xpose.msra.mxu0 0
      %7186 = vmatprep.subr.bf16.mxu0 0
      %7187 = vmatpush1.bf16.xpose.msra.mxu0 0
      %7188 = vmatprep.subr.bf16.mxu0 0
      %7189 = vmatpush1.bf16.xpose.msra.mxu0 %v7172
      %7190 = vmatprep.subr.bf16.mxu0 0
      %7191 = vmatpush2.bf16.xpose.msra.mxu0 0
      %7192 = vmatprep.subr.bf16.mxu0 0
      %7193 = vmatpush2.bf16.xpose.msra.mxu0 0
      %7194 = vmatprep.subr.bf16.mxu0 0
      %7195 = vmatpush2.bf16.xpose.msra.mxu0 0
      %7196 = vmatprep.subr.bf16.mxu0 0
      %7197 = vmatpush2.bf16.xpose.msra.mxu0 0
      %7198 = vmatprep.subr.bf16.mxu0 0
      %7199 = vmatpush2.bf16.xpose.msra.mxu0 0
      %7200 = vmatprep.subr.bf16.mxu0 0
      %7201 = vmatpush2.bf16.xpose.msra.mxu0 0
      %7202 = vmatprep.subr.bf16.mxu0 0
      %7203 = vmatpush2.bf16.xpose.msra.mxu0 0
      %7204 = vmatprep.subr.bf16.mxu0 0
      %7205 = vmatpush2.bf16.xpose.msra.mxu0 0
      %7206 = vmatprep.mubr.bf16.mxu0 0
      %7207 = vmatmul.mubr.bf16.gmra.mxu0 %v7169
      %v7208 = vpop.f32.mrf.mxu0
      %v7209 = vadd.f32 0.0, %v7208
      %v7210 = vpop.f32.mrf.mxu0
      %v7211 = vpop.f32.mrf.mxu0
      %v7212 = vadd.f32 0.0, %v7211
      %v7213 = vpop.f32.mrf.mxu0
      %7214 = vdwg.mxu0
      %v7216 = vsel %vm5804, %v5772, 0
      %v7219 = vsel %vm5804, %v5784, 0
      %7221 = vmatprep.subr.bf16.mxu0 0
      %7222 = vmatpush1.bf16.xpose.msra.mxu0 0
      %7223 = vmatprep.subr.bf16.mxu0 0
      %7224 = vmatpush1.bf16.xpose.msra.mxu0 0
      %7225 = vmatprep.subr.bf16.mxu0 0
      %7226 = vmatpush1.bf16.xpose.msra.mxu0 0
      %7227 = vmatprep.subr.bf16.mxu0 0
      %7228 = vmatpush1.bf16.xpose.msra.mxu0 0
      %7229 = vmatprep.subr.bf16.mxu0 0
      %7230 = vmatpush1.bf16.xpose.msra.mxu0 0
      %7231 = vmatprep.subr.bf16.mxu0 0
      %7232 = vmatpush1.bf16.xpose.msra.mxu0 0
      %7233 = vmatprep.subr.bf16.mxu0 0
      %7234 = vmatpush1.bf16.xpose.msra.mxu0 0
      %7235 = vmatprep.subr.bf16.mxu0 0
      %7236 = vmatpush1.bf16.xpose.msra.mxu0 %v7219
      %7237 = vmatprep.subr.bf16.mxu0 0
      %7238 = vmatpush2.bf16.xpose.msra.mxu0 0
      %7239 = vmatprep.subr.bf16.mxu0 0
      %7240 = vmatpush2.bf16.xpose.msra.mxu0 0
      %7241 = vmatprep.subr.bf16.mxu0 0
      %7242 = vmatpush2.bf16.xpose.msra.mxu0 0
      %7243 = vmatprep.subr.bf16.mxu0 0
      %7244 = vmatpush2.bf16.xpose.msra.mxu0 0
      %7245 = vmatprep.subr.bf16.mxu0 0
      %7246 = vmatpush2.bf16.xpose.msra.mxu0 0
      %7247 = vmatprep.subr.bf16.mxu0 0
      %7248 = vmatpush2.bf16.xpose.msra.mxu0 0
      %7249 = vmatprep.subr.bf16.mxu0 0
      %7250 = vmatpush2.bf16.xpose.msra.mxu0 0
      %7251 = vmatprep.subr.bf16.mxu0 0
      %7252 = vmatpush2.bf16.xpose.msra.mxu0 0
      %7253 = vmatprep.mubr.bf16.mxu0 0
      %7254 = vmatmul.mubr.bf16.gmra.mxu0 %v7216
      %v7255 = vpop.f32.mrf.mxu0
      %v7256 = vadd.f32 0.0, %v7255
      %v7257 = vpop.f32.mrf.mxu0
      %v7258 = vpop.f32.mrf.mxu0
      %v7259 = vadd.f32 0.0, %v7258
      %v7260 = vpop.f32.mrf.mxu0
      %7261 = vdwg.mxu0
      %v7263 = vsel %vm5804, %v5775, 0
      %v7266 = vsel %vm5804, %v5787, 0
      %7268 = vmatprep.subr.bf16.mxu0 0
      %7269 = vmatpush1.bf16.xpose.msra.mxu0 0
      %7270 = vmatprep.subr.bf16.mxu0 0
      %7271 = vmatpush1.bf16.xpose.msra.mxu0 0
      %7272 = vmatprep.subr.bf16.mxu0 0
      %7273 = vmatpush1.bf16.xpose.msra.mxu0 0
      %7274 = vmatprep.subr.bf16.mxu0 0
      %7275 = vmatpush1.bf16.xpose.msra.mxu0 0
      %7276 = vmatprep.subr.bf16.mxu0 0
      %7277 = vmatpush1.bf16.xpose.msra.mxu0 0
      %7278 = vmatprep.subr.bf16.mxu0 0
      %7279 = vmatpush1.bf16.xpose.msra.mxu0 0
      %7280 = vmatprep.subr.bf16.mxu0 0
      %7281 = vmatpush1.bf16.xpose.msra.mxu0 0
      %7282 = vmatprep.subr.bf16.mxu0 0
      %7283 = vmatpush1.bf16.xpose.msra.mxu0 %v7266
      %7284 = vmatprep.subr.bf16.mxu0 0
      %7285 = vmatpush2.bf16.xpose.msra.mxu0 0
      %7286 = vmatprep.subr.bf16.mxu0 0
      %7287 = vmatpush2.bf16.xpose.msra.mxu0 0
      %7288 = vmatprep.subr.bf16.mxu0 0
      %7289 = vmatpush2.bf16.xpose.msra.mxu0 0
      %7290 = vmatprep.subr.bf16.mxu0 0
      %7291 = vmatpush2.bf16.xpose.msra.mxu0 0
      %7292 = vmatprep.subr.bf16.mxu0 0
      %7293 = vmatpush2.bf16.xpose.msra.mxu0 0
      %7294 = vmatprep.subr.bf16.mxu0 0
      %7295 = vmatpush2.bf16.xpose.msra.mxu0 0
      %7296 = vmatprep.subr.bf16.mxu0 0
      %7297 = vmatpush2.bf16.xpose.msra.mxu0 0
      %7298 = vmatprep.subr.bf16.mxu0 0
      %7299 = vmatpush2.bf16.xpose.msra.mxu0 0
      %7300 = vmatprep.mubr.bf16.mxu0 0
      %7301 = vmatmul.mubr.bf16.gmra.mxu0 %v7263
      %v7302 = vpop.f32.mrf.mxu0
      %v7303 = vadd.f32 0.0, %v7302
      %v7304 = vpop.f32.mrf.mxu0
      %v7305 = vpop.f32.mrf.mxu0
      %v7306 = vadd.f32 0.0, %v7305
      %v7307 = vpop.f32.mrf.mxu0
      %7308 = vdwg.mxu0
      %v7309 = vld [vmem:[%s2] sm:$0xf]
      %v7310 = vld [vmem:[%s2 + $0x4] sm:$0xf]
      %v7311 = vld [vmem:[%s2 + $0x8] sm:$0xf]
      %v7312 = vld [vmem:[%s2 + $0xc] sm:$0xf]
      %v7313 = vld [vmem:[%s2 + $0x10] sm:$0xf]
      %v7314 = vld [vmem:[%s2 + $0x14] sm:$0xf]
      %v7315 = vld [vmem:[%s2 + $0x18] sm:$0xf]
      %v7316 = vld [vmem:[%s2 + $0x1c] sm:$0xf]
      %v7317 = vunpack.c.l.bf16 %v7309
      %v7318 = vunpack.c.l.bf16 %v7310
      %v7319 = vunpack.c.l.bf16 %v7311
      %v7320 = vunpack.c.l.bf16 %v7312
      %v7321 = vunpack.c.l.bf16 %v7313
      %v7322 = vunpack.c.l.bf16 %v7314
      %v7323 = vunpack.c.l.bf16 %v7315
      %v7324 = vunpack.c.l.bf16 %v7316
      %v7325 = vadd.f32 %v5846, %v7317
      %v7326 = vadd.f32 %v5849, %v7318
      %v7327 = vadd.f32 %v5893, %v7319
      %v7328 = vadd.f32 %v5896, %v7320
      %v7329 = vadd.f32 %v5940, %v7321
      %v7330 = vadd.f32 %v5943, %v7322
      %v7331 = vadd.f32 %v5987, %v7323
      %v7332 = vadd.f32 %v5990, %v7324
      %v7333 = vadd.f32 %v6034, %v7317
      %v7334 = vadd.f32 %v6037, %v7318
      %v7335 = vadd.f32 %v6081, %v7319
      %v7336 = vadd.f32 %v6084, %v7320
      %v7337 = vadd.f32 %v6128, %v7321
      %v7338 = vadd.f32 %v6131, %v7322
      %v7339 = vadd.f32 %v6175, %v7323
      %v7340 = vadd.f32 %v6178, %v7324
      %v7341 = vadd.f32 %v6222, %v7317
      %v7342 = vadd.f32 %v6225, %v7318
      %v7343 = vadd.f32 %v6269, %v7319
      %v7344 = vadd.f32 %v6272, %v7320
      %v7345 = vadd.f32 %v6316, %v7321
      %v7346 = vadd.f32 %v6319, %v7322
      %v7347 = vadd.f32 %v6363, %v7323
      %v7348 = vadd.f32 %v6366, %v7324
      %v7349 = vadd.f32 %v6410, %v7317
      %v7350 = vadd.f32 %v6413, %v7318
      %v7351 = vadd.f32 %v6457, %v7319
      %v7352 = vadd.f32 %v6460, %v7320
      %v7353 = vadd.f32 %v6504, %v7321
      %v7354 = vadd.f32 %v6507, %v7322
      %v7355 = vadd.f32 %v6551, %v7323
      %v7356 = vadd.f32 %v6554, %v7324
      %v7357 = vadd.f32 %v6598, %v7317
      %v7358 = vadd.f32 %v6601, %v7318
      %v7359 = vadd.f32 %v6645, %v7319
      %v7360 = vadd.f32 %v6648, %v7320
      %v7361 = vadd.f32 %v6692, %v7321
      %v7362 = vadd.f32 %v6695, %v7322
      %v7363 = vadd.f32 %v6739, %v7323
      %v7364 = vadd.f32 %v6742, %v7324
      %v7365 = vadd.f32 %v6786, %v7317
      %v7366 = vadd.f32 %v6789, %v7318
      %v7367 = vadd.f32 %v6833, %v7319
      %v7368 = vadd.f32 %v6836, %v7320
      %v7369 = vadd.f32 %v6880, %v7321
      %v7370 = vadd.f32 %v6883, %v7322
      %v7371 = vadd.f32 %v6927, %v7323
      %v7372 = vadd.f32 %v6930, %v7324
      %v7373 = vadd.f32 %v6974, %v7317
      %v7374 = vadd.f32 %v6977, %v7318
      %v7375 = vadd.f32 %v7021, %v7319
      %v7376 = vadd.f32 %v7024, %v7320
      %v7377 = vadd.f32 %v7068, %v7321
      %v7378 = vadd.f32 %v7071, %v7322
      %v7379 = vadd.f32 %v7115, %v7323
      %v7380 = vadd.f32 %v7118, %v7324
      %v7381 = vadd.f32 %v7162, %v7317
      %v7382 = vadd.f32 %v7165, %v7318
      %v7383 = vadd.f32 %v7209, %v7319
      %v7384 = vadd.f32 %v7212, %v7320
      %v7385 = vadd.f32 %v7256, %v7321
      %v7386 = vadd.f32 %v7259, %v7322
      %v7387 = vadd.f32 %v7303, %v7323
      %v7388 = vadd.f32 %v7306, %v7324
      %v7389 = vld [vmem:[%s468] sm:$0x1]
      %v7390 = vld [vmem:[%s468 + $0x1] sm:$0x1]
      %v7391 = vld [vmem:[%s468 + $0x2] sm:$0x1]
      %v7392 = vld [vmem:[%s468 + $0x3] sm:$0x1]
      %v7393 = vld [vmem:[%s468 + $0x4] sm:$0x1]
      %v7394 = vld [vmem:[%s468 + $0x5] sm:$0x1]
      %v7395 = vld [vmem:[%s468 + $0x6] sm:$0x1]
      %v7396 = vld [vmem:[%s468 + $0x7] sm:$0x1]
      %v7405 = vlaneseq
      %v7406 = vshrl.u32 %v7405, 7
      %v7407 = vsub.s32 0, %v7406
      %v7408 = vrot.slane %v7389, %v7407
      %v7409 = vlaneseq
      %v7410 = vshrl.u32 %v7409, 7
      %v7411 = vsub.s32 0, %v7410
      %v7412 = vrot.slane %v7390, %v7411
      %v7413 = vlaneseq
      %v7414 = vshrl.u32 %v7413, 7
      %v7415 = vsub.s32 0, %v7414
      %v7416 = vrot.slane %v7391, %v7415
      %v7417 = vlaneseq
      %v7418 = vshrl.u32 %v7417, 7
      %v7419 = vsub.s32 0, %v7418
      %v7420 = vrot.slane %v7392, %v7419
      %v7421 = vlaneseq
      %v7422 = vshrl.u32 %v7421, 7
      %v7423 = vsub.s32 0, %v7422
      %v7424 = vrot.slane %v7393, %v7423
      %v7425 = vlaneseq
      %v7426 = vshrl.u32 %v7425, 7
      %v7427 = vsub.s32 0, %v7426
      %v7428 = vrot.slane %v7394, %v7427
      %v7429 = vlaneseq
      %v7430 = vshrl.u32 %v7429, 7
      %v7431 = vsub.s32 0, %v7430
      %v7432 = vrot.slane %v7395, %v7431
      %v7433 = vlaneseq
      %v7434 = vshrl.u32 %v7433, 7
      %v7435 = vsub.s32 0, %v7434
      %v7436 = vrot.slane %v7396, %v7435
      %v7445 = vadd.f32 %v7325, %v7408
      %v7446 = vadd.f32 %v7326, %v7408
      %v7447 = vadd.f32 %v7327, %v7408
      %v7448 = vadd.f32 %v7328, %v7408
      %v7449 = vadd.f32 %v7329, %v7408
      %v7450 = vadd.f32 %v7330, %v7408
      %v7451 = vadd.f32 %v7331, %v7408
      %v7452 = vadd.f32 %v7332, %v7408
      %v7453 = vadd.f32 %v7333, %v7412
      %v7454 = vadd.f32 %v7334, %v7412
      %v7455 = vadd.f32 %v7335, %v7412
      %v7456 = vadd.f32 %v7336, %v7412
      %v7457 = vadd.f32 %v7337, %v7412
      %v7458 = vadd.f32 %v7338, %v7412
      %v7459 = vadd.f32 %v7339, %v7412
      %v7460 = vadd.f32 %v7340, %v7412
      %v7461 = vadd.f32 %v7341, %v7416
      %v7462 = vadd.f32 %v7342, %v7416
      %v7463 = vadd.f32 %v7343, %v7416
      %v7464 = vadd.f32 %v7344, %v7416
      %v7465 = vadd.f32 %v7345, %v7416
      %v7466 = vadd.f32 %v7346, %v7416
      %v7467 = vadd.f32 %v7347, %v7416
      %v7468 = vadd.f32 %v7348, %v7416
      %v7469 = vadd.f32 %v7349, %v7420
      %v7470 = vadd.f32 %v7350, %v7420
      %v7471 = vadd.f32 %v7351, %v7420
      %v7472 = vadd.f32 %v7352, %v7420
      %v7473 = vadd.f32 %v7353, %v7420
      %v7474 = vadd.f32 %v7354, %v7420
      %v7475 = vadd.f32 %v7355, %v7420
      %v7476 = vadd.f32 %v7356, %v7420
      %v7477 = vadd.f32 %v7357, %v7424
      %v7478 = vadd.f32 %v7358, %v7424
      %v7479 = vadd.f32 %v7359, %v7424
      %v7480 = vadd.f32 %v7360, %v7424
      %v7481 = vadd.f32 %v7361, %v7424
      %v7482 = vadd.f32 %v7362, %v7424
      %v7483 = vadd.f32 %v7363, %v7424
      %v7484 = vadd.f32 %v7364, %v7424
      %v7485 = vadd.f32 %v7365, %v7428
      %v7486 = vadd.f32 %v7366, %v7428
      %v7487 = vadd.f32 %v7367, %v7428
      %v7488 = vadd.f32 %v7368, %v7428
      %v7489 = vadd.f32 %v7369, %v7428
      %v7490 = vadd.f32 %v7370, %v7428
      %v7491 = vadd.f32 %v7371, %v7428
      %v7492 = vadd.f32 %v7372, %v7428
      %v7493 = vadd.f32 %v7373, %v7432
      %v7494 = vadd.f32 %v7374, %v7432
      %v7495 = vadd.f32 %v7375, %v7432
      %v7496 = vadd.f32 %v7376, %v7432
      %v7497 = vadd.f32 %v7377, %v7432
      %v7498 = vadd.f32 %v7378, %v7432
      %v7499 = vadd.f32 %v7379, %v7432
      %v7500 = vadd.f32 %v7380, %v7432
      %v7501 = vadd.f32 %v7381, %v7436
      %v7502 = vadd.f32 %v7382, %v7436
      %v7503 = vadd.f32 %v7383, %v7436
      %v7504 = vadd.f32 %v7384, %v7436
      %v7505 = vadd.f32 %v7385, %v7436
      %v7506 = vadd.f32 %v7386, %v7436
      %v7507 = vadd.f32 %v7387, %v7436
      %v7508 = vadd.f32 %v7388, %v7436
      %vm7509 = vcmask 130048
      %v7510 = vsel %vm7509, %v7445, -inf
      %7511 = vmax.xlane.f32.xlu0 %v7510
      %v7512 = vpop.xlane.xlu0 %7511
      %v7513 = vsel %vm7509, %v7446, -inf
      %7514 = vmax.xlane.f32.xlu0 %v7513
      %v7515 = vpop.xlane.xlu0 %7514
      %v7516 = vsel %vm7509, %v7447, -inf
      %7517 = vmax.xlane.f32.xlu0 %v7516
      %v7518 = vpop.xlane.xlu0 %7517
      %v7519 = vsel %vm7509, %v7448, -inf
      %7520 = vmax.xlane.f32.xlu0 %v7519
      %v7521 = vpop.xlane.xlu0 %7520
      %v7522 = vsel %vm7509, %v7449, -inf
      %7523 = vmax.xlane.f32.xlu0 %v7522
      %v7524 = vpop.xlane.xlu0 %7523
      %v7525 = vsel %vm7509, %v7450, -inf
      %7526 = vmax.xlane.f32.xlu0 %v7525
      %v7527 = vpop.xlane.xlu0 %7526
      %v7528 = vsel %vm7509, %v7451, -inf
      %7529 = vmax.xlane.f32.xlu0 %v7528
      %v7530 = vpop.xlane.xlu0 %7529
      %v7531 = vsel %vm7509, %v7452, -inf
      %7532 = vmax.xlane.f32.xlu0 %v7531
      %v7533 = vpop.xlane.xlu0 %7532
      %v7534 = vsel %vm7509, %v7453, -inf
      %7535 = vmax.xlane.f32.xlu0 %v7534
      %v7536 = vpop.xlane.xlu0 %7535
      %v7537 = vsel %vm7509, %v7454, -inf
      %7538 = vmax.xlane.f32.xlu0 %v7537
      %v7539 = vpop.xlane.xlu0 %7538
      %v7540 = vsel %vm7509, %v7455, -inf
      %7541 = vmax.xlane.f32.xlu0 %v7540
      %v7542 = vpop.xlane.xlu0 %7541
      %v7543 = vsel %vm7509, %v7456, -inf
      %7544 = vmax.xlane.f32.xlu0 %v7543
      %v7545 = vpop.xlane.xlu0 %7544
      %v7546 = vsel %vm7509, %v7457, -inf
      %7547 = vmax.xlane.f32.xlu0 %v7546
      %v7548 = vpop.xlane.xlu0 %7547
      %v7549 = vsel %vm7509, %v7458, -inf
      %7550 = vmax.xlane.f32.xlu0 %v7549
      %v7551 = vpop.xlane.xlu0 %7550
      %v7552 = vsel %vm7509, %v7459, -inf
      %7553 = vmax.xlane.f32.xlu0 %v7552
      %v7554 = vpop.xlane.xlu0 %7553
      %v7555 = vsel %vm7509, %v7460, -inf
      %7556 = vmax.xlane.f32.xlu0 %v7555
      %v7557 = vpop.xlane.xlu0 %7556
      %v7558 = vsel %vm7509, %v7461, -inf
      %7559 = vmax.xlane.f32.xlu0 %v7558
      %v7560 = vpop.xlane.xlu0 %7559
      %v7561 = vsel %vm7509, %v7462, -inf
      %7562 = vmax.xlane.f32.xlu0 %v7561
      %v7563 = vpop.xlane.xlu0 %7562
      %v7564 = vsel %vm7509, %v7463, -inf
      %7565 = vmax.xlane.f32.xlu0 %v7564
      %v7566 = vpop.xlane.xlu0 %7565
      %v7567 = vsel %vm7509, %v7464, -inf
      %7568 = vmax.xlane.f32.xlu0 %v7567
      %v7569 = vpop.xlane.xlu0 %7568
      %v7570 = vsel %vm7509, %v7465, -inf
      %7571 = vmax.xlane.f32.xlu0 %v7570
      %v7572 = vpop.xlane.xlu0 %7571
      %v7573 = vsel %vm7509, %v7466, -inf
      %7574 = vmax.xlane.f32.xlu0 %v7573
      %v7575 = vpop.xlane.xlu0 %7574
      %v7576 = vsel %vm7509, %v7467, -inf
      %7577 = vmax.xlane.f32.xlu0 %v7576
      %v7578 = vpop.xlane.xlu0 %7577
      %v7579 = vsel %vm7509, %v7468, -inf
      %7580 = vmax.xlane.f32.xlu0 %v7579
      %v7581 = vpop.xlane.xlu0 %7580
      %v7582 = vsel %vm7509, %v7469, -inf
      %7583 = vmax.xlane.f32.xlu0 %v7582
      %v7584 = vpop.xlane.xlu0 %7583
      %v7585 = vsel %vm7509, %v7470, -inf
      %7586 = vmax.xlane.f32.xlu0 %v7585
      %v7587 = vpop.xlane.xlu0 %7586
      %v7588 = vsel %vm7509, %v7471, -inf
      %7589 = vmax.xlane.f32.xlu0 %v7588
      %v7590 = vpop.xlane.xlu0 %7589
      %v7591 = vsel %vm7509, %v7472, -inf
      %7592 = vmax.xlane.f32.xlu0 %v7591
      %v7593 = vpop.xlane.xlu0 %7592
      %v7594 = vsel %vm7509, %v7473, -inf
      %7595 = vmax.xlane.f32.xlu0 %v7594
      %v7596 = vpop.xlane.xlu0 %7595
      %v7597 = vsel %vm7509, %v7474, -inf
      %7598 = vmax.xlane.f32.xlu0 %v7597
      %v7599 = vpop.xlane.xlu0 %7598
      %v7600 = vsel %vm7509, %v7475, -inf
      %7601 = vmax.xlane.f32.xlu0 %v7600
      %v7602 = vpop.xlane.xlu0 %7601
      %v7603 = vsel %vm7509, %v7476, -inf
      %7604 = vmax.xlane.f32.xlu0 %v7603
      %v7605 = vpop.xlane.xlu0 %7604
      %v7606 = vsel %vm7509, %v7477, -inf
      %7607 = vmax.xlane.f32.xlu0 %v7606
      %v7608 = vpop.xlane.xlu0 %7607
      %v7609 = vsel %vm7509, %v7478, -inf
      %7610 = vmax.xlane.f32.xlu0 %v7609
      %v7611 = vpop.xlane.xlu0 %7610
      %v7612 = vsel %vm7509, %v7479, -inf
      %7613 = vmax.xlane.f32.xlu0 %v7612
      %v7614 = vpop.xlane.xlu0 %7613
      %v7615 = vsel %vm7509, %v7480, -inf
      %7616 = vmax.xlane.f32.xlu0 %v7615
      %v7617 = vpop.xlane.xlu0 %7616
      %v7618 = vsel %vm7509, %v7481, -inf
      %7619 = vmax.xlane.f32.xlu0 %v7618
      %v7620 = vpop.xlane.xlu0 %7619
      %v7621 = vsel %vm7509, %v7482, -inf
      %7622 = vmax.xlane.f32.xlu0 %v7621
      %v7623 = vpop.xlane.xlu0 %7622
      %v7624 = vsel %vm7509, %v7483, -inf
      %7625 = vmax.xlane.f32.xlu0 %v7624
      %v7626 = vpop.xlane.xlu0 %7625
      %v7627 = vsel %vm7509, %v7484, -inf
      %7628 = vmax.xlane.f32.xlu0 %v7627
      %v7629 = vpop.xlane.xlu0 %7628
      %v7630 = vsel %vm7509, %v7485, -inf
      %7631 = vmax.xlane.f32.xlu0 %v7630
      %v7632 = vpop.xlane.xlu0 %7631
      %v7633 = vsel %vm7509, %v7486, -inf
      %7634 = vmax.xlane.f32.xlu0 %v7633
      %v7635 = vpop.xlane.xlu0 %7634
      %v7636 = vsel %vm7509, %v7487, -inf
      %7637 = vmax.xlane.f32.xlu0 %v7636
      %v7638 = vpop.xlane.xlu0 %7637
      %v7639 = vsel %vm7509, %v7488, -inf
      %7640 = vmax.xlane.f32.xlu0 %v7639
      %v7641 = vpop.xlane.xlu0 %7640
      %v7642 = vsel %vm7509, %v7489, -inf
      %7643 = vmax.xlane.f32.xlu0 %v7642
      %v7644 = vpop.xlane.xlu0 %7643
      %v7645 = vsel %vm7509, %v7490, -inf
      %7646 = vmax.xlane.f32.xlu0 %v7645
      %v7647 = vpop.xlane.xlu0 %7646
      %v7648 = vsel %vm7509, %v7491, -inf
      %7649 = vmax.xlane.f32.xlu0 %v7648
      %v7650 = vpop.xlane.xlu0 %7649
      %v7651 = vsel %vm7509, %v7492, -inf
      %7652 = vmax.xlane.f32.xlu0 %v7651
      %v7653 = vpop.xlane.xlu0 %7652
      %v7654 = vsel %vm7509, %v7493, -inf
      %7655 = vmax.xlane.f32.xlu0 %v7654
      %v7656 = vpop.xlane.xlu0 %7655
      %v7657 = vsel %vm7509, %v7494, -inf
      %7658 = vmax.xlane.f32.xlu0 %v7657
      %v7659 = vpop.xlane.xlu0 %7658
      %v7660 = vsel %vm7509, %v7495, -inf
      %7661 = vmax.xlane.f32.xlu0 %v7660
      %v7662 = vpop.xlane.xlu0 %7661
      %v7663 = vsel %vm7509, %v7496, -inf
      %7664 = vmax.xlane.f32.xlu0 %v7663
      %v7665 = vpop.xlane.xlu0 %7664
      %v7666 = vsel %vm7509, %v7497, -inf
      %7667 = vmax.xlane.f32.xlu0 %v7666
      %v7668 = vpop.xlane.xlu0 %7667
      %v7669 = vsel %vm7509, %v7498, -inf
      %7670 = vmax.xlane.f32.xlu0 %v7669
      %v7671 = vpop.xlane.xlu0 %7670
      %v7672 = vsel %vm7509, %v7499, -inf
      %7673 = vmax.xlane.f32.xlu0 %v7672
      %v7674 = vpop.xlane.xlu0 %7673
      %v7675 = vsel %vm7509, %v7500, -inf
      %7676 = vmax.xlane.f32.xlu0 %v7675
      %v7677 = vpop.xlane.xlu0 %7676
      %v7678 = vsel %vm7509, %v7501, -inf
      %7679 = vmax.xlane.f32.xlu0 %v7678
      %v7680 = vpop.xlane.xlu0 %7679
      %v7681 = vsel %vm7509, %v7502, -inf
      %7682 = vmax.xlane.f32.xlu0 %v7681
      %v7683 = vpop.xlane.xlu0 %7682
      %v7684 = vsel %vm7509, %v7503, -inf
      %7685 = vmax.xlane.f32.xlu0 %v7684
      %v7686 = vpop.xlane.xlu0 %7685
      %v7687 = vsel %vm7509, %v7504, -inf
      %7688 = vmax.xlane.f32.xlu0 %v7687
      %v7689 = vpop.xlane.xlu0 %7688
      %v7690 = vsel %vm7509, %v7505, -inf
      %7691 = vmax.xlane.f32.xlu0 %v7690
      %v7692 = vpop.xlane.xlu0 %7691
      %v7693 = vsel %vm7509, %v7506, -inf
      %7694 = vmax.xlane.f32.xlu0 %v7693
      %v7695 = vpop.xlane.xlu0 %7694
      %v7696 = vsel %vm7509, %v7507, -inf
      %7697 = vmax.xlane.f32.xlu0 %v7696
      %v7698 = vpop.xlane.xlu0 %7697
      %v7699 = vsel %vm7509, %v7508, -inf
      %7700 = vmax.xlane.f32.xlu0 %v7699
      %v7701 = vpop.xlane.xlu0 %7700
      %v7702 = vsub.f32 %v7445, %v7512
      %v7703 = vsub.f32 %v7446, %v7515
      %v7704 = vsub.f32 %v7447, %v7518
      %v7705 = vsub.f32 %v7448, %v7521
      %v7706 = vsub.f32 %v7449, %v7524
      %v7707 = vsub.f32 %v7450, %v7527
      %v7708 = vsub.f32 %v7451, %v7530
      %v7709 = vsub.f32 %v7452, %v7533
      %v7710 = vsub.f32 %v7453, %v7536
      %v7711 = vsub.f32 %v7454, %v7539
      %v7712 = vsub.f32 %v7455, %v7542
      %v7713 = vsub.f32 %v7456, %v7545
      %v7714 = vsub.f32 %v7457, %v7548
      %v7715 = vsub.f32 %v7458, %v7551
      %v7716 = vsub.f32 %v7459, %v7554
      %v7717 = vsub.f32 %v7460, %v7557
      %v7718 = vsub.f32 %v7461, %v7560
      %v7719 = vsub.f32 %v7462, %v7563
      %v7720 = vsub.f32 %v7463, %v7566
      %v7721 = vsub.f32 %v7464, %v7569
      %v7722 = vsub.f32 %v7465, %v7572
      %v7723 = vsub.f32 %v7466, %v7575
      %v7724 = vsub.f32 %v7467, %v7578
      %v7725 = vsub.f32 %v7468, %v7581
      %v7726 = vsub.f32 %v7469, %v7584
      %v7727 = vsub.f32 %v7470, %v7587
      %v7728 = vsub.f32 %v7471, %v7590
      %v7729 = vsub.f32 %v7472, %v7593
      %v7730 = vsub.f32 %v7473, %v7596
      %v7731 = vsub.f32 %v7474, %v7599
      %v7732 = vsub.f32 %v7475, %v7602
      %v7733 = vsub.f32 %v7476, %v7605
      %v7734 = vsub.f32 %v7477, %v7608
      %v7735 = vsub.f32 %v7478, %v7611
      %v7736 = vsub.f32 %v7479, %v7614
      %v7737 = vsub.f32 %v7480, %v7617
      %v7738 = vsub.f32 %v7481, %v7620
      %v7739 = vsub.f32 %v7482, %v7623
      %v7740 = vsub.f32 %v7483, %v7626
      %v7741 = vsub.f32 %v7484, %v7629
      %v7742 = vsub.f32 %v7485, %v7632
      %v7743 = vsub.f32 %v7486, %v7635
      %v7744 = vsub.f32 %v7487, %v7638
      %v7745 = vsub.f32 %v7488, %v7641
      %v7746 = vsub.f32 %v7489, %v7644
      %v7747 = vsub.f32 %v7490, %v7647
      %v7748 = vsub.f32 %v7491, %v7650
      %v7749 = vsub.f32 %v7492, %v7653
      %v7750 = vsub.f32 %v7493, %v7656
      %v7751 = vsub.f32 %v7494, %v7659
      %v7752 = vsub.f32 %v7495, %v7662
      %v7753 = vsub.f32 %v7496, %v7665
      %v7754 = vsub.f32 %v7497, %v7668
      %v7755 = vsub.f32 %v7498, %v7671
      %v7756 = vsub.f32 %v7499, %v7674
      %v7757 = vsub.f32 %v7500, %v7677
      %v7758 = vsub.f32 %v7501, %v7680
      %v7759 = vsub.f32 %v7502, %v7683
      %v7760 = vsub.f32 %v7503, %v7686
      %v7761 = vsub.f32 %v7504, %v7689
      %v7762 = vsub.f32 %v7505, %v7692
      %v7763 = vsub.f32 %v7506, %v7695
      %v7764 = vsub.f32 %v7507, %v7698
      %v7765 = vsub.f32 %v7508, %v7701
      %v7766 = vmul.f32 %v7702, 1.442695
      %v7767 = vpow.pop %v7766
      %v7768 = vmul.f32 %v7703, 1.442695
      %v7769 = vpow.pop %v7768
      %v7770 = vmul.f32 %v7704, 1.442695
      %v7771 = vpow.pop %v7770
      %v7772 = vmul.f32 %v7705, 1.442695
      %v7773 = vpow.pop %v7772
      %v7774 = vmul.f32 %v7706, 1.442695
      %v7775 = vpow.pop %v7774
      %v7776 = vmul.f32 %v7707, 1.442695
      %v7777 = vpow.pop %v7776
      %v7778 = vmul.f32 %v7708, 1.442695
      %v7779 = vpow.pop %v7778
      %v7780 = vmul.f32 %v7709, 1.442695
      %v7781 = vpow.pop %v7780
      %v7782 = vmul.f32 %v7710, 1.442695
      %v7783 = vpow.pop %v7782
      %v7784 = vmul.f32 %v7711, 1.442695
      %v7785 = vpow.pop %v7784
      %v7786 = vmul.f32 %v7712, 1.442695
      %v7787 = vpow.pop %v7786
      %v7788 = vmul.f32 %v7713, 1.442695
      %v7789 = vpow.pop %v7788
      %v7790 = vmul.f32 %v7714, 1.442695
      %v7791 = vpow.pop %v7790
      %v7792 = vmul.f32 %v7715, 1.442695
      %v7793 = vpow.pop %v7792
      %v7794 = vmul.f32 %v7716, 1.442695
      %v7795 = vpow.pop %v7794
      %v7796 = vmul.f32 %v7717, 1.442695
      %v7797 = vpow.pop %v7796
      %v7798 = vmul.f32 %v7718, 1.442695
      %v7799 = vpow.pop %v7798
      %v7800 = vmul.f32 %v7719, 1.442695
      %v7801 = vpow.pop %v7800
      %v7802 = vmul.f32 %v7720, 1.442695
      %v7803 = vpow.pop %v7802
      %v7804 = vmul.f32 %v7721, 1.442695
      %v7805 = vpow.pop %v7804
      %v7806 = vmul.f32 %v7722, 1.442695
      %v7807 = vpow.pop %v7806
      %v7808 = vmul.f32 %v7723, 1.442695
      %v7809 = vpow.pop %v7808
      %v7810 = vmul.f32 %v7724, 1.442695
      %v7811 = vpow.pop %v7810
      %v7812 = vmul.f32 %v7725, 1.442695
      %v7813 = vpow.pop %v7812
      %v7814 = vmul.f32 %v7726, 1.442695
      %v7815 = vpow.pop %v7814
      %v7816 = vmul.f32 %v7727, 1.442695
      %v7817 = vpow.pop %v7816
      %v7818 = vmul.f32 %v7728, 1.442695
      %v7819 = vpow.pop %v7818
      %v7820 = vmul.f32 %v7729, 1.442695
      %v7821 = vpow.pop %v7820
      %v7822 = vmul.f32 %v7730, 1.442695
      %v7823 = vpow.pop %v7822
      %v7824 = vmul.f32 %v7731, 1.442695
      %v7825 = vpow.pop %v7824
      %v7826 = vmul.f32 %v7732, 1.442695
      %v7827 = vpow.pop %v7826
      %v7828 = vmul.f32 %v7733, 1.442695
      %v7829 = vpow.pop %v7828
      %v7830 = vmul.f32 %v7734, 1.442695
      %v7831 = vpow.pop %v7830
      %v7832 = vmul.f32 %v7735, 1.442695
      %v7833 = vpow.pop %v7832
      %v7834 = vmul.f32 %v7736, 1.442695
      %v7835 = vpow.pop %v7834
      %v7836 = vmul.f32 %v7737, 1.442695
      %v7837 = vpow.pop %v7836
      %v7838 = vmul.f32 %v7738, 1.442695
      %v7839 = vpow.pop %v7838
      %v7840 = vmul.f32 %v7739, 1.442695
      %v7841 = vpow.pop %v7840
      %v7842 = vmul.f32 %v7740, 1.442695
      %v7843 = vpow.pop %v7842
      %v7844 = vmul.f32 %v7741, 1.442695
      %v7845 = vpow.pop %v7844
      %v7846 = vmul.f32 %v7742, 1.442695
      %v7847 = vpow.pop %v7846
      %v7848 = vmul.f32 %v7743, 1.442695
      %v7849 = vpow.pop %v7848
      %v7850 = vmul.f32 %v7744, 1.442695
      %v7851 = vpow.pop %v7850
      %v7852 = vmul.f32 %v7745, 1.442695
      %v7853 = vpow.pop %v7852
      %v7854 = vmul.f32 %v7746, 1.442695
      %v7855 = vpow.pop %v7854
      %v7856 = vmul.f32 %v7747, 1.442695
      %v7857 = vpow.pop %v7856
      %v7858 = vmul.f32 %v7748, 1.442695
      %v7859 = vpow.pop %v7858
      %v7860 = vmul.f32 %v7749, 1.442695
      %v7861 = vpow.pop %v7860
      %v7862 = vmul.f32 %v7750, 1.442695
      %v7863 = vpow.pop %v7862
      %v7864 = vmul.f32 %v7751, 1.442695
      %v7865 = vpow.pop %v7864
      %v7866 = vmul.f32 %v7752, 1.442695
      %v7867 = vpow.pop %v7866
      %v7868 = vmul.f32 %v7753, 1.442695
      %v7869 = vpow.pop %v7868
      %v7870 = vmul.f32 %v7754, 1.442695
      %v7871 = vpow.pop %v7870
      %v7872 = vmul.f32 %v7755, 1.442695
      %v7873 = vpow.pop %v7872
      %v7874 = vmul.f32 %v7756, 1.442695
      %v7875 = vpow.pop %v7874
      %v7876 = vmul.f32 %v7757, 1.442695
      %v7877 = vpow.pop %v7876
      %v7878 = vmul.f32 %v7758, 1.442695
      %v7879 = vpow.pop %v7878
      %v7880 = vmul.f32 %v7759, 1.442695
      %v7881 = vpow.pop %v7880
      %v7882 = vmul.f32 %v7760, 1.442695
      %v7883 = vpow.pop %v7882
      %v7884 = vmul.f32 %v7761, 1.442695
      %v7885 = vpow.pop %v7884
      %v7886 = vmul.f32 %v7762, 1.442695
      %v7887 = vpow.pop %v7886
      %v7888 = vmul.f32 %v7763, 1.442695
      %v7889 = vpow.pop %v7888
      %v7890 = vmul.f32 %v7764, 1.442695
      %v7891 = vpow.pop %v7890
      %v7892 = vmul.f32 %v7765, 1.442695
      %v7893 = vpow.pop %v7892
      %v7894 = vsel %vm7509, %v7767, 0.0
      %7895 = vadd.xlane.f32.xlu0 %v7894
      %v7896 = vpop.xlane.xlu0 %7895
      %v7897 = vsel %vm7509, %v7769, 0.0
      %7898 = vadd.xlane.f32.xlu0 %v7897
      %v7899 = vpop.xlane.xlu0 %7898
      %v7900 = vsel %vm7509, %v7771, 0.0
      %7901 = vadd.xlane.f32.xlu0 %v7900
      %v7902 = vpop.xlane.xlu0 %7901
      %v7903 = vsel %vm7509, %v7773, 0.0
      %7904 = vadd.xlane.f32.xlu0 %v7903
      %v7905 = vpop.xlane.xlu0 %7904
      %v7906 = vsel %vm7509, %v7775, 0.0
      %7907 = vadd.xlane.f32.xlu0 %v7906
      %v7908 = vpop.xlane.xlu0 %7907
      %v7909 = vsel %vm7509, %v7777, 0.0
      %7910 = vadd.xlane.f32.xlu0 %v7909
      %v7911 = vpop.xlane.xlu0 %7910
      %v7912 = vsel %vm7509, %v7779, 0.0
      %7913 = vadd.xlane.f32.xlu0 %v7912
      %v7914 = vpop.xlane.xlu0 %7913
      %v7915 = vsel %vm7509, %v7781, 0.0
      %7916 = vadd.xlane.f32.xlu0 %v7915
      %v7917 = vpop.xlane.xlu0 %7916
      %v7918 = vsel %vm7509, %v7783, 0.0
      %7919 = vadd.xlane.f32.xlu0 %v7918
      %v7920 = vpop.xlane.xlu0 %7919
      %v7921 = vsel %vm7509, %v7785, 0.0
      %7922 = vadd.xlane.f32.xlu0 %v7921
      %v7923 = vpop.xlane.xlu0 %7922
      %v7924 = vsel %vm7509, %v7787, 0.0
      %7925 = vadd.xlane.f32.xlu0 %v7924
      %v7926 = vpop.xlane.xlu0 %7925
      %v7927 = vsel %vm7509, %v7789, 0.0
      %7928 = vadd.xlane.f32.xlu0 %v7927
      %v7929 = vpop.xlane.xlu0 %7928
      %v7930 = vsel %vm7509, %v7791, 0.0
      %7931 = vadd.xlane.f32.xlu0 %v7930
      %v7932 = vpop.xlane.xlu0 %7931
      %v7933 = vsel %vm7509, %v7793, 0.0
      %7934 = vadd.xlane.f32.xlu0 %v7933
      %v7935 = vpop.xlane.xlu0 %7934
      %v7936 = vsel %vm7509, %v7795, 0.0
      %7937 = vadd.xlane.f32.xlu0 %v7936
      %v7938 = vpop.xlane.xlu0 %7937
      %v7939 = vsel %vm7509, %v7797, 0.0
      %7940 = vadd.xlane.f32.xlu0 %v7939
      %v7941 = vpop.xlane.xlu0 %7940
      %v7942 = vsel %vm7509, %v7799, 0.0
      %7943 = vadd.xlane.f32.xlu0 %v7942
      %v7944 = vpop.xlane.xlu0 %7943
      %v7945 = vsel %vm7509, %v7801, 0.0
      %7946 = vadd.xlane.f32.xlu0 %v7945
      %v7947 = vpop.xlane.xlu0 %7946
      %v7948 = vsel %vm7509, %v7803, 0.0
      %7949 = vadd.xlane.f32.xlu0 %v7948
      %v7950 = vpop.xlane.xlu0 %7949
      %v7951 = vsel %vm7509, %v7805, 0.0
      %7952 = vadd.xlane.f32.xlu0 %v7951
      %v7953 = vpop.xlane.xlu0 %7952
      %v7954 = vsel %vm7509, %v7807, 0.0
      %7955 = vadd.xlane.f32.xlu0 %v7954
      %v7956 = vpop.xlane.xlu0 %7955
      %v7957 = vsel %vm7509, %v7809, 0.0
      %7958 = vadd.xlane.f32.xlu0 %v7957
      %v7959 = vpop.xlane.xlu0 %7958
      %v7960 = vsel %vm7509, %v7811, 0.0
      %7961 = vadd.xlane.f32.xlu0 %v7960
      %v7962 = vpop.xlane.xlu0 %7961
      %v7963 = vsel %vm7509, %v7813, 0.0
      %7964 = vadd.xlane.f32.xlu0 %v7963
      %v7965 = vpop.xlane.xlu0 %7964
      %v7966 = vsel %vm7509, %v7815, 0.0
      %7967 = vadd.xlane.f32.xlu0 %v7966
      %v7968 = vpop.xlane.xlu0 %7967
      %v7969 = vsel %vm7509, %v7817, 0.0
      %7970 = vadd.xlane.f32.xlu0 %v7969
      %v7971 = vpop.xlane.xlu0 %7970
      %v7972 = vsel %vm7509, %v7819, 0.0
      %7973 = vadd.xlane.f32.xlu0 %v7972
      %v7974 = vpop.xlane.xlu0 %7973
      %v7975 = vsel %vm7509, %v7821, 0.0
      %7976 = vadd.xlane.f32.xlu0 %v7975
      %v7977 = vpop.xlane.xlu0 %7976
      %v7978 = vsel %vm7509, %v7823, 0.0
      %7979 = vadd.xlane.f32.xlu0 %v7978
      %v7980 = vpop.xlane.xlu0 %7979
      %v7981 = vsel %vm7509, %v7825, 0.0
      %7982 = vadd.xlane.f32.xlu0 %v7981
      %v7983 = vpop.xlane.xlu0 %7982
      %v7984 = vsel %vm7509, %v7827, 0.0
      %7985 = vadd.xlane.f32.xlu0 %v7984
      %v7986 = vpop.xlane.xlu0 %7985
      %v7987 = vsel %vm7509, %v7829, 0.0
      %7988 = vadd.xlane.f32.xlu0 %v7987
      %v7989 = vpop.xlane.xlu0 %7988
      %v7990 = vsel %vm7509, %v7831, 0.0
      %7991 = vadd.xlane.f32.xlu0 %v7990
      %v7992 = vpop.xlane.xlu0 %7991
      %v7993 = vsel %vm7509, %v7833, 0.0
      %7994 = vadd.xlane.f32.xlu0 %v7993
      %v7995 = vpop.xlane.xlu0 %7994
      %v7996 = vsel %vm7509, %v7835, 0.0
      %7997 = vadd.xlane.f32.xlu0 %v7996
      %v7998 = vpop.xlane.xlu0 %7997
      %v7999 = vsel %vm7509, %v7837, 0.0
      %8000 = vadd.xlane.f32.xlu0 %v7999
      %v8001 = vpop.xlane.xlu0 %8000
      %v8002 = vsel %vm7509, %v7839, 0.0
      %8003 = vadd.xlane.f32.xlu0 %v8002
      %v8004 = vpop.xlane.xlu0 %8003
      %v8005 = vsel %vm7509, %v7841, 0.0
      %8006 = vadd.xlane.f32.xlu0 %v8005
      %v8007 = vpop.xlane.xlu0 %8006
      %v8008 = vsel %vm7509, %v7843, 0.0
      %8009 = vadd.xlane.f32.xlu0 %v8008
      %v8010 = vpop.xlane.xlu0 %8009
      %v8011 = vsel %vm7509, %v7845, 0.0
      %8012 = vadd.xlane.f32.xlu0 %v8011
      %v8013 = vpop.xlane.xlu0 %8012
      %v8014 = vsel %vm7509, %v7847, 0.0
      %8015 = vadd.xlane.f32.xlu0 %v8014
      %v8016 = vpop.xlane.xlu0 %8015
      %v8017 = vsel %vm7509, %v7849, 0.0
      %8018 = vadd.xlane.f32.xlu0 %v8017
      %v8019 = vpop.xlane.xlu0 %8018
      %v8020 = vsel %vm7509, %v7851, 0.0
      %8021 = vadd.xlane.f32.xlu0 %v8020
      %v8022 = vpop.xlane.xlu0 %8021
      %v8023 = vsel %vm7509, %v7853, 0.0
      %8024 = vadd.xlane.f32.xlu0 %v8023
      %v8025 = vpop.xlane.xlu0 %8024
      %v8026 = vsel %vm7509, %v7855, 0.0
      %8027 = vadd.xlane.f32.xlu0 %v8026
      %v8028 = vpop.xlane.xlu0 %8027
      %v8029 = vsel %vm7509, %v7857, 0.0
      %8030 = vadd.xlane.f32.xlu0 %v8029
      %v8031 = vpop.xlane.xlu0 %8030
      %v8032 = vsel %vm7509, %v7859, 0.0
      %8033 = vadd.xlane.f32.xlu0 %v8032
      %v8034 = vpop.xlane.xlu0 %8033
      %v8035 = vsel %vm7509, %v7861, 0.0
      %8036 = vadd.xlane.f32.xlu0 %v8035
      %v8037 = vpop.xlane.xlu0 %8036
      %v8038 = vsel %vm7509, %v7863, 0.0
      %8039 = vadd.xlane.f32.xlu0 %v8038
      %v8040 = vpop.xlane.xlu0 %8039
      %v8041 = vsel %vm7509, %v7865, 0.0
      %8042 = vadd.xlane.f32.xlu0 %v8041
      %v8043 = vpop.xlane.xlu0 %8042
      %v8044 = vsel %vm7509, %v7867, 0.0
      %8045 = vadd.xlane.f32.xlu0 %v8044
      %v8046 = vpop.xlane.xlu0 %8045
      %v8047 = vsel %vm7509, %v7869, 0.0
      %8048 = vadd.xlane.f32.xlu0 %v8047
      %v8049 = vpop.xlane.xlu0 %8048
      %v8050 = vsel %vm7509, %v7871, 0.0
      %8051 = vadd.xlane.f32.xlu0 %v8050
      %v8052 = vpop.xlane.xlu0 %8051
      %v8053 = vsel %vm7509, %v7873, 0.0
      %8054 = vadd.xlane.f32.xlu0 %v8053
      %v8055 = vpop.xlane.xlu0 %8054
      %v8056 = vsel %vm7509, %v7875, 0.0
      %8057 = vadd.xlane.f32.xlu0 %v8056
      %v8058 = vpop.xlane.xlu0 %8057
      %v8059 = vsel %vm7509, %v7877, 0.0
      %8060 = vadd.xlane.f32.xlu0 %v8059
      %v8061 = vpop.xlane.xlu0 %8060
      %v8062 = vsel %vm7509, %v7879, 0.0
      %8063 = vadd.xlane.f32.xlu0 %v8062
      %v8064 = vpop.xlane.xlu0 %8063
      %v8065 = vsel %vm7509, %v7881, 0.0
      %8066 = vadd.xlane.f32.xlu0 %v8065
      %v8067 = vpop.xlane.xlu0 %8066
      %v8068 = vsel %vm7509, %v7883, 0.0
      %8069 = vadd.xlane.f32.xlu0 %v8068
      %v8070 = vpop.xlane.xlu0 %8069
      %v8071 = vsel %vm7509, %v7885, 0.0
      %8072 = vadd.xlane.f32.xlu0 %v8071
      %v8073 = vpop.xlane.xlu0 %8072
      %v8074 = vsel %vm7509, %v7887, 0.0
      %8075 = vadd.xlane.f32.xlu0 %v8074
      %v8076 = vpop.xlane.xlu0 %8075
      %v8077 = vsel %vm7509, %v7889, 0.0
      %8078 = vadd.xlane.f32.xlu0 %v8077
      %v8079 = vpop.xlane.xlu0 %8078
      %v8080 = vsel %vm7509, %v7891, 0.0
      %8081 = vadd.xlane.f32.xlu0 %v8080
      %v8082 = vpop.xlane.xlu0 %8081
      %v8083 = vsel %vm7509, %v7893, 0.0
      %8084 = vadd.xlane.f32.xlu0 %v8083
      %v8085 = vpop.xlane.xlu0 %8084
      %v8086 = vrcp.pop %v7896
      %v8087 = vrcp.pop %v7899
      %v8088 = vrcp.pop %v7902
      %v8089 = vrcp.pop %v7905
      %v8090 = vrcp.pop %v7908
      %v8091 = vrcp.pop %v7911
      %v8092 = vrcp.pop %v7914
      %v8093 = vrcp.pop %v7917
      %v8094 = vrcp.pop %v7920
      %v8095 = vrcp.pop %v7923
      %v8096 = vrcp.pop %v7926
      %v8097 = vrcp.pop %v7929
      %v8098 = vrcp.pop %v7932
      %v8099 = vrcp.pop %v7935
      %v8100 = vrcp.pop %v7938
      %v8101 = vrcp.pop %v7941
      %v8102 = vrcp.pop %v7944
      %v8103 = vrcp.pop %v7947
      %v8104 = vrcp.pop %v7950
      %v8105 = vrcp.pop %v7953
      %v8106 = vrcp.pop %v7956
      %v8107 = vrcp.pop %v7959
      %v8108 = vrcp.pop %v7962
      %v8109 = vrcp.pop %v7965
      %v8110 = vrcp.pop %v7968
      %v8111 = vrcp.pop %v7971
      %v8112 = vrcp.pop %v7974
      %v8113 = vrcp.pop %v7977
      %v8114 = vrcp.pop %v7980
      %v8115 = vrcp.pop %v7983
      %v8116 = vrcp.pop %v7986
      %v8117 = vrcp.pop %v7989
      %v8118 = vrcp.pop %v7992
      %v8119 = vrcp.pop %v7995
      %v8120 = vrcp.pop %v7998
      %v8121 = vrcp.pop %v8001
      %v8122 = vrcp.pop %v8004
      %v8123 = vrcp.pop %v8007
      %v8124 = vrcp.pop %v8010
      %v8125 = vrcp.pop %v8013
      %v8126 = vrcp.pop %v8016
      %v8127 = vrcp.pop %v8019
      %v8128 = vrcp.pop %v8022
      %v8129 = vrcp.pop %v8025
      %v8130 = vrcp.pop %v8028
      %v8131 = vrcp.pop %v8031
      %v8132 = vrcp.pop %v8034
      %v8133 = vrcp.pop %v8037
      %v8134 = vrcp.pop %v8040
      %v8135 = vrcp.pop %v8043
      %v8136 = vrcp.pop %v8046
      %v8137 = vrcp.pop %v8049
      %v8138 = vrcp.pop %v8052
      %v8139 = vrcp.pop %v8055
      %v8140 = vrcp.pop %v8058
      %v8141 = vrcp.pop %v8061
      %v8142 = vrcp.pop %v8064
      %v8143 = vrcp.pop %v8067
      %v8144 = vrcp.pop %v8070
      %v8145 = vrcp.pop %v8073
      %v8146 = vrcp.pop %v8076
      %v8147 = vrcp.pop %v8079
      %v8148 = vrcp.pop %v8082
      %v8149 = vrcp.pop %v8085
      %v8150 = vmul.f32 %v7767, %v8086
      %v8151 = vmul.f32 %v7769, %v8087
      %v8152 = vmul.f32 %v7771, %v8088
      %v8153 = vmul.f32 %v7773, %v8089
      %v8154 = vmul.f32 %v7775, %v8090
      %v8155 = vmul.f32 %v7777, %v8091
      %v8156 = vmul.f32 %v7779, %v8092
      %v8157 = vmul.f32 %v7781, %v8093
      %v8158 = vmul.f32 %v7783, %v8094
      %v8159 = vmul.f32 %v7785, %v8095
      %v8160 = vmul.f32 %v7787, %v8096
      %v8161 = vmul.f32 %v7789, %v8097
      %v8162 = vmul.f32 %v7791, %v8098
      %v8163 = vmul.f32 %v7793, %v8099
      %v8164 = vmul.f32 %v7795, %v8100
      %v8165 = vmul.f32 %v7797, %v8101
      %v8166 = vmul.f32 %v7799, %v8102
      %v8167 = vmul.f32 %v7801, %v8103
      %v8168 = vmul.f32 %v7803, %v8104
      %v8169 = vmul.f32 %v7805, %v8105
      %v8170 = vmul.f32 %v7807, %v8106
      %v8171 = vmul.f32 %v7809, %v8107
      %v8172 = vmul.f32 %v7811, %v8108
      %v8173 = vmul.f32 %v7813, %v8109
      %v8174 = vmul.f32 %v7815, %v8110
      %v8175 = vmul.f32 %v7817, %v8111
      %v8176 = vmul.f32 %v7819, %v8112
      %v8177 = vmul.f32 %v7821, %v8113
      %v8178 = vmul.f32 %v7823, %v8114
      %v8179 = vmul.f32 %v7825, %v8115
      %v8180 = vmul.f32 %v7827, %v8116
      %v8181 = vmul.f32 %v7829, %v8117
      %v8182 = vmul.f32 %v7831, %v8118
      %v8183 = vmul.f32 %v7833, %v8119
      %v8184 = vmul.f32 %v7835, %v8120
      %v8185 = vmul.f32 %v7837, %v8121
      %v8186 = vmul.f32 %v7839, %v8122
      %v8187 = vmul.f32 %v7841, %v8123
      %v8188 = vmul.f32 %v7843, %v8124
      %v8189 = vmul.f32 %v7845, %v8125
      %v8190 = vmul.f32 %v7847, %v8126
      %v8191 = vmul.f32 %v7849, %v8127
      %v8192 = vmul.f32 %v7851, %v8128
      %v8193 = vmul.f32 %v7853, %v8129
      %v8194 = vmul.f32 %v7855, %v8130
      %v8195 = vmul.f32 %v7857, %v8131
      %v8196 = vmul.f32 %v7859, %v8132
      %v8197 = vmul.f32 %v7861, %v8133
      %v8198 = vmul.f32 %v7863, %v8134
      %v8199 = vmul.f32 %v7865, %v8135
      %v8200 = vmul.f32 %v7867, %v8136
      %v8201 = vmul.f32 %v7869, %v8137
      %v8202 = vmul.f32 %v7871, %v8138
      %v8203 = vmul.f32 %v7873, %v8139
      %v8204 = vmul.f32 %v7875, %v8140
      %v8205 = vmul.f32 %v7877, %v8141
      %v8206 = vmul.f32 %v7879, %v8142
      %v8207 = vmul.f32 %v7881, %v8143
      %v8208 = vmul.f32 %v7883, %v8144
      %v8209 = vmul.f32 %v7885, %v8145
      %v8210 = vmul.f32 %v7887, %v8146
      %v8211 = vmul.f32 %v7889, %v8147
      %v8212 = vmul.f32 %v7891, %v8148
      %v8213 = vmul.f32 %v7893, %v8149
      %v8214 = vpack.c.bf16 %v8151, %v8150
      %v8215 = vpack.c.bf16 %v8153, %v8152
      %v8216 = vpack.c.bf16 %v8155, %v8154
      %v8217 = vpack.c.bf16 %v8157, %v8156
      %v8218 = vpack.c.bf16 %v8159, %v8158
      %v8219 = vpack.c.bf16 %v8161, %v8160
      %v8220 = vpack.c.bf16 %v8163, %v8162
      %v8221 = vpack.c.bf16 %v8165, %v8164
      %v8222 = vpack.c.bf16 %v8167, %v8166
      %v8223 = vpack.c.bf16 %v8169, %v8168
      %v8224 = vpack.c.bf16 %v8171, %v8170
      %v8225 = vpack.c.bf16 %v8173, %v8172
      %v8226 = vpack.c.bf16 %v8175, %v8174
      %v8227 = vpack.c.bf16 %v8177, %v8176
      %v8228 = vpack.c.bf16 %v8179, %v8178
      %v8229 = vpack.c.bf16 %v8181, %v8180
      %v8230 = vpack.c.bf16 %v8183, %v8182
      %v8231 = vpack.c.bf16 %v8185, %v8184
      %v8232 = vpack.c.bf16 %v8187, %v8186
      %v8233 = vpack.c.bf16 %v8189, %v8188
      %v8234 = vpack.c.bf16 %v8191, %v8190
      %v8235 = vpack.c.bf16 %v8193, %v8192
      %v8236 = vpack.c.bf16 %v8195, %v8194
      %v8237 = vpack.c.bf16 %v8197, %v8196
      %v8238 = vpack.c.bf16 %v8199, %v8198
      %v8239 = vpack.c.bf16 %v8201, %v8200
      %v8240 = vpack.c.bf16 %v8203, %v8202
      %v8241 = vpack.c.bf16 %v8205, %v8204
      %v8242 = vpack.c.bf16 %v8207, %v8206
      %v8243 = vpack.c.bf16 %v8209, %v8208
      %v8244 = vpack.c.bf16 %v8211, %v8210
      %v8245 = vpack.c.bf16 %v8213, %v8212
      %v8247 = vsel %vm7509, %v8214, 0
      %8249 = vmatprep.subr.bf16.mxu0 0
      %8250 = vmatpush1.bf16.msra.mxu0 0
      %8251 = vmatprep.subr.bf16.mxu0 0
      %8252 = vmatpush1.bf16.msra.mxu0 0
      %8253 = vmatprep.subr.bf16.mxu0 0
      %8254 = vmatpush1.bf16.msra.mxu0 0
      %8255 = vmatprep.subr.bf16.mxu0 0
      %8256 = vmatpush1.bf16.msra.mxu0 0
      %8257 = vmatprep.subr.bf16.mxu0 0
      %8258 = vmatpush1.bf16.msra.mxu0 0
      %8259 = vmatprep.subr.bf16.mxu0 0
      %8260 = vmatpush1.bf16.msra.mxu0 0
      %8261 = vmatprep.subr.bf16.mxu0 0
      %8262 = vmatpush1.bf16.msra.mxu0 0
      %8263 = vmatprep.subr.bf16.mxu0 0
      %8264 = vmatpush1.bf16.msra.mxu0 %v5510
      %8265 = vmatprep.subr.bf16.mxu0 0
      %8266 = vmatpush2.bf16.msra.mxu0 0
      %8267 = vmatprep.subr.bf16.mxu0 0
      %8268 = vmatpush2.bf16.msra.mxu0 0
      %8269 = vmatprep.subr.bf16.mxu0 0
      %8270 = vmatpush2.bf16.msra.mxu0 0
      %8271 = vmatprep.subr.bf16.mxu0 0
      %8272 = vmatpush2.bf16.msra.mxu0 0
      %8273 = vmatprep.subr.bf16.mxu0 0
      %8274 = vmatpush2.bf16.msra.mxu0 0
      %8275 = vmatprep.subr.bf16.mxu0 0
      %8276 = vmatpush2.bf16.msra.mxu0 0
      %8277 = vmatprep.subr.bf16.mxu0 0
      %8278 = vmatpush2.bf16.msra.mxu0 0
      %8279 = vmatprep.subr.bf16.mxu0 0
      %8280 = vmatpush2.bf16.msra.mxu0 0
      %8281 = vmatprep.mubr.bf16.mxu0 0
      %8282 = vmatmul.mubr.bf16.gmra.mxu0 %v8247
      %v8283 = vpop.f32.mrf.mxu0
      %v8284 = vadd.f32 0.0, %v8283
      %v8285 = vpop.f32.mrf.mxu0
      %v8286 = vpop.f32.mrf.mxu0
      %v8287 = vadd.f32 0.0, %v8286
      %v8288 = vpop.f32.mrf.mxu0
      %8289 = vdwg.mxu0
      %v8291 = vsel %vm7509, %v8215, 0
      %8293 = vmatprep.subr.bf16.mxu0 0
      %8294 = vmatpush1.bf16.msra.mxu0 0
      %8295 = vmatprep.subr.bf16.mxu0 0
      %8296 = vmatpush1.bf16.msra.mxu0 0
      %8297 = vmatprep.subr.bf16.mxu0 0
      %8298 = vmatpush1.bf16.msra.mxu0 0
      %8299 = vmatprep.subr.bf16.mxu0 0
      %8300 = vmatpush1.bf16.msra.mxu0 0
      %8301 = vmatprep.subr.bf16.mxu0 0
      %8302 = vmatpush1.bf16.msra.mxu0 0
      %8303 = vmatprep.subr.bf16.mxu0 0
      %8304 = vmatpush1.bf16.msra.mxu0 0
      %8305 = vmatprep.subr.bf16.mxu0 0
      %8306 = vmatpush1.bf16.msra.mxu0 0
      %8307 = vmatprep.subr.bf16.mxu0 0
      %8308 = vmatpush1.bf16.msra.mxu0 %v5514
      %8309 = vmatprep.subr.bf16.mxu0 0
      %8310 = vmatpush2.bf16.msra.mxu0 0
      %8311 = vmatprep.subr.bf16.mxu0 0
      %8312 = vmatpush2.bf16.msra.mxu0 0
      %8313 = vmatprep.subr.bf16.mxu0 0
      %8314 = vmatpush2.bf16.msra.mxu0 0
      %8315 = vmatprep.subr.bf16.mxu0 0
      %8316 = vmatpush2.bf16.msra.mxu0 0
      %8317 = vmatprep.subr.bf16.mxu0 0
      %8318 = vmatpush2.bf16.msra.mxu0 0
      %8319 = vmatprep.subr.bf16.mxu0 0
      %8320 = vmatpush2.bf16.msra.mxu0 0
      %8321 = vmatprep.subr.bf16.mxu0 0
      %8322 = vmatpush2.bf16.msra.mxu0 0
      %8323 = vmatprep.subr.bf16.mxu0 0
      %8324 = vmatpush2.bf16.msra.mxu0 0
      %8325 = vmatprep.mubr.bf16.mxu0 0
      %8326 = vmatmul.mubr.bf16.gmra.mxu0 %v8291
      %v8327 = vpop.f32.mrf.mxu0
      %v8328 = vadd.f32 0.0, %v8327
      %v8329 = vpop.f32.mrf.mxu0
      %v8330 = vpop.f32.mrf.mxu0
      %v8331 = vadd.f32 0.0, %v8330
      %v8332 = vpop.f32.mrf.mxu0
      %8333 = vdwg.mxu0
      %v8335 = vsel %vm7509, %v8216, 0
      %8337 = vmatprep.subr.bf16.mxu0 0
      %8338 = vmatpush1.bf16.msra.mxu0 0
      %8339 = vmatprep.subr.bf16.mxu0 0
      %8340 = vmatpush1.bf16.msra.mxu0 0
      %8341 = vmatprep.subr.bf16.mxu0 0
      %8342 = vmatpush1.bf16.msra.mxu0 0
      %8343 = vmatprep.subr.bf16.mxu0 0
      %8344 = vmatpush1.bf16.msra.mxu0 0
      %8345 = vmatprep.subr.bf16.mxu0 0
      %8346 = vmatpush1.bf16.msra.mxu0 0
      %8347 = vmatprep.subr.bf16.mxu0 0
      %8348 = vmatpush1.bf16.msra.mxu0 0
      %8349 = vmatprep.subr.bf16.mxu0 0
      %8350 = vmatpush1.bf16.msra.mxu0 0
      %8351 = vmatprep.subr.bf16.mxu0 0
      %8352 = vmatpush1.bf16.msra.mxu0 %v5518
      %8353 = vmatprep.subr.bf16.mxu0 0
      %8354 = vmatpush2.bf16.msra.mxu0 0
      %8355 = vmatprep.subr.bf16.mxu0 0
      %8356 = vmatpush2.bf16.msra.mxu0 0
      %8357 = vmatprep.subr.bf16.mxu0 0
      %8358 = vmatpush2.bf16.msra.mxu0 0
      %8359 = vmatprep.subr.bf16.mxu0 0
      %8360 = vmatpush2.bf16.msra.mxu0 0
      %8361 = vmatprep.subr.bf16.mxu0 0
      %8362 = vmatpush2.bf16.msra.mxu0 0
      %8363 = vmatprep.subr.bf16.mxu0 0
      %8364 = vmatpush2.bf16.msra.mxu0 0
      %8365 = vmatprep.subr.bf16.mxu0 0
      %8366 = vmatpush2.bf16.msra.mxu0 0
      %8367 = vmatprep.subr.bf16.mxu0 0
      %8368 = vmatpush2.bf16.msra.mxu0 0
      %8369 = vmatprep.mubr.bf16.mxu0 0
      %8370 = vmatmul.mubr.bf16.gmra.mxu0 %v8335
      %v8371 = vpop.f32.mrf.mxu0
      %v8372 = vadd.f32 0.0, %v8371
      %v8373 = vpop.f32.mrf.mxu0
      %v8374 = vpop.f32.mrf.mxu0
      %v8375 = vadd.f32 0.0, %v8374
      %v8376 = vpop.f32.mrf.mxu0
      %8377 = vdwg.mxu0
      %v8379 = vsel %vm7509, %v8217, 0
      %8381 = vmatprep.subr.bf16.mxu0 0
      %8382 = vmatpush1.bf16.msra.mxu0 0
      %8383 = vmatprep.subr.bf16.mxu0 0
      %8384 = vmatpush1.bf16.msra.mxu0 0
      %8385 = vmatprep.subr.bf16.mxu0 0
      %8386 = vmatpush1.bf16.msra.mxu0 0
      %8387 = vmatprep.subr.bf16.mxu0 0
      %8388 = vmatpush1.bf16.msra.mxu0 0
      %8389 = vmatprep.subr.bf16.mxu0 0
      %8390 = vmatpush1.bf16.msra.mxu0 0
      %8391 = vmatprep.subr.bf16.mxu0 0
      %8392 = vmatpush1.bf16.msra.mxu0 0
      %8393 = vmatprep.subr.bf16.mxu0 0
      %8394 = vmatpush1.bf16.msra.mxu0 0
      %8395 = vmatprep.subr.bf16.mxu0 0
      %8396 = vmatpush1.bf16.msra.mxu0 %v5522
      %8397 = vmatprep.subr.bf16.mxu0 0
      %8398 = vmatpush2.bf16.msra.mxu0 0
      %8399 = vmatprep.subr.bf16.mxu0 0
      %8400 = vmatpush2.bf16.msra.mxu0 0
      %8401 = vmatprep.subr.bf16.mxu0 0
      %8402 = vmatpush2.bf16.msra.mxu0 0
      %8403 = vmatprep.subr.bf16.mxu0 0
      %8404 = vmatpush2.bf16.msra.mxu0 0
      %8405 = vmatprep.subr.bf16.mxu0 0
      %8406 = vmatpush2.bf16.msra.mxu0 0
      %8407 = vmatprep.subr.bf16.mxu0 0
      %8408 = vmatpush2.bf16.msra.mxu0 0
      %8409 = vmatprep.subr.bf16.mxu0 0
      %8410 = vmatpush2.bf16.msra.mxu0 0
      %8411 = vmatprep.subr.bf16.mxu0 0
      %8412 = vmatpush2.bf16.msra.mxu0 0
      %8413 = vmatprep.mubr.bf16.mxu0 0
      %8414 = vmatmul.mubr.bf16.gmra.mxu0 %v8379
      %v8415 = vpop.f32.mrf.mxu0
      %v8416 = vadd.f32 0.0, %v8415
      %v8417 = vpop.f32.mrf.mxu0
      %v8418 = vpop.f32.mrf.mxu0
      %v8419 = vadd.f32 0.0, %v8418
      %v8420 = vpop.f32.mrf.mxu0
      %8421 = vdwg.mxu0
      %v8423 = vsel %vm7509, %v8218, 0
      %8425 = vmatprep.subr.bf16.mxu0 0
      %8426 = vmatpush1.bf16.msra.mxu0 0
      %8427 = vmatprep.subr.bf16.mxu0 0
      %8428 = vmatpush1.bf16.msra.mxu0 0
      %8429 = vmatprep.subr.bf16.mxu0 0
      %8430 = vmatpush1.bf16.msra.mxu0 0
      %8431 = vmatprep.subr.bf16.mxu0 0
      %8432 = vmatpush1.bf16.msra.mxu0 0
      %8433 = vmatprep.subr.bf16.mxu0 0
      %8434 = vmatpush1.bf16.msra.mxu0 0
      %8435 = vmatprep.subr.bf16.mxu0 0
      %8436 = vmatpush1.bf16.msra.mxu0 0
      %8437 = vmatprep.subr.bf16.mxu0 0
      %8438 = vmatpush1.bf16.msra.mxu0 0
      %8439 = vmatprep.subr.bf16.mxu0 0
      %8440 = vmatpush1.bf16.msra.mxu0 %v5550
      %8441 = vmatprep.subr.bf16.mxu0 0
      %8442 = vmatpush2.bf16.msra.mxu0 0
      %8443 = vmatprep.subr.bf16.mxu0 0
      %8444 = vmatpush2.bf16.msra.mxu0 0
      %8445 = vmatprep.subr.bf16.mxu0 0
      %8446 = vmatpush2.bf16.msra.mxu0 0
      %8447 = vmatprep.subr.bf16.mxu0 0
      %8448 = vmatpush2.bf16.msra.mxu0 0
      %8449 = vmatprep.subr.bf16.mxu0 0
      %8450 = vmatpush2.bf16.msra.mxu0 0
      %8451 = vmatprep.subr.bf16.mxu0 0
      %8452 = vmatpush2.bf16.msra.mxu0 0
      %8453 = vmatprep.subr.bf16.mxu0 0
      %8454 = vmatpush2.bf16.msra.mxu0 0
      %8455 = vmatprep.subr.bf16.mxu0 0
      %8456 = vmatpush2.bf16.msra.mxu0 0
      %8457 = vmatprep.mubr.bf16.mxu0 0
      %8458 = vmatmul.mubr.bf16.gmra.mxu0 %v8423
      %v8459 = vpop.f32.mrf.mxu0
      %v8460 = vadd.f32 0.0, %v8459
      %v8461 = vpop.f32.mrf.mxu0
      %v8462 = vpop.f32.mrf.mxu0
      %v8463 = vadd.f32 0.0, %v8462
      %v8464 = vpop.f32.mrf.mxu0
      %8465 = vdwg.mxu0
      %v8467 = vsel %vm7509, %v8219, 0
      %8469 = vmatprep.subr.bf16.mxu0 0
      %8470 = vmatpush1.bf16.msra.mxu0 0
      %8471 = vmatprep.subr.bf16.mxu0 0
      %8472 = vmatpush1.bf16.msra.mxu0 0
      %8473 = vmatprep.subr.bf16.mxu0 0
      %8474 = vmatpush1.bf16.msra.mxu0 0
      %8475 = vmatprep.subr.bf16.mxu0 0
      %8476 = vmatpush1.bf16.msra.mxu0 0
      %8477 = vmatprep.subr.bf16.mxu0 0
      %8478 = vmatpush1.bf16.msra.mxu0 0
      %8479 = vmatprep.subr.bf16.mxu0 0
      %8480 = vmatpush1.bf16.msra.mxu0 0
      %8481 = vmatprep.subr.bf16.mxu0 0
      %8482 = vmatpush1.bf16.msra.mxu0 0
      %8483 = vmatprep.subr.bf16.mxu0 0
      %8484 = vmatpush1.bf16.msra.mxu0 %v5554
      %8485 = vmatprep.subr.bf16.mxu0 0
      %8486 = vmatpush2.bf16.msra.mxu0 0
      %8487 = vmatprep.subr.bf16.mxu0 0
      %8488 = vmatpush2.bf16.msra.mxu0 0
      %8489 = vmatprep.subr.bf16.mxu0 0
      %8490 = vmatpush2.bf16.msra.mxu0 0
      %8491 = vmatprep.subr.bf16.mxu0 0
      %8492 = vmatpush2.bf16.msra.mxu0 0
      %8493 = vmatprep.subr.bf16.mxu0 0
      %8494 = vmatpush2.bf16.msra.mxu0 0
      %8495 = vmatprep.subr.bf16.mxu0 0
      %8496 = vmatpush2.bf16.msra.mxu0 0
      %8497 = vmatprep.subr.bf16.mxu0 0
      %8498 = vmatpush2.bf16.msra.mxu0 0
      %8499 = vmatprep.subr.bf16.mxu0 0
      %8500 = vmatpush2.bf16.msra.mxu0 0
      %8501 = vmatprep.mubr.bf16.mxu0 0
      %8502 = vmatmul.mubr.bf16.gmra.mxu0 %v8467
      %v8503 = vpop.f32.mrf.mxu0
      %v8504 = vadd.f32 0.0, %v8503
      %v8505 = vpop.f32.mrf.mxu0
      %v8506 = vpop.f32.mrf.mxu0
      %v8507 = vadd.f32 0.0, %v8506
      %v8508 = vpop.f32.mrf.mxu0
      %8509 = vdwg.mxu0
      %v8511 = vsel %vm7509, %v8220, 0
      %8513 = vmatprep.subr.bf16.mxu0 0
      %8514 = vmatpush1.bf16.msra.mxu0 0
      %8515 = vmatprep.subr.bf16.mxu0 0
      %8516 = vmatpush1.bf16.msra.mxu0 0
      %8517 = vmatprep.subr.bf16.mxu0 0
      %8518 = vmatpush1.bf16.msra.mxu0 0
      %8519 = vmatprep.subr.bf16.mxu0 0
      %8520 = vmatpush1.bf16.msra.mxu0 0
      %8521 = vmatprep.subr.bf16.mxu0 0
      %8522 = vmatpush1.bf16.msra.mxu0 0
      %8523 = vmatprep.subr.bf16.mxu0 0
      %8524 = vmatpush1.bf16.msra.mxu0 0
      %8525 = vmatprep.subr.bf16.mxu0 0
      %8526 = vmatpush1.bf16.msra.mxu0 0
      %8527 = vmatprep.subr.bf16.mxu0 0
      %8528 = vmatpush1.bf16.msra.mxu0 %v5558
      %8529 = vmatprep.subr.bf16.mxu0 0
      %8530 = vmatpush2.bf16.msra.mxu0 0
      %8531 = vmatprep.subr.bf16.mxu0 0
      %8532 = vmatpush2.bf16.msra.mxu0 0
      %8533 = vmatprep.subr.bf16.mxu0 0
      %8534 = vmatpush2.bf16.msra.mxu0 0
      %8535 = vmatprep.subr.bf16.mxu0 0
      %8536 = vmatpush2.bf16.msra.mxu0 0
      %8537 = vmatprep.subr.bf16.mxu0 0
      %8538 = vmatpush2.bf16.msra.mxu0 0
      %8539 = vmatprep.subr.bf16.mxu0 0
      %8540 = vmatpush2.bf16.msra.mxu0 0
      %8541 = vmatprep.subr.bf16.mxu0 0
      %8542 = vmatpush2.bf16.msra.mxu0 0
      %8543 = vmatprep.subr.bf16.mxu0 0
      %8544 = vmatpush2.bf16.msra.mxu0 0
      %8545 = vmatprep.mubr.bf16.mxu0 0
      %8546 = vmatmul.mubr.bf16.gmra.mxu0 %v8511
      %v8547 = vpop.f32.mrf.mxu0
      %v8548 = vadd.f32 0.0, %v8547
      %v8549 = vpop.f32.mrf.mxu0
      %v8550 = vpop.f32.mrf.mxu0
      %v8551 = vadd.f32 0.0, %v8550
      %v8552 = vpop.f32.mrf.mxu0
      %8553 = vdwg.mxu0
      %v8555 = vsel %vm7509, %v8221, 0
      %8557 = vmatprep.subr.bf16.mxu0 0
      %8558 = vmatpush1.bf16.msra.mxu0 0
      %8559 = vmatprep.subr.bf16.mxu0 0
      %8560 = vmatpush1.bf16.msra.mxu0 0
      %8561 = vmatprep.subr.bf16.mxu0 0
      %8562 = vmatpush1.bf16.msra.mxu0 0
      %8563 = vmatprep.subr.bf16.mxu0 0
      %8564 = vmatpush1.bf16.msra.mxu0 0
      %8565 = vmatprep.subr.bf16.mxu0 0
      %8566 = vmatpush1.bf16.msra.mxu0 0
      %8567 = vmatprep.subr.bf16.mxu0 0
      %8568 = vmatpush1.bf16.msra.mxu0 0
      %8569 = vmatprep.subr.bf16.mxu0 0
      %8570 = vmatpush1.bf16.msra.mxu0 0
      %8571 = vmatprep.subr.bf16.mxu0 0
      %8572 = vmatpush1.bf16.msra.mxu0 %v5562
      %8573 = vmatprep.subr.bf16.mxu0 0
      %8574 = vmatpush2.bf16.msra.mxu0 0
      %8575 = vmatprep.subr.bf16.mxu0 0
      %8576 = vmatpush2.bf16.msra.mxu0 0
      %8577 = vmatprep.subr.bf16.mxu0 0
      %8578 = vmatpush2.bf16.msra.mxu0 0
      %8579 = vmatprep.subr.bf16.mxu0 0
      %8580 = vmatpush2.bf16.msra.mxu0 0
      %8581 = vmatprep.subr.bf16.mxu0 0
      %8582 = vmatpush2.bf16.msra.mxu0 0
      %8583 = vmatprep.subr.bf16.mxu0 0
      %8584 = vmatpush2.bf16.msra.mxu0 0
      %8585 = vmatprep.subr.bf16.mxu0 0
      %8586 = vmatpush2.bf16.msra.mxu0 0
      %8587 = vmatprep.subr.bf16.mxu0 0
      %8588 = vmatpush2.bf16.msra.mxu0 0
      %8589 = vmatprep.mubr.bf16.mxu0 0
      %8590 = vmatmul.mubr.bf16.gmra.mxu0 %v8555
      %v8591 = vpop.f32.mrf.mxu0
      %v8592 = vadd.f32 0.0, %v8591
      %v8593 = vpop.f32.mrf.mxu0
      %v8594 = vpop.f32.mrf.mxu0
      %v8595 = vadd.f32 0.0, %v8594
      %v8596 = vpop.f32.mrf.mxu0
      %8597 = vdwg.mxu0
      %v8599 = vsel %vm7509, %v8222, 0
      %8601 = vmatprep.subr.bf16.mxu0 0
      %8602 = vmatpush1.bf16.msra.mxu0 0
      %8603 = vmatprep.subr.bf16.mxu0 0
      %8604 = vmatpush1.bf16.msra.mxu0 0
      %8605 = vmatprep.subr.bf16.mxu0 0
      %8606 = vmatpush1.bf16.msra.mxu0 0
      %8607 = vmatprep.subr.bf16.mxu0 0
      %8608 = vmatpush1.bf16.msra.mxu0 0
      %8609 = vmatprep.subr.bf16.mxu0 0
      %8610 = vmatpush1.bf16.msra.mxu0 0
      %8611 = vmatprep.subr.bf16.mxu0 0
      %8612 = vmatpush1.bf16.msra.mxu0 0
      %8613 = vmatprep.subr.bf16.mxu0 0
      %8614 = vmatpush1.bf16.msra.mxu0 0
      %8615 = vmatprep.subr.bf16.mxu0 0
      %8616 = vmatpush1.bf16.msra.mxu0 %v5590
      %8617 = vmatprep.subr.bf16.mxu0 0
      %8618 = vmatpush2.bf16.msra.mxu0 0
      %8619 = vmatprep.subr.bf16.mxu0 0
      %8620 = vmatpush2.bf16.msra.mxu0 0
      %8621 = vmatprep.subr.bf16.mxu0 0
      %8622 = vmatpush2.bf16.msra.mxu0 0
      %8623 = vmatprep.subr.bf16.mxu0 0
      %8624 = vmatpush2.bf16.msra.mxu0 0
      %8625 = vmatprep.subr.bf16.mxu0 0
      %8626 = vmatpush2.bf16.msra.mxu0 0
      %8627 = vmatprep.subr.bf16.mxu0 0
      %8628 = vmatpush2.bf16.msra.mxu0 0
      %8629 = vmatprep.subr.bf16.mxu0 0
      %8630 = vmatpush2.bf16.msra.mxu0 0
      %8631 = vmatprep.subr.bf16.mxu0 0
      %8632 = vmatpush2.bf16.msra.mxu0 0
      %8633 = vmatprep.mubr.bf16.mxu0 0
      %8634 = vmatmul.mubr.bf16.gmra.mxu0 %v8599
      %v8635 = vpop.f32.mrf.mxu0
      %v8636 = vadd.f32 0.0, %v8635
      %v8637 = vpop.f32.mrf.mxu0
      %v8638 = vpop.f32.mrf.mxu0
      %v8639 = vadd.f32 0.0, %v8638
      %v8640 = vpop.f32.mrf.mxu0
      %8641 = vdwg.mxu0
      %v8643 = vsel %vm7509, %v8223, 0
      %8645 = vmatprep.subr.bf16.mxu0 0
      %8646 = vmatpush1.bf16.msra.mxu0 0
      %8647 = vmatprep.subr.bf16.mxu0 0
      %8648 = vmatpush1.bf16.msra.mxu0 0
      %8649 = vmatprep.subr.bf16.mxu0 0
      %8650 = vmatpush1.bf16.msra.mxu0 0
      %8651 = vmatprep.subr.bf16.mxu0 0
      %8652 = vmatpush1.bf16.msra.mxu0 0
      %8653 = vmatprep.subr.bf16.mxu0 0
      %8654 = vmatpush1.bf16.msra.mxu0 0
      %8655 = vmatprep.subr.bf16.mxu0 0
      %8656 = vmatpush1.bf16.msra.mxu0 0
      %8657 = vmatprep.subr.bf16.mxu0 0
      %8658 = vmatpush1.bf16.msra.mxu0 0
      %8659 = vmatprep.subr.bf16.mxu0 0
      %8660 = vmatpush1.bf16.msra.mxu0 %v5594
      %8661 = vmatprep.subr.bf16.mxu0 0
      %8662 = vmatpush2.bf16.msra.mxu0 0
      %8663 = vmatprep.subr.bf16.mxu0 0
      %8664 = vmatpush2.bf16.msra.mxu0 0
      %8665 = vmatprep.subr.bf16.mxu0 0
      %8666 = vmatpush2.bf16.msra.mxu0 0
      %8667 = vmatprep.subr.bf16.mxu0 0
      %8668 = vmatpush2.bf16.msra.mxu0 0
      %8669 = vmatprep.subr.bf16.mxu0 0
      %8670 = vmatpush2.bf16.msra.mxu0 0
      %8671 = vmatprep.subr.bf16.mxu0 0
      %8672 = vmatpush2.bf16.msra.mxu0 0
      %8673 = vmatprep.subr.bf16.mxu0 0
      %8674 = vmatpush2.bf16.msra.mxu0 0
      %8675 = vmatprep.subr.bf16.mxu0 0
      %8676 = vmatpush2.bf16.msra.mxu0 0
      %8677 = vmatprep.mubr.bf16.mxu0 0
      %8678 = vmatmul.mubr.bf16.gmra.mxu0 %v8643
      %v8679 = vpop.f32.mrf.mxu0
      %v8680 = vadd.f32 0.0, %v8679
      %v8681 = vpop.f32.mrf.mxu0
      %v8682 = vpop.f32.mrf.mxu0
      %v8683 = vadd.f32 0.0, %v8682
      %v8684 = vpop.f32.mrf.mxu0
      %8685 = vdwg.mxu0
      %v8687 = vsel %vm7509, %v8224, 0
      %8689 = vmatprep.subr.bf16.mxu0 0
      %8690 = vmatpush1.bf16.msra.mxu0 0
      %8691 = vmatprep.subr.bf16.mxu0 0
      %8692 = vmatpush1.bf16.msra.mxu0 0
      %8693 = vmatprep.subr.bf16.mxu0 0
      %8694 = vmatpush1.bf16.msra.mxu0 0
      %8695 = vmatprep.subr.bf16.mxu0 0
      %8696 = vmatpush1.bf16.msra.mxu0 0
      %8697 = vmatprep.subr.bf16.mxu0 0
      %8698 = vmatpush1.bf16.msra.mxu0 0
      %8699 = vmatprep.subr.bf16.mxu0 0
      %8700 = vmatpush1.bf16.msra.mxu0 0
      %8701 = vmatprep.subr.bf16.mxu0 0
      %8702 = vmatpush1.bf16.msra.mxu0 0
      %8703 = vmatprep.subr.bf16.mxu0 0
      %8704 = vmatpush1.bf16.msra.mxu0 %v5598
      %8705 = vmatprep.subr.bf16.mxu0 0
      %8706 = vmatpush2.bf16.msra.mxu0 0
      %8707 = vmatprep.subr.bf16.mxu0 0
      %8708 = vmatpush2.bf16.msra.mxu0 0
      %8709 = vmatprep.subr.bf16.mxu0 0
      %8710 = vmatpush2.bf16.msra.mxu0 0
      %8711 = vmatprep.subr.bf16.mxu0 0
      %8712 = vmatpush2.bf16.msra.mxu0 0
      %8713 = vmatprep.subr.bf16.mxu0 0
      %8714 = vmatpush2.bf16.msra.mxu0 0
      %8715 = vmatprep.subr.bf16.mxu0 0
      %8716 = vmatpush2.bf16.msra.mxu0 0
      %8717 = vmatprep.subr.bf16.mxu0 0
      %8718 = vmatpush2.bf16.msra.mxu0 0
      %8719 = vmatprep.subr.bf16.mxu0 0
      %8720 = vmatpush2.bf16.msra.mxu0 0
      %8721 = vmatprep.mubr.bf16.mxu0 0
      %8722 = vmatmul.mubr.bf16.gmra.mxu0 %v8687
      %v8723 = vpop.f32.mrf.mxu0
      %v8724 = vadd.f32 0.0, %v8723
      %v8725 = vpop.f32.mrf.mxu0
      %v8726 = vpop.f32.mrf.mxu0
      %v8727 = vadd.f32 0.0, %v8726
      %v8728 = vpop.f32.mrf.mxu0
      %8729 = vdwg.mxu0
      %v8731 = vsel %vm7509, %v8225, 0
      %8733 = vmatprep.subr.bf16.mxu0 0
      %8734 = vmatpush1.bf16.msra.mxu0 0
      %8735 = vmatprep.subr.bf16.mxu0 0
      %8736 = vmatpush1.bf16.msra.mxu0 0
      %8737 = vmatprep.subr.bf16.mxu0 0
      %8738 = vmatpush1.bf16.msra.mxu0 0
      %8739 = vmatprep.subr.bf16.mxu0 0
      %8740 = vmatpush1.bf16.msra.mxu0 0
      %8741 = vmatprep.subr.bf16.mxu0 0
      %8742 = vmatpush1.bf16.msra.mxu0 0
      %8743 = vmatprep.subr.bf16.mxu0 0
      %8744 = vmatpush1.bf16.msra.mxu0 0
      %8745 = vmatprep.subr.bf16.mxu0 0
      %8746 = vmatpush1.bf16.msra.mxu0 0
      %8747 = vmatprep.subr.bf16.mxu0 0
      %8748 = vmatpush1.bf16.msra.mxu0 %v5602
      %8749 = vmatprep.subr.bf16.mxu0 0
      %8750 = vmatpush2.bf16.msra.mxu0 0
      %8751 = vmatprep.subr.bf16.mxu0 0
      %8752 = vmatpush2.bf16.msra.mxu0 0
      %8753 = vmatprep.subr.bf16.mxu0 0
      %8754 = vmatpush2.bf16.msra.mxu0 0
      %8755 = vmatprep.subr.bf16.mxu0 0
      %8756 = vmatpush2.bf16.msra.mxu0 0
      %8757 = vmatprep.subr.bf16.mxu0 0
      %8758 = vmatpush2.bf16.msra.mxu0 0
      %8759 = vmatprep.subr.bf16.mxu0 0
      %8760 = vmatpush2.bf16.msra.mxu0 0
      %8761 = vmatprep.subr.bf16.mxu0 0
      %8762 = vmatpush2.bf16.msra.mxu0 0
      %8763 = vmatprep.subr.bf16.mxu0 0
      %8764 = vmatpush2.bf16.msra.mxu0 0
      %8765 = vmatprep.mubr.bf16.mxu0 0
      %8766 = vmatmul.mubr.bf16.gmra.mxu0 %v8731
      %v8767 = vpop.f32.mrf.mxu0
      %v8768 = vadd.f32 0.0, %v8767
      %v8769 = vpop.f32.mrf.mxu0
      %v8770 = vpop.f32.mrf.mxu0
      %v8771 = vadd.f32 0.0, %v8770
      %v8772 = vpop.f32.mrf.mxu0
      %8773 = vdwg.mxu0
      %v8775 = vsel %vm7509, %v8226, 0
      %8777 = vmatprep.subr.bf16.mxu0 0
      %8778 = vmatpush1.bf16.msra.mxu0 0
      %8779 = vmatprep.subr.bf16.mxu0 0
      %8780 = vmatpush1.bf16.msra.mxu0 0
      %8781 = vmatprep.subr.bf16.mxu0 0
      %8782 = vmatpush1.bf16.msra.mxu0 0
      %8783 = vmatprep.subr.bf16.mxu0 0
      %8784 = vmatpush1.bf16.msra.mxu0 0
      %8785 = vmatprep.subr.bf16.mxu0 0
      %8786 = vmatpush1.bf16.msra.mxu0 0
      %8787 = vmatprep.subr.bf16.mxu0 0
      %8788 = vmatpush1.bf16.msra.mxu0 0
      %8789 = vmatprep.subr.bf16.mxu0 0
      %8790 = vmatpush1.bf16.msra.mxu0 0
      %8791 = vmatprep.subr.bf16.mxu0 0
      %8792 = vmatpush1.bf16.msra.mxu0 %v5630
      %8793 = vmatprep.subr.bf16.mxu0 0
      %8794 = vmatpush2.bf16.msra.mxu0 0
      %8795 = vmatprep.subr.bf16.mxu0 0
      %8796 = vmatpush2.bf16.msra.mxu0 0
      %8797 = vmatprep.subr.bf16.mxu0 0
      %8798 = vmatpush2.bf16.msra.mxu0 0
      %8799 = vmatprep.subr.bf16.mxu0 0
      %8800 = vmatpush2.bf16.msra.mxu0 0
      %8801 = vmatprep.subr.bf16.mxu0 0
      %8802 = vmatpush2.bf16.msra.mxu0 0
      %8803 = vmatprep.subr.bf16.mxu0 0
      %8804 = vmatpush2.bf16.msra.mxu0 0
      %8805 = vmatprep.subr.bf16.mxu0 0
      %8806 = vmatpush2.bf16.msra.mxu0 0
      %8807 = vmatprep.subr.bf16.mxu0 0
      %8808 = vmatpush2.bf16.msra.mxu0 0
      %8809 = vmatprep.mubr.bf16.mxu0 0
      %8810 = vmatmul.mubr.bf16.gmra.mxu0 %v8775
      %v8811 = vpop.f32.mrf.mxu0
      %v8812 = vadd.f32 0.0, %v8811
      %v8813 = vpop.f32.mrf.mxu0
      %v8814 = vpop.f32.mrf.mxu0
      %v8815 = vadd.f32 0.0, %v8814
      %v8816 = vpop.f32.mrf.mxu0
      %8817 = vdwg.mxu0
      %v8819 = vsel %vm7509, %v8227, 0
      %8821 = vmatprep.subr.bf16.mxu0 0
      %8822 = vmatpush1.bf16.msra.mxu0 0
      %8823 = vmatprep.subr.bf16.mxu0 0
      %8824 = vmatpush1.bf16.msra.mxu0 0
      %8825 = vmatprep.subr.bf16.mxu0 0
      %8826 = vmatpush1.bf16.msra.mxu0 0
      %8827 = vmatprep.subr.bf16.mxu0 0
      %8828 = vmatpush1.bf16.msra.mxu0 0
      %8829 = vmatprep.subr.bf16.mxu0 0
      %8830 = vmatpush1.bf16.msra.mxu0 0
      %8831 = vmatprep.subr.bf16.mxu0 0
      %8832 = vmatpush1.bf16.msra.mxu0 0
      %8833 = vmatprep.subr.bf16.mxu0 0
      %8834 = vmatpush1.bf16.msra.mxu0 0
      %8835 = vmatprep.subr.bf16.mxu0 0
      %8836 = vmatpush1.bf16.msra.mxu0 %v5634
      %8837 = vmatprep.subr.bf16.mxu0 0
      %8838 = vmatpush2.bf16.msra.mxu0 0
      %8839 = vmatprep.subr.bf16.mxu0 0
      %8840 = vmatpush2.bf16.msra.mxu0 0
      %8841 = vmatprep.subr.bf16.mxu0 0
      %8842 = vmatpush2.bf16.msra.mxu0 0
      %8843 = vmatprep.subr.bf16.mxu0 0
      %8844 = vmatpush2.bf16.msra.mxu0 0
      %8845 = vmatprep.subr.bf16.mxu0 0
      %8846 = vmatpush2.bf16.msra.mxu0 0
      %8847 = vmatprep.subr.bf16.mxu0 0
      %8848 = vmatpush2.bf16.msra.mxu0 0
      %8849 = vmatprep.subr.bf16.mxu0 0
      %8850 = vmatpush2.bf16.msra.mxu0 0
      %8851 = vmatprep.subr.bf16.mxu0 0
      %8852 = vmatpush2.bf16.msra.mxu0 0
      %8853 = vmatprep.mubr.bf16.mxu0 0
      %8854 = vmatmul.mubr.bf16.gmra.mxu0 %v8819
      %v8855 = vpop.f32.mrf.mxu0
      %v8856 = vadd.f32 0.0, %v8855
      %v8857 = vpop.f32.mrf.mxu0
      %v8858 = vpop.f32.mrf.mxu0
      %v8859 = vadd.f32 0.0, %v8858
      %v8860 = vpop.f32.mrf.mxu0
      %8861 = vdwg.mxu0
      %v8863 = vsel %vm7509, %v8228, 0
      %8865 = vmatprep.subr.bf16.mxu0 0
      %8866 = vmatpush1.bf16.msra.mxu0 0
      %8867 = vmatprep.subr.bf16.mxu0 0
      %8868 = vmatpush1.bf16.msra.mxu0 0
      %8869 = vmatprep.subr.bf16.mxu0 0
      %8870 = vmatpush1.bf16.msra.mxu0 0
      %8871 = vmatprep.subr.bf16.mxu0 0
      %8872 = vmatpush1.bf16.msra.mxu0 0
      %8873 = vmatprep.subr.bf16.mxu0 0
      %8874 = vmatpush1.bf16.msra.mxu0 0
      %8875 = vmatprep.subr.bf16.mxu0 0
      %8876 = vmatpush1.bf16.msra.mxu0 0
      %8877 = vmatprep.subr.bf16.mxu0 0
      %8878 = vmatpush1.bf16.msra.mxu0 0
      %8879 = vmatprep.subr.bf16.mxu0 0
      %8880 = vmatpush1.bf16.msra.mxu0 %v5638
      %8881 = vmatprep.subr.bf16.mxu0 0
      %8882 = vmatpush2.bf16.msra.mxu0 0
      %8883 = vmatprep.subr.bf16.mxu0 0
      %8884 = vmatpush2.bf16.msra.mxu0 0
      %8885 = vmatprep.subr.bf16.mxu0 0
      %8886 = vmatpush2.bf16.msra.mxu0 0
      %8887 = vmatprep.subr.bf16.mxu0 0
      %8888 = vmatpush2.bf16.msra.mxu0 0
      %8889 = vmatprep.subr.bf16.mxu0 0
      %8890 = vmatpush2.bf16.msra.mxu0 0
      %8891 = vmatprep.subr.bf16.mxu0 0
      %8892 = vmatpush2.bf16.msra.mxu0 0
      %8893 = vmatprep.subr.bf16.mxu0 0
      %8894 = vmatpush2.bf16.msra.mxu0 0
      %8895 = vmatprep.subr.bf16.mxu0 0
      %8896 = vmatpush2.bf16.msra.mxu0 0
      %8897 = vmatprep.mubr.bf16.mxu0 0
      %8898 = vmatmul.mubr.bf16.gmra.mxu0 %v8863
      %v8899 = vpop.f32.mrf.mxu0
      %v8900 = vadd.f32 0.0, %v8899
      %v8901 = vpop.f32.mrf.mxu0
      %v8902 = vpop.f32.mrf.mxu0
      %v8903 = vadd.f32 0.0, %v8902
      %v8904 = vpop.f32.mrf.mxu0
      %8905 = vdwg.mxu0
      %v8907 = vsel %vm7509, %v8229, 0
      %8909 = vmatprep.subr.bf16.mxu0 0
      %8910 = vmatpush1.bf16.msra.mxu0 0
      %8911 = vmatprep.subr.bf16.mxu0 0
      %8912 = vmatpush1.bf16.msra.mxu0 0
      %8913 = vmatprep.subr.bf16.mxu0 0
      %8914 = vmatpush1.bf16.msra.mxu0 0
      %8915 = vmatprep.subr.bf16.mxu0 0
      %8916 = vmatpush1.bf16.msra.mxu0 0
      %8917 = vmatprep.subr.bf16.mxu0 0
      %8918 = vmatpush1.bf16.msra.mxu0 0
      %8919 = vmatprep.subr.bf16.mxu0 0
      %8920 = vmatpush1.bf16.msra.mxu0 0
      %8921 = vmatprep.subr.bf16.mxu0 0
      %8922 = vmatpush1.bf16.msra.mxu0 0
      %8923 = vmatprep.subr.bf16.mxu0 0
      %8924 = vmatpush1.bf16.msra.mxu0 %v5642
      %8925 = vmatprep.subr.bf16.mxu0 0
      %8926 = vmatpush2.bf16.msra.mxu0 0
      %8927 = vmatprep.subr.bf16.mxu0 0
      %8928 = vmatpush2.bf16.msra.mxu0 0
      %8929 = vmatprep.subr.bf16.mxu0 0
      %8930 = vmatpush2.bf16.msra.mxu0 0
      %8931 = vmatprep.subr.bf16.mxu0 0
      %8932 = vmatpush2.bf16.msra.mxu0 0
      %8933 = vmatprep.subr.bf16.mxu0 0
      %8934 = vmatpush2.bf16.msra.mxu0 0
      %8935 = vmatprep.subr.bf16.mxu0 0
      %8936 = vmatpush2.bf16.msra.mxu0 0
      %8937 = vmatprep.subr.bf16.mxu0 0
      %8938 = vmatpush2.bf16.msra.mxu0 0
      %8939 = vmatprep.subr.bf16.mxu0 0
      %8940 = vmatpush2.bf16.msra.mxu0 0
      %8941 = vmatprep.mubr.bf16.mxu0 0
      %8942 = vmatmul.mubr.bf16.gmra.mxu0 %v8907
      %v8943 = vpop.f32.mrf.mxu0
      %v8944 = vadd.f32 0.0, %v8943
      %v8945 = vpop.f32.mrf.mxu0
      %v8946 = vpop.f32.mrf.mxu0
      %v8947 = vadd.f32 0.0, %v8946
      %v8948 = vpop.f32.mrf.mxu0
      %8949 = vdwg.mxu0
      %v8951 = vsel %vm7509, %v8230, 0
      %8953 = vmatprep.subr.bf16.mxu0 0
      %8954 = vmatpush1.bf16.msra.mxu0 0
      %8955 = vmatprep.subr.bf16.mxu0 0
      %8956 = vmatpush1.bf16.msra.mxu0 0
      %8957 = vmatprep.subr.bf16.mxu0 0
      %8958 = vmatpush1.bf16.msra.mxu0 0
      %8959 = vmatprep.subr.bf16.mxu0 0
      %8960 = vmatpush1.bf16.msra.mxu0 0
      %8961 = vmatprep.subr.bf16.mxu0 0
      %8962 = vmatpush1.bf16.msra.mxu0 0
      %8963 = vmatprep.subr.bf16.mxu0 0
      %8964 = vmatpush1.bf16.msra.mxu0 0
      %8965 = vmatprep.subr.bf16.mxu0 0
      %8966 = vmatpush1.bf16.msra.mxu0 0
      %8967 = vmatprep.subr.bf16.mxu0 0
      %8968 = vmatpush1.bf16.msra.mxu0 %v5670
      %8969 = vmatprep.subr.bf16.mxu0 0
      %8970 = vmatpush2.bf16.msra.mxu0 0
      %8971 = vmatprep.subr.bf16.mxu0 0
      %8972 = vmatpush2.bf16.msra.mxu0 0
      %8973 = vmatprep.subr.bf16.mxu0 0
      %8974 = vmatpush2.bf16.msra.mxu0 0
      %8975 = vmatprep.subr.bf16.mxu0 0
      %8976 = vmatpush2.bf16.msra.mxu0 0
      %8977 = vmatprep.subr.bf16.mxu0 0
      %8978 = vmatpush2.bf16.msra.mxu0 0
      %8979 = vmatprep.subr.bf16.mxu0 0
      %8980 = vmatpush2.bf16.msra.mxu0 0
      %8981 = vmatprep.subr.bf16.mxu0 0
      %8982 = vmatpush2.bf16.msra.mxu0 0
      %8983 = vmatprep.subr.bf16.mxu0 0
      %8984 = vmatpush2.bf16.msra.mxu0 0
      %8985 = vmatprep.mubr.bf16.mxu0 0
      %8986 = vmatmul.mubr.bf16.gmra.mxu0 %v8951
      %v8987 = vpop.f32.mrf.mxu0
      %v8988 = vadd.f32 0.0, %v8987
      %v8989 = vpop.f32.mrf.mxu0
      %v8990 = vpop.f32.mrf.mxu0
      %v8991 = vadd.f32 0.0, %v8990
      %v8992 = vpop.f32.mrf.mxu0
      %8993 = vdwg.mxu0
      %v8995 = vsel %vm7509, %v8231, 0
      %8997 = vmatprep.subr.bf16.mxu0 0
      %8998 = vmatpush1.bf16.msra.mxu0 0
      %8999 = vmatprep.subr.bf16.mxu0 0
      %9000 = vmatpush1.bf16.msra.mxu0 0
      %9001 = vmatprep.subr.bf16.mxu0 0
      %9002 = vmatpush1.bf16.msra.mxu0 0
      %9003 = vmatprep.subr.bf16.mxu0 0
      %9004 = vmatpush1.bf16.msra.mxu0 0
      %9005 = vmatprep.subr.bf16.mxu0 0
      %9006 = vmatpush1.bf16.msra.mxu0 0
      %9007 = vmatprep.subr.bf16.mxu0 0
      %9008 = vmatpush1.bf16.msra.mxu0 0
      %9009 = vmatprep.subr.bf16.mxu0 0
      %9010 = vmatpush1.bf16.msra.mxu0 0
      %9011 = vmatprep.subr.bf16.mxu0 0
      %9012 = vmatpush1.bf16.msra.mxu0 %v5674
      %9013 = vmatprep.subr.bf16.mxu0 0
      %9014 = vmatpush2.bf16.msra.mxu0 0
      %9015 = vmatprep.subr.bf16.mxu0 0
      %9016 = vmatpush2.bf16.msra.mxu0 0
      %9017 = vmatprep.subr.bf16.mxu0 0
      %9018 = vmatpush2.bf16.msra.mxu0 0
      %9019 = vmatprep.subr.bf16.mxu0 0
      %9020 = vmatpush2.bf16.msra.mxu0 0
      %9021 = vmatprep.subr.bf16.mxu0 0
      %9022 = vmatpush2.bf16.msra.mxu0 0
      %9023 = vmatprep.subr.bf16.mxu0 0
      %9024 = vmatpush2.bf16.msra.mxu0 0
      %9025 = vmatprep.subr.bf16.mxu0 0
      %9026 = vmatpush2.bf16.msra.mxu0 0
      %9027 = vmatprep.subr.bf16.mxu0 0
      %9028 = vmatpush2.bf16.msra.mxu0 0
      %9029 = vmatprep.mubr.bf16.mxu0 0
      %9030 = vmatmul.mubr.bf16.gmra.mxu0 %v8995
      %v9031 = vpop.f32.mrf.mxu0
      %v9032 = vadd.f32 0.0, %v9031
      %v9033 = vpop.f32.mrf.mxu0
      %v9034 = vpop.f32.mrf.mxu0
      %v9035 = vadd.f32 0.0, %v9034
      %v9036 = vpop.f32.mrf.mxu0
      %9037 = vdwg.mxu0
      %v9039 = vsel %vm7509, %v8232, 0
      %9041 = vmatprep.subr.bf16.mxu0 0
      %9042 = vmatpush1.bf16.msra.mxu0 0
      %9043 = vmatprep.subr.bf16.mxu0 0
      %9044 = vmatpush1.bf16.msra.mxu0 0
      %9045 = vmatprep.subr.bf16.mxu0 0
      %9046 = vmatpush1.bf16.msra.mxu0 0
      %9047 = vmatprep.subr.bf16.mxu0 0
      %9048 = vmatpush1.bf16.msra.mxu0 0
      %9049 = vmatprep.subr.bf16.mxu0 0
      %9050 = vmatpush1.bf16.msra.mxu0 0
      %9051 = vmatprep.subr.bf16.mxu0 0
      %9052 = vmatpush1.bf16.msra.mxu0 0
      %9053 = vmatprep.subr.bf16.mxu0 0
      %9054 = vmatpush1.bf16.msra.mxu0 0
      %9055 = vmatprep.subr.bf16.mxu0 0
      %9056 = vmatpush1.bf16.msra.mxu0 %v5678
      %9057 = vmatprep.subr.bf16.mxu0 0
      %9058 = vmatpush2.bf16.msra.mxu0 0
      %9059 = vmatprep.subr.bf16.mxu0 0
      %9060 = vmatpush2.bf16.msra.mxu0 0
      %9061 = vmatprep.subr.bf16.mxu0 0
      %9062 = vmatpush2.bf16.msra.mxu0 0
      %9063 = vmatprep.subr.bf16.mxu0 0
      %9064 = vmatpush2.bf16.msra.mxu0 0
      %9065 = vmatprep.subr.bf16.mxu0 0
      %9066 = vmatpush2.bf16.msra.mxu0 0
      %9067 = vmatprep.subr.bf16.mxu0 0
      %9068 = vmatpush2.bf16.msra.mxu0 0
      %9069 = vmatprep.subr.bf16.mxu0 0
      %9070 = vmatpush2.bf16.msra.mxu0 0
      %9071 = vmatprep.subr.bf16.mxu0 0
      %9072 = vmatpush2.bf16.msra.mxu0 0
      %9073 = vmatprep.mubr.bf16.mxu0 0
      %9074 = vmatmul.mubr.bf16.gmra.mxu0 %v9039
      %v9075 = vpop.f32.mrf.mxu0
      %v9076 = vadd.f32 0.0, %v9075
      %v9077 = vpop.f32.mrf.mxu0
      %v9078 = vpop.f32.mrf.mxu0
      %v9079 = vadd.f32 0.0, %v9078
      %v9080 = vpop.f32.mrf.mxu0
      %9081 = vdwg.mxu0
      %v9083 = vsel %vm7509, %v8233, 0
      %9085 = vmatprep.subr.bf16.mxu0 0
      %9086 = vmatpush1.bf16.msra.mxu0 0
      %9087 = vmatprep.subr.bf16.mxu0 0
      %9088 = vmatpush1.bf16.msra.mxu0 0
      %9089 = vmatprep.subr.bf16.mxu0 0
      %9090 = vmatpush1.bf16.msra.mxu0 0
      %9091 = vmatprep.subr.bf16.mxu0 0
      %9092 = vmatpush1.bf16.msra.mxu0 0
      %9093 = vmatprep.subr.bf16.mxu0 0
      %9094 = vmatpush1.bf16.msra.mxu0 0
      %9095 = vmatprep.subr.bf16.mxu0 0
      %9096 = vmatpush1.bf16.msra.mxu0 0
      %9097 = vmatprep.subr.bf16.mxu0 0
      %9098 = vmatpush1.bf16.msra.mxu0 0
      %9099 = vmatprep.subr.bf16.mxu0 0
      %9100 = vmatpush1.bf16.msra.mxu0 %v5682
      %9101 = vmatprep.subr.bf16.mxu0 0
      %9102 = vmatpush2.bf16.msra.mxu0 0
      %9103 = vmatprep.subr.bf16.mxu0 0
      %9104 = vmatpush2.bf16.msra.mxu0 0
      %9105 = vmatprep.subr.bf16.mxu0 0
      %9106 = vmatpush2.bf16.msra.mxu0 0
      %9107 = vmatprep.subr.bf16.mxu0 0
      %9108 = vmatpush2.bf16.msra.mxu0 0
      %9109 = vmatprep.subr.bf16.mxu0 0
      %9110 = vmatpush2.bf16.msra.mxu0 0
      %9111 = vmatprep.subr.bf16.mxu0 0
      %9112 = vmatpush2.bf16.msra.mxu0 0
      %9113 = vmatprep.subr.bf16.mxu0 0
      %9114 = vmatpush2.bf16.msra.mxu0 0
      %9115 = vmatprep.subr.bf16.mxu0 0
      %9116 = vmatpush2.bf16.msra.mxu0 0
      %9117 = vmatprep.mubr.bf16.mxu0 0
      %9118 = vmatmul.mubr.bf16.gmra.mxu0 %v9083
      %v9119 = vpop.f32.mrf.mxu0
      %v9120 = vadd.f32 0.0, %v9119
      %v9121 = vpop.f32.mrf.mxu0
      %v9122 = vpop.f32.mrf.mxu0
      %v9123 = vadd.f32 0.0, %v9122
      %v9124 = vpop.f32.mrf.mxu0
      %9125 = vdwg.mxu0
      %v9127 = vsel %vm7509, %v8234, 0
      %9129 = vmatprep.subr.bf16.mxu0 0
      %9130 = vmatpush1.bf16.msra.mxu0 0
      %9131 = vmatprep.subr.bf16.mxu0 0
      %9132 = vmatpush1.bf16.msra.mxu0 0
      %9133 = vmatprep.subr.bf16.mxu0 0
      %9134 = vmatpush1.bf16.msra.mxu0 0
      %9135 = vmatprep.subr.bf16.mxu0 0
      %9136 = vmatpush1.bf16.msra.mxu0 0
      %9137 = vmatprep.subr.bf16.mxu0 0
      %9138 = vmatpush1.bf16.msra.mxu0 0
      %9139 = vmatprep.subr.bf16.mxu0 0
      %9140 = vmatpush1.bf16.msra.mxu0 0
      %9141 = vmatprep.subr.bf16.mxu0 0
      %9142 = vmatpush1.bf16.msra.mxu0 0
      %9143 = vmatprep.subr.bf16.mxu0 0
      %9144 = vmatpush1.bf16.msra.mxu0 %v5710
      %9145 = vmatprep.subr.bf16.mxu0 0
      %9146 = vmatpush2.bf16.msra.mxu0 0
      %9147 = vmatprep.subr.bf16.mxu0 0
      %9148 = vmatpush2.bf16.msra.mxu0 0
      %9149 = vmatprep.subr.bf16.mxu0 0
      %9150 = vmatpush2.bf16.msra.mxu0 0
      %9151 = vmatprep.subr.bf16.mxu0 0
      %9152 = vmatpush2.bf16.msra.mxu0 0
      %9153 = vmatprep.subr.bf16.mxu0 0
      %9154 = vmatpush2.bf16.msra.mxu0 0
      %9155 = vmatprep.subr.bf16.mxu0 0
      %9156 = vmatpush2.bf16.msra.mxu0 0
      %9157 = vmatprep.subr.bf16.mxu0 0
      %9158 = vmatpush2.bf16.msra.mxu0 0
      %9159 = vmatprep.subr.bf16.mxu0 0
      %9160 = vmatpush2.bf16.msra.mxu0 0
      %9161 = vmatprep.mubr.bf16.mxu0 0
      %9162 = vmatmul.mubr.bf16.gmra.mxu0 %v9127
      %v9163 = vpop.f32.mrf.mxu0
      %v9164 = vadd.f32 0.0, %v9163
      %v9165 = vpop.f32.mrf.mxu0
      %v9166 = vpop.f32.mrf.mxu0
      %v9167 = vadd.f32 0.0, %v9166
      %v9168 = vpop.f32.mrf.mxu0
      %9169 = vdwg.mxu0
      %v9171 = vsel %vm7509, %v8235, 0
      %9173 = vmatprep.subr.bf16.mxu0 0
      %9174 = vmatpush1.bf16.msra.mxu0 0
      %9175 = vmatprep.subr.bf16.mxu0 0
      %9176 = vmatpush1.bf16.msra.mxu0 0
      %9177 = vmatprep.subr.bf16.mxu0 0
      %9178 = vmatpush1.bf16.msra.mxu0 0
      %9179 = vmatprep.subr.bf16.mxu0 0
      %9180 = vmatpush1.bf16.msra.mxu0 0
      %9181 = vmatprep.subr.bf16.mxu0 0
      %9182 = vmatpush1.bf16.msra.mxu0 0
      %9183 = vmatprep.subr.bf16.mxu0 0
      %9184 = vmatpush1.bf16.msra.mxu0 0
      %9185 = vmatprep.subr.bf16.mxu0 0
      %9186 = vmatpush1.bf16.msra.mxu0 0
      %9187 = vmatprep.subr.bf16.mxu0 0
      %9188 = vmatpush1.bf16.msra.mxu0 %v5714
      %9189 = vmatprep.subr.bf16.mxu0 0
      %9190 = vmatpush2.bf16.msra.mxu0 0
      %9191 = vmatprep.subr.bf16.mxu0 0
      %9192 = vmatpush2.bf16.msra.mxu0 0
      %9193 = vmatprep.subr.bf16.mxu0 0
      %9194 = vmatpush2.bf16.msra.mxu0 0
      %9195 = vmatprep.subr.bf16.mxu0 0
      %9196 = vmatpush2.bf16.msra.mxu0 0
      %9197 = vmatprep.subr.bf16.mxu0 0
      %9198 = vmatpush2.bf16.msra.mxu0 0
      %9199 = vmatprep.subr.bf16.mxu0 0
      %9200 = vmatpush2.bf16.msra.mxu0 0
      %9201 = vmatprep.subr.bf16.mxu0 0
      %9202 = vmatpush2.bf16.msra.mxu0 0
      %9203 = vmatprep.subr.bf16.mxu0 0
      %9204 = vmatpush2.bf16.msra.mxu0 0
      %9205 = vmatprep.mubr.bf16.mxu0 0
      %9206 = vmatmul.mubr.bf16.gmra.mxu0 %v9171
      %v9207 = vpop.f32.mrf.mxu0
      %v9208 = vadd.f32 0.0, %v9207
      %v9209 = vpop.f32.mrf.mxu0
      %v9210 = vpop.f32.mrf.mxu0
      %v9211 = vadd.f32 0.0, %v9210
      %v9212 = vpop.f32.mrf.mxu0
      %9213 = vdwg.mxu0
      %v9215 = vsel %vm7509, %v8236, 0
      %9217 = vmatprep.subr.bf16.mxu0 0
      %9218 = vmatpush1.bf16.msra.mxu0 0
      %9219 = vmatprep.subr.bf16.mxu0 0
      %9220 = vmatpush1.bf16.msra.mxu0 0
      %9221 = vmatprep.subr.bf16.mxu0 0
      %9222 = vmatpush1.bf16.msra.mxu0 0
      %9223 = vmatprep.subr.bf16.mxu0 0
      %9224 = vmatpush1.bf16.msra.mxu0 0
      %9225 = vmatprep.subr.bf16.mxu0 0
      %9226 = vmatpush1.bf16.msra.mxu0 0
      %9227 = vmatprep.subr.bf16.mxu0 0
      %9228 = vmatpush1.bf16.msra.mxu0 0
      %9229 = vmatprep.subr.bf16.mxu0 0
      %9230 = vmatpush1.bf16.msra.mxu0 0
      %9231 = vmatprep.subr.bf16.mxu0 0
      %9232 = vmatpush1.bf16.msra.mxu0 %v5718
      %9233 = vmatprep.subr.bf16.mxu0 0
      %9234 = vmatpush2.bf16.msra.mxu0 0
      %9235 = vmatprep.subr.bf16.mxu0 0
      %9236 = vmatpush2.bf16.msra.mxu0 0
      %9237 = vmatprep.subr.bf16.mxu0 0
      %9238 = vmatpush2.bf16.msra.mxu0 0
      %9239 = vmatprep.subr.bf16.mxu0 0
      %9240 = vmatpush2.bf16.msra.mxu0 0
      %9241 = vmatprep.subr.bf16.mxu0 0
      %9242 = vmatpush2.bf16.msra.mxu0 0
      %9243 = vmatprep.subr.bf16.mxu0 0
      %9244 = vmatpush2.bf16.msra.mxu0 0
      %9245 = vmatprep.subr.bf16.mxu0 0
      %9246 = vmatpush2.bf16.msra.mxu0 0
      %9247 = vmatprep.subr.bf16.mxu0 0
      %9248 = vmatpush2.bf16.msra.mxu0 0
      %9249 = vmatprep.mubr.bf16.mxu0 0
      %9250 = vmatmul.mubr.bf16.gmra.mxu0 %v9215
      %v9251 = vpop.f32.mrf.mxu0
      %v9252 = vadd.f32 0.0, %v9251
      %v9253 = vpop.f32.mrf.mxu0
      %v9254 = vpop.f32.mrf.mxu0
      %v9255 = vadd.f32 0.0, %v9254
      %v9256 = vpop.f32.mrf.mxu0
      %9257 = vdwg.mxu0
      %v9259 = vsel %vm7509, %v8237, 0
      %9261 = vmatprep.subr.bf16.mxu0 0
      %9262 = vmatpush1.bf16.msra.mxu0 0
      %9263 = vmatprep.subr.bf16.mxu0 0
      %9264 = vmatpush1.bf16.msra.mxu0 0
      %9265 = vmatprep.subr.bf16.mxu0 0
      %9266 = vmatpush1.bf16.msra.mxu0 0
      %9267 = vmatprep.subr.bf16.mxu0 0
      %9268 = vmatpush1.bf16.msra.mxu0 0
      %9269 = vmatprep.subr.bf16.mxu0 0
      %9270 = vmatpush1.bf16.msra.mxu0 0
      %9271 = vmatprep.subr.bf16.mxu0 0
      %9272 = vmatpush1.bf16.msra.mxu0 0
      %9273 = vmatprep.subr.bf16.mxu0 0
      %9274 = vmatpush1.bf16.msra.mxu0 0
      %9275 = vmatprep.subr.bf16.mxu0 0
      %9276 = vmatpush1.bf16.msra.mxu0 %v5722
      %9277 = vmatprep.subr.bf16.mxu0 0
      %9278 = vmatpush2.bf16.msra.mxu0 0
      %9279 = vmatprep.subr.bf16.mxu0 0
      %9280 = vmatpush2.bf16.msra.mxu0 0
      %9281 = vmatprep.subr.bf16.mxu0 0
      %9282 = vmatpush2.bf16.msra.mxu0 0
      %9283 = vmatprep.subr.bf16.mxu0 0
      %9284 = vmatpush2.bf16.msra.mxu0 0
      %9285 = vmatprep.subr.bf16.mxu0 0
      %9286 = vmatpush2.bf16.msra.mxu0 0
      %9287 = vmatprep.subr.bf16.mxu0 0
      %9288 = vmatpush2.bf16.msra.mxu0 0
      %9289 = vmatprep.subr.bf16.mxu0 0
      %9290 = vmatpush2.bf16.msra.mxu0 0
      %9291 = vmatprep.subr.bf16.mxu0 0
      %9292 = vmatpush2.bf16.msra.mxu0 0
      %9293 = vmatprep.mubr.bf16.mxu0 0
      %9294 = vmatmul.mubr.bf16.gmra.mxu0 %v9259
      %v9295 = vpop.f32.mrf.mxu0
      %v9296 = vadd.f32 0.0, %v9295
      %v9297 = vpop.f32.mrf.mxu0
      %v9298 = vpop.f32.mrf.mxu0
      %v9299 = vadd.f32 0.0, %v9298
      %v9300 = vpop.f32.mrf.mxu0
      %9301 = vdwg.mxu0
      %v9303 = vsel %vm7509, %v8238, 0
      %9305 = vmatprep.subr.bf16.mxu0 0
      %9306 = vmatpush1.bf16.msra.mxu0 0
      %9307 = vmatprep.subr.bf16.mxu0 0
      %9308 = vmatpush1.bf16.msra.mxu0 0
      %9309 = vmatprep.subr.bf16.mxu0 0
      %9310 = vmatpush1.bf16.msra.mxu0 0
      %9311 = vmatprep.subr.bf16.mxu0 0
      %9312 = vmatpush1.bf16.msra.mxu0 0
      %9313 = vmatprep.subr.bf16.mxu0 0
      %9314 = vmatpush1.bf16.msra.mxu0 0
      %9315 = vmatprep.subr.bf16.mxu0 0
      %9316 = vmatpush1.bf16.msra.mxu0 0
      %9317 = vmatprep.subr.bf16.mxu0 0
      %9318 = vmatpush1.bf16.msra.mxu0 0
      %9319 = vmatprep.subr.bf16.mxu0 0
      %9320 = vmatpush1.bf16.msra.mxu0 %v5750
      %9321 = vmatprep.subr.bf16.mxu0 0
      %9322 = vmatpush2.bf16.msra.mxu0 0
      %9323 = vmatprep.subr.bf16.mxu0 0
      %9324 = vmatpush2.bf16.msra.mxu0 0
      %9325 = vmatprep.subr.bf16.mxu0 0
      %9326 = vmatpush2.bf16.msra.mxu0 0
      %9327 = vmatprep.subr.bf16.mxu0 0
      %9328 = vmatpush2.bf16.msra.mxu0 0
      %9329 = vmatprep.subr.bf16.mxu0 0
      %9330 = vmatpush2.bf16.msra.mxu0 0
      %9331 = vmatprep.subr.bf16.mxu0 0
      %9332 = vmatpush2.bf16.msra.mxu0 0
      %9333 = vmatprep.subr.bf16.mxu0 0
      %9334 = vmatpush2.bf16.msra.mxu0 0
      %9335 = vmatprep.subr.bf16.mxu0 0
      %9336 = vmatpush2.bf16.msra.mxu0 0
      %9337 = vmatprep.mubr.bf16.mxu0 0
      %9338 = vmatmul.mubr.bf16.gmra.mxu0 %v9303
      %v9339 = vpop.f32.mrf.mxu0
      %v9340 = vadd.f32 0.0, %v9339
      %v9341 = vpop.f32.mrf.mxu0
      %v9342 = vpop.f32.mrf.mxu0
      %v9343 = vadd.f32 0.0, %v9342
      %v9344 = vpop.f32.mrf.mxu0
      %9345 = vdwg.mxu0
      %v9347 = vsel %vm7509, %v8239, 0
      %9349 = vmatprep.subr.bf16.mxu0 0
      %9350 = vmatpush1.bf16.msra.mxu0 0
      %9351 = vmatprep.subr.bf16.mxu0 0
      %9352 = vmatpush1.bf16.msra.mxu0 0
      %9353 = vmatprep.subr.bf16.mxu0 0
      %9354 = vmatpush1.bf16.msra.mxu0 0
      %9355 = vmatprep.subr.bf16.mxu0 0
      %9356 = vmatpush1.bf16.msra.mxu0 0
      %9357 = vmatprep.subr.bf16.mxu0 0
      %9358 = vmatpush1.bf16.msra.mxu0 0
      %9359 = vmatprep.subr.bf16.mxu0 0
      %9360 = vmatpush1.bf16.msra.mxu0 0
      %9361 = vmatprep.subr.bf16.mxu0 0
      %9362 = vmatpush1.bf16.msra.mxu0 0
      %9363 = vmatprep.subr.bf16.mxu0 0
      %9364 = vmatpush1.bf16.msra.mxu0 %v5754
      %9365 = vmatprep.subr.bf16.mxu0 0
      %9366 = vmatpush2.bf16.msra.mxu0 0
      %9367 = vmatprep.subr.bf16.mxu0 0
      %9368 = vmatpush2.bf16.msra.mxu0 0
      %9369 = vmatprep.subr.bf16.mxu0 0
      %9370 = vmatpush2.bf16.msra.mxu0 0
      %9371 = vmatprep.subr.bf16.mxu0 0
      %9372 = vmatpush2.bf16.msra.mxu0 0
      %9373 = vmatprep.subr.bf16.mxu0 0
      %9374 = vmatpush2.bf16.msra.mxu0 0
      %9375 = vmatprep.subr.bf16.mxu0 0
      %9376 = vmatpush2.bf16.msra.mxu0 0
      %9377 = vmatprep.subr.bf16.mxu0 0
      %9378 = vmatpush2.bf16.msra.mxu0 0
      %9379 = vmatprep.subr.bf16.mxu0 0
      %9380 = vmatpush2.bf16.msra.mxu0 0
      %9381 = vmatprep.mubr.bf16.mxu0 0
      %9382 = vmatmul.mubr.bf16.gmra.mxu0 %v9347
      %v9383 = vpop.f32.mrf.mxu0
      %v9384 = vadd.f32 0.0, %v9383
      %v9385 = vpop.f32.mrf.mxu0
      %v9386 = vpop.f32.mrf.mxu0
      %v9387 = vadd.f32 0.0, %v9386
      %v9388 = vpop.f32.mrf.mxu0
      %9389 = vdwg.mxu0
      %v9391 = vsel %vm7509, %v8240, 0
      %9393 = vmatprep.subr.bf16.mxu0 0
      %9394 = vmatpush1.bf16.msra.mxu0 0
      %9395 = vmatprep.subr.bf16.mxu0 0
      %9396 = vmatpush1.bf16.msra.mxu0 0
      %9397 = vmatprep.subr.bf16.mxu0 0
      %9398 = vmatpush1.bf16.msra.mxu0 0
      %9399 = vmatprep.subr.bf16.mxu0 0
      %9400 = vmatpush1.bf16.msra.mxu0 0
      %9401 = vmatprep.subr.bf16.mxu0 0
      %9402 = vmatpush1.bf16.msra.mxu0 0
      %9403 = vmatprep.subr.bf16.mxu0 0
      %9404 = vmatpush1.bf16.msra.mxu0 0
      %9405 = vmatprep.subr.bf16.mxu0 0
      %9406 = vmatpush1.bf16.msra.mxu0 0
      %9407 = vmatprep.subr.bf16.mxu0 0
      %9408 = vmatpush1.bf16.msra.mxu0 %v5758
      %9409 = vmatprep.subr.bf16.mxu0 0
      %9410 = vmatpush2.bf16.msra.mxu0 0
      %9411 = vmatprep.subr.bf16.mxu0 0
      %9412 = vmatpush2.bf16.msra.mxu0 0
      %9413 = vmatprep.subr.bf16.mxu0 0
      %9414 = vmatpush2.bf16.msra.mxu0 0
      %9415 = vmatprep.subr.bf16.mxu0 0
      %9416 = vmatpush2.bf16.msra.mxu0 0
      %9417 = vmatprep.subr.bf16.mxu0 0
      %9418 = vmatpush2.bf16.msra.mxu0 0
      %9419 = vmatprep.subr.bf16.mxu0 0
      %9420 = vmatpush2.bf16.msra.mxu0 0
      %9421 = vmatprep.subr.bf16.mxu0 0
      %9422 = vmatpush2.bf16.msra.mxu0 0
      %9423 = vmatprep.subr.bf16.mxu0 0
      %9424 = vmatpush2.bf16.msra.mxu0 0
      %9425 = vmatprep.mubr.bf16.mxu0 0
      %9426 = vmatmul.mubr.bf16.gmra.mxu0 %v9391
      %v9427 = vpop.f32.mrf.mxu0
      %v9428 = vadd.f32 0.0, %v9427
      %v9429 = vpop.f32.mrf.mxu0
      %v9430 = vpop.f32.mrf.mxu0
      %v9431 = vadd.f32 0.0, %v9430
      %v9432 = vpop.f32.mrf.mxu0
      %9433 = vdwg.mxu0
      %v9435 = vsel %vm7509, %v8241, 0
      %9437 = vmatprep.subr.bf16.mxu0 0
      %9438 = vmatpush1.bf16.msra.mxu0 0
      %9439 = vmatprep.subr.bf16.mxu0 0
      %9440 = vmatpush1.bf16.msra.mxu0 0
      %9441 = vmatprep.subr.bf16.mxu0 0
      %9442 = vmatpush1.bf16.msra.mxu0 0
      %9443 = vmatprep.subr.bf16.mxu0 0
      %9444 = vmatpush1.bf16.msra.mxu0 0
      %9445 = vmatprep.subr.bf16.mxu0 0
      %9446 = vmatpush1.bf16.msra.mxu0 0
      %9447 = vmatprep.subr.bf16.mxu0 0
      %9448 = vmatpush1.bf16.msra.mxu0 0
      %9449 = vmatprep.subr.bf16.mxu0 0
      %9450 = vmatpush1.bf16.msra.mxu0 0
      %9451 = vmatprep.subr.bf16.mxu0 0
      %9452 = vmatpush1.bf16.msra.mxu0 %v5762
      %9453 = vmatprep.subr.bf16.mxu0 0
      %9454 = vmatpush2.bf16.msra.mxu0 0
      %9455 = vmatprep.subr.bf16.mxu0 0
      %9456 = vmatpush2.bf16.msra.mxu0 0
      %9457 = vmatprep.subr.bf16.mxu0 0
      %9458 = vmatpush2.bf16.msra.mxu0 0
      %9459 = vmatprep.subr.bf16.mxu0 0
      %9460 = vmatpush2.bf16.msra.mxu0 0
      %9461 = vmatprep.subr.bf16.mxu0 0
      %9462 = vmatpush2.bf16.msra.mxu0 0
      %9463 = vmatprep.subr.bf16.mxu0 0
      %9464 = vmatpush2.bf16.msra.mxu0 0
      %9465 = vmatprep.subr.bf16.mxu0 0
      %9466 = vmatpush2.bf16.msra.mxu0 0
      %9467 = vmatprep.subr.bf16.mxu0 0
      %9468 = vmatpush2.bf16.msra.mxu0 0
      %9469 = vmatprep.mubr.bf16.mxu0 0
      %9470 = vmatmul.mubr.bf16.gmra.mxu0 %v9435
      %v9471 = vpop.f32.mrf.mxu0
      %v9472 = vadd.f32 0.0, %v9471
      %v9473 = vpop.f32.mrf.mxu0
      %v9474 = vpop.f32.mrf.mxu0
      %v9475 = vadd.f32 0.0, %v9474
      %v9476 = vpop.f32.mrf.mxu0
      %9477 = vdwg.mxu0
      %v9479 = vsel %vm7509, %v8242, 0
      %9481 = vmatprep.subr.bf16.mxu0 0
      %9482 = vmatpush1.bf16.msra.mxu0 0
      %9483 = vmatprep.subr.bf16.mxu0 0
      %9484 = vmatpush1.bf16.msra.mxu0 0
      %9485 = vmatprep.subr.bf16.mxu0 0
      %9486 = vmatpush1.bf16.msra.mxu0 0
      %9487 = vmatprep.subr.bf16.mxu0 0
      %9488 = vmatpush1.bf16.msra.mxu0 0
      %9489 = vmatprep.subr.bf16.mxu0 0
      %9490 = vmatpush1.bf16.msra.mxu0 0
      %9491 = vmatprep.subr.bf16.mxu0 0
      %9492 = vmatpush1.bf16.msra.mxu0 0
      %9493 = vmatprep.subr.bf16.mxu0 0
      %9494 = vmatpush1.bf16.msra.mxu0 0
      %9495 = vmatprep.subr.bf16.mxu0 0
      %9496 = vmatpush1.bf16.msra.mxu0 %v5790
      %9497 = vmatprep.subr.bf16.mxu0 0
      %9498 = vmatpush2.bf16.msra.mxu0 0
      %9499 = vmatprep.subr.bf16.mxu0 0
      %9500 = vmatpush2.bf16.msra.mxu0 0
      %9501 = vmatprep.subr.bf16.mxu0 0
      %9502 = vmatpush2.bf16.msra.mxu0 0
      %9503 = vmatprep.subr.bf16.mxu0 0
      %9504 = vmatpush2.bf16.msra.mxu0 0
      %9505 = vmatprep.subr.bf16.mxu0 0
      %9506 = vmatpush2.bf16.msra.mxu0 0
      %9507 = vmatprep.subr.bf16.mxu0 0
      %9508 = vmatpush2.bf16.msra.mxu0 0
      %9509 = vmatprep.subr.bf16.mxu0 0
      %9510 = vmatpush2.bf16.msra.mxu0 0
      %9511 = vmatprep.subr.bf16.mxu0 0
      %9512 = vmatpush2.bf16.msra.mxu0 0
      %9513 = vmatprep.mubr.bf16.mxu0 0
      %9514 = vmatmul.mubr.bf16.gmra.mxu0 %v9479
      %v9515 = vpop.f32.mrf.mxu0
      %v9516 = vadd.f32 0.0, %v9515
      %v9517 = vpop.f32.mrf.mxu0
      %v9518 = vpop.f32.mrf.mxu0
      %v9519 = vadd.f32 0.0, %v9518
      %v9520 = vpop.f32.mrf.mxu0
      %9521 = vdwg.mxu0
      %v9523 = vsel %vm7509, %v8243, 0
      %9525 = vmatprep.subr.bf16.mxu0 0
      %9526 = vmatpush1.bf16.msra.mxu0 0
      %9527 = vmatprep.subr.bf16.mxu0 0
      %9528 = vmatpush1.bf16.msra.mxu0 0
      %9529 = vmatprep.subr.bf16.mxu0 0
      %9530 = vmatpush1.bf16.msra.mxu0 0
      %9531 = vmatprep.subr.bf16.mxu0 0
      %9532 = vmatpush1.bf16.msra.mxu0 0
      %9533 = vmatprep.subr.bf16.mxu0 0
      %9534 = vmatpush1.bf16.msra.mxu0 0
      %9535 = vmatprep.subr.bf16.mxu0 0
      %9536 = vmatpush1.bf16.msra.mxu0 0
      %9537 = vmatprep.subr.bf16.mxu0 0
      %9538 = vmatpush1.bf16.msra.mxu0 0
      %9539 = vmatprep.subr.bf16.mxu0 0
      %9540 = vmatpush1.bf16.msra.mxu0 %v5794
      %9541 = vmatprep.subr.bf16.mxu0 0
      %9542 = vmatpush2.bf16.msra.mxu0 0
      %9543 = vmatprep.subr.bf16.mxu0 0
      %9544 = vmatpush2.bf16.msra.mxu0 0
      %9545 = vmatprep.subr.bf16.mxu0 0
      %9546 = vmatpush2.bf16.msra.mxu0 0
      %9547 = vmatprep.subr.bf16.mxu0 0
      %9548 = vmatpush2.bf16.msra.mxu0 0
      %9549 = vmatprep.subr.bf16.mxu0 0
      %9550 = vmatpush2.bf16.msra.mxu0 0
      %9551 = vmatprep.subr.bf16.mxu0 0
      %9552 = vmatpush2.bf16.msra.mxu0 0
      %9553 = vmatprep.subr.bf16.mxu0 0
      %9554 = vmatpush2.bf16.msra.mxu0 0
      %9555 = vmatprep.subr.bf16.mxu0 0
      %9556 = vmatpush2.bf16.msra.mxu0 0
      %9557 = vmatprep.mubr.bf16.mxu0 0
      %9558 = vmatmul.mubr.bf16.gmra.mxu0 %v9523
      %v9559 = vpop.f32.mrf.mxu0
      %v9560 = vadd.f32 0.0, %v9559
      %v9561 = vpop.f32.mrf.mxu0
      %v9562 = vpop.f32.mrf.mxu0
      %v9563 = vadd.f32 0.0, %v9562
      %v9564 = vpop.f32.mrf.mxu0
      %9565 = vdwg.mxu0
      %v9567 = vsel %vm7509, %v8244, 0
      %9569 = vmatprep.subr.bf16.mxu0 0
      %9570 = vmatpush1.bf16.msra.mxu0 0
      %9571 = vmatprep.subr.bf16.mxu0 0
      %9572 = vmatpush1.bf16.msra.mxu0 0
      %9573 = vmatprep.subr.bf16.mxu0 0
      %9574 = vmatpush1.bf16.msra.mxu0 0
      %9575 = vmatprep.subr.bf16.mxu0 0
      %9576 = vmatpush1.bf16.msra.mxu0 0
      %9577 = vmatprep.subr.bf16.mxu0 0
      %9578 = vmatpush1.bf16.msra.mxu0 0
      %9579 = vmatprep.subr.bf16.mxu0 0
      %9580 = vmatpush1.bf16.msra.mxu0 0
      %9581 = vmatprep.subr.bf16.mxu0 0
      %9582 = vmatpush1.bf16.msra.mxu0 0
      %9583 = vmatprep.subr.bf16.mxu0 0
      %9584 = vmatpush1.bf16.msra.mxu0 %v5798
      %9585 = vmatprep.subr.bf16.mxu0 0
      %9586 = vmatpush2.bf16.msra.mxu0 0
      %9587 = vmatprep.subr.bf16.mxu0 0
      %9588 = vmatpush2.bf16.msra.mxu0 0
      %9589 = vmatprep.subr.bf16.mxu0 0
      %9590 = vmatpush2.bf16.msra.mxu0 0
      %9591 = vmatprep.subr.bf16.mxu0 0
      %9592 = vmatpush2.bf16.msra.mxu0 0
      %9593 = vmatprep.subr.bf16.mxu0 0
      %9594 = vmatpush2.bf16.msra.mxu0 0
      %9595 = vmatprep.subr.bf16.mxu0 0
      %9596 = vmatpush2.bf16.msra.mxu0 0
      %9597 = vmatprep.subr.bf16.mxu0 0
      %9598 = vmatpush2.bf16.msra.mxu0 0
      %9599 = vmatprep.subr.bf16.mxu0 0
      %9600 = vmatpush2.bf16.msra.mxu0 0
      %9601 = vmatprep.mubr.bf16.mxu0 0
      %9602 = vmatmul.mubr.bf16.gmra.mxu0 %v9567
      %v9603 = vpop.f32.mrf.mxu0
      %v9604 = vadd.f32 0.0, %v9603
      %v9605 = vpop.f32.mrf.mxu0
      %v9606 = vpop.f32.mrf.mxu0
      %v9607 = vadd.f32 0.0, %v9606
      %v9608 = vpop.f32.mrf.mxu0
      %9609 = vdwg.mxu0
      %v9611 = vsel %vm7509, %v8245, 0
      %9613 = vmatprep.subr.bf16.mxu0 0
      %9614 = vmatpush1.bf16.msra.mxu0 0
      %9615 = vmatprep.subr.bf16.mxu0 0
      %9616 = vmatpush1.bf16.msra.mxu0 0
      %9617 = vmatprep.subr.bf16.mxu0 0
      %9618 = vmatpush1.bf16.msra.mxu0 0
      %9619 = vmatprep.subr.bf16.mxu0 0
      %9620 = vmatpush1.bf16.msra.mxu0 0
      %9621 = vmatprep.subr.bf16.mxu0 0
      %9622 = vmatpush1.bf16.msra.mxu0 0
      %9623 = vmatprep.subr.bf16.mxu0 0
      %9624 = vmatpush1.bf16.msra.mxu0 0
      %9625 = vmatprep.subr.bf16.mxu0 0
      %9626 = vmatpush1.bf16.msra.mxu0 0
      %9627 = vmatprep.subr.bf16.mxu0 0
      %9628 = vmatpush1.bf16.msra.mxu0 %v5802
      %9629 = vmatprep.subr.bf16.mxu0 0
      %9630 = vmatpush2.bf16.msra.mxu0 0
      %9631 = vmatprep.subr.bf16.mxu0 0
      %9632 = vmatpush2.bf16.msra.mxu0 0
      %9633 = vmatprep.subr.bf16.mxu0 0
      %9634 = vmatpush2.bf16.msra.mxu0 0
      %9635 = vmatprep.subr.bf16.mxu0 0
      %9636 = vmatpush2.bf16.msra.mxu0 0
      %9637 = vmatprep.subr.bf16.mxu0 0
      %9638 = vmatpush2.bf16.msra.mxu0 0
      %9639 = vmatprep.subr.bf16.mxu0 0
      %9640 = vmatpush2.bf16.msra.mxu0 0
      %9641 = vmatprep.subr.bf16.mxu0 0
      %9642 = vmatpush2.bf16.msra.mxu0 0
      %9643 = vmatprep.subr.bf16.mxu0 0
      %9644 = vmatpush2.bf16.msra.mxu0 0
      %9645 = vmatprep.mubr.bf16.mxu0 0
      %9646 = vmatmul.mubr.bf16.gmra.mxu0 %v9611
      %v9647 = vpop.f32.mrf.mxu0
      %v9648 = vadd.f32 0.0, %v9647
      %v9649 = vpop.f32.mrf.mxu0
      %v9650 = vpop.f32.mrf.mxu0
      %v9651 = vadd.f32 0.0, %v9650
      %v9652 = vpop.f32.mrf.mxu0
      %9653 = vdwg.mxu0
      %v9654 = vcombine.low %v8284, %v8372
      %v9655 = vcombine.high %v8284, %v8372
      %v9657 = vunpack.c.l.s4 1983009808
      %v9658 = vunpack.c.0.s8 %v9657
      %v9659 = vlaneseq
      %v9660 = vshrl.u32 %v9659, 7
      %v9661 = vsub.s32 %v9658, %v9660
      %v9662 = vrot.slane %v9654, %v9661
      %v9664 = vunpack.c.l.s4 1983009808
      %v9665 = vunpack.c.0.s8 %v9664
      %v9666 = vlaneseq
      %v9667 = vshrl.u32 %v9666, 7
      %v9668 = vsub.s32 %v9665, %v9667
      %v9669 = vrot.slane %v9655, %v9668
      %v9670 = vcombine.low %v8328, %v8416
      %v9671 = vcombine.high %v8328, %v8416
      %v9673 = vunpack.c.l.s4 1983009808
      %v9674 = vunpack.c.0.s8 %v9673
      %v9675 = vlaneseq
      %v9676 = vshrl.u32 %v9675, 7
      %v9677 = vsub.s32 %v9674, %v9676
      %v9678 = vrot.slane %v9670, %v9677
      %v9680 = vunpack.c.l.s4 1983009808
      %v9681 = vunpack.c.0.s8 %v9680
      %v9682 = vlaneseq
      %v9683 = vshrl.u32 %v9682, 7
      %v9684 = vsub.s32 %v9681, %v9683
      %v9685 = vrot.slane %v9671, %v9684
      %v9686 = vcombine.low %v9662, %v9678
      %v9687 = vcombine.high %v9662, %v9678
      %v9689 = vunpack.c.l.s4 1934713408
      %v9690 = vunpack.c.0.s8 %v9689
      %v9691 = vlaneseq
      %v9692 = vshrl.u32 %v9691, 7
      %v9693 = vsub.s32 %v9690, %v9692
      %v9694 = vrot.slane %v9686, %v9693
      %v9696 = vunpack.c.l.s4 1934713408
      %v9697 = vunpack.c.0.s8 %v9696
      %v9698 = vlaneseq
      %v9699 = vshrl.u32 %v9698, 7
      %v9700 = vsub.s32 %v9697, %v9699
      %v9701 = vrot.slane %v9687, %v9700
      %v9702 = vcombine.low %v9669, %v9685
      %v9703 = vcombine.high %v9669, %v9685
      %v9705 = vunpack.c.l.s4 1934713408
      %v9706 = vunpack.c.0.s8 %v9705
      %v9707 = vlaneseq
      %v9708 = vshrl.u32 %v9707, 7
      %v9709 = vsub.s32 %v9706, %v9708
      %v9710 = vrot.slane %v9702, %v9709
      %v9712 = vunpack.c.l.s4 1934713408
      %v9713 = vunpack.c.0.s8 %v9712
      %v9714 = vlaneseq
      %v9715 = vshrl.u32 %v9714, 7
      %v9716 = vsub.s32 %v9713, %v9715
      %v9717 = vrot.slane %v9703, %v9716
      %v9718 = vcombine.high %v9694, 0.0
      %v9719 = vcombine.high %v9701, 0.0
      %v9720 = vcombine.high %v9710, 0.0
      %v9721 = vcombine.high %v9717, 0.0
      %v9722 = vcombine.low %v8287, %v8375
      %v9723 = vcombine.high %v8287, %v8375
      %v9725 = vunpack.c.l.s4 1983009808
      %v9726 = vunpack.c.0.s8 %v9725
      %v9727 = vlaneseq
      %v9728 = vshrl.u32 %v9727, 7
      %v9729 = vsub.s32 %v9726, %v9728
      %v9730 = vrot.slane %v9722, %v9729
      %v9732 = vunpack.c.l.s4 1983009808
      %v9733 = vunpack.c.0.s8 %v9732
      %v9734 = vlaneseq
      %v9735 = vshrl.u32 %v9734, 7
      %v9736 = vsub.s32 %v9733, %v9735
      %v9737 = vrot.slane %v9723, %v9736
      %v9738 = vcombine.low %v8331, %v8419
      %v9739 = vcombine.high %v8331, %v8419
      %v9741 = vunpack.c.l.s4 1983009808
      %v9742 = vunpack.c.0.s8 %v9741
      %v9743 = vlaneseq
      %v9744 = vshrl.u32 %v9743, 7
      %v9745 = vsub.s32 %v9742, %v9744
      %v9746 = vrot.slane %v9738, %v9745
      %v9748 = vunpack.c.l.s4 1983009808
      %v9749 = vunpack.c.0.s8 %v9748
      %v9750 = vlaneseq
      %v9751 = vshrl.u32 %v9750, 7
      %v9752 = vsub.s32 %v9749, %v9751
      %v9753 = vrot.slane %v9739, %v9752
      %v9754 = vcombine.low %v9730, %v9746
      %v9755 = vcombine.high %v9730, %v9746
      %v9757 = vunpack.c.l.s4 1934713408
      %v9758 = vunpack.c.0.s8 %v9757
      %v9759 = vlaneseq
      %v9760 = vshrl.u32 %v9759, 7
      %v9761 = vsub.s32 %v9758, %v9760
      %v9762 = vrot.slane %v9754, %v9761
      %v9764 = vunpack.c.l.s4 1934713408
      %v9765 = vunpack.c.0.s8 %v9764
      %v9766 = vlaneseq
      %v9767 = vshrl.u32 %v9766, 7
      %v9768 = vsub.s32 %v9765, %v9767
      %v9769 = vrot.slane %v9755, %v9768
      %v9770 = vcombine.low %v9737, %v9753
      %v9771 = vcombine.high %v9737, %v9753
      %v9773 = vunpack.c.l.s4 1934713408
      %v9774 = vunpack.c.0.s8 %v9773
      %v9775 = vlaneseq
      %v9776 = vshrl.u32 %v9775, 7
      %v9777 = vsub.s32 %v9774, %v9776
      %v9778 = vrot.slane %v9770, %v9777
      %v9780 = vunpack.c.l.s4 1934713408
      %v9781 = vunpack.c.0.s8 %v9780
      %v9782 = vlaneseq
      %v9783 = vshrl.u32 %v9782, 7
      %v9784 = vsub.s32 %v9781, %v9783
      %v9785 = vrot.slane %v9771, %v9784
      %v9786 = vcombine.high %v9762, 0.0
      %v9787 = vcombine.high %v9769, 0.0
      %v9788 = vcombine.high %v9778, 0.0
      %v9789 = vcombine.high %v9785, 0.0
      %v9790 = vcombine.low %v8460, %v8548
      %v9791 = vcombine.high %v8460, %v8548
      %v9793 = vunpack.c.l.s4 1983009808
      %v9794 = vunpack.c.0.s8 %v9793
      %v9795 = vlaneseq
      %v9796 = vshrl.u32 %v9795, 7
      %v9797 = vsub.s32 %v9794, %v9796
      %v9798 = vrot.slane %v9790, %v9797
      %v9800 = vunpack.c.l.s4 1983009808
      %v9801 = vunpack.c.0.s8 %v9800
      %v9802 = vlaneseq
      %v9803 = vshrl.u32 %v9802, 7
      %v9804 = vsub.s32 %v9801, %v9803
      %v9805 = vrot.slane %v9791, %v9804
      %v9806 = vcombine.low %v8504, %v8592
      %v9807 = vcombine.high %v8504, %v8592
      %v9809 = vunpack.c.l.s4 1983009808
      %v9810 = vunpack.c.0.s8 %v9809
      %v9811 = vlaneseq
      %v9812 = vshrl.u32 %v9811, 7
      %v9813 = vsub.s32 %v9810, %v9812
      %v9814 = vrot.slane %v9806, %v9813
      %v9816 = vunpack.c.l.s4 1983009808
      %v9817 = vunpack.c.0.s8 %v9816
      %v9818 = vlaneseq
      %v9819 = vshrl.u32 %v9818, 7
      %v9820 = vsub.s32 %v9817, %v9819
      %v9821 = vrot.slane %v9807, %v9820
      %v9822 = vcombine.low %v9798, %v9814
      %v9823 = vcombine.high %v9798, %v9814
      %v9825 = vunpack.c.l.s4 1934713408
      %v9826 = vunpack.c.0.s8 %v9825
      %v9827 = vlaneseq
      %v9828 = vshrl.u32 %v9827, 7
      %v9829 = vsub.s32 %v9826, %v9828
      %v9830 = vrot.slane %v9822, %v9829
      %v9832 = vunpack.c.l.s4 1934713408
      %v9833 = vunpack.c.0.s8 %v9832
      %v9834 = vlaneseq
      %v9835 = vshrl.u32 %v9834, 7
      %v9836 = vsub.s32 %v9833, %v9835
      %v9837 = vrot.slane %v9823, %v9836
      %v9838 = vcombine.low %v9805, %v9821
      %v9839 = vcombine.high %v9805, %v9821
      %v9841 = vunpack.c.l.s4 1934713408
      %v9842 = vunpack.c.0.s8 %v9841
      %v9843 = vlaneseq
      %v9844 = vshrl.u32 %v9843, 7
      %v9845 = vsub.s32 %v9842, %v9844
      %v9846 = vrot.slane %v9838, %v9845
      %v9848 = vunpack.c.l.s4 1934713408
      %v9849 = vunpack.c.0.s8 %v9848
      %v9850 = vlaneseq
      %v9851 = vshrl.u32 %v9850, 7
      %v9852 = vsub.s32 %v9849, %v9851
      %v9853 = vrot.slane %v9839, %v9852
      %v9854 = vcombine.high %v9830, 0.0
      %v9855 = vcombine.high %v9837, 0.0
      %v9856 = vcombine.high %v9846, 0.0
      %v9857 = vcombine.high %v9853, 0.0
      %v9858 = vcombine.low %v8463, %v8551
      %v9859 = vcombine.high %v8463, %v8551
      %v9861 = vunpack.c.l.s4 1983009808
      %v9862 = vunpack.c.0.s8 %v9861
      %v9863 = vlaneseq
      %v9864 = vshrl.u32 %v9863, 7
      %v9865 = vsub.s32 %v9862, %v9864
      %v9866 = vrot.slane %v9858, %v9865
      %v9868 = vunpack.c.l.s4 1983009808
      %v9869 = vunpack.c.0.s8 %v9868
      %v9870 = vlaneseq
      %v9871 = vshrl.u32 %v9870, 7
      %v9872 = vsub.s32 %v9869, %v9871
      %v9873 = vrot.slane %v9859, %v9872
      %v9874 = vcombine.low %v8507, %v8595
      %v9875 = vcombine.high %v8507, %v8595
      %v9877 = vunpack.c.l.s4 1983009808
      %v9878 = vunpack.c.0.s8 %v9877
      %v9879 = vlaneseq
      %v9880 = vshrl.u32 %v9879, 7
      %v9881 = vsub.s32 %v9878, %v9880
      %v9882 = vrot.slane %v9874, %v9881
      %v9884 = vunpack.c.l.s4 1983009808
      %v9885 = vunpack.c.0.s8 %v9884
      %v9886 = vlaneseq
      %v9887 = vshrl.u32 %v9886, 7
      %v9888 = vsub.s32 %v9885, %v9887
      %v9889 = vrot.slane %v9875, %v9888
      %v9890 = vcombine.low %v9866, %v9882
      %v9891 = vcombine.high %v9866, %v9882
      %v9893 = vunpack.c.l.s4 1934713408
      %v9894 = vunpack.c.0.s8 %v9893
      %v9895 = vlaneseq
      %v9896 = vshrl.u32 %v9895, 7
      %v9897 = vsub.s32 %v9894, %v9896
      %v9898 = vrot.slane %v9890, %v9897
      %v9900 = vunpack.c.l.s4 1934713408
      %v9901 = vunpack.c.0.s8 %v9900
      %v9902 = vlaneseq
      %v9903 = vshrl.u32 %v9902, 7
      %v9904 = vsub.s32 %v9901, %v9903
      %v9905 = vrot.slane %v9891, %v9904
      %v9906 = vcombine.low %v9873, %v9889
      %v9907 = vcombine.high %v9873, %v9889
      %v9909 = vunpack.c.l.s4 1934713408
      %v9910 = vunpack.c.0.s8 %v9909
      %v9911 = vlaneseq
      %v9912 = vshrl.u32 %v9911, 7
      %v9913 = vsub.s32 %v9910, %v9912
      %v9914 = vrot.slane %v9906, %v9913
      %v9916 = vunpack.c.l.s4 1934713408
      %v9917 = vunpack.c.0.s8 %v9916
      %v9918 = vlaneseq
      %v9919 = vshrl.u32 %v9918, 7
      %v9920 = vsub.s32 %v9917, %v9919
      %v9921 = vrot.slane %v9907, %v9920
      %v9922 = vcombine.high %v9898, 0.0
      %v9923 = vcombine.high %v9905, 0.0
      %v9924 = vcombine.high %v9914, 0.0
      %v9925 = vcombine.high %v9921, 0.0
      %v9926 = vcombine.low %v8636, %v8724
      %v9927 = vcombine.high %v8636, %v8724
      %v9929 = vunpack.c.l.s4 1983009808
      %v9930 = vunpack.c.0.s8 %v9929
      %v9931 = vlaneseq
      %v9932 = vshrl.u32 %v9931, 7
      %v9933 = vsub.s32 %v9930, %v9932
      %v9934 = vrot.slane %v9926, %v9933
      %v9936 = vunpack.c.l.s4 1983009808
      %v9937 = vunpack.c.0.s8 %v9936
      %v9938 = vlaneseq
      %v9939 = vshrl.u32 %v9938, 7
      %v9940 = vsub.s32 %v9937, %v9939
      %v9941 = vrot.slane %v9927, %v9940
      %v9942 = vcombine.low %v8680, %v8768
      %v9943 = vcombine.high %v8680, %v8768
      %v9945 = vunpack.c.l.s4 1983009808
      %v9946 = vunpack.c.0.s8 %v9945
      %v9947 = vlaneseq
      %v9948 = vshrl.u32 %v9947, 7
      %v9949 = vsub.s32 %v9946, %v9948
      %v9950 = vrot.slane %v9942, %v9949
      %v9952 = vunpack.c.l.s4 1983009808
      %v9953 = vunpack.c.0.s8 %v9952
      %v9954 = vlaneseq
      %v9955 = vshrl.u32 %v9954, 7
      %v9956 = vsub.s32 %v9953, %v9955
      %v9957 = vrot.slane %v9943, %v9956
      %v9958 = vcombine.low %v9934, %v9950
      %v9959 = vcombine.high %v9934, %v9950
      %v9961 = vunpack.c.l.s4 1934713408
      %v9962 = vunpack.c.0.s8 %v9961
      %v9963 = vlaneseq
      %v9964 = vshrl.u32 %v9963, 7
      %v9965 = vsub.s32 %v9962, %v9964
      %v9966 = vrot.slane %v9958, %v9965
      %v9968 = vunpack.c.l.s4 1934713408
      %v9969 = vunpack.c.0.s8 %v9968
      %v9970 = vlaneseq
      %v9971 = vshrl.u32 %v9970, 7
      %v9972 = vsub.s32 %v9969, %v9971
      %v9973 = vrot.slane %v9959, %v9972
      %v9974 = vcombine.low %v9941, %v9957
      %v9975 = vcombine.high %v9941, %v9957
      %v9977 = vunpack.c.l.s4 1934713408
      %v9978 = vunpack.c.0.s8 %v9977
      %v9979 = vlaneseq
      %v9980 = vshrl.u32 %v9979, 7
      %v9981 = vsub.s32 %v9978, %v9980
      %v9982 = vrot.slane %v9974, %v9981
      %v9984 = vunpack.c.l.s4 1934713408
      %v9985 = vunpack.c.0.s8 %v9984
      %v9986 = vlaneseq
      %v9987 = vshrl.u32 %v9986, 7
      %v9988 = vsub.s32 %v9985, %v9987
      %v9989 = vrot.slane %v9975, %v9988
      %v9990 = vcombine.high %v9966, 0.0
      %v9991 = vcombine.high %v9973, 0.0
      %v9992 = vcombine.high %v9982, 0.0
      %v9993 = vcombine.high %v9989, 0.0
      %v9994 = vcombine.low %v8639, %v8727
      %v9995 = vcombine.high %v8639, %v8727
      %v9997 = vunpack.c.l.s4 1983009808
      %v9998 = vunpack.c.0.s8 %v9997
      %v9999 = vlaneseq
      %v10000 = vshrl.u32 %v9999, 7
      %v10001 = vsub.s32 %v9998, %v10000
      %v10002 = vrot.slane %v9994, %v10001
      %v10004 = vunpack.c.l.s4 1983009808
      %v10005 = vunpack.c.0.s8 %v10004
      %v10006 = vlaneseq
      %v10007 = vshrl.u32 %v10006, 7
      %v10008 = vsub.s32 %v10005, %v10007
      %v10009 = vrot.slane %v9995, %v10008
      %v10010 = vcombine.low %v8683, %v8771
      %v10011 = vcombine.high %v8683, %v8771
      %v10013 = vunpack.c.l.s4 1983009808
      %v10014 = vunpack.c.0.s8 %v10013
      %v10015 = vlaneseq
      %v10016 = vshrl.u32 %v10015, 7
      %v10017 = vsub.s32 %v10014, %v10016
      %v10018 = vrot.slane %v10010, %v10017
      %v10020 = vunpack.c.l.s4 1983009808
      %v10021 = vunpack.c.0.s8 %v10020
      %v10022 = vlaneseq
      %v10023 = vshrl.u32 %v10022, 7
      %v10024 = vsub.s32 %v10021, %v10023
      %v10025 = vrot.slane %v10011, %v10024
      %v10026 = vcombine.low %v10002, %v10018
      %v10027 = vcombine.high %v10002, %v10018
      %v10029 = vunpack.c.l.s4 1934713408
      %v10030 = vunpack.c.0.s8 %v10029
      %v10031 = vlaneseq
      %v10032 = vshrl.u32 %v10031, 7
      %v10033 = vsub.s32 %v10030, %v10032
      %v10034 = vrot.slane %v10026, %v10033
      %v10036 = vunpack.c.l.s4 1934713408
      %v10037 = vunpack.c.0.s8 %v10036
      %v10038 = vlaneseq
      %v10039 = vshrl.u32 %v10038, 7
      %v10040 = vsub.s32 %v10037, %v10039
      %v10041 = vrot.slane %v10027, %v10040
      %v10042 = vcombine.low %v10009, %v10025
      %v10043 = vcombine.high %v10009, %v10025
      %v10045 = vunpack.c.l.s4 1934713408
      %v10046 = vunpack.c.0.s8 %v10045
      %v10047 = vlaneseq
      %v10048 = vshrl.u32 %v10047, 7
      %v10049 = vsub.s32 %v10046, %v10048
      %v10050 = vrot.slane %v10042, %v10049
      %v10052 = vunpack.c.l.s4 1934713408
      %v10053 = vunpack.c.0.s8 %v10052
      %v10054 = vlaneseq
      %v10055 = vshrl.u32 %v10054, 7
      %v10056 = vsub.s32 %v10053, %v10055
      %v10057 = vrot.slane %v10043, %v10056
      %v10058 = vcombine.high %v10034, 0.0
      %v10059 = vcombine.high %v10041, 0.0
      %v10060 = vcombine.high %v10050, 0.0
      %v10061 = vcombine.high %v10057, 0.0
      %v10062 = vcombine.low %v8812, %v8900
      %v10063 = vcombine.high %v8812, %v8900
      %v10065 = vunpack.c.l.s4 1983009808
      %v10066 = vunpack.c.0.s8 %v10065
      %v10067 = vlaneseq
      %v10068 = vshrl.u32 %v10067, 7
      %v10069 = vsub.s32 %v10066, %v10068
      %v10070 = vrot.slane %v10062, %v10069
      %v10072 = vunpack.c.l.s4 1983009808
      %v10073 = vunpack.c.0.s8 %v10072
      %v10074 = vlaneseq
      %v10075 = vshrl.u32 %v10074, 7
      %v10076 = vsub.s32 %v10073, %v10075
      %v10077 = vrot.slane %v10063, %v10076
      %v10078 = vcombine.low %v8856, %v8944
      %v10079 = vcombine.high %v8856, %v8944
      %v10081 = vunpack.c.l.s4 1983009808
      %v10082 = vunpack.c.0.s8 %v10081
      %v10083 = vlaneseq
      %v10084 = vshrl.u32 %v10083, 7
      %v10085 = vsub.s32 %v10082, %v10084
      %v10086 = vrot.slane %v10078, %v10085
      %v10088 = vunpack.c.l.s4 1983009808
      %v10089 = vunpack.c.0.s8 %v10088
      %v10090 = vlaneseq
      %v10091 = vshrl.u32 %v10090, 7
      %v10092 = vsub.s32 %v10089, %v10091
      %v10093 = vrot.slane %v10079, %v10092
      %v10094 = vcombine.low %v10070, %v10086
      %v10095 = vcombine.high %v10070, %v10086
      %v10097 = vunpack.c.l.s4 1934713408
      %v10098 = vunpack.c.0.s8 %v10097
      %v10099 = vlaneseq
      %v10100 = vshrl.u32 %v10099, 7
      %v10101 = vsub.s32 %v10098, %v10100
      %v10102 = vrot.slane %v10094, %v10101
      %v10104 = vunpack.c.l.s4 1934713408
      %v10105 = vunpack.c.0.s8 %v10104
      %v10106 = vlaneseq
      %v10107 = vshrl.u32 %v10106, 7
      %v10108 = vsub.s32 %v10105, %v10107
      %v10109 = vrot.slane %v10095, %v10108
      %v10110 = vcombine.low %v10077, %v10093
      %v10111 = vcombine.high %v10077, %v10093
      %v10113 = vunpack.c.l.s4 1934713408
      %v10114 = vunpack.c.0.s8 %v10113
      %v10115 = vlaneseq
      %v10116 = vshrl.u32 %v10115, 7
      %v10117 = vsub.s32 %v10114, %v10116
      %v10118 = vrot.slane %v10110, %v10117
      %v10120 = vunpack.c.l.s4 1934713408
      %v10121 = vunpack.c.0.s8 %v10120
      %v10122 = vlaneseq
      %v10123 = vshrl.u32 %v10122, 7
      %v10124 = vsub.s32 %v10121, %v10123
      %v10125 = vrot.slane %v10111, %v10124
      %v10126 = vcombine.high %v10102, 0.0
      %v10127 = vcombine.high %v10109, 0.0
      %v10128 = vcombine.high %v10118, 0.0
      %v10129 = vcombine.high %v10125, 0.0
      %v10130 = vcombine.low %v8815, %v8903
      %v10131 = vcombine.high %v8815, %v8903
      %v10133 = vunpack.c.l.s4 1983009808
      %v10134 = vunpack.c.0.s8 %v10133
      %v10135 = vlaneseq
      %v10136 = vshrl.u32 %v10135, 7
      %v10137 = vsub.s32 %v10134, %v10136
      %v10138 = vrot.slane %v10130, %v10137
      %v10140 = vunpack.c.l.s4 1983009808
      %v10141 = vunpack.c.0.s8 %v10140
      %v10142 = vlaneseq
      %v10143 = vshrl.u32 %v10142, 7
      %v10144 = vsub.s32 %v10141, %v10143
      %v10145 = vrot.slane %v10131, %v10144
      %v10146 = vcombine.low %v8859, %v8947
      %v10147 = vcombine.high %v8859, %v8947
      %v10149 = vunpack.c.l.s4 1983009808
      %v10150 = vunpack.c.0.s8 %v10149
      %v10151 = vlaneseq
      %v10152 = vshrl.u32 %v10151, 7
      %v10153 = vsub.s32 %v10150, %v10152
      %v10154 = vrot.slane %v10146, %v10153
      %v10156 = vunpack.c.l.s4 1983009808
      %v10157 = vunpack.c.0.s8 %v10156
      %v10158 = vlaneseq
      %v10159 = vshrl.u32 %v10158, 7
      %v10160 = vsub.s32 %v10157, %v10159
      %v10161 = vrot.slane %v10147, %v10160
      %v10162 = vcombine.low %v10138, %v10154
      %v10163 = vcombine.high %v10138, %v10154
      %v10165 = vunpack.c.l.s4 1934713408
      %v10166 = vunpack.c.0.s8 %v10165
      %v10167 = vlaneseq
      %v10168 = vshrl.u32 %v10167, 7
      %v10169 = vsub.s32 %v10166, %v10168
      %v10170 = vrot.slane %v10162, %v10169
      %v10172 = vunpack.c.l.s4 1934713408
      %v10173 = vunpack.c.0.s8 %v10172
      %v10174 = vlaneseq
      %v10175 = vshrl.u32 %v10174, 7
      %v10176 = vsub.s32 %v10173, %v10175
      %v10177 = vrot.slane %v10163, %v10176
      %v10178 = vcombine.low %v10145, %v10161
      %v10179 = vcombine.high %v10145, %v10161
      %v10181 = vunpack.c.l.s4 1934713408
      %v10182 = vunpack.c.0.s8 %v10181
      %v10183 = vlaneseq
      %v10184 = vshrl.u32 %v10183, 7
      %v10185 = vsub.s32 %v10182, %v10184
      %v10186 = vrot.slane %v10178, %v10185
      %v10188 = vunpack.c.l.s4 1934713408
      %v10189 = vunpack.c.0.s8 %v10188
      %v10190 = vlaneseq
      %v10191 = vshrl.u32 %v10190, 7
      %v10192 = vsub.s32 %v10189, %v10191
      %v10193 = vrot.slane %v10179, %v10192
      %v10194 = vcombine.high %v10170, 0.0
      %v10195 = vcombine.high %v10177, 0.0
      %v10196 = vcombine.high %v10186, 0.0
      %v10197 = vcombine.high %v10193, 0.0
      %v10198 = vcombine.low %v8988, %v9076
      %v10199 = vcombine.high %v8988, %v9076
      %v10201 = vunpack.c.l.s4 1983009808
      %v10202 = vunpack.c.0.s8 %v10201
      %v10203 = vlaneseq
      %v10204 = vshrl.u32 %v10203, 7
      %v10205 = vsub.s32 %v10202, %v10204
      %v10206 = vrot.slane %v10198, %v10205
      %v10208 = vunpack.c.l.s4 1983009808
      %v10209 = vunpack.c.0.s8 %v10208
      %v10210 = vlaneseq
      %v10211 = vshrl.u32 %v10210, 7
      %v10212 = vsub.s32 %v10209, %v10211
      %v10213 = vrot.slane %v10199, %v10212
      %v10214 = vcombine.low %v9032, %v9120
      %v10215 = vcombine.high %v9032, %v9120
      %v10217 = vunpack.c.l.s4 1983009808
      %v10218 = vunpack.c.0.s8 %v10217
      %v10219 = vlaneseq
      %v10220 = vshrl.u32 %v10219, 7
      %v10221 = vsub.s32 %v10218, %v10220
      %v10222 = vrot.slane %v10214, %v10221
      %v10224 = vunpack.c.l.s4 1983009808
      %v10225 = vunpack.c.0.s8 %v10224
      %v10226 = vlaneseq
      %v10227 = vshrl.u32 %v10226, 7
      %v10228 = vsub.s32 %v10225, %v10227
      %v10229 = vrot.slane %v10215, %v10228
      %v10230 = vcombine.low %v10206, %v10222
      %v10231 = vcombine.high %v10206, %v10222
      %v10233 = vunpack.c.l.s4 1934713408
      %v10234 = vunpack.c.0.s8 %v10233
      %v10235 = vlaneseq
      %v10236 = vshrl.u32 %v10235, 7
      %v10237 = vsub.s32 %v10234, %v10236
      %v10238 = vrot.slane %v10230, %v10237
      %v10240 = vunpack.c.l.s4 1934713408
      %v10241 = vunpack.c.0.s8 %v10240
      %v10242 = vlaneseq
      %v10243 = vshrl.u32 %v10242, 7
      %v10244 = vsub.s32 %v10241, %v10243
      %v10245 = vrot.slane %v10231, %v10244
      %v10246 = vcombine.low %v10213, %v10229
      %v10247 = vcombine.high %v10213, %v10229
      %v10249 = vunpack.c.l.s4 1934713408
      %v10250 = vunpack.c.0.s8 %v10249
      %v10251 = vlaneseq
      %v10252 = vshrl.u32 %v10251, 7
      %v10253 = vsub.s32 %v10250, %v10252
      %v10254 = vrot.slane %v10246, %v10253
      %v10256 = vunpack.c.l.s4 1934713408
      %v10257 = vunpack.c.0.s8 %v10256
      %v10258 = vlaneseq
      %v10259 = vshrl.u32 %v10258, 7
      %v10260 = vsub.s32 %v10257, %v10259
      %v10261 = vrot.slane %v10247, %v10260
      %v10262 = vcombine.high %v10238, 0.0
      %v10263 = vcombine.high %v10245, 0.0
      %v10264 = vcombine.high %v10254, 0.0
      %v10265 = vcombine.high %v10261, 0.0
      %v10266 = vcombine.low %v8991, %v9079
      %v10267 = vcombine.high %v8991, %v9079
      %v10269 = vunpack.c.l.s4 1983009808
      %v10270 = vunpack.c.0.s8 %v10269
      %v10271 = vlaneseq
      %v10272 = vshrl.u32 %v10271, 7
      %v10273 = vsub.s32 %v10270, %v10272
      %v10274 = vrot.slane %v10266, %v10273
      %v10276 = vunpack.c.l.s4 1983009808
      %v10277 = vunpack.c.0.s8 %v10276
      %v10278 = vlaneseq
      %v10279 = vshrl.u32 %v10278, 7
      %v10280 = vsub.s32 %v10277, %v10279
      %v10281 = vrot.slane %v10267, %v10280
      %v10282 = vcombine.low %v9035, %v9123
      %v10283 = vcombine.high %v9035, %v9123
      %v10285 = vunpack.c.l.s4 1983009808
      %v10286 = vunpack.c.0.s8 %v10285
      %v10287 = vlaneseq
      %v10288 = vshrl.u32 %v10287, 7
      %v10289 = vsub.s32 %v10286, %v10288
      %v10290 = vrot.slane %v10282, %v10289
      %v10292 = vunpack.c.l.s4 1983009808
      %v10293 = vunpack.c.0.s8 %v10292
      %v10294 = vlaneseq
      %v10295 = vshrl.u32 %v10294, 7
      %v10296 = vsub.s32 %v10293, %v10295
      %v10297 = vrot.slane %v10283, %v10296
      %v10298 = vcombine.low %v10274, %v10290
      %v10299 = vcombine.high %v10274, %v10290
      %v10301 = vunpack.c.l.s4 1934713408
      %v10302 = vunpack.c.0.s8 %v10301
      %v10303 = vlaneseq
      %v10304 = vshrl.u32 %v10303, 7
      %v10305 = vsub.s32 %v10302, %v10304
      %v10306 = vrot.slane %v10298, %v10305
      %v10308 = vunpack.c.l.s4 1934713408
      %v10309 = vunpack.c.0.s8 %v10308
      %v10310 = vlaneseq
      %v10311 = vshrl.u32 %v10310, 7
      %v10312 = vsub.s32 %v10309, %v10311
      %v10313 = vrot.slane %v10299, %v10312
      %v10314 = vcombine.low %v10281, %v10297
      %v10315 = vcombine.high %v10281, %v10297
      %v10317 = vunpack.c.l.s4 1934713408
      %v10318 = vunpack.c.0.s8 %v10317
      %v10319 = vlaneseq
      %v10320 = vshrl.u32 %v10319, 7
      %v10321 = vsub.s32 %v10318, %v10320
      %v10322 = vrot.slane %v10314, %v10321
      %v10324 = vunpack.c.l.s4 1934713408
      %v10325 = vunpack.c.0.s8 %v10324
      %v10326 = vlaneseq
      %v10327 = vshrl.u32 %v10326, 7
      %v10328 = vsub.s32 %v10325, %v10327
      %v10329 = vrot.slane %v10315, %v10328
      %v10330 = vcombine.high %v10306, 0.0
      %v10331 = vcombine.high %v10313, 0.0
      %v10332 = vcombine.high %v10322, 0.0
      %v10333 = vcombine.high %v10329, 0.0
      %v10334 = vcombine.low %v9164, %v9252
      %v10335 = vcombine.high %v9164, %v9252
      %v10337 = vunpack.c.l.s4 1983009808
      %v10338 = vunpack.c.0.s8 %v10337
      %v10339 = vlaneseq
      %v10340 = vshrl.u32 %v10339, 7
      %v10341 = vsub.s32 %v10338, %v10340
      %v10342 = vrot.slane %v10334, %v10341
      %v10344 = vunpack.c.l.s4 1983009808
      %v10345 = vunpack.c.0.s8 %v10344
      %v10346 = vlaneseq
      %v10347 = vshrl.u32 %v10346, 7
      %v10348 = vsub.s32 %v10345, %v10347
      %v10349 = vrot.slane %v10335, %v10348
      %v10350 = vcombine.low %v9208, %v9296
      %v10351 = vcombine.high %v9208, %v9296
      %v10353 = vunpack.c.l.s4 1983009808
      %v10354 = vunpack.c.0.s8 %v10353
      %v10355 = vlaneseq
      %v10356 = vshrl.u32 %v10355, 7
      %v10357 = vsub.s32 %v10354, %v10356
      %v10358 = vrot.slane %v10350, %v10357
      %v10360 = vunpack.c.l.s4 1983009808
      %v10361 = vunpack.c.0.s8 %v10360
      %v10362 = vlaneseq
      %v10363 = vshrl.u32 %v10362, 7
      %v10364 = vsub.s32 %v10361, %v10363
      %v10365 = vrot.slane %v10351, %v10364
      %v10366 = vcombine.low %v10342, %v10358
      %v10367 = vcombine.high %v10342, %v10358
      %v10369 = vunpack.c.l.s4 1934713408
      %v10370 = vunpack.c.0.s8 %v10369
      %v10371 = vlaneseq
      %v10372 = vshrl.u32 %v10371, 7
      %v10373 = vsub.s32 %v10370, %v10372
      %v10374 = vrot.slane %v10366, %v10373
      %v10376 = vunpack.c.l.s4 1934713408
      %v10377 = vunpack.c.0.s8 %v10376
      %v10378 = vlaneseq
      %v10379 = vshrl.u32 %v10378, 7
      %v10380 = vsub.s32 %v10377, %v10379
      %v10381 = vrot.slane %v10367, %v10380
      %v10382 = vcombine.low %v10349, %v10365
      %v10383 = vcombine.high %v10349, %v10365
      %v10385 = vunpack.c.l.s4 1934713408
      %v10386 = vunpack.c.0.s8 %v10385
      %v10387 = vlaneseq
      %v10388 = vshrl.u32 %v10387, 7
      %v10389 = vsub.s32 %v10386, %v10388
      %v10390 = vrot.slane %v10382, %v10389
      %v10392 = vunpack.c.l.s4 1934713408
      %v10393 = vunpack.c.0.s8 %v10392
      %v10394 = vlaneseq
      %v10395 = vshrl.u32 %v10394, 7
      %v10396 = vsub.s32 %v10393, %v10395
      %v10397 = vrot.slane %v10383, %v10396
      %v10398 = vcombine.high %v10374, 0.0
      %v10399 = vcombine.high %v10381, 0.0
      %v10400 = vcombine.high %v10390, 0.0
      %v10401 = vcombine.high %v10397, 0.0
      %v10402 = vcombine.low %v9167, %v9255
      %v10403 = vcombine.high %v9167, %v9255
      %v10405 = vunpack.c.l.s4 1983009808
      %v10406 = vunpack.c.0.s8 %v10405
      %v10407 = vlaneseq
      %v10408 = vshrl.u32 %v10407, 7
      %v10409 = vsub.s32 %v10406, %v10408
      %v10410 = vrot.slane %v10402, %v10409
      %v10412 = vunpack.c.l.s4 1983009808
      %v10413 = vunpack.c.0.s8 %v10412
      %v10414 = vlaneseq
      %v10415 = vshrl.u32 %v10414, 7
      %v10416 = vsub.s32 %v10413, %v10415
      %v10417 = vrot.slane %v10403, %v10416
      %v10418 = vcombine.low %v9211, %v9299
      %v10419 = vcombine.high %v9211, %v9299
      %v10421 = vunpack.c.l.s4 1983009808
      %v10422 = vunpack.c.0.s8 %v10421
      %v10423 = vlaneseq
      %v10424 = vshrl.u32 %v10423, 7
      %v10425 = vsub.s32 %v10422, %v10424
      %v10426 = vrot.slane %v10418, %v10425
      %v10428 = vunpack.c.l.s4 1983009808
      %v10429 = vunpack.c.0.s8 %v10428
      %v10430 = vlaneseq
      %v10431 = vshrl.u32 %v10430, 7
      %v10432 = vsub.s32 %v10429, %v10431
      %v10433 = vrot.slane %v10419, %v10432
      %v10434 = vcombine.low %v10410, %v10426
      %v10435 = vcombine.high %v10410, %v10426
      %v10437 = vunpack.c.l.s4 1934713408
      %v10438 = vunpack.c.0.s8 %v10437
      %v10439 = vlaneseq
      %v10440 = vshrl.u32 %v10439, 7
      %v10441 = vsub.s32 %v10438, %v10440
      %v10442 = vrot.slane %v10434, %v10441
      %v10444 = vunpack.c.l.s4 1934713408
      %v10445 = vunpack.c.0.s8 %v10444
      %v10446 = vlaneseq
      %v10447 = vshrl.u32 %v10446, 7
      %v10448 = vsub.s32 %v10445, %v10447
      %v10449 = vrot.slane %v10435, %v10448
      %v10450 = vcombine.low %v10417, %v10433
      %v10451 = vcombine.high %v10417, %v10433
      %v10453 = vunpack.c.l.s4 1934713408
      %v10454 = vunpack.c.0.s8 %v10453
      %v10455 = vlaneseq
      %v10456 = vshrl.u32 %v10455, 7
      %v10457 = vsub.s32 %v10454, %v10456
      %v10458 = vrot.slane %v10450, %v10457
      %v10460 = vunpack.c.l.s4 1934713408
      %v10461 = vunpack.c.0.s8 %v10460
      %v10462 = vlaneseq
      %v10463 = vshrl.u32 %v10462, 7
      %v10464 = vsub.s32 %v10461, %v10463
      %v10465 = vrot.slane %v10451, %v10464
      %v10466 = vcombine.high %v10442, 0.0
      %v10467 = vcombine.high %v10449, 0.0
      %v10468 = vcombine.high %v10458, 0.0
      %v10469 = vcombine.high %v10465, 0.0
      %v10470 = vcombine.low %v9340, %v9428
      %v10471 = vcombine.high %v9340, %v9428
      %v10473 = vunpack.c.l.s4 1983009808
      %v10474 = vunpack.c.0.s8 %v10473
      %v10475 = vlaneseq
      %v10476 = vshrl.u32 %v10475, 7
      %v10477 = vsub.s32 %v10474, %v10476
      %v10478 = vrot.slane %v10470, %v10477
      %v10480 = vunpack.c.l.s4 1983009808
      %v10481 = vunpack.c.0.s8 %v10480
      %v10482 = vlaneseq
      %v10483 = vshrl.u32 %v10482, 7
      %v10484 = vsub.s32 %v10481, %v10483
      %v10485 = vrot.slane %v10471, %v10484
      %v10486 = vcombine.low %v9384, %v9472
      %v10487 = vcombine.high %v9384, %v9472
      %v10489 = vunpack.c.l.s4 1983009808
      %v10490 = vunpack.c.0.s8 %v10489
      %v10491 = vlaneseq
      %v10492 = vshrl.u32 %v10491, 7
      %v10493 = vsub.s32 %v10490, %v10492
      %v10494 = vrot.slane %v10486, %v10493
      %v10496 = vunpack.c.l.s4 1983009808
      %v10497 = vunpack.c.0.s8 %v10496
      %v10498 = vlaneseq
      %v10499 = vshrl.u32 %v10498, 7
      %v10500 = vsub.s32 %v10497, %v10499
      %v10501 = vrot.slane %v10487, %v10500
      %v10502 = vcombine.low %v10478, %v10494
      %v10503 = vcombine.high %v10478, %v10494
      %v10505 = vunpack.c.l.s4 1934713408
      %v10506 = vunpack.c.0.s8 %v10505
      %v10507 = vlaneseq
      %v10508 = vshrl.u32 %v10507, 7
      %v10509 = vsub.s32 %v10506, %v10508
      %v10510 = vrot.slane %v10502, %v10509
      %v10512 = vunpack.c.l.s4 1934713408
      %v10513 = vunpack.c.0.s8 %v10512
      %v10514 = vlaneseq
      %v10515 = vshrl.u32 %v10514, 7
      %v10516 = vsub.s32 %v10513, %v10515
      %v10517 = vrot.slane %v10503, %v10516
      %v10518 = vcombine.low %v10485, %v10501
      %v10519 = vcombine.high %v10485, %v10501
      %v10521 = vunpack.c.l.s4 1934713408
      %v10522 = vunpack.c.0.s8 %v10521
      %v10523 = vlaneseq
      %v10524 = vshrl.u32 %v10523, 7
      %v10525 = vsub.s32 %v10522, %v10524
      %v10526 = vrot.slane %v10518, %v10525
      %v10528 = vunpack.c.l.s4 1934713408
      %v10529 = vunpack.c.0.s8 %v10528
      %v10530 = vlaneseq
      %v10531 = vshrl.u32 %v10530, 7
      %v10532 = vsub.s32 %v10529, %v10531
      %v10533 = vrot.slane %v10519, %v10532
      %v10534 = vcombine.high %v10510, 0.0
      %v10535 = vcombine.high %v10517, 0.0
      %v10536 = vcombine.high %v10526, 0.0
      %v10537 = vcombine.high %v10533, 0.0
      %v10538 = vcombine.low %v9343, %v9431
      %v10539 = vcombine.high %v9343, %v9431
      %v10541 = vunpack.c.l.s4 1983009808
      %v10542 = vunpack.c.0.s8 %v10541
      %v10543 = vlaneseq
      %v10544 = vshrl.u32 %v10543, 7
      %v10545 = vsub.s32 %v10542, %v10544
      %v10546 = vrot.slane %v10538, %v10545
      %v10548 = vunpack.c.l.s4 1983009808
      %v10549 = vunpack.c.0.s8 %v10548
      %v10550 = vlaneseq
      %v10551 = vshrl.u32 %v10550, 7
      %v10552 = vsub.s32 %v10549, %v10551
      %v10553 = vrot.slane %v10539, %v10552
      %v10554 = vcombine.low %v9387, %v9475
      %v10555 = vcombine.high %v9387, %v9475
      %v10557 = vunpack.c.l.s4 1983009808
      %v10558 = vunpack.c.0.s8 %v10557
      %v10559 = vlaneseq
      %v10560 = vshrl.u32 %v10559, 7
      %v10561 = vsub.s32 %v10558, %v10560
      %v10562 = vrot.slane %v10554, %v10561
      %v10564 = vunpack.c.l.s4 1983009808
      %v10565 = vunpack.c.0.s8 %v10564
      %v10566 = vlaneseq
      %v10567 = vshrl.u32 %v10566, 7
      %v10568 = vsub.s32 %v10565, %v10567
      %v10569 = vrot.slane %v10555, %v10568
      %v10570 = vcombine.low %v10546, %v10562
      %v10571 = vcombine.high %v10546, %v10562
      %v10573 = vunpack.c.l.s4 1934713408
      %v10574 = vunpack.c.0.s8 %v10573
      %v10575 = vlaneseq
      %v10576 = vshrl.u32 %v10575, 7
      %v10577 = vsub.s32 %v10574, %v10576
      %v10578 = vrot.slane %v10570, %v10577
      %v10580 = vunpack.c.l.s4 1934713408
      %v10581 = vunpack.c.0.s8 %v10580
      %v10582 = vlaneseq
      %v10583 = vshrl.u32 %v10582, 7
      %v10584 = vsub.s32 %v10581, %v10583
      %v10585 = vrot.slane %v10571, %v10584
      %v10586 = vcombine.low %v10553, %v10569
      %v10587 = vcombine.high %v10553, %v10569
      %v10589 = vunpack.c.l.s4 1934713408
      %v10590 = vunpack.c.0.s8 %v10589
      %v10591 = vlaneseq
      %v10592 = vshrl.u32 %v10591, 7
      %v10593 = vsub.s32 %v10590, %v10592
      %v10594 = vrot.slane %v10586, %v10593
      %v10596 = vunpack.c.l.s4 1934713408
      %v10597 = vunpack.c.0.s8 %v10596
      %v10598 = vlaneseq
      %v10599 = vshrl.u32 %v10598, 7
      %v10600 = vsub.s32 %v10597, %v10599
      %v10601 = vrot.slane %v10587, %v10600
      %v10602 = vcombine.high %v10578, 0.0
      %v10603 = vcombine.high %v10585, 0.0
      %v10604 = vcombine.high %v10594, 0.0
      %v10605 = vcombine.high %v10601, 0.0
      %v10606 = vcombine.low %v9516, %v9604
      %v10607 = vcombine.high %v9516, %v9604
      %v10609 = vunpack.c.l.s4 1983009808
      %v10610 = vunpack.c.0.s8 %v10609
      %v10611 = vlaneseq
      %v10612 = vshrl.u32 %v10611, 7
      %v10613 = vsub.s32 %v10610, %v10612
      %v10614 = vrot.slane %v10606, %v10613
      %v10616 = vunpack.c.l.s4 1983009808
      %v10617 = vunpack.c.0.s8 %v10616
      %v10618 = vlaneseq
      %v10619 = vshrl.u32 %v10618, 7
      %v10620 = vsub.s32 %v10617, %v10619
      %v10621 = vrot.slane %v10607, %v10620
      %v10622 = vcombine.low %v9560, %v9648
      %v10623 = vcombine.high %v9560, %v9648
      %v10625 = vunpack.c.l.s4 1983009808
      %v10626 = vunpack.c.0.s8 %v10625
      %v10627 = vlaneseq
      %v10628 = vshrl.u32 %v10627, 7
      %v10629 = vsub.s32 %v10626, %v10628
      %v10630 = vrot.slane %v10622, %v10629
      %v10632 = vunpack.c.l.s4 1983009808
      %v10633 = vunpack.c.0.s8 %v10632
      %v10634 = vlaneseq
      %v10635 = vshrl.u32 %v10634, 7
      %v10636 = vsub.s32 %v10633, %v10635
      %v10637 = vrot.slane %v10623, %v10636
      %v10638 = vcombine.low %v10614, %v10630
      %v10639 = vcombine.high %v10614, %v10630
      %v10641 = vunpack.c.l.s4 1934713408
      %v10642 = vunpack.c.0.s8 %v10641
      %v10643 = vlaneseq
      %v10644 = vshrl.u32 %v10643, 7
      %v10645 = vsub.s32 %v10642, %v10644
      %v10646 = vrot.slane %v10638, %v10645
      %v10648 = vunpack.c.l.s4 1934713408
      %v10649 = vunpack.c.0.s8 %v10648
      %v10650 = vlaneseq
      %v10651 = vshrl.u32 %v10650, 7
      %v10652 = vsub.s32 %v10649, %v10651
      %v10653 = vrot.slane %v10639, %v10652
      %v10654 = vcombine.low %v10621, %v10637
      %v10655 = vcombine.high %v10621, %v10637
      %v10657 = vunpack.c.l.s4 1934713408
      %v10658 = vunpack.c.0.s8 %v10657
      %v10659 = vlaneseq
      %v10660 = vshrl.u32 %v10659, 7
      %v10661 = vsub.s32 %v10658, %v10660
      %v10662 = vrot.slane %v10654, %v10661
      %v10664 = vunpack.c.l.s4 1934713408
      %v10665 = vunpack.c.0.s8 %v10664
      %v10666 = vlaneseq
      %v10667 = vshrl.u32 %v10666, 7
      %v10668 = vsub.s32 %v10665, %v10667
      %v10669 = vrot.slane %v10655, %v10668
      %v10670 = vcombine.high %v10646, 0.0
      %v10671 = vcombine.high %v10653, 0.0
      %v10672 = vcombine.high %v10662, 0.0
      %v10673 = vcombine.high %v10669, 0.0
      %v10674 = vcombine.low %v9519, %v9607
      %v10675 = vcombine.high %v9519, %v9607
      %v10677 = vunpack.c.l.s4 1983009808
      %v10678 = vunpack.c.0.s8 %v10677
      %v10679 = vlaneseq
      %v10680 = vshrl.u32 %v10679, 7
      %v10681 = vsub.s32 %v10678, %v10680
      %v10682 = vrot.slane %v10674, %v10681
      %v10684 = vunpack.c.l.s4 1983009808
      %v10685 = vunpack.c.0.s8 %v10684
      %v10686 = vlaneseq
      %v10687 = vshrl.u32 %v10686, 7
      %v10688 = vsub.s32 %v10685, %v10687
      %v10689 = vrot.slane %v10675, %v10688
      %v10690 = vcombine.low %v9563, %v9651
      %v10691 = vcombine.high %v9563, %v9651
      %v10693 = vunpack.c.l.s4 1983009808
      %v10694 = vunpack.c.0.s8 %v10693
      %v10695 = vlaneseq
      %v10696 = vshrl.u32 %v10695, 7
      %v10697 = vsub.s32 %v10694, %v10696
      %v10698 = vrot.slane %v10690, %v10697
      %v10700 = vunpack.c.l.s4 1983009808
      %v10701 = vunpack.c.0.s8 %v10700
      %v10702 = vlaneseq
      %v10703 = vshrl.u32 %v10702, 7
      %v10704 = vsub.s32 %v10701, %v10703
      %v10705 = vrot.slane %v10691, %v10704
      %v10706 = vcombine.low %v10682, %v10698
      %v10707 = vcombine.high %v10682, %v10698
      %v10709 = vunpack.c.l.s4 1934713408
      %v10710 = vunpack.c.0.s8 %v10709
      %v10711 = vlaneseq
      %v10712 = vshrl.u32 %v10711, 7
      %v10713 = vsub.s32 %v10710, %v10712
      %v10714 = vrot.slane %v10706, %v10713
      %v10716 = vunpack.c.l.s4 1934713408
      %v10717 = vunpack.c.0.s8 %v10716
      %v10718 = vlaneseq
      %v10719 = vshrl.u32 %v10718, 7
      %v10720 = vsub.s32 %v10717, %v10719
      %v10721 = vrot.slane %v10707, %v10720
      %v10722 = vcombine.low %v10689, %v10705
      %v10723 = vcombine.high %v10689, %v10705
      %v10725 = vunpack.c.l.s4 1934713408
      %v10726 = vunpack.c.0.s8 %v10725
      %v10727 = vlaneseq
      %v10728 = vshrl.u32 %v10727, 7
      %v10729 = vsub.s32 %v10726, %v10728
      %v10730 = vrot.slane %v10722, %v10729
      %v10732 = vunpack.c.l.s4 1934713408
      %v10733 = vunpack.c.0.s8 %v10732
      %v10734 = vlaneseq
      %v10735 = vshrl.u32 %v10734, 7
      %v10736 = vsub.s32 %v10733, %v10735
      %v10737 = vrot.slane %v10723, %v10736
      %v10738 = vcombine.high %v10714, 0.0
      %v10739 = vcombine.high %v10721, 0.0
      %v10740 = vcombine.high %v10730, 0.0
      %v10741 = vcombine.high %v10737, 0.0
      %v10742 = vcombine.low %v9694, %v9701
      %v10744 = vunpack.c.l.s4 1983009808
      %v10745 = vunpack.c.0.s8 %v10744
      %v10746 = vlaneseq
      %v10747 = vshrl.u32 %v10746, 7
      %v10748 = vsub.s32 %v10745, %v10747
      %v10749 = vrot.slane %v10742, %v10748
      %v10750 = vcombine.low %v9718, %v9719
      %v10752 = vunpack.c.l.s4 1983009808
      %v10753 = vunpack.c.0.s8 %v10752
      %v10754 = vlaneseq
      %v10755 = vshrl.u32 %v10754, 7
      %v10756 = vsub.s32 %v10753, %v10755
      %v10757 = vrot.slane %v10750, %v10756
      %v10758 = vcombine.low %v9710, %v9717
      %v10760 = vunpack.c.l.s4 1983009808
      %v10761 = vunpack.c.0.s8 %v10760
      %v10762 = vlaneseq
      %v10763 = vshrl.u32 %v10762, 7
      %v10764 = vsub.s32 %v10761, %v10763
      %v10765 = vrot.slane %v10758, %v10764
      %v10766 = vcombine.low %v9720, %v9721
      %v10768 = vunpack.c.l.s4 1983009808
      %v10769 = vunpack.c.0.s8 %v10768
      %v10770 = vlaneseq
      %v10771 = vshrl.u32 %v10770, 7
      %v10772 = vsub.s32 %v10769, %v10771
      %v10773 = vrot.slane %v10766, %v10772
      %v10774 = vcombine.low %v10749, %v10757
      %v10775 = vcombine.high %v10749, %v10757
      %v10777 = vunpack.c.l.s4 1934713408
      %v10778 = vunpack.c.0.s8 %v10777
      %v10779 = vlaneseq
      %v10780 = vshrl.u32 %v10779, 7
      %v10781 = vsub.s32 %v10778, %v10780
      %v10782 = vrot.slane %v10774, %v10781
      %v10784 = vunpack.c.l.s4 1934713408
      %v10785 = vunpack.c.0.s8 %v10784
      %v10786 = vlaneseq
      %v10787 = vshrl.u32 %v10786, 7
      %v10788 = vsub.s32 %v10785, %v10787
      %v10789 = vrot.slane %v10775, %v10788
      %v10790 = vcombine.low %v10765, %v10773
      %v10791 = vcombine.high %v10765, %v10773
      %v10793 = vunpack.c.l.s4 1934713408
      %v10794 = vunpack.c.0.s8 %v10793
      %v10795 = vlaneseq
      %v10796 = vshrl.u32 %v10795, 7
      %v10797 = vsub.s32 %v10794, %v10796
      %v10798 = vrot.slane %v10790, %v10797
      %v10800 = vunpack.c.l.s4 1934713408
      %v10801 = vunpack.c.0.s8 %v10800
      %v10802 = vlaneseq
      %v10803 = vshrl.u32 %v10802, 7
      %v10804 = vsub.s32 %v10801, %v10803
      %v10805 = vrot.slane %v10791, %v10804
      %v10806 = vcombine.low %v10782, %v10798
      %v10807 = vcombine.high %v10782, %v10798
      %v10808 = vcombine.low %v10789, %v10805
      %v10809 = vcombine.high %v10789, %v10805
      %v10810 = vcombine.low %v9762, %v9769
      %v10812 = vunpack.c.l.s4 1983009808
      %v10813 = vunpack.c.0.s8 %v10812
      %v10814 = vlaneseq
      %v10815 = vshrl.u32 %v10814, 7
      %v10816 = vsub.s32 %v10813, %v10815
      %v10817 = vrot.slane %v10810, %v10816
      %v10818 = vcombine.low %v9786, %v9787
      %v10820 = vunpack.c.l.s4 1983009808
      %v10821 = vunpack.c.0.s8 %v10820
      %v10822 = vlaneseq
      %v10823 = vshrl.u32 %v10822, 7
      %v10824 = vsub.s32 %v10821, %v10823
      %v10825 = vrot.slane %v10818, %v10824
      %v10826 = vcombine.low %v9778, %v9785
      %v10828 = vunpack.c.l.s4 1983009808
      %v10829 = vunpack.c.0.s8 %v10828
      %v10830 = vlaneseq
      %v10831 = vshrl.u32 %v10830, 7
      %v10832 = vsub.s32 %v10829, %v10831
      %v10833 = vrot.slane %v10826, %v10832
      %v10834 = vcombine.low %v9788, %v9789
      %v10836 = vunpack.c.l.s4 1983009808
      %v10837 = vunpack.c.0.s8 %v10836
      %v10838 = vlaneseq
      %v10839 = vshrl.u32 %v10838, 7
      %v10840 = vsub.s32 %v10837, %v10839
      %v10841 = vrot.slane %v10834, %v10840
      %v10842 = vcombine.low %v10817, %v10825
      %v10843 = vcombine.high %v10817, %v10825
      %v10845 = vunpack.c.l.s4 1934713408
      %v10846 = vunpack.c.0.s8 %v10845
      %v10847 = vlaneseq
      %v10848 = vshrl.u32 %v10847, 7
      %v10849 = vsub.s32 %v10846, %v10848
      %v10850 = vrot.slane %v10842, %v10849
      %v10852 = vunpack.c.l.s4 1934713408
      %v10853 = vunpack.c.0.s8 %v10852
      %v10854 = vlaneseq
      %v10855 = vshrl.u32 %v10854, 7
      %v10856 = vsub.s32 %v10853, %v10855
      %v10857 = vrot.slane %v10843, %v10856
      %v10858 = vcombine.low %v10833, %v10841
      %v10859 = vcombine.high %v10833, %v10841
      %v10861 = vunpack.c.l.s4 1934713408
      %v10862 = vunpack.c.0.s8 %v10861
      %v10863 = vlaneseq
      %v10864 = vshrl.u32 %v10863, 7
      %v10865 = vsub.s32 %v10862, %v10864
      %v10866 = vrot.slane %v10858, %v10865
      %v10868 = vunpack.c.l.s4 1934713408
      %v10869 = vunpack.c.0.s8 %v10868
      %v10870 = vlaneseq
      %v10871 = vshrl.u32 %v10870, 7
      %v10872 = vsub.s32 %v10869, %v10871
      %v10873 = vrot.slane %v10859, %v10872
      %v10874 = vcombine.low %v10850, %v10866
      %v10875 = vcombine.high %v10850, %v10866
      %v10876 = vcombine.low %v10857, %v10873
      %v10877 = vcombine.high %v10857, %v10873
      %v10878 = vcombine.low %v9830, %v9837
      %v10880 = vunpack.c.l.s4 1983009808
      %v10881 = vunpack.c.0.s8 %v10880
      %v10882 = vlaneseq
      %v10883 = vshrl.u32 %v10882, 7
      %v10884 = vsub.s32 %v10881, %v10883
      %v10885 = vrot.slane %v10878, %v10884
      %v10886 = vcombine.low %v9854, %v9855
      %v10888 = vunpack.c.l.s4 1983009808
      %v10889 = vunpack.c.0.s8 %v10888
      %v10890 = vlaneseq
      %v10891 = vshrl.u32 %v10890, 7
      %v10892 = vsub.s32 %v10889, %v10891
      %v10893 = vrot.slane %v10886, %v10892
      %v10894 = vcombine.low %v9846, %v9853
      %v10896 = vunpack.c.l.s4 1983009808
      %v10897 = vunpack.c.0.s8 %v10896
      %v10898 = vlaneseq
      %v10899 = vshrl.u32 %v10898, 7
      %v10900 = vsub.s32 %v10897, %v10899
      %v10901 = vrot.slane %v10894, %v10900
      %v10902 = vcombine.low %v9856, %v9857
      %v10904 = vunpack.c.l.s4 1983009808
      %v10905 = vunpack.c.0.s8 %v10904
      %v10906 = vlaneseq
      %v10907 = vshrl.u32 %v10906, 7
      %v10908 = vsub.s32 %v10905, %v10907
      %v10909 = vrot.slane %v10902, %v10908
      %v10910 = vcombine.low %v10885, %v10893
      %v10911 = vcombine.high %v10885, %v10893
      %v10913 = vunpack.c.l.s4 1934713408
      %v10914 = vunpack.c.0.s8 %v10913
      %v10915 = vlaneseq
      %v10916 = vshrl.u32 %v10915, 7
      %v10917 = vsub.s32 %v10914, %v10916
      %v10918 = vrot.slane %v10910, %v10917
      %v10920 = vunpack.c.l.s4 1934713408
      %v10921 = vunpack.c.0.s8 %v10920
      %v10922 = vlaneseq
      %v10923 = vshrl.u32 %v10922, 7
      %v10924 = vsub.s32 %v10921, %v10923
      %v10925 = vrot.slane %v10911, %v10924
      %v10926 = vcombine.low %v10901, %v10909
      %v10927 = vcombine.high %v10901, %v10909
      %v10929 = vunpack.c.l.s4 1934713408
      %v10930 = vunpack.c.0.s8 %v10929
      %v10931 = vlaneseq
      %v10932 = vshrl.u32 %v10931, 7
      %v10933 = vsub.s32 %v10930, %v10932
      %v10934 = vrot.slane %v10926, %v10933
      %v10936 = vunpack.c.l.s4 1934713408
      %v10937 = vunpack.c.0.s8 %v10936
      %v10938 = vlaneseq
      %v10939 = vshrl.u32 %v10938, 7
      %v10940 = vsub.s32 %v10937, %v10939
      %v10941 = vrot.slane %v10927, %v10940
      %v10942 = vcombine.low %v10918, %v10934
      %v10943 = vcombine.high %v10918, %v10934
      %v10944 = vcombine.low %v10925, %v10941
      %v10945 = vcombine.high %v10925, %v10941
      %v10946 = vcombine.low %v9898, %v9905
      %v10948 = vunpack.c.l.s4 1983009808
      %v10949 = vunpack.c.0.s8 %v10948
      %v10950 = vlaneseq
      %v10951 = vshrl.u32 %v10950, 7
      %v10952 = vsub.s32 %v10949, %v10951
      %v10953 = vrot.slane %v10946, %v10952
      %v10954 = vcombine.low %v9922, %v9923
      %v10956 = vunpack.c.l.s4 1983009808
      %v10957 = vunpack.c.0.s8 %v10956
      %v10958 = vlaneseq
      %v10959 = vshrl.u32 %v10958, 7
      %v10960 = vsub.s32 %v10957, %v10959
      %v10961 = vrot.slane %v10954, %v10960
      %v10962 = vcombine.low %v9914, %v9921
      %v10964 = vunpack.c.l.s4 1983009808
      %v10965 = vunpack.c.0.s8 %v10964
      %v10966 = vlaneseq
      %v10967 = vshrl.u32 %v10966, 7
      %v10968 = vsub.s32 %v10965, %v10967
      %v10969 = vrot.slane %v10962, %v10968
      %v10970 = vcombine.low %v9924, %v9925
      %v10972 = vunpack.c.l.s4 1983009808
      %v10973 = vunpack.c.0.s8 %v10972
      %v10974 = vlaneseq
      %v10975 = vshrl.u32 %v10974, 7
      %v10976 = vsub.s32 %v10973, %v10975
      %v10977 = vrot.slane %v10970, %v10976
      %v10978 = vcombine.low %v10953, %v10961
      %v10979 = vcombine.high %v10953, %v10961
      %v10981 = vunpack.c.l.s4 1934713408
      %v10982 = vunpack.c.0.s8 %v10981
      %v10983 = vlaneseq
      %v10984 = vshrl.u32 %v10983, 7
      %v10985 = vsub.s32 %v10982, %v10984
      %v10986 = vrot.slane %v10978, %v10985
      %v10988 = vunpack.c.l.s4 1934713408
      %v10989 = vunpack.c.0.s8 %v10988
      %v10990 = vlaneseq
      %v10991 = vshrl.u32 %v10990, 7
      %v10992 = vsub.s32 %v10989, %v10991
      %v10993 = vrot.slane %v10979, %v10992
      %v10994 = vcombine.low %v10969, %v10977
      %v10995 = vcombine.high %v10969, %v10977
      %v10997 = vunpack.c.l.s4 1934713408
      %v10998 = vunpack.c.0.s8 %v10997
      %v10999 = vlaneseq
      %v11000 = vshrl.u32 %v10999, 7
      %v11001 = vsub.s32 %v10998, %v11000
      %v11002 = vrot.slane %v10994, %v11001
      %v11004 = vunpack.c.l.s4 1934713408
      %v11005 = vunpack.c.0.s8 %v11004
      %v11006 = vlaneseq
      %v11007 = vshrl.u32 %v11006, 7
      %v11008 = vsub.s32 %v11005, %v11007
      %v11009 = vrot.slane %v10995, %v11008
      %v11010 = vcombine.low %v10986, %v11002
      %v11011 = vcombine.high %v10986, %v11002
      %v11012 = vcombine.low %v10993, %v11009
      %v11013 = vcombine.high %v10993, %v11009
      %v11014 = vcombine.low %v9966, %v9973
      %v11016 = vunpack.c.l.s4 1983009808
      %v11017 = vunpack.c.0.s8 %v11016
      %v11018 = vlaneseq
      %v11019 = vshrl.u32 %v11018, 7
      %v11020 = vsub.s32 %v11017, %v11019
      %v11021 = vrot.slane %v11014, %v11020
      %v11022 = vcombine.low %v9990, %v9991
      %v11024 = vunpack.c.l.s4 1983009808
      %v11025 = vunpack.c.0.s8 %v11024
      %v11026 = vlaneseq
      %v11027 = vshrl.u32 %v11026, 7
      %v11028 = vsub.s32 %v11025, %v11027
      %v11029 = vrot.slane %v11022, %v11028
      %v11030 = vcombine.low %v9982, %v9989
      %v11032 = vunpack.c.l.s4 1983009808
      %v11033 = vunpack.c.0.s8 %v11032
      %v11034 = vlaneseq
      %v11035 = vshrl.u32 %v11034, 7
      %v11036 = vsub.s32 %v11033, %v11035
      %v11037 = vrot.slane %v11030, %v11036
      %v11038 = vcombine.low %v9992, %v9993
      %v11040 = vunpack.c.l.s4 1983009808
      %v11041 = vunpack.c.0.s8 %v11040
      %v11042 = vlaneseq
      %v11043 = vshrl.u32 %v11042, 7
      %v11044 = vsub.s32 %v11041, %v11043
      %v11045 = vrot.slane %v11038, %v11044
      %v11046 = vcombine.low %v11021, %v11029
      %v11047 = vcombine.high %v11021, %v11029
      %v11049 = vunpack.c.l.s4 1934713408
      %v11050 = vunpack.c.0.s8 %v11049
      %v11051 = vlaneseq
      %v11052 = vshrl.u32 %v11051, 7
      %v11053 = vsub.s32 %v11050, %v11052
      %v11054 = vrot.slane %v11046, %v11053
      %v11056 = vunpack.c.l.s4 1934713408
      %v11057 = vunpack.c.0.s8 %v11056
      %v11058 = vlaneseq
      %v11059 = vshrl.u32 %v11058, 7
      %v11060 = vsub.s32 %v11057, %v11059
      %v11061 = vrot.slane %v11047, %v11060
      %v11062 = vcombine.low %v11037, %v11045
      %v11063 = vcombine.high %v11037, %v11045
      %v11065 = vunpack.c.l.s4 1934713408
      %v11066 = vunpack.c.0.s8 %v11065
      %v11067 = vlaneseq
      %v11068 = vshrl.u32 %v11067, 7
      %v11069 = vsub.s32 %v11066, %v11068
      %v11070 = vrot.slane %v11062, %v11069
      %v11072 = vunpack.c.l.s4 1934713408
      %v11073 = vunpack.c.0.s8 %v11072
      %v11074 = vlaneseq
      %v11075 = vshrl.u32 %v11074, 7
      %v11076 = vsub.s32 %v11073, %v11075
      %v11077 = vrot.slane %v11063, %v11076
      %v11078 = vcombine.low %v11054, %v11070
      %v11079 = vcombine.high %v11054, %v11070
      %v11080 = vcombine.low %v11061, %v11077
      %v11081 = vcombine.high %v11061, %v11077
      %v11082 = vcombine.low %v10034, %v10041
      %v11084 = vunpack.c.l.s4 1983009808
      %v11085 = vunpack.c.0.s8 %v11084
      %v11086 = vlaneseq
      %v11087 = vshrl.u32 %v11086, 7
      %v11088 = vsub.s32 %v11085, %v11087
      %v11089 = vrot.slane %v11082, %v11088
      %v11090 = vcombine.low %v10058, %v10059
      %v11092 = vunpack.c.l.s4 1983009808
      %v11093 = vunpack.c.0.s8 %v11092
      %v11094 = vlaneseq
      %v11095 = vshrl.u32 %v11094, 7
      %v11096 = vsub.s32 %v11093, %v11095
      %v11097 = vrot.slane %v11090, %v11096
      %v11098 = vcombine.low %v10050, %v10057
      %v11100 = vunpack.c.l.s4 1983009808
      %v11101 = vunpack.c.0.s8 %v11100
      %v11102 = vlaneseq
      %v11103 = vshrl.u32 %v11102, 7
      %v11104 = vsub.s32 %v11101, %v11103
      %v11105 = vrot.slane %v11098, %v11104
      %v11106 = vcombine.low %v10060, %v10061
      %v11108 = vunpack.c.l.s4 1983009808
      %v11109 = vunpack.c.0.s8 %v11108
      %v11110 = vlaneseq
      %v11111 = vshrl.u32 %v11110, 7
      %v11112 = vsub.s32 %v11109, %v11111
      %v11113 = vrot.slane %v11106, %v11112
      %v11114 = vcombine.low %v11089, %v11097
      %v11115 = vcombine.high %v11089, %v11097
      %v11117 = vunpack.c.l.s4 1934713408
      %v11118 = vunpack.c.0.s8 %v11117
      %v11119 = vlaneseq
      %v11120 = vshrl.u32 %v11119, 7
      %v11121 = vsub.s32 %v11118, %v11120
      %v11122 = vrot.slane %v11114, %v11121
      %v11124 = vunpack.c.l.s4 1934713408
      %v11125 = vunpack.c.0.s8 %v11124
      %v11126 = vlaneseq
      %v11127 = vshrl.u32 %v11126, 7
      %v11128 = vsub.s32 %v11125, %v11127
      %v11129 = vrot.slane %v11115, %v11128
      %v11130 = vcombine.low %v11105, %v11113
      %v11131 = vcombine.high %v11105, %v11113
      %v11133 = vunpack.c.l.s4 1934713408
      %v11134 = vunpack.c.0.s8 %v11133
      %v11135 = vlaneseq
      %v11136 = vshrl.u32 %v11135, 7
      %v11137 = vsub.s32 %v11134, %v11136
      %v11138 = vrot.slane %v11130, %v11137
      %v11140 = vunpack.c.l.s4 1934713408
      %v11141 = vunpack.c.0.s8 %v11140
      %v11142 = vlaneseq
      %v11143 = vshrl.u32 %v11142, 7
      %v11144 = vsub.s32 %v11141, %v11143
      %v11145 = vrot.slane %v11131, %v11144
      %v11146 = vcombine.low %v11122, %v11138
      %v11147 = vcombine.high %v11122, %v11138
      %v11148 = vcombine.low %v11129, %v11145
      %v11149 = vcombine.high %v11129, %v11145
      %v11150 = vcombine.low %v10102, %v10109
      %v11152 = vunpack.c.l.s4 1983009808
      %v11153 = vunpack.c.0.s8 %v11152
      %v11154 = vlaneseq
      %v11155 = vshrl.u32 %v11154, 7
      %v11156 = vsub.s32 %v11153, %v11155
      %v11157 = vrot.slane %v11150, %v11156
      %v11158 = vcombine.low %v10126, %v10127
      %v11160 = vunpack.c.l.s4 1983009808
      %v11161 = vunpack.c.0.s8 %v11160
      %v11162 = vlaneseq
      %v11163 = vshrl.u32 %v11162, 7
      %v11164 = vsub.s32 %v11161, %v11163
      %v11165 = vrot.slane %v11158, %v11164
      %v11166 = vcombine.low %v10118, %v10125
      %v11168 = vunpack.c.l.s4 1983009808
      %v11169 = vunpack.c.0.s8 %v11168
      %v11170 = vlaneseq
      %v11171 = vshrl.u32 %v11170, 7
      %v11172 = vsub.s32 %v11169, %v11171
      %v11173 = vrot.slane %v11166, %v11172
      %v11174 = vcombine.low %v10128, %v10129
      %v11176 = vunpack.c.l.s4 1983009808
      %v11177 = vunpack.c.0.s8 %v11176
      %v11178 = vlaneseq
      %v11179 = vshrl.u32 %v11178, 7
      %v11180 = vsub.s32 %v11177, %v11179
      %v11181 = vrot.slane %v11174, %v11180
      %v11182 = vcombine.low %v11157, %v11165
      %v11183 = vcombine.high %v11157, %v11165
      %v11185 = vunpack.c.l.s4 1934713408
      %v11186 = vunpack.c.0.s8 %v11185
      %v11187 = vlaneseq
      %v11188 = vshrl.u32 %v11187, 7
      %v11189 = vsub.s32 %v11186, %v11188
      %v11190 = vrot.slane %v11182, %v11189
      %v11192 = vunpack.c.l.s4 1934713408
      %v11193 = vunpack.c.0.s8 %v11192
      %v11194 = vlaneseq
      %v11195 = vshrl.u32 %v11194, 7
      %v11196 = vsub.s32 %v11193, %v11195
      %v11197 = vrot.slane %v11183, %v11196
      %v11198 = vcombine.low %v11173, %v11181
      %v11199 = vcombine.high %v11173, %v11181
      %v11201 = vunpack.c.l.s4 1934713408
      %v11202 = vunpack.c.0.s8 %v11201
      %v11203 = vlaneseq
      %v11204 = vshrl.u32 %v11203, 7
      %v11205 = vsub.s32 %v11202, %v11204
      %v11206 = vrot.slane %v11198, %v11205
      %v11208 = vunpack.c.l.s4 1934713408
      %v11209 = vunpack.c.0.s8 %v11208
      %v11210 = vlaneseq
      %v11211 = vshrl.u32 %v11210, 7
      %v11212 = vsub.s32 %v11209, %v11211
      %v11213 = vrot.slane %v11199, %v11212
      %v11214 = vcombine.low %v11190, %v11206
      %v11215 = vcombine.high %v11190, %v11206
      %v11216 = vcombine.low %v11197, %v11213
      %v11217 = vcombine.high %v11197, %v11213
      %v11218 = vcombine.low %v10170, %v10177
      %v11220 = vunpack.c.l.s4 1983009808
      %v11221 = vunpack.c.0.s8 %v11220
      %v11222 = vlaneseq
      %v11223 = vshrl.u32 %v11222, 7
      %v11224 = vsub.s32 %v11221, %v11223
      %v11225 = vrot.slane %v11218, %v11224
      %v11226 = vcombine.low %v10194, %v10195
      %v11228 = vunpack.c.l.s4 1983009808
      %v11229 = vunpack.c.0.s8 %v11228
      %v11230 = vlaneseq
      %v11231 = vshrl.u32 %v11230, 7
      %v11232 = vsub.s32 %v11229, %v11231
      %v11233 = vrot.slane %v11226, %v11232
      %v11234 = vcombine.low %v10186, %v10193
      %v11236 = vunpack.c.l.s4 1983009808
      %v11237 = vunpack.c.0.s8 %v11236
      %v11238 = vlaneseq
      %v11239 = vshrl.u32 %v11238, 7
      %v11240 = vsub.s32 %v11237, %v11239
      %v11241 = vrot.slane %v11234, %v11240
      %v11242 = vcombine.low %v10196, %v10197
      %v11244 = vunpack.c.l.s4 1983009808
      %v11245 = vunpack.c.0.s8 %v11244
      %v11246 = vlaneseq
      %v11247 = vshrl.u32 %v11246, 7
      %v11248 = vsub.s32 %v11245, %v11247
      %v11249 = vrot.slane %v11242, %v11248
      %v11250 = vcombine.low %v11225, %v11233
      %v11251 = vcombine.high %v11225, %v11233
      %v11253 = vunpack.c.l.s4 1934713408
      %v11254 = vunpack.c.0.s8 %v11253
      %v11255 = vlaneseq
      %v11256 = vshrl.u32 %v11255, 7
      %v11257 = vsub.s32 %v11254, %v11256
      %v11258 = vrot.slane %v11250, %v11257
      %v11260 = vunpack.c.l.s4 1934713408
      %v11261 = vunpack.c.0.s8 %v11260
      %v11262 = vlaneseq
      %v11263 = vshrl.u32 %v11262, 7
      %v11264 = vsub.s32 %v11261, %v11263
      %v11265 = vrot.slane %v11251, %v11264
      %v11266 = vcombine.low %v11241, %v11249
      %v11267 = vcombine.high %v11241, %v11249
      %v11269 = vunpack.c.l.s4 1934713408
      %v11270 = vunpack.c.0.s8 %v11269
      %v11271 = vlaneseq
      %v11272 = vshrl.u32 %v11271, 7
      %v11273 = vsub.s32 %v11270, %v11272
      %v11274 = vrot.slane %v11266, %v11273
      %v11276 = vunpack.c.l.s4 1934713408
      %v11277 = vunpack.c.0.s8 %v11276
      %v11278 = vlaneseq
      %v11279 = vshrl.u32 %v11278, 7
      %v11280 = vsub.s32 %v11277, %v11279
      %v11281 = vrot.slane %v11267, %v11280
      %v11282 = vcombine.low %v11258, %v11274
      %v11283 = vcombine.high %v11258, %v11274
      %v11284 = vcombine.low %v11265, %v11281
      %v11285 = vcombine.high %v11265, %v11281
      %v11286 = vcombine.low %v10238, %v10245
      %v11288 = vunpack.c.l.s4 1983009808
      %v11289 = vunpack.c.0.s8 %v11288
      %v11290 = vlaneseq
      %v11291 = vshrl.u32 %v11290, 7
      %v11292 = vsub.s32 %v11289, %v11291
      %v11293 = vrot.slane %v11286, %v11292
      %v11294 = vcombine.low %v10262, %v10263
      %v11296 = vunpack.c.l.s4 1983009808
      %v11297 = vunpack.c.0.s8 %v11296
      %v11298 = vlaneseq
      %v11299 = vshrl.u32 %v11298, 7
      %v11300 = vsub.s32 %v11297, %v11299
      %v11301 = vrot.slane %v11294, %v11300
      %v11302 = vcombine.low %v10254, %v10261
      %v11304 = vunpack.c.l.s4 1983009808
      %v11305 = vunpack.c.0.s8 %v11304
      %v11306 = vlaneseq
      %v11307 = vshrl.u32 %v11306, 7
      %v11308 = vsub.s32 %v11305, %v11307
      %v11309 = vrot.slane %v11302, %v11308
      %v11310 = vcombine.low %v10264, %v10265
      %v11312 = vunpack.c.l.s4 1983009808
      %v11313 = vunpack.c.0.s8 %v11312
      %v11314 = vlaneseq
      %v11315 = vshrl.u32 %v11314, 7
      %v11316 = vsub.s32 %v11313, %v11315
      %v11317 = vrot.slane %v11310, %v11316
      %v11318 = vcombine.low %v11293, %v11301
      %v11319 = vcombine.high %v11293, %v11301
      %v11321 = vunpack.c.l.s4 1934713408
      %v11322 = vunpack.c.0.s8 %v11321
      %v11323 = vlaneseq
      %v11324 = vshrl.u32 %v11323, 7
      %v11325 = vsub.s32 %v11322, %v11324
      %v11326 = vrot.slane %v11318, %v11325
      %v11328 = vunpack.c.l.s4 1934713408
      %v11329 = vunpack.c.0.s8 %v11328
      %v11330 = vlaneseq
      %v11331 = vshrl.u32 %v11330, 7
      %v11332 = vsub.s32 %v11329, %v11331
      %v11333 = vrot.slane %v11319, %v11332
      %v11334 = vcombine.low %v11309, %v11317
      %v11335 = vcombine.high %v11309, %v11317
      %v11337 = vunpack.c.l.s4 1934713408
      %v11338 = vunpack.c.0.s8 %v11337
      %v11339 = vlaneseq
      %v11340 = vshrl.u32 %v11339, 7
      %v11341 = vsub.s32 %v11338, %v11340
      %v11342 = vrot.slane %v11334, %v11341
      %v11344 = vunpack.c.l.s4 1934713408
      %v11345 = vunpack.c.0.s8 %v11344
      %v11346 = vlaneseq
      %v11347 = vshrl.u32 %v11346, 7
      %v11348 = vsub.s32 %v11345, %v11347
      %v11349 = vrot.slane %v11335, %v11348
      %v11350 = vcombine.low %v11326, %v11342
      %v11351 = vcombine.high %v11326, %v11342
      %v11352 = vcombine.low %v11333, %v11349
      %v11353 = vcombine.high %v11333, %v11349
      %v11354 = vcombine.low %v10306, %v10313
      %v11356 = vunpack.c.l.s4 1983009808
      %v11357 = vunpack.c.0.s8 %v11356
      %v11358 = vlaneseq
      %v11359 = vshrl.u32 %v11358, 7
      %v11360 = vsub.s32 %v11357, %v11359
      %v11361 = vrot.slane %v11354, %v11360
      %v11362 = vcombine.low %v10330, %v10331
      %v11364 = vunpack.c.l.s4 1983009808
      %v11365 = vunpack.c.0.s8 %v11364
      %v11366 = vlaneseq
      %v11367 = vshrl.u32 %v11366, 7
      %v11368 = vsub.s32 %v11365, %v11367
      %v11369 = vrot.slane %v11362, %v11368
      %v11370 = vcombine.low %v10322, %v10329
      %v11372 = vunpack.c.l.s4 1983009808
      %v11373 = vunpack.c.0.s8 %v11372
      %v11374 = vlaneseq
      %v11375 = vshrl.u32 %v11374, 7
      %v11376 = vsub.s32 %v11373, %v11375
      %v11377 = vrot.slane %v11370, %v11376
      %v11378 = vcombine.low %v10332, %v10333
      %v11380 = vunpack.c.l.s4 1983009808
      %v11381 = vunpack.c.0.s8 %v11380
      %v11382 = vlaneseq
      %v11383 = vshrl.u32 %v11382, 7
      %v11384 = vsub.s32 %v11381, %v11383
      %v11385 = vrot.slane %v11378, %v11384
      %v11386 = vcombine.low %v11361, %v11369
      %v11387 = vcombine.high %v11361, %v11369
      %v11389 = vunpack.c.l.s4 1934713408
      %v11390 = vunpack.c.0.s8 %v11389
      %v11391 = vlaneseq
      %v11392 = vshrl.u32 %v11391, 7
      %v11393 = vsub.s32 %v11390, %v11392
      %v11394 = vrot.slane %v11386, %v11393
      %v11396 = vunpack.c.l.s4 1934713408
      %v11397 = vunpack.c.0.s8 %v11396
      %v11398 = vlaneseq
      %v11399 = vshrl.u32 %v11398, 7
      %v11400 = vsub.s32 %v11397, %v11399
      %v11401 = vrot.slane %v11387, %v11400
      %v11402 = vcombine.low %v11377, %v11385
      %v11403 = vcombine.high %v11377, %v11385
      %v11405 = vunpack.c.l.s4 1934713408
      %v11406 = vunpack.c.0.s8 %v11405
      %v11407 = vlaneseq
      %v11408 = vshrl.u32 %v11407, 7
      %v11409 = vsub.s32 %v11406, %v11408
      %v11410 = vrot.slane %v11402, %v11409
      %v11412 = vunpack.c.l.s4 1934713408
      %v11413 = vunpack.c.0.s8 %v11412
      %v11414 = vlaneseq
      %v11415 = vshrl.u32 %v11414, 7
      %v11416 = vsub.s32 %v11413, %v11415
      %v11417 = vrot.slane %v11403, %v11416
      %v11418 = vcombine.low %v11394, %v11410
      %v11419 = vcombine.high %v11394, %v11410
      %v11420 = vcombine.low %v11401, %v11417
      %v11421 = vcombine.high %v11401, %v11417
      %v11422 = vcombine.low %v10374, %v10381
      %v11424 = vunpack.c.l.s4 1983009808
      %v11425 = vunpack.c.0.s8 %v11424
      %v11426 = vlaneseq
      %v11427 = vshrl.u32 %v11426, 7
      %v11428 = vsub.s32 %v11425, %v11427
      %v11429 = vrot.slane %v11422, %v11428
      %v11430 = vcombine.low %v10398, %v10399
      %v11432 = vunpack.c.l.s4 1983009808
      %v11433 = vunpack.c.0.s8 %v11432
      %v11434 = vlaneseq
      %v11435 = vshrl.u32 %v11434, 7
      %v11436 = vsub.s32 %v11433, %v11435
      %v11437 = vrot.slane %v11430, %v11436
      %v11438 = vcombine.low %v10390, %v10397
      %v11440 = vunpack.c.l.s4 1983009808
      %v11441 = vunpack.c.0.s8 %v11440
      %v11442 = vlaneseq
      %v11443 = vshrl.u32 %v11442, 7
      %v11444 = vsub.s32 %v11441, %v11443
      %v11445 = vrot.slane %v11438, %v11444
      %v11446 = vcombine.low %v10400, %v10401
      %v11448 = vunpack.c.l.s4 1983009808
      %v11449 = vunpack.c.0.s8 %v11448
      %v11450 = vlaneseq
      %v11451 = vshrl.u32 %v11450, 7
      %v11452 = vsub.s32 %v11449, %v11451
      %v11453 = vrot.slane %v11446, %v11452
      %v11454 = vcombine.low %v11429, %v11437
      %v11455 = vcombine.high %v11429, %v11437
      %v11457 = vunpack.c.l.s4 1934713408
      %v11458 = vunpack.c.0.s8 %v11457
      %v11459 = vlaneseq
      %v11460 = vshrl.u32 %v11459, 7
      %v11461 = vsub.s32 %v11458, %v11460
      %v11462 = vrot.slane %v11454, %v11461
      %v11464 = vunpack.c.l.s4 1934713408
      %v11465 = vunpack.c.0.s8 %v11464
      %v11466 = vlaneseq
      %v11467 = vshrl.u32 %v11466, 7
      %v11468 = vsub.s32 %v11465, %v11467
      %v11469 = vrot.slane %v11455, %v11468
      %v11470 = vcombine.low %v11445, %v11453
      %v11471 = vcombine.high %v11445, %v11453
      %v11473 = vunpack.c.l.s4 1934713408
      %v11474 = vunpack.c.0.s8 %v11473
      %v11475 = vlaneseq
      %v11476 = vshrl.u32 %v11475, 7
      %v11477 = vsub.s32 %v11474, %v11476
      %v11478 = vrot.slane %v11470, %v11477
      %v11480 = vunpack.c.l.s4 1934713408
      %v11481 = vunpack.c.0.s8 %v11480
      %v11482 = vlaneseq
      %v11483 = vshrl.u32 %v11482, 7
      %v11484 = vsub.s32 %v11481, %v11483
      %v11485 = vrot.slane %v11471, %v11484
      %v11486 = vcombine.low %v11462, %v11478
      %v11487 = vcombine.high %v11462, %v11478
      %v11488 = vcombine.low %v11469, %v11485
      %v11489 = vcombine.high %v11469, %v11485
      %v11490 = vcombine.low %v10442, %v10449
      %v11492 = vunpack.c.l.s4 1983009808
      %v11493 = vunpack.c.0.s8 %v11492
      %v11494 = vlaneseq
      %v11495 = vshrl.u32 %v11494, 7
      %v11496 = vsub.s32 %v11493, %v11495
      %v11497 = vrot.slane %v11490, %v11496
      %v11498 = vcombine.low %v10466, %v10467
      %v11500 = vunpack.c.l.s4 1983009808
      %v11501 = vunpack.c.0.s8 %v11500
      %v11502 = vlaneseq
      %v11503 = vshrl.u32 %v11502, 7
      %v11504 = vsub.s32 %v11501, %v11503
      %v11505 = vrot.slane %v11498, %v11504
      %v11506 = vcombine.low %v10458, %v10465
      %v11508 = vunpack.c.l.s4 1983009808
      %v11509 = vunpack.c.0.s8 %v11508
      %v11510 = vlaneseq
      %v11511 = vshrl.u32 %v11510, 7
      %v11512 = vsub.s32 %v11509, %v11511
      %v11513 = vrot.slane %v11506, %v11512
      %v11514 = vcombine.low %v10468, %v10469
      %v11516 = vunpack.c.l.s4 1983009808
      %v11517 = vunpack.c.0.s8 %v11516
      %v11518 = vlaneseq
      %v11519 = vshrl.u32 %v11518, 7
      %v11520 = vsub.s32 %v11517, %v11519
      %v11521 = vrot.slane %v11514, %v11520
      %v11522 = vcombine.low %v11497, %v11505
      %v11523 = vcombine.high %v11497, %v11505
      %v11525 = vunpack.c.l.s4 1934713408
      %v11526 = vunpack.c.0.s8 %v11525
      %v11527 = vlaneseq
      %v11528 = vshrl.u32 %v11527, 7
      %v11529 = vsub.s32 %v11526, %v11528
      %v11530 = vrot.slane %v11522, %v11529
      %v11532 = vunpack.c.l.s4 1934713408
      %v11533 = vunpack.c.0.s8 %v11532
      %v11534 = vlaneseq
      %v11535 = vshrl.u32 %v11534, 7
      %v11536 = vsub.s32 %v11533, %v11535
      %v11537 = vrot.slane %v11523, %v11536
      %v11538 = vcombine.low %v11513, %v11521
      %v11539 = vcombine.high %v11513, %v11521
      %v11541 = vunpack.c.l.s4 1934713408
      %v11542 = vunpack.c.0.s8 %v11541
      %v11543 = vlaneseq
      %v11544 = vshrl.u32 %v11543, 7
      %v11545 = vsub.s32 %v11542, %v11544
      %v11546 = vrot.slane %v11538, %v11545
      %v11548 = vunpack.c.l.s4 1934713408
      %v11549 = vunpack.c.0.s8 %v11548
      %v11550 = vlaneseq
      %v11551 = vshrl.u32 %v11550, 7
      %v11552 = vsub.s32 %v11549, %v11551
      %v11553 = vrot.slane %v11539, %v11552
      %v11554 = vcombine.low %v11530, %v11546
      %v11555 = vcombine.high %v11530, %v11546
      %v11556 = vcombine.low %v11537, %v11553
      %v11557 = vcombine.high %v11537, %v11553
      %v11558 = vcombine.low %v10510, %v10517
      %v11560 = vunpack.c.l.s4 1983009808
      %v11561 = vunpack.c.0.s8 %v11560
      %v11562 = vlaneseq
      %v11563 = vshrl.u32 %v11562, 7
      %v11564 = vsub.s32 %v11561, %v11563
      %v11565 = vrot.slane %v11558, %v11564
      %v11566 = vcombine.low %v10534, %v10535
      %v11568 = vunpack.c.l.s4 1983009808
      %v11569 = vunpack.c.0.s8 %v11568
      %v11570 = vlaneseq
      %v11571 = vshrl.u32 %v11570, 7
      %v11572 = vsub.s32 %v11569, %v11571
      %v11573 = vrot.slane %v11566, %v11572
      %v11574 = vcombine.low %v10526, %v10533
      %v11576 = vunpack.c.l.s4 1983009808
      %v11577 = vunpack.c.0.s8 %v11576
      %v11578 = vlaneseq
      %v11579 = vshrl.u32 %v11578, 7
      %v11580 = vsub.s32 %v11577, %v11579
      %v11581 = vrot.slane %v11574, %v11580
      %v11582 = vcombine.low %v10536, %v10537
      %v11584 = vunpack.c.l.s4 1983009808
      %v11585 = vunpack.c.0.s8 %v11584
      %v11586 = vlaneseq
      %v11587 = vshrl.u32 %v11586, 7
      %v11588 = vsub.s32 %v11585, %v11587
      %v11589 = vrot.slane %v11582, %v11588
      %v11590 = vcombine.low %v11565, %v11573
      %v11591 = vcombine.high %v11565, %v11573
      %v11593 = vunpack.c.l.s4 1934713408
      %v11594 = vunpack.c.0.s8 %v11593
      %v11595 = vlaneseq
      %v11596 = vshrl.u32 %v11595, 7
      %v11597 = vsub.s32 %v11594, %v11596
      %v11598 = vrot.slane %v11590, %v11597
      %v11600 = vunpack.c.l.s4 1934713408
      %v11601 = vunpack.c.0.s8 %v11600
      %v11602 = vlaneseq
      %v11603 = vshrl.u32 %v11602, 7
      %v11604 = vsub.s32 %v11601, %v11603
      %v11605 = vrot.slane %v11591, %v11604
      %v11606 = vcombine.low %v11581, %v11589
      %v11607 = vcombine.high %v11581, %v11589
      %v11609 = vunpack.c.l.s4 1934713408
      %v11610 = vunpack.c.0.s8 %v11609
      %v11611 = vlaneseq
      %v11612 = vshrl.u32 %v11611, 7
      %v11613 = vsub.s32 %v11610, %v11612
      %v11614 = vrot.slane %v11606, %v11613
      %v11616 = vunpack.c.l.s4 1934713408
      %v11617 = vunpack.c.0.s8 %v11616
      %v11618 = vlaneseq
      %v11619 = vshrl.u32 %v11618, 7
      %v11620 = vsub.s32 %v11617, %v11619
      %v11621 = vrot.slane %v11607, %v11620
      %v11622 = vcombine.low %v11598, %v11614
      %v11623 = vcombine.high %v11598, %v11614
      %v11624 = vcombine.low %v11605, %v11621
      %v11625 = vcombine.high %v11605, %v11621
      %v11626 = vcombine.low %v10578, %v10585
      %v11628 = vunpack.c.l.s4 1983009808
      %v11629 = vunpack.c.0.s8 %v11628
      %v11630 = vlaneseq
      %v11631 = vshrl.u32 %v11630, 7
      %v11632 = vsub.s32 %v11629, %v11631
      %v11633 = vrot.slane %v11626, %v11632
      %v11634 = vcombine.low %v10602, %v10603
      %v11636 = vunpack.c.l.s4 1983009808
      %v11637 = vunpack.c.0.s8 %v11636
      %v11638 = vlaneseq
      %v11639 = vshrl.u32 %v11638, 7
      %v11640 = vsub.s32 %v11637, %v11639
      %v11641 = vrot.slane %v11634, %v11640
      %v11642 = vcombine.low %v10594, %v10601
      %v11644 = vunpack.c.l.s4 1983009808
      %v11645 = vunpack.c.0.s8 %v11644
      %v11646 = vlaneseq
      %v11647 = vshrl.u32 %v11646, 7
      %v11648 = vsub.s32 %v11645, %v11647
      %v11649 = vrot.slane %v11642, %v11648
      %v11650 = vcombine.low %v10604, %v10605
      %v11652 = vunpack.c.l.s4 1983009808
      %v11653 = vunpack.c.0.s8 %v11652
      %v11654 = vlaneseq
      %v11655 = vshrl.u32 %v11654, 7
      %v11656 = vsub.s32 %v11653, %v11655
      %v11657 = vrot.slane %v11650, %v11656
      %v11658 = vcombine.low %v11633, %v11641
      %v11659 = vcombine.high %v11633, %v11641
      %v11661 = vunpack.c.l.s4 1934713408
      %v11662 = vunpack.c.0.s8 %v11661
      %v11663 = vlaneseq
      %v11664 = vshrl.u32 %v11663, 7
      %v11665 = vsub.s32 %v11662, %v11664
      %v11666 = vrot.slane %v11658, %v11665
      %v11668 = vunpack.c.l.s4 1934713408
      %v11669 = vunpack.c.0.s8 %v11668
      %v11670 = vlaneseq
      %v11671 = vshrl.u32 %v11670, 7
      %v11672 = vsub.s32 %v11669, %v11671
      %v11673 = vrot.slane %v11659, %v11672
      %v11674 = vcombine.low %v11649, %v11657
      %v11675 = vcombine.high %v11649, %v11657
      %v11677 = vunpack.c.l.s4 1934713408
      %v11678 = vunpack.c.0.s8 %v11677
      %v11679 = vlaneseq
      %v11680 = vshrl.u32 %v11679, 7
      %v11681 = vsub.s32 %v11678, %v11680
      %v11682 = vrot.slane %v11674, %v11681
      %v11684 = vunpack.c.l.s4 1934713408
      %v11685 = vunpack.c.0.s8 %v11684
      %v11686 = vlaneseq
      %v11687 = vshrl.u32 %v11686, 7
      %v11688 = vsub.s32 %v11685, %v11687
      %v11689 = vrot.slane %v11675, %v11688
      %v11690 = vcombine.low %v11666, %v11682
      %v11691 = vcombine.high %v11666, %v11682
      %v11692 = vcombine.low %v11673, %v11689
      %v11693 = vcombine.high %v11673, %v11689
      %v11694 = vcombine.low %v10646, %v10653
      %v11696 = vunpack.c.l.s4 1983009808
      %v11697 = vunpack.c.0.s8 %v11696
      %v11698 = vlaneseq
      %v11699 = vshrl.u32 %v11698, 7
      %v11700 = vsub.s32 %v11697, %v11699
      %v11701 = vrot.slane %v11694, %v11700
      %v11702 = vcombine.low %v10670, %v10671
      %v11704 = vunpack.c.l.s4 1983009808
      %v11705 = vunpack.c.0.s8 %v11704
      %v11706 = vlaneseq
      %v11707 = vshrl.u32 %v11706, 7
      %v11708 = vsub.s32 %v11705, %v11707
      %v11709 = vrot.slane %v11702, %v11708
      %v11710 = vcombine.low %v10662, %v10669
      %v11712 = vunpack.c.l.s4 1983009808
      %v11713 = vunpack.c.0.s8 %v11712
      %v11714 = vlaneseq
      %v11715 = vshrl.u32 %v11714, 7
      %v11716 = vsub.s32 %v11713, %v11715
      %v11717 = vrot.slane %v11710, %v11716
      %v11718 = vcombine.low %v10672, %v10673
      %v11720 = vunpack.c.l.s4 1983009808
      %v11721 = vunpack.c.0.s8 %v11720
      %v11722 = vlaneseq
      %v11723 = vshrl.u32 %v11722, 7
      %v11724 = vsub.s32 %v11721, %v11723
      %v11725 = vrot.slane %v11718, %v11724
      %v11726 = vcombine.low %v11701, %v11709
      %v11727 = vcombine.high %v11701, %v11709
      %v11729 = vunpack.c.l.s4 1934713408
      %v11730 = vunpack.c.0.s8 %v11729
      %v11731 = vlaneseq
      %v11732 = vshrl.u32 %v11731, 7
      %v11733 = vsub.s32 %v11730, %v11732
      %v11734 = vrot.slane %v11726, %v11733
      %v11736 = vunpack.c.l.s4 1934713408
      %v11737 = vunpack.c.0.s8 %v11736
      %v11738 = vlaneseq
      %v11739 = vshrl.u32 %v11738, 7
      %v11740 = vsub.s32 %v11737, %v11739
      %v11741 = vrot.slane %v11727, %v11740
      %v11742 = vcombine.low %v11717, %v11725
      %v11743 = vcombine.high %v11717, %v11725
      %v11745 = vunpack.c.l.s4 1934713408
      %v11746 = vunpack.c.0.s8 %v11745
      %v11747 = vlaneseq
      %v11748 = vshrl.u32 %v11747, 7
      %v11749 = vsub.s32 %v11746, %v11748
      %v11750 = vrot.slane %v11742, %v11749
      %v11752 = vunpack.c.l.s4 1934713408
      %v11753 = vunpack.c.0.s8 %v11752
      %v11754 = vlaneseq
      %v11755 = vshrl.u32 %v11754, 7
      %v11756 = vsub.s32 %v11753, %v11755
      %v11757 = vrot.slane %v11743, %v11756
      %v11758 = vcombine.low %v11734, %v11750
      %v11759 = vcombine.high %v11734, %v11750
      %v11760 = vcombine.low %v11741, %v11757
      %v11761 = vcombine.high %v11741, %v11757
      %v11762 = vcombine.low %v10714, %v10721
      %v11764 = vunpack.c.l.s4 1983009808
      %v11765 = vunpack.c.0.s8 %v11764
      %v11766 = vlaneseq
      %v11767 = vshrl.u32 %v11766, 7
      %v11768 = vsub.s32 %v11765, %v11767
      %v11769 = vrot.slane %v11762, %v11768
      %v11770 = vcombine.low %v10738, %v10739
      %v11772 = vunpack.c.l.s4 1983009808
      %v11773 = vunpack.c.0.s8 %v11772
      %v11774 = vlaneseq
      %v11775 = vshrl.u32 %v11774, 7
      %v11776 = vsub.s32 %v11773, %v11775
      %v11777 = vrot.slane %v11770, %v11776
      %v11778 = vcombine.low %v10730, %v10737
      %v11780 = vunpack.c.l.s4 1983009808
      %v11781 = vunpack.c.0.s8 %v11780
      %v11782 = vlaneseq
      %v11783 = vshrl.u32 %v11782, 7
      %v11784 = vsub.s32 %v11781, %v11783
      %v11785 = vrot.slane %v11778, %v11784
      %v11786 = vcombine.low %v10740, %v10741
      %v11788 = vunpack.c.l.s4 1983009808
      %v11789 = vunpack.c.0.s8 %v11788
      %v11790 = vlaneseq
      %v11791 = vshrl.u32 %v11790, 7
      %v11792 = vsub.s32 %v11789, %v11791
      %v11793 = vrot.slane %v11786, %v11792
      %v11794 = vcombine.low %v11769, %v11777
      %v11795 = vcombine.high %v11769, %v11777
      %v11797 = vunpack.c.l.s4 1934713408
      %v11798 = vunpack.c.0.s8 %v11797
      %v11799 = vlaneseq
      %v11800 = vshrl.u32 %v11799, 7
      %v11801 = vsub.s32 %v11798, %v11800
      %v11802 = vrot.slane %v11794, %v11801
      %v11804 = vunpack.c.l.s4 1934713408
      %v11805 = vunpack.c.0.s8 %v11804
      %v11806 = vlaneseq
      %v11807 = vshrl.u32 %v11806, 7
      %v11808 = vsub.s32 %v11805, %v11807
      %v11809 = vrot.slane %v11795, %v11808
      %v11810 = vcombine.low %v11785, %v11793
      %v11811 = vcombine.high %v11785, %v11793
      %v11813 = vunpack.c.l.s4 1934713408
      %v11814 = vunpack.c.0.s8 %v11813
      %v11815 = vlaneseq
      %v11816 = vshrl.u32 %v11815, 7
      %v11817 = vsub.s32 %v11814, %v11816
      %v11818 = vrot.slane %v11810, %v11817
      %v11820 = vunpack.c.l.s4 1934713408
      %v11821 = vunpack.c.0.s8 %v11820
      %v11822 = vlaneseq
      %v11823 = vshrl.u32 %v11822, 7
      %v11824 = vsub.s32 %v11821, %v11823
      %v11825 = vrot.slane %v11811, %v11824
      %v11826 = vcombine.low %v11802, %v11818
      %v11827 = vcombine.high %v11802, %v11818
      %v11828 = vcombine.low %v11809, %v11825
      %v11829 = vcombine.high %v11809, %v11825
      %11846 = vrot.lane.b32.xlu0 %v10807, 8
      %v11847 = vpop.permute.xlu0 %11846
      %11848 = vrot.lane.b32.xlu0 %v10875, 8
      %v11849 = vpop.permute.xlu0 %11848
      %11850 = vrot.lane.b32.xlu0 %v10943, 8
      %v11851 = vpop.permute.xlu0 %11850
      %11852 = vrot.lane.b32.xlu0 %v11011, 8
      %v11853 = vpop.permute.xlu0 %11852
      %11854 = vrot.lane.b32.xlu0 %v11079, 8
      %v11855 = vpop.permute.xlu0 %11854
      %11856 = vrot.lane.b32.xlu0 %v11147, 8
      %v11857 = vpop.permute.xlu0 %11856
      %11858 = vrot.lane.b32.xlu0 %v11215, 8
      %v11859 = vpop.permute.xlu0 %11858
      %11860 = vrot.lane.b32.xlu0 %v11283, 8
      %v11861 = vpop.permute.xlu0 %11860
      %11862 = vrot.lane.b32.xlu0 %v11351, 8
      %v11863 = vpop.permute.xlu0 %11862
      %11864 = vrot.lane.b32.xlu0 %v11419, 8
      %v11865 = vpop.permute.xlu0 %11864
      %11866 = vrot.lane.b32.xlu0 %v11487, 8
      %v11867 = vpop.permute.xlu0 %11866
      %11868 = vrot.lane.b32.xlu0 %v11555, 8
      %v11869 = vpop.permute.xlu0 %11868
      %11870 = vrot.lane.b32.xlu0 %v11623, 8
      %v11871 = vpop.permute.xlu0 %11870
      %11872 = vrot.lane.b32.xlu0 %v11691, 8
      %v11873 = vpop.permute.xlu0 %11872
      %11874 = vrot.lane.b32.xlu0 %v11759, 8
      %v11875 = vpop.permute.xlu0 %11874
      %11876 = vrot.lane.b32.xlu0 %v11827, 8
      %v11877 = vpop.permute.xlu0 %11876
      %11910 = vrot.lane.b32.xlu0 %v10808, 16
      %v11911 = vpop.permute.xlu0 %11910
      %11912 = vrot.lane.b32.xlu0 %v10876, 16
      %v11913 = vpop.permute.xlu0 %11912
      %11914 = vrot.lane.b32.xlu0 %v10944, 16
      %v11915 = vpop.permute.xlu0 %11914
      %11916 = vrot.lane.b32.xlu0 %v11012, 16
      %v11917 = vpop.permute.xlu0 %11916
      %11918 = vrot.lane.b32.xlu0 %v11080, 16
      %v11919 = vpop.permute.xlu0 %11918
      %11920 = vrot.lane.b32.xlu0 %v11148, 16
      %v11921 = vpop.permute.xlu0 %11920
      %11922 = vrot.lane.b32.xlu0 %v11216, 16
      %v11923 = vpop.permute.xlu0 %11922
      %11924 = vrot.lane.b32.xlu0 %v11284, 16
      %v11925 = vpop.permute.xlu0 %11924
      %11926 = vrot.lane.b32.xlu0 %v11352, 16
      %v11927 = vpop.permute.xlu0 %11926
      %11928 = vrot.lane.b32.xlu0 %v11420, 16
      %v11929 = vpop.permute.xlu0 %11928
      %11930 = vrot.lane.b32.xlu0 %v11488, 16
      %v11931 = vpop.permute.xlu0 %11930
      %11932 = vrot.lane.b32.xlu0 %v11556, 16
      %v11933 = vpop.permute.xlu0 %11932
      %11934 = vrot.lane.b32.xlu0 %v11624, 16
      %v11935 = vpop.permute.xlu0 %11934
      %11936 = vrot.lane.b32.xlu0 %v11692, 16
      %v11937 = vpop.permute.xlu0 %11936
      %11938 = vrot.lane.b32.xlu0 %v11760, 16
      %v11939 = vpop.permute.xlu0 %11938
      %11940 = vrot.lane.b32.xlu0 %v11828, 16
      %v11941 = vpop.permute.xlu0 %11940
      %11974 = vrot.lane.b32.xlu0 %v10809, 24
      %v11975 = vpop.permute.xlu0 %11974
      %11976 = vrot.lane.b32.xlu0 %v10877, 24
      %v11977 = vpop.permute.xlu0 %11976
      %11978 = vrot.lane.b32.xlu0 %v10945, 24
      %v11979 = vpop.permute.xlu0 %11978
      %11980 = vrot.lane.b32.xlu0 %v11013, 24
      %v11981 = vpop.permute.xlu0 %11980
      %11982 = vrot.lane.b32.xlu0 %v11081, 24
      %v11983 = vpop.permute.xlu0 %11982
      %11984 = vrot.lane.b32.xlu0 %v11149, 24
      %v11985 = vpop.permute.xlu0 %11984
      %11986 = vrot.lane.b32.xlu0 %v11217, 24
      %v11987 = vpop.permute.xlu0 %11986
      %11988 = vrot.lane.b32.xlu0 %v11285, 24
      %v11989 = vpop.permute.xlu0 %11988
      %11990 = vrot.lane.b32.xlu0 %v11353, 24
      %v11991 = vpop.permute.xlu0 %11990
      %11992 = vrot.lane.b32.xlu0 %v11421, 24
      %v11993 = vpop.permute.xlu0 %11992
      %11994 = vrot.lane.b32.xlu0 %v11489, 24
      %v11995 = vpop.permute.xlu0 %11994
      %11996 = vrot.lane.b32.xlu0 %v11557, 24
      %v11997 = vpop.permute.xlu0 %11996
      %11998 = vrot.lane.b32.xlu0 %v11625, 24
      %v11999 = vpop.permute.xlu0 %11998
      %12000 = vrot.lane.b32.xlu0 %v11693, 24
      %v12001 = vpop.permute.xlu0 %12000
      %12002 = vrot.lane.b32.xlu0 %v11761, 24
      %v12003 = vpop.permute.xlu0 %12002
      %12004 = vrot.lane.b32.xlu0 %v11829, 24
      %v12005 = vpop.permute.xlu0 %12004
      %v12022 = vsel %vm5804, %v10806, %v11847
      %v12023 = vsel %vm5804, %v10874, %v11849
      %v12024 = vsel %vm5804, %v10942, %v11851
      %v12025 = vsel %vm5804, %v11010, %v11853
      %v12026 = vsel %vm5804, %v11078, %v11855
      %v12027 = vsel %vm5804, %v11146, %v11857
      %v12028 = vsel %vm5804, %v11214, %v11859
      %v12029 = vsel %vm5804, %v11282, %v11861
      %v12030 = vsel %vm5804, %v11350, %v11863
      %v12031 = vsel %vm5804, %v11418, %v11865
      %v12032 = vsel %vm5804, %v11486, %v11867
      %v12033 = vsel %vm5804, %v11554, %v11869
      %v12034 = vsel %vm5804, %v11622, %v11871
      %v12035 = vsel %vm5804, %v11690, %v11873
      %v12036 = vsel %vm5804, %v11758, %v11875
      %v12037 = vsel %vm5804, %v11826, %v11877
      %v12038 = vsel %vm7509, %v12022, %v11911
      %v12039 = vsel %vm7509, %v12023, %v11913
      %v12040 = vsel %vm7509, %v12024, %v11915
      %v12041 = vsel %vm7509, %v12025, %v11917
      %v12042 = vsel %vm7509, %v12026, %v11919
      %v12043 = vsel %vm7509, %v12027, %v11921
      %v12044 = vsel %vm7509, %v12028, %v11923
      %v12045 = vsel %vm7509, %v12029, %v11925
      %v12046 = vsel %vm7509, %v12030, %v11927
      %v12047 = vsel %vm7509, %v12031, %v11929
      %v12048 = vsel %vm7509, %v12032, %v11931
      %v12049 = vsel %vm7509, %v12033, %v11933
      %v12050 = vsel %vm7509, %v12034, %v11935
      %v12051 = vsel %vm7509, %v12035, %v11937
      %v12052 = vsel %vm7509, %v12036, %v11939
      %v12053 = vsel %vm7509, %v12037, %v11941
      %vm12054 = vcmask 195584
      %v12055 = vsel %vm12054, %v12038, %v11975
      %v12056 = vsel %vm12054, %v12039, %v11977
      %v12057 = vsel %vm12054, %v12040, %v11979
      %v12058 = vsel %vm12054, %v12041, %v11981
      %v12059 = vsel %vm12054, %v12042, %v11983
      %v12060 = vsel %vm12054, %v12043, %v11985
      %v12061 = vsel %vm12054, %v12044, %v11987
      %v12062 = vsel %vm12054, %v12045, %v11989
      %v12063 = vsel %vm12054, %v12046, %v11991
      %v12064 = vsel %vm12054, %v12047, %v11993
      %v12065 = vsel %vm12054, %v12048, %v11995
      %v12066 = vsel %vm12054, %v12049, %v11997
      %v12067 = vsel %vm12054, %v12050, %v11999
      %v12068 = vsel %vm12054, %v12051, %v12001
      %v12069 = vsel %vm12054, %v12052, %v12003
      %v12070 = vsel %vm12054, %v12053, %v12005
      %v12071 = vpack.c.bf16 %v12056, %v12055
      %v12072 = vpack.c.bf16 %v12058, %v12057
      %v12073 = vpack.c.bf16 %v12060, %v12059
      %v12074 = vpack.c.bf16 %v12062, %v12061
      %v12075 = vpack.c.bf16 %v12064, %v12063
      %v12076 = vpack.c.bf16 %v12066, %v12065
      %v12077 = vpack.c.bf16 %v12068, %v12067
      %v12078 = vpack.c.bf16 %v12070, %v12069
      %v12079 = vld [vmem:[%s482] sm:$0xf]
      %v12080 = vld [vmem:[%s482 + $0x4] sm:$0xf]
      %v12081 = vld [vmem:[%s482 + $0x8] sm:$0xf]
      %v12082 = vld [vmem:[%s482 + $0xc] sm:$0xf]
      %v12087 = vunpack.c.l.b16 %v12079
      %v12088 = vunpack.c.l.b16 %v12080
      %v12089 = vunpack.c.l.b16 %v12081
      %v12090 = vunpack.c.l.b16 %v12082
      %v12091 = vpack.c.b16 %v12088, %v12087
      %v12092 = vpack.c.b16 %v12090, %v12089
      %v12096 = vsel %vm589, %v12071, 0
      %v12099 = vsel %vm589, %v12072, 0
      %v12102 = vsel %vm589, %v12073, 0
      %v12105 = vsel %vm589, %v12074, 0
      %v12108 = vsel %vm589, %v12075, 0
      %v12111 = vsel %vm589, %v12076, 0
      %v12114 = vsel %vm589, %v12077, 0
      %v12117 = vsel %vm589, %v12078, 0
      %12119 = vmatprep.subr.bf16.mxu0 0
      %12120 = vmatpush1.bf16.msra.mxu0 0
      %12121 = vmatprep.subr.bf16.mxu0 0
      %12122 = vmatpush1.bf16.msra.mxu0 0
      %12123 = vmatprep.subr.bf16.mxu0 0
      %12124 = vmatpush1.bf16.msra.mxu0 0
      %12125 = vmatprep.subr.bf16.mxu0 0
      %12126 = vmatpush1.bf16.msra.mxu0 0
      %12127 = vmatprep.subr.bf16.mxu0 0
      %12128 = vmatpush1.bf16.msra.mxu0 0
      %12129 = vmatprep.subr.bf16.mxu0 0
      %12130 = vmatpush1.bf16.msra.mxu0 0
      %12131 = vmatprep.subr.bf16.mxu0 0
      %12132 = vmatpush1.bf16.msra.mxu0 %v12092
      %12133 = vmatprep.subr.bf16.mxu0 0
      %12134 = vmatpush1.bf16.msra.mxu0 %v12091
      %12135 = vmatprep.subr.bf16.mxu0 0
      %12136 = vmatpush2.bf16.msra.mxu0 0
      %12137 = vmatprep.subr.bf16.mxu0 0
      %12138 = vmatpush2.bf16.msra.mxu0 0
      %12139 = vmatprep.subr.bf16.mxu0 0
      %12140 = vmatpush2.bf16.msra.mxu0 0
      %12141 = vmatprep.subr.bf16.mxu0 0
      %12142 = vmatpush2.bf16.msra.mxu0 0
      %12143 = vmatprep.subr.bf16.mxu0 0
      %12144 = vmatpush2.bf16.msra.mxu0 0
      %12145 = vmatprep.subr.bf16.mxu0 0
      %12146 = vmatpush2.bf16.msra.mxu0 0
      %12147 = vmatprep.subr.bf16.mxu0 0
      %12148 = vmatpush2.bf16.msra.mxu0 0
      %12149 = vmatprep.subr.bf16.mxu0 0
      %12150 = vmatpush2.bf16.msra.mxu0 0
      %12151 = vmatprep.mubr.bf16.mxu0 0
      %12152 = vmatmul.mubr.bf16.gmra.mxu0 %v12096
      %v12153 = vpop.f32.mrf.mxu0
      %v12154 = vadd.f32 0.0, %v12153
      %v12155 = vpop.f32.mrf.mxu0
      %v12156 = vpop.f32.mrf.mxu0
      %v12157 = vadd.f32 0.0, %v12156
      %v12158 = vpop.f32.mrf.mxu0
      %12159 = vmatprep.mubr.bf16.mxu0 0
      %12160 = vmatmul.mubr.bf16.gmra.mxu0 %v12099
      %v12161 = vpop.f32.mrf.mxu0
      %v12162 = vadd.f32 0.0, %v12161
      %v12163 = vpop.f32.mrf.mxu0
      %v12164 = vpop.f32.mrf.mxu0
      %v12165 = vadd.f32 0.0, %v12164
      %v12166 = vpop.f32.mrf.mxu0
      %12167 = vmatprep.mubr.bf16.mxu0 0
      %12168 = vmatmul.mubr.bf16.gmra.mxu0 %v12102
      %v12169 = vpop.f32.mrf.mxu0
      %v12170 = vadd.f32 0.0, %v12169
      %v12171 = vpop.f32.mrf.mxu0
      %v12172 = vpop.f32.mrf.mxu0
      %v12173 = vadd.f32 0.0, %v12172
      %v12174 = vpop.f32.mrf.mxu0
      %12175 = vmatprep.mubr.bf16.mxu0 0
      %12176 = vmatmul.mubr.bf16.gmra.mxu0 %v12105
      %v12177 = vpop.f32.mrf.mxu0
      %v12178 = vadd.f32 0.0, %v12177
      %v12179 = vpop.f32.mrf.mxu0
      %v12180 = vpop.f32.mrf.mxu0
      %v12181 = vadd.f32 0.0, %v12180
      %v12182 = vpop.f32.mrf.mxu0
      %12183 = vmatprep.mubr.bf16.mxu0 0
      %12184 = vmatmul.mubr.bf16.gmra.mxu0 %v12108
      %v12185 = vpop.f32.mrf.mxu0
      %v12186 = vadd.f32 0.0, %v12185
      %v12187 = vpop.f32.mrf.mxu0
      %v12188 = vpop.f32.mrf.mxu0
      %v12189 = vadd.f32 0.0, %v12188
      %v12190 = vpop.f32.mrf.mxu0
      %12191 = vmatprep.mubr.bf16.mxu0 0
      %12192 = vmatmul.mubr.bf16.gmra.mxu0 %v12111
      %v12193 = vpop.f32.mrf.mxu0
      %v12194 = vadd.f32 0.0, %v12193
      %v12195 = vpop.f32.mrf.mxu0
      %v12196 = vpop.f32.mrf.mxu0
      %v12197 = vadd.f32 0.0, %v12196
      %v12198 = vpop.f32.mrf.mxu0
      %12199 = vmatprep.mubr.bf16.mxu0 0
      %12200 = vmatmul.mubr.bf16.gmra.mxu0 %v12114
      %v12201 = vpop.f32.mrf.mxu0
      %v12202 = vadd.f32 0.0, %v12201
      %v12203 = vpop.f32.mrf.mxu0
      %v12204 = vpop.f32.mrf.mxu0
      %v12205 = vadd.f32 0.0, %v12204
      %v12206 = vpop.f32.mrf.mxu0
      %12207 = vmatprep.mubr.bf16.mxu0 0
      %12208 = vmatmul.mubr.bf16.gmra.mxu0 %v12117
      %v12209 = vpop.f32.mrf.mxu0
      %v12210 = vadd.f32 0.0, %v12209
      %v12211 = vpop.f32.mrf.mxu0
      %v12212 = vpop.f32.mrf.mxu0
      %v12213 = vadd.f32 0.0, %v12212
      %v12214 = vpop.f32.mrf.mxu0
      %12215 = vdwg.mxu0
      %v12216 = vadd.f32 %v556, %v12154
      %v12217 = vadd.f32 %v557, %v12157
      %v12218 = vadd.f32 %v558, %v12162
      %v12219 = vadd.f32 %v559, %v12165
      %v12220 = vadd.f32 %v560, %v12170
      %v12221 = vadd.f32 %v561, %v12173
      %v12222 = vadd.f32 %v562, %v12178
      %v12223 = vadd.f32 %v563, %v12181
      %v12224 = vadd.f32 %v564, %v12186
      %v12225 = vadd.f32 %v565, %v12189
      %v12226 = vadd.f32 %v566, %v12194
      %v12227 = vadd.f32 %v567, %v12197
      %v12228 = vadd.f32 %v568, %v12202
      %v12229 = vadd.f32 %v569, %v12205
      %v12230 = vadd.f32 %v570, %v12210
      %v12231 = vadd.f32 %v571, %v12213
      %v12232 = vld [vmem:[%s485] sm:$0x1]
      %v12233 = vmul.f32 %v12216, %v12216
      %v12234 = vmul.f32 %v12217, %v12217
      %v12235 = vmul.f32 %v12218, %v12218
      %v12236 = vmul.f32 %v12219, %v12219
      %v12237 = vmul.f32 %v12220, %v12220
      %v12238 = vmul.f32 %v12221, %v12221
      %v12239 = vmul.f32 %v12222, %v12222
      %v12240 = vmul.f32 %v12223, %v12223
      %v12241 = vmul.f32 %v12224, %v12224
      %v12242 = vmul.f32 %v12225, %v12225
      %v12243 = vmul.f32 %v12226, %v12226
      %v12244 = vmul.f32 %v12227, %v12227
      %v12245 = vmul.f32 %v12228, %v12228
      %v12246 = vmul.f32 %v12229, %v12229
      %v12247 = vmul.f32 %v12230, %v12230
      %v12248 = vmul.f32 %v12231, %v12231
      %v12249 = vsel %vm589, %v12233, 0.0
      %12250 = vadd.xlane.f32.xlu0 %v12249
      %v12251 = vpop.xlane.xlu0 %12250
      %v12252 = vsel %vm589, %v12234, 0.0
      %12253 = vadd.xlane.f32.xlu0 %v12252
      %v12254 = vpop.xlane.xlu0 %12253
      %v12255 = vsel %vm589, %v12235, 0.0
      %12256 = vadd.xlane.f32.xlu0 %v12255
      %v12257 = vpop.xlane.xlu0 %12256
      %v12258 = vsel %vm589, %v12236, 0.0
      %12259 = vadd.xlane.f32.xlu0 %v12258
      %v12260 = vpop.xlane.xlu0 %12259
      %v12261 = vsel %vm589, %v12237, 0.0
      %12262 = vadd.xlane.f32.xlu0 %v12261
      %v12263 = vpop.xlane.xlu0 %12262
      %v12264 = vsel %vm589, %v12238, 0.0
      %12265 = vadd.xlane.f32.xlu0 %v12264
      %v12266 = vpop.xlane.xlu0 %12265
      %v12267 = vsel %vm589, %v12239, 0.0
      %12268 = vadd.xlane.f32.xlu0 %v12267
      %v12269 = vpop.xlane.xlu0 %12268
      %v12270 = vsel %vm589, %v12240, 0.0
      %12271 = vadd.xlane.f32.xlu0 %v12270
      %v12272 = vpop.xlane.xlu0 %12271
      %v12273 = vsel %vm589, %v12241, 0.0
      %12274 = vadd.xlane.f32.xlu0 %v12273
      %v12275 = vpop.xlane.xlu0 %12274
      %v12276 = vsel %vm589, %v12242, 0.0
      %12277 = vadd.xlane.f32.xlu0 %v12276
      %v12278 = vpop.xlane.xlu0 %12277
      %v12279 = vsel %vm589, %v12243, 0.0
      %12280 = vadd.xlane.f32.xlu0 %v12279
      %v12281 = vpop.xlane.xlu0 %12280
      %v12282 = vsel %vm589, %v12244, 0.0
      %12283 = vadd.xlane.f32.xlu0 %v12282
      %v12284 = vpop.xlane.xlu0 %12283
      %v12285 = vsel %vm589, %v12245, 0.0
      %12286 = vadd.xlane.f32.xlu0 %v12285
      %v12287 = vpop.xlane.xlu0 %12286
      %v12288 = vsel %vm589, %v12246, 0.0
      %12289 = vadd.xlane.f32.xlu0 %v12288
      %v12290 = vpop.xlane.xlu0 %12289
      %v12291 = vsel %vm589, %v12247, 0.0
      %12292 = vadd.xlane.f32.xlu0 %v12291
      %v12293 = vpop.xlane.xlu0 %12292
      %v12294 = vsel %vm589, %v12248, 0.0
      %12295 = vadd.xlane.f32.xlu0 %v12294
      %v12296 = vpop.xlane.xlu0 %12295
      %v12297 = vmul.f32 %v12251, %v638
      %v12298 = vmul.f32 %v12254, %v638
      %v12299 = vmul.f32 %v12257, %v638
      %v12300 = vmul.f32 %v12260, %v638
      %v12301 = vmul.f32 %v12263, %v638
      %v12302 = vmul.f32 %v12266, %v638
      %v12303 = vmul.f32 %v12269, %v638
      %v12304 = vmul.f32 %v12272, %v638
      %v12305 = vmul.f32 %v12275, %v638
      %v12306 = vmul.f32 %v12278, %v638
      %v12307 = vmul.f32 %v12281, %v638
      %v12308 = vmul.f32 %v12284, %v638
      %v12309 = vmul.f32 %v12287, %v638
      %v12310 = vmul.f32 %v12290, %v638
      %v12311 = vmul.f32 %v12293, %v638
      %v12312 = vmul.f32 %v12296, %v638
      %v12313 = vadd.f32 %v12297, 1e-06
      %v12314 = vadd.f32 %v12298, 1e-06
      %v12315 = vadd.f32 %v12299, 1e-06
      %v12316 = vadd.f32 %v12300, 1e-06
      %v12317 = vadd.f32 %v12301, 1e-06
      %v12318 = vadd.f32 %v12302, 1e-06
      %v12319 = vadd.f32 %v12303, 1e-06
      %v12320 = vadd.f32 %v12304, 1e-06
      %v12321 = vadd.f32 %v12305, 1e-06
      %v12322 = vadd.f32 %v12306, 1e-06
      %v12323 = vadd.f32 %v12307, 1e-06
      %v12324 = vadd.f32 %v12308, 1e-06
      %v12325 = vadd.f32 %v12309, 1e-06
      %v12326 = vadd.f32 %v12310, 1e-06
      %v12327 = vadd.f32 %v12311, 1e-06
      %v12328 = vadd.f32 %v12312, 1e-06
      %v12329 = vrsqrt.pop %v12313
      %v12330 = vrsqrt.pop %v12314
      %v12331 = vrsqrt.pop %v12315
      %v12332 = vrsqrt.pop %v12316
      %v12333 = vrsqrt.pop %v12317
      %v12334 = vrsqrt.pop %v12318
      %v12335 = vrsqrt.pop %v12319
      %v12336 = vrsqrt.pop %v12320
      %v12337 = vrsqrt.pop %v12321
      %v12338 = vrsqrt.pop %v12322
      %v12339 = vrsqrt.pop %v12323
      %v12340 = vrsqrt.pop %v12324
      %v12341 = vrsqrt.pop %v12325
      %v12342 = vrsqrt.pop %v12326
      %v12343 = vrsqrt.pop %v12327
      %v12344 = vrsqrt.pop %v12328
      %v12345 = vmul.f32 %v12216, %v12329
      %v12346 = vmul.f32 %v12217, %v12330
      %v12347 = vmul.f32 %v12218, %v12331
      %v12348 = vmul.f32 %v12219, %v12332
      %v12349 = vmul.f32 %v12220, %v12333
      %v12350 = vmul.f32 %v12221, %v12334
      %v12351 = vmul.f32 %v12222, %v12335
      %v12352 = vmul.f32 %v12223, %v12336
      %v12353 = vmul.f32 %v12224, %v12337
      %v12354 = vmul.f32 %v12225, %v12338
      %v12355 = vmul.f32 %v12226, %v12339
      %v12356 = vmul.f32 %v12227, %v12340
      %v12357 = vmul.f32 %v12228, %v12341
      %v12358 = vmul.f32 %v12229, %v12342
      %v12359 = vmul.f32 %v12230, %v12343
      %v12360 = vmul.f32 %v12231, %v12344
      %v12362 = vlaneseq
      %v12363 = vshrl.u32 %v12362, 7
      %v12364 = vsub.s32 0, %v12363
      %v12365 = vrot.slane %v12232, %v12364
      %v12367 = vmul.f32 %v12345, %v12365
      %v12368 = vmul.f32 %v12346, %v12365
      %v12369 = vmul.f32 %v12347, %v12365
      %v12370 = vmul.f32 %v12348, %v12365
      %v12371 = vmul.f32 %v12349, %v12365
      %v12372 = vmul.f32 %v12350, %v12365
      %v12373 = vmul.f32 %v12351, %v12365
      %v12374 = vmul.f32 %v12352, %v12365
      %v12375 = vmul.f32 %v12353, %v12365
      %v12376 = vmul.f32 %v12354, %v12365
      %v12377 = vmul.f32 %v12355, %v12365
      %v12378 = vmul.f32 %v12356, %v12365
      %v12379 = vmul.f32 %v12357, %v12365
      %v12380 = vmul.f32 %v12358, %v12365
      %v12381 = vmul.f32 %v12359, %v12365
      %v12382 = vmul.f32 %v12360, %v12365
      %v12383 = vpack.c.bf16 %v12368, %v12367
      %v12384 = vpack.c.bf16 %v12370, %v12369
      %v12385 = vpack.c.bf16 %v12372, %v12371
      %v12386 = vpack.c.bf16 %v12374, %v12373
      %v12387 = vpack.c.bf16 %v12376, %v12375
      %v12388 = vpack.c.bf16 %v12378, %v12377
      %v12389 = vpack.c.bf16 %v12380, %v12379
      %v12390 = vpack.c.bf16 %v12382, %v12381
      %v12391 = vld [vmem:[%s490] sm:$0xf]
      %v12392 = vld [vmem:[%s490 + $0x4] sm:$0xf]
      %v12393 = vld [vmem:[%s490 + $0x8] sm:$0xf]
      %v12394 = vld [vmem:[%s490 + $0xc] sm:$0xf]
      %v12399 = vunpack.c.l.b16 %v12391
      %v12400 = vunpack.c.l.b16 %v12392
      %v12401 = vunpack.c.l.b16 %v12393
      %v12402 = vunpack.c.l.b16 %v12394
      %v12403 = vpack.c.b16 %v12400, %v12399
      %v12404 = vpack.c.b16 %v12402, %v12401
      %v12408 = vsel %vm589, %v12383, 0
      %v12411 = vsel %vm589, %v12384, 0
      %v12414 = vsel %vm589, %v12385, 0
      %v12417 = vsel %vm589, %v12386, 0
      %v12420 = vsel %vm589, %v12387, 0
      %v12423 = vsel %vm589, %v12388, 0
      %v12426 = vsel %vm589, %v12389, 0
      %v12429 = vsel %vm589, %v12390, 0
      %12431 = vmatprep.subr.bf16.mxu0 0
      %12432 = vmatpush1.bf16.msra.mxu0 0
      %12433 = vmatprep.subr.bf16.mxu0 0
      %12434 = vmatpush1.bf16.msra.mxu0 0
      %12435 = vmatprep.subr.bf16.mxu0 0
      %12436 = vmatpush1.bf16.msra.mxu0 0
      %12437 = vmatprep.subr.bf16.mxu0 0
      %12438 = vmatpush1.bf16.msra.mxu0 0
      %12439 = vmatprep.subr.bf16.mxu0 0
      %12440 = vmatpush1.bf16.msra.mxu0 0
      %12441 = vmatprep.subr.bf16.mxu0 0
      %12442 = vmatpush1.bf16.msra.mxu0 0
      %12443 = vmatprep.subr.bf16.mxu0 0
      %12444 = vmatpush1.bf16.msra.mxu0 %v12404
      %12445 = vmatprep.subr.bf16.mxu0 0
      %12446 = vmatpush1.bf16.msra.mxu0 %v12403
      %12447 = vmatprep.subr.bf16.mxu0 0
      %12448 = vmatpush2.bf16.msra.mxu0 0
      %12449 = vmatprep.subr.bf16.mxu0 0
      %12450 = vmatpush2.bf16.msra.mxu0 0
      %12451 = vmatprep.subr.bf16.mxu0 0
      %12452 = vmatpush2.bf16.msra.mxu0 0
      %12453 = vmatprep.subr.bf16.mxu0 0
      %12454 = vmatpush2.bf16.msra.mxu0 0
      %12455 = vmatprep.subr.bf16.mxu0 0
      %12456 = vmatpush2.bf16.msra.mxu0 0
      %12457 = vmatprep.subr.bf16.mxu0 0
      %12458 = vmatpush2.bf16.msra.mxu0 0
      %12459 = vmatprep.subr.bf16.mxu0 0
      %12460 = vmatpush2.bf16.msra.mxu0 0
      %12461 = vmatprep.subr.bf16.mxu0 0
      %12462 = vmatpush2.bf16.msra.mxu0 0
      %12463 = vmatprep.mubr.bf16.mxu0 0
      %12464 = vmatmul.mubr.bf16.gmra.mxu0 %v12408
      %v12465 = vpop.f32.mrf.mxu0
      %v12466 = vadd.f32 0.0, %v12465
      %v12467 = vpop.f32.mrf.mxu0
      %v12468 = vpop.f32.mrf.mxu0
      %v12469 = vadd.f32 0.0, %v12468
      %v12470 = vpop.f32.mrf.mxu0
      %12471 = vmatprep.mubr.bf16.mxu0 0
      %12472 = vmatmul.mubr.bf16.gmra.mxu0 %v12411
      %v12473 = vpop.f32.mrf.mxu0
      %v12474 = vadd.f32 0.0, %v12473
      %v12475 = vpop.f32.mrf.mxu0
      %v12476 = vpop.f32.mrf.mxu0
      %v12477 = vadd.f32 0.0, %v12476
      %v12478 = vpop.f32.mrf.mxu0
      %12479 = vmatprep.mubr.bf16.mxu0 0
      %12480 = vmatmul.mubr.bf16.gmra.mxu0 %v12414
      %v12481 = vpop.f32.mrf.mxu0
      %v12482 = vadd.f32 0.0, %v12481
      %v12483 = vpop.f32.mrf.mxu0
      %v12484 = vpop.f32.mrf.mxu0
      %v12485 = vadd.f32 0.0, %v12484
      %v12486 = vpop.f32.mrf.mxu0
      %12487 = vmatprep.mubr.bf16.mxu0 0
      %12488 = vmatmul.mubr.bf16.gmra.mxu0 %v12417
      %v12489 = vpop.f32.mrf.mxu0
      %v12490 = vadd.f32 0.0, %v12489
      %v12491 = vpop.f32.mrf.mxu0
      %v12492 = vpop.f32.mrf.mxu0
      %v12493 = vadd.f32 0.0, %v12492
      %v12494 = vpop.f32.mrf.mxu0
      %12495 = vmatprep.mubr.bf16.mxu0 0
      %12496 = vmatmul.mubr.bf16.gmra.mxu0 %v12420
      %v12497 = vpop.f32.mrf.mxu0
      %v12498 = vadd.f32 0.0, %v12497
      %v12499 = vpop.f32.mrf.mxu0
      %v12500 = vpop.f32.mrf.mxu0
      %v12501 = vadd.f32 0.0, %v12500
      %v12502 = vpop.f32.mrf.mxu0
      %12503 = vmatprep.mubr.bf16.mxu0 0
      %12504 = vmatmul.mubr.bf16.gmra.mxu0 %v12423
      %v12505 = vpop.f32.mrf.mxu0
      %v12506 = vadd.f32 0.0, %v12505
      %v12507 = vpop.f32.mrf.mxu0
      %v12508 = vpop.f32.mrf.mxu0
      %v12509 = vadd.f32 0.0, %v12508
      %v12510 = vpop.f32.mrf.mxu0
      %12511 = vmatprep.mubr.bf16.mxu0 0
      %12512 = vmatmul.mubr.bf16.gmra.mxu0 %v12426
      %v12513 = vpop.f32.mrf.mxu0
      %v12514 = vadd.f32 0.0, %v12513
      %v12515 = vpop.f32.mrf.mxu0
      %v12516 = vpop.f32.mrf.mxu0
      %v12517 = vadd.f32 0.0, %v12516
      %v12518 = vpop.f32.mrf.mxu0
      %12519 = vmatprep.mubr.bf16.mxu0 0
      %12520 = vmatmul.mubr.bf16.gmra.mxu0 %v12429
      %v12521 = vpop.f32.mrf.mxu0
      %v12522 = vadd.f32 0.0, %v12521
      %v12523 = vpop.f32.mrf.mxu0
      %v12524 = vpop.f32.mrf.mxu0
      %v12525 = vadd.f32 0.0, %v12524
      %v12526 = vpop.f32.mrf.mxu0
      %12527 = vdwg.mxu0
      %v12528 = vmax.f32 %v12466, 0.0
      %v12529 = vmax.f32 %v12469, 0.0
      %v12530 = vmax.f32 %v12474, 0.0
      %v12531 = vmax.f32 %v12477, 0.0
      %v12532 = vmax.f32 %v12482, 0.0
      %v12533 = vmax.f32 %v12485, 0.0
      %v12534 = vmax.f32 %v12490, 0.0
      %v12535 = vmax.f32 %v12493, 0.0
      %v12536 = vmax.f32 %v12498, 0.0
      %v12537 = vmax.f32 %v12501, 0.0
      %v12538 = vmax.f32 %v12506, 0.0
      %v12539 = vmax.f32 %v12509, 0.0
      %v12540 = vmax.f32 %v12514, 0.0
      %v12541 = vmax.f32 %v12517, 0.0
      %v12542 = vmax.f32 %v12522, 0.0
      %v12543 = vmax.f32 %v12525, 0.0
      %v12544 = vpack.c.bf16 %v12529, %v12528
      %v12545 = vpack.c.bf16 %v12531, %v12530
      %v12546 = vpack.c.bf16 %v12533, %v12532
      %v12547 = vpack.c.bf16 %v12535, %v12534
      %v12548 = vpack.c.bf16 %v12537, %v12536
      %v12549 = vpack.c.bf16 %v12539, %v12538
      %v12550 = vpack.c.bf16 %v12541, %v12540
      %v12551 = vpack.c.bf16 %v12543, %v12542
      %v12552 = vld [vmem:[%s495] sm:$0xf]
      %v12553 = vld [vmem:[%s495 + $0x4] sm:$0xf]
      %v12554 = vld [vmem:[%s495 + $0x8] sm:$0xf]
      %v12555 = vld [vmem:[%s495 + $0xc] sm:$0xf]
      %v12556 = vld [vmem:[%s495 + $0x10] sm:$0xf]
      %v12557 = vld [vmem:[%s495 + $0x14] sm:$0xf]
      %v12558 = vld [vmem:[%s495 + $0x18] sm:$0xf]
      %v12559 = vld [vmem:[%s495 + $0x1c] sm:$0xf]
      %v12568 = vunpack.c.l.b16 %v12552
      %v12569 = vunpack.c.l.b16 %v12553
      %v12570 = vunpack.c.l.b16 %v12554
      %v12571 = vunpack.c.l.b16 %v12555
      %v12572 = vunpack.c.l.b16 %v12556
      %v12573 = vunpack.c.l.b16 %v12557
      %v12574 = vunpack.c.l.b16 %v12558
      %v12575 = vunpack.c.l.b16 %v12559
      %v12576 = vpack.c.b16 %v12569, %v12568
      %v12577 = vpack.c.b16 %v12571, %v12570
      %v12578 = vpack.c.b16 %v12573, %v12572
      %v12579 = vpack.c.b16 %v12575, %v12574
      %vm12584 = vcmask 523264
      %v12586 = vsel %vm12584, %v12544, 0
      %v12589 = vsel %vm12584, %v12545, 0
      %v12592 = vsel %vm12584, %v12546, 0
      %v12595 = vsel %vm12584, %v12547, 0
      %v12598 = vsel %vm12584, %v12548, 0
      %v12601 = vsel %vm12584, %v12549, 0
      %v12604 = vsel %vm12584, %v12550, 0
      %v12607 = vsel %vm12584, %v12551, 0
      %12609 = vmatprep.subr.bf16.mxu0 0
      %12610 = vmatpush1.bf16.msra.mxu0 0
      %12611 = vmatprep.subr.bf16.mxu0 0
      %12612 = vmatpush1.bf16.msra.mxu0 0
      %12613 = vmatprep.subr.bf16.mxu0 0
      %12614 = vmatpush1.bf16.msra.mxu0 0
      %12615 = vmatprep.subr.bf16.mxu0 0
      %12616 = vmatpush1.bf16.msra.mxu0 0
      %12617 = vmatprep.subr.bf16.mxu0 0
      %12618 = vmatpush1.bf16.msra.mxu0 %v12579
      %12619 = vmatprep.subr.bf16.mxu0 0
      %12620 = vmatpush1.bf16.msra.mxu0 %v12578
      %12621 = vmatprep.subr.bf16.mxu0 0
      %12622 = vmatpush1.bf16.msra.mxu0 %v12577
      %12623 = vmatprep.subr.bf16.mxu0 0
      %12624 = vmatpush1.bf16.msra.mxu0 %v12576
      %12625 = vmatprep.subr.bf16.mxu0 0
      %12626 = vmatpush2.bf16.msra.mxu0 0
      %12627 = vmatprep.subr.bf16.mxu0 0
      %12628 = vmatpush2.bf16.msra.mxu0 0
      %12629 = vmatprep.subr.bf16.mxu0 0
      %12630 = vmatpush2.bf16.msra.mxu0 0
      %12631 = vmatprep.subr.bf16.mxu0 0
      %12632 = vmatpush2.bf16.msra.mxu0 0
      %12633 = vmatprep.subr.bf16.mxu0 0
      %12634 = vmatpush2.bf16.msra.mxu0 0
      %12635 = vmatprep.subr.bf16.mxu0 0
      %12636 = vmatpush2.bf16.msra.mxu0 0
      %12637 = vmatprep.subr.bf16.mxu0 0
      %12638 = vmatpush2.bf16.msra.mxu0 0
      %12639 = vmatprep.subr.bf16.mxu0 0
      %12640 = vmatpush2.bf16.msra.mxu0 0
      %12641 = vmatprep.mubr.bf16.mxu0 0
      %12642 = vmatmul.mubr.bf16.gmra.mxu0 %v12586
      %v12643 = vpop.f32.mrf.mxu0
      %v12644 = vadd.f32 0.0, %v12643
      %v12645 = vpop.f32.mrf.mxu0
      %v12646 = vpop.f32.mrf.mxu0
      %v12647 = vadd.f32 0.0, %v12646
      %v12648 = vpop.f32.mrf.mxu0
      %12649 = vmatprep.mubr.bf16.mxu0 0
      %12650 = vmatmul.mubr.bf16.gmra.mxu0 %v12589
      %v12651 = vpop.f32.mrf.mxu0
      %v12652 = vadd.f32 0.0, %v12651
      %v12653 = vpop.f32.mrf.mxu0
      %v12654 = vpop.f32.mrf.mxu0
      %v12655 = vadd.f32 0.0, %v12654
      %v12656 = vpop.f32.mrf.mxu0
      %12657 = vmatprep.mubr.bf16.mxu0 0
      %12658 = vmatmul.mubr.bf16.gmra.mxu0 %v12592
      %v12659 = vpop.f32.mrf.mxu0
      %v12660 = vadd.f32 0.0, %v12659
      %v12661 = vpop.f32.mrf.mxu0
      %v12662 = vpop.f32.mrf.mxu0
      %v12663 = vadd.f32 0.0, %v12662
      %v12664 = vpop.f32.mrf.mxu0
      %12665 = vmatprep.mubr.bf16.mxu0 0
      %12666 = vmatmul.mubr.bf16.gmra.mxu0 %v12595
      %v12667 = vpop.f32.mrf.mxu0
      %v12668 = vadd.f32 0.0, %v12667
      %v12669 = vpop.f32.mrf.mxu0
      %v12670 = vpop.f32.mrf.mxu0
      %v12671 = vadd.f32 0.0, %v12670
      %v12672 = vpop.f32.mrf.mxu0
      %12673 = vmatprep.mubr.bf16.mxu0 0
      %12674 = vmatmul.mubr.bf16.gmra.mxu0 %v12598
      %v12675 = vpop.f32.mrf.mxu0
      %v12676 = vadd.f32 0.0, %v12675
      %v12677 = vpop.f32.mrf.mxu0
      %v12678 = vpop.f32.mrf.mxu0
      %v12679 = vadd.f32 0.0, %v12678
      %v12680 = vpop.f32.mrf.mxu0
      %12681 = vmatprep.mubr.bf16.mxu0 0
      %12682 = vmatmul.mubr.bf16.gmra.mxu0 %v12601
      %v12683 = vpop.f32.mrf.mxu0
      %v12684 = vadd.f32 0.0, %v12683
      %v12685 = vpop.f32.mrf.mxu0
      %v12686 = vpop.f32.mrf.mxu0
      %v12687 = vadd.f32 0.0, %v12686
      %v12688 = vpop.f32.mrf.mxu0
      %12689 = vmatprep.mubr.bf16.mxu0 0
      %12690 = vmatmul.mubr.bf16.gmra.mxu0 %v12604
      %v12691 = vpop.f32.mrf.mxu0
      %v12692 = vadd.f32 0.0, %v12691
      %v12693 = vpop.f32.mrf.mxu0
      %v12694 = vpop.f32.mrf.mxu0
      %v12695 = vadd.f32 0.0, %v12694
      %v12696 = vpop.f32.mrf.mxu0
      %12697 = vmatprep.mubr.bf16.mxu0 0
      %12698 = vmatmul.mubr.bf16.gmra.mxu0 %v12607
      %v12699 = vpop.f32.mrf.mxu0
      %v12700 = vadd.f32 0.0, %v12699
      %v12701 = vpop.f32.mrf.mxu0
      %v12702 = vpop.f32.mrf.mxu0
      %v12703 = vadd.f32 0.0, %v12702
      %v12704 = vpop.f32.mrf.mxu0
      %12705 = vdwg.mxu0
      %v12706 = vadd.f32 %v12216, %v12644
      %v12707 = vadd.f32 %v12217, %v12647
      %v12708 = vadd.f32 %v12218, %v12652
      %v12709 = vadd.f32 %v12219, %v12655
      %v12710 = vadd.f32 %v12220, %v12660
      %v12711 = vadd.f32 %v12221, %v12663
      %v12712 = vadd.f32 %v12222, %v12668
      %v12713 = vadd.f32 %v12223, %v12671
      %v12714 = vadd.f32 %v12224, %v12676
      %v12715 = vadd.f32 %v12225, %v12679
      %v12716 = vadd.f32 %v12226, %v12684
      %v12717 = vadd.f32 %v12227, %v12687
      %v12718 = vadd.f32 %v12228, %v12692
      %v12719 = vadd.f32 %v12229, %v12695
      %v12720 = vadd.f32 %v12230, %v12700
      %v12721 = vadd.f32 %v12231, %v12703
      %p12722 = scmp.lt.s32.totalorder %s26, 1
      // Predicated region
      $region65: #{tpu_custom_call.1} parent=59 // pred_check
        %p12723 = pneg %p12722
      $region66: #{tpu_custom_call.1} parent=59 // pred_check_branch
        %12725 = sbr.rel (%p12723) target = $region68
      $region67: #{tpu_custom_call.1} parent=59 // pred_region
        %12726 = vst.msk [vmem:[%s500] sm:$0xff] %vm589, %v12706
        %12727 = vst.msk [vmem:[%s500 + $0x8] sm:$0xff] %vm589, %v12707
        %12728 = vst.msk [vmem:[%s500 + $0x10] sm:$0xff] %vm589, %v12708
        %12729 = vst.msk [vmem:[%s500 + $0x18] sm:$0xff] %vm589, %v12709
        %12730 = vst.msk [vmem:[%s500 + $0x20] sm:$0xff] %vm589, %v12710
        %12731 = vst.msk [vmem:[%s500 + $0x28] sm:$0xff] %vm589, %v12711
        %12732 = vst.msk [vmem:[%s500 + $0x30] sm:$0xff] %vm589, %v12712
        %12733 = vst.msk [vmem:[%s500 + $0x38] sm:$0xff] %vm589, %v12713
        %12734 = vst.msk [vmem:[%s500 + $0x40] sm:$0xff] %vm589, %v12714
        %12735 = vst.msk [vmem:[%s500 + $0x48] sm:$0xff] %vm589, %v12715
        %12736 = vst.msk [vmem:[%s500 + $0x50] sm:$0xff] %vm589, %v12716
        %12737 = vst.msk [vmem:[%s500 + $0x58] sm:$0xff] %vm589, %v12717
        %12738 = vst.msk [vmem:[%s500 + $0x60] sm:$0xff] %vm589, %v12718
        %12739 = vst.msk [vmem:[%s500 + $0x68] sm:$0xff] %vm589, %v12719
        %12740 = vst.msk [vmem:[%s500 + $0x70] sm:$0xff] %vm589, %v12720
        %12741 = vst.msk [vmem:[%s500 + $0x78] sm:$0xff] %vm589, %v12721
      $region68: #{tpu_custom_call.1} parent=59 // pred_fallthru
        _
      %p12742 = scmp.eq.s32.totalorder %s26, 1
      // Predicated region
      $region69: #{tpu_custom_call.1} parent=59 // pred_check
        %p12743 = pneg %p12742
      $region70: #{tpu_custom_call.1} parent=59 // pred_check_branch
        %12745 = sbr.rel (%p12743) target = $region72
      $region71: #{tpu_custom_call.1} parent=59 // pred_region
        %v12746 = vld [vmem:[%s9] sm:$0x1]
        %v12747 = vmul.f32 %v12706, %v12706
        %v12748 = vmul.f32 %v12707, %v12707
        %v12749 = vmul.f32 %v12708, %v12708
        %v12750 = vmul.f32 %v12709, %v12709
        %v12751 = vmul.f32 %v12710, %v12710
        %v12752 = vmul.f32 %v12711, %v12711
        %v12753 = vmul.f32 %v12712, %v12712
        %v12754 = vmul.f32 %v12713, %v12713
        %v12755 = vmul.f32 %v12714, %v12714
        %v12756 = vmul.f32 %v12715, %v12715
        %v12757 = vmul.f32 %v12716, %v12716
        %v12758 = vmul.f32 %v12717, %v12717
        %v12759 = vmul.f32 %v12718, %v12718
        %v12760 = vmul.f32 %v12719, %v12719
        %v12761 = vmul.f32 %v12720, %v12720
        %v12762 = vmul.f32 %v12721, %v12721
        %v12763 = vsel %vm589, %v12747, 0.0
        %12764 = vadd.xlane.f32.xlu0 %v12763
        %v12765 = vpop.xlane.xlu0 %12764
        %v12766 = vsel %vm589, %v12748, 0.0
        %12767 = vadd.xlane.f32.xlu0 %v12766
        %v12768 = vpop.xlane.xlu0 %12767
        %v12769 = vsel %vm589, %v12749, 0.0
        %12770 = vadd.xlane.f32.xlu0 %v12769
        %v12771 = vpop.xlane.xlu0 %12770
        %v12772 = vsel %vm589, %v12750, 0.0
        %12773 = vadd.xlane.f32.xlu0 %v12772
        %v12774 = vpop.xlane.xlu0 %12773
        %v12775 = vsel %vm589, %v12751, 0.0
        %12776 = vadd.xlane.f32.xlu0 %v12775
        %v12777 = vpop.xlane.xlu0 %12776
        %v12778 = vsel %vm589, %v12752, 0.0
        %12779 = vadd.xlane.f32.xlu0 %v12778
        %v12780 = vpop.xlane.xlu0 %12779
        %v12781 = vsel %vm589, %v12753, 0.0
        %12782 = vadd.xlane.f32.xlu0 %v12781
        %v12783 = vpop.xlane.xlu0 %12782
        %v12784 = vsel %vm589, %v12754, 0.0
        %12785 = vadd.xlane.f32.xlu0 %v12784
        %v12786 = vpop.xlane.xlu0 %12785
        %v12787 = vsel %vm589, %v12755, 0.0
        %12788 = vadd.xlane.f32.xlu0 %v12787
        %v12789 = vpop.xlane.xlu0 %12788
        %v12790 = vsel %vm589, %v12756, 0.0
        %12791 = vadd.xlane.f32.xlu0 %v12790
        %v12792 = vpop.xlane.xlu0 %12791
        %v12793 = vsel %vm589, %v12757, 0.0
        %12794 = vadd.xlane.f32.xlu0 %v12793
        %v12795 = vpop.xlane.xlu0 %12794
        %v12796 = vsel %vm589, %v12758, 0.0
        %12797 = vadd.xlane.f32.xlu0 %v12796
        %v12798 = vpop.xlane.xlu0 %12797
        %v12799 = vsel %vm589, %v12759, 0.0
        %12800 = vadd.xlane.f32.xlu0 %v12799
        %v12801 = vpop.xlane.xlu0 %12800
        %v12802 = vsel %vm589, %v12760, 0.0
        %12803 = vadd.xlane.f32.xlu0 %v12802
        %v12804 = vpop.xlane.xlu0 %12803
        %v12805 = vsel %vm589, %v12761, 0.0
        %12806 = vadd.xlane.f32.xlu0 %v12805
        %v12807 = vpop.xlane.xlu0 %12806
        %v12808 = vsel %vm589, %v12762, 0.0
        %12809 = vadd.xlane.f32.xlu0 %v12808
        %v12810 = vpop.xlane.xlu0 %12809
        %v12811 = vmul.f32 %v12765, %v638
        %v12812 = vmul.f32 %v12768, %v638
        %v12813 = vmul.f32 %v12771, %v638
        %v12814 = vmul.f32 %v12774, %v638
        %v12815 = vmul.f32 %v12777, %v638
        %v12816 = vmul.f32 %v12780, %v638
        %v12817 = vmul.f32 %v12783, %v638
        %v12818 = vmul.f32 %v12786, %v638
        %v12819 = vmul.f32 %v12789, %v638
        %v12820 = vmul.f32 %v12792, %v638
        %v12821 = vmul.f32 %v12795, %v638
        %v12822 = vmul.f32 %v12798, %v638
        %v12823 = vmul.f32 %v12801, %v638
        %v12824 = vmul.f32 %v12804, %v638
        %v12825 = vmul.f32 %v12807, %v638
        %v12826 = vmul.f32 %v12810, %v638
        %v12827 = vadd.f32 %v12811, 1e-06
        %v12828 = vadd.f32 %v12812, 1e-06
        %v12829 = vadd.f32 %v12813, 1e-06
        %v12830 = vadd.f32 %v12814, 1e-06
        %v12831 = vadd.f32 %v12815, 1e-06
        %v12832 = vadd.f32 %v12816, 1e-06
        %v12833 = vadd.f32 %v12817, 1e-06
        %v12834 = vadd.f32 %v12818, 1e-06
        %v12835 = vadd.f32 %v12819, 1e-06
        %v12836 = vadd.f32 %v12820, 1e-06
        %v12837 = vadd.f32 %v12821, 1e-06
        %v12838 = vadd.f32 %v12822, 1e-06
        %v12839 = vadd.f32 %v12823, 1e-06
        %v12840 = vadd.f32 %v12824, 1e-06
        %v12841 = vadd.f32 %v12825, 1e-06
        %v12842 = vadd.f32 %v12826, 1e-06
        %v12843 = vrsqrt.pop %v12827
        %v12844 = vrsqrt.pop %v12828
        %v12845 = vrsqrt.pop %v12829
        %v12846 = vrsqrt.pop %v12830
        %v12847 = vrsqrt.pop %v12831
        %v12848 = vrsqrt.pop %v12832
        %v12849 = vrsqrt.pop %v12833
        %v12850 = vrsqrt.pop %v12834
        %v12851 = vrsqrt.pop %v12835
        %v12852 = vrsqrt.pop %v12836
        %v12853 = vrsqrt.pop %v12837
        %v12854 = vrsqrt.pop %v12838
        %v12855 = vrsqrt.pop %v12839
        %v12856 = vrsqrt.pop %v12840
        %v12857 = vrsqrt.pop %v12841
        %v12858 = vrsqrt.pop %v12842
        %v12859 = vmul.f32 %v12706, %v12843
        %v12860 = vmul.f32 %v12707, %v12844
        %v12861 = vmul.f32 %v12708, %v12845
        %v12862 = vmul.f32 %v12709, %v12846
        %v12863 = vmul.f32 %v12710, %v12847
        %v12864 = vmul.f32 %v12711, %v12848
        %v12865 = vmul.f32 %v12712, %v12849
        %v12866 = vmul.f32 %v12713, %v12850
        %v12867 = vmul.f32 %v12714, %v12851
        %v12868 = vmul.f32 %v12715, %v12852
        %v12869 = vmul.f32 %v12716, %v12853
        %v12870 = vmul.f32 %v12717, %v12854
        %v12871 = vmul.f32 %v12718, %v12855
        %v12872 = vmul.f32 %v12719, %v12856
        %v12873 = vmul.f32 %v12720, %v12857
        %v12874 = vmul.f32 %v12721, %v12858
        %v12876 = vlaneseq
        %v12877 = vshrl.u32 %v12876, 7
        %v12878 = vsub.s32 0, %v12877
        %v12879 = vrot.slane %v12746, %v12878
        %v12881 = vmul.f32 %v12859, %v12879
        %v12882 = vmul.f32 %v12860, %v12879
        %v12883 = vmul.f32 %v12861, %v12879
        %v12884 = vmul.f32 %v12862, %v12879
        %v12885 = vmul.f32 %v12863, %v12879
        %v12886 = vmul.f32 %v12864, %v12879
        %v12887 = vmul.f32 %v12865, %v12879
        %v12888 = vmul.f32 %v12866, %v12879
        %v12889 = vmul.f32 %v12867, %v12879
        %v12890 = vmul.f32 %v12868, %v12879
        %v12891 = vmul.f32 %v12869, %v12879
        %v12892 = vmul.f32 %v12870, %v12879
        %v12893 = vmul.f32 %v12871, %v12879
        %v12894 = vmul.f32 %v12872, %v12879
        %v12895 = vmul.f32 %v12873, %v12879
        %v12896 = vmul.f32 %v12874, %v12879
        %12897 = vst.msk [vmem:[%s500] sm:$0xff] %vm589, %v12881
        %12898 = vst.msk [vmem:[%s500 + $0x8] sm:$0xff] %vm589, %v12882
        %12899 = vst.msk [vmem:[%s500 + $0x10] sm:$0xff] %vm589, %v12883
        %12900 = vst.msk [vmem:[%s500 + $0x18] sm:$0xff] %vm589, %v12884
        %12901 = vst.msk [vmem:[%s500 + $0x20] sm:$0xff] %vm589, %v12885
        %12902 = vst.msk [vmem:[%s500 + $0x28] sm:$0xff] %vm589, %v12886
        %12903 = vst.msk [vmem:[%s500 + $0x30] sm:$0xff] %vm589, %v12887
        %12904 = vst.msk [vmem:[%s500 + $0x38] sm:$0xff] %vm589, %v12888
        %12905 = vst.msk [vmem:[%s500 + $0x40] sm:$0xff] %vm589, %v12889
        %12906 = vst.msk [vmem:[%s500 + $0x48] sm:$0xff] %vm589, %v12890
        %12907 = vst.msk [vmem:[%s500 + $0x50] sm:$0xff] %vm589, %v12891
        %12908 = vst.msk [vmem:[%s500 + $0x58] sm:$0xff] %vm589, %v12892
        %12909 = vst.msk [vmem:[%s500 + $0x60] sm:$0xff] %vm589, %v12893
        %12910 = vst.msk [vmem:[%s500 + $0x68] sm:$0xff] %vm589, %v12894
        %12911 = vst.msk [vmem:[%s500 + $0x70] sm:$0xff] %vm589, %v12895
        %12912 = vst.msk [vmem:[%s500 + $0x78] sm:$0xff] %vm589, %v12896
      $region72: #{tpu_custom_call.1} parent=59 // pred_fallthru
        _
      %s12913 = smul.u32 16, %s25
      %p12914 = scmp.lt.s32.totalorder %s12913, 15
      %s12915 = scalar_select %p12914, %s12913, 15
      %s12916 = smul.addr %s12915, 8
      %s12917 = scalar_lea.vmem %s10, %s12916
      // Predicated region
      $region73: #{tpu_custom_call.1} parent=59 // pred_check
        %p12918 = pneg %p301
      $region74: #{tpu_custom_call.1} parent=59 // pred_check_branch
        %12920 = sbr.rel (%p12918) target = $region76
      $region75: #{tpu_custom_call.1} parent=59 // pred_region
        %s12921 = smul.u32 16, %s25
      $region76: #{tpu_custom_call.1} parent=59 // pred_fallthru
        _
      // Predicated region
      $region77: #{tpu_custom_call.1} parent=59 // pred_check
        %p12922 = pneg %p301
      $region78: #{tpu_custom_call.1} parent=59 // pred_check_branch
        %12924 = sbr.rel (%p12922) target = $region80
      $region79: #{tpu_custom_call.1} parent=59 // pred_region
        %s12925 = smul.u32 16, %s25
        %p12926 = scmp.lt.s32.totalorder %s12925, 15
        %s12927 = scalar_select %p12926, %s12925, 15
        %s12928 = smul.addr %s12927, 8
        %s12929 = scalar_lea.vmem %s10, %s12928
      $region80: #{tpu_custom_call.1} parent=59 // pred_fallthru
        _
    $region60: #{tpu_custom_call.1} parent=5 // pred_fallthru
      _
    %p12930 = scmp.le.s32.totalorder 2, %s16
    // Predicated region
    $region81: #{tpu_custom_call.1} parent=5 // pred_check
      %p12931 = pneg %p12930
    $region82: #{tpu_custom_call.1} parent=5 // pred_check_branch
      %12933 = sbr.rel (%p12931) target = $region84
    $region83: #{tpu_custom_call.1} parent=5 // pred_region
      %s12934 = ssub.s32 %s16, 2
    $region84: #{tpu_custom_call.1} parent=5 // pred_fallthru
      _
  $region6: #{tpu_custom_call.1} parent=0 // loop_footer
    %s20 = sadd.s32 1, %s16
  $region7: #{tpu_custom_call.1} parent=0 // loop_footer_branch
    %15 = sbr.rel target = $region3
  $region8: #{tpu_custom_call.1} parent=0 // loop_exit
    _

</llo_original>
